<compile_context>
chip_gen: v7x
topology: tpu7x:2x2x1
jax: 0.10.0
libtpu: 0.0.40
codegen_flags: <defaults>
</compile_context>

<pallas_src>
import functools

import jax
import jax.numpy as jnp
from jax import lax
from jax.experimental import pallas as pl
from jax.experimental.pallas import tpu as pltpu

C_IN = 24
C_OUT = 96
N_PAIRS = 28                       # the "28" axis (row pairs)
W_ROW = 112                        # one row of the (28, 112) view:  o*56 + m
W_HALF = 56                        # the m axis (original W)
KT = 3                             # conv taps along the 28-axis
FLAT_OUT = N_PAIRS * W_ROW         # 3136 = 56*56  (lane-dense output width)
SLAB = (N_PAIRS + 2) * W_ROW       # 3360: zero halo row above/below for the conv
HALO = 64                          # lane halo so shifted window reads stay in bounds
XQ_W = HALO + SLAB + HALO          # 3488

# TODO(synk): the PyTorch module samples a random +/-1 shift at construction
# time; here `shift` is a static argument (both values exercised in __main__).


def _fused_kernel(x_ref, w_ref, o_ref, xq_ref, xp_ref, *, shift):
    # x_ref : (24, 3136)  raw input, lane index = n*112 + o*56 + m
    # w_ref : (3, 96, 24) per-tap weights
    # o_ref : (96, 3136)  lane-dense output, lane index = h*56 + w
    # xq_ref: (24, 3488)  scratch: [halo | pad row | 28 n-rolled rows | pad row | halo]
    # xp_ref: (24, 3360)  scratch: fully rolled + zero-padded conv slab

    # ---- zero halos + conv padding rows -------------------------------------
    xq_ref[:, 0:HALO + W_ROW] = jnp.zeros((C_IN, HALO + W_ROW), jnp.float32)
    xq_ref[:, HALO + SLAB - W_ROW:XQ_W] = jnp.zeros((C_IN, HALO + W_ROW),
                                                    jnp.float32)

    d0 = HALO + W_ROW                       # first data lane inside xq (=176)
    if shift == 1:
        # n-rolled row n holds x row (n-1) mod 28
        xq_ref[:, d0 + W_ROW:d0 + FLAT_OUT] = x_ref[:, 0:FLAT_OUT - W_ROW]
        xq_ref[:, d0:d0 + W_ROW] = x_ref[:, FLAT_OUT - W_ROW:FLAT_OUT]
        off_main, off_bnd, bnd_m = -1, W_HALF - 1, 0
    else:
        # n-rolled row n holds x row (n+1) mod 28
        xq_ref[:, d0:d0 + FLAT_OUT - W_ROW] = x_ref[:, W_ROW:FLAT_OUT]
        xq_ref[:, d0 + FLAT_OUT - W_ROW:d0 + FLAT_OUT] = x_ref[:, 0:W_ROW]
        off_main, off_bnd, bnd_m = 1, -(W_HALF - 1), W_HALF - 1

    # ---- W-roll (within every 56-lane group), writing the padded slab -------
    # slab lane L' has m = L' % 56;  boundary lanes wrap inside their group.
    lane = lax.broadcasted_iota(jnp.int32, (C_IN, SLAB), 1)
    is_bnd = (lane % W_HALF) == bnd_m
    main = xq_ref[:, HALO + off_main:HALO + off_main + SLAB]
    bnd = xq_ref[:, HALO + off_bnd:HALO + off_bnd + SLAB]
    xp_ref[...] = jnp.where(is_bnd, bnd, main)

    # ---- 3-tap conv along the 28-axis == 3 accumulating MXU matmuls ---------
    # tap k reads the lane window  xp[:, k*112 : k*112 + 3136]
    acc = jnp.dot(w_ref[0], xp_ref[:, 0:FLAT_OUT],
                  preferred_element_type=jnp.float32)
    for k in range(1, KT):                                     # static unroll
        acc = acc + jnp.dot(w_ref[k],
                            xp_ref[:, k * W_ROW:k * W_ROW + FLAT_OUT],
                            preferred_element_type=jnp.float32)
    o_ref[...] = acc


def _pallas_conv(x_flat, wt, shift):
    # x_flat: (24, 3136), wt: (3, 96, 24) -> (96, 3136)
    kern = functools.partial(_fused_kernel, shift=shift)
    return pl.pallas_call(
        kern,
        out_shape=jax.ShapeDtypeStruct((C_OUT, FLAT_OUT), jnp.float32),
        grid=(1,),
        in_specs=[
            pl.BlockSpec((C_IN, FLAT_OUT), lambda i: (0, 0)),
            pl.BlockSpec((KT, C_OUT, C_IN), lambda i: (0, 0, 0)),
        ],
        out_specs=pl.BlockSpec((C_OUT, FLAT_OUT), lambda i: (0, 0)),
        scratch_shapes=[
            pltpu.VMEM((C_IN, XQ_W), jnp.float32),
            pltpu.VMEM((C_IN, SLAB), jnp.float32),
        ],
        compiler_params=pltpu.CompilerParams(
            dimension_semantics=("arbitrary",)),
    )(x_flat, wt)


@functools.partial(jax.jit, static_argnames=("shift",))
def kernel_generated_1_forward(x, w, *, shift=1):
    # x: (1, 24, 56, 56), w: (96, 24, 3)  ->  (1, 96, 56, 56)
    x_flat = x.astype(jnp.float32).reshape(C_IN, FLAT_OUT)      # free, contiguous
    wt = jnp.transpose(w.astype(jnp.float32), (2, 0, 1))        # (3, 96, 24), 27 KB
    out = _pallas_conv(x_flat, wt, shift)                       # (96, 3136)
    # lane n*112 + o*56 + m == (2n+o)*56 + m == h*56 + w  -> free reshape
    return out.reshape(1, C_OUT, 56, 56)


def _reference_forward(x, w, shift):
    # Pure-JAX mirror of the PyTorch module for validation.
    t2 = x.reshape(1, C_IN, N_PAIRS, 2, 56)
    t2 = jnp.roll(t2, shift, axis=2)
    t2 = t2.reshape(1, C_IN, N_PAIRS, W_ROW)
    tp = jnp.pad(t2, ((0, 0), (0, 0), (1, 1), (0, 0)))
    unf = jnp.stack([tp[:, :, k:k + N_PAIRS, :] for k in range(KT)], axis=2)
    unf = unf.reshape(1, C_IN, KT, N_PAIRS, 2, 56)
    t3 = jnp.einsum('ljknom,ijk->linom', unf, w)
    t4 = t3.reshape(1, C_OUT, 56, 56)
    return jnp.roll(t4, shift, axis=3)


if __name__ == "__main__":
    key = jax.random.PRNGKey(0)
    kx, kw = jax.random.split(key)
    x = jax.random.normal(kx, (1, C_IN, 56, 56), dtype=jnp.float32)
    w = jax.random.normal(kw, (C_OUT, C_IN, KT), dtype=jnp.float32)

    for s in (1, -1):   # exercise both possible shift directions of the module
        y = jax.block_until_ready(kernel_generated_1_forward(x, w, shift=s))
        y_ref = _reference_forward(x, w, s)
        assert y.shape == (1, C_OUT, 56, 56), y.shape
        assert jnp.allclose(y, y_ref, atol=1e-3, rtol=1e-3), \
            f"mismatch vs reference (shift={s})"
    print("KERNEL_OK")
</pallas_src>

<mosaic_0001>
module attributes {stable_mosaic.version = 11 : i64} {
  func.func @_fused_kernel(%arg0: i32, %arg1: memref<24x3136xf32, #tpu.memory_space<vmem>>, %arg2: memref<3x96x24xf32, #tpu.memory_space<vmem>>, %arg3: memref<96x3136xf32, #tpu.memory_space<vmem>>, %arg4: memref<24x3488xf32, #tpu.memory_space<vmem>>, %arg5: memref<24x3360xf32, #tpu.memory_space<vmem>>) attributes {dimension_semantics = [#tpu.dimension_semantics<arbitrary>], iteration_bounds = array<i64: 1>, scalar_prefetch = 0 : i64, scratch_operands = 2 : i64, tpu.core_type = #tpu.core_type<tc>, window_params = [{pipeline_mode = #tpu.pipeline_mode<synchronous>, transform_indices = @transform_0, window_bounds = array<i64: 24, 3136>}, {pipeline_mode = #tpu.pipeline_mode<synchronous>, transform_indices = @transform_1, window_bounds = array<i64: 3, 96, 24>}, {pipeline_mode = #tpu.pipeline_mode<synchronous>, transform_indices = @transform_2, window_bounds = array<i64: 96, 3136>}]} {
    %cst = arith.constant 0.000000e+00 : f32
    %0 = vector.broadcast %cst : f32 to vector<24x176xf32>
    %c0 = arith.constant 0 : index
    %c0_0 = arith.constant 0 : index
    %1 = vector.load %arg4[%c0, %c0_0] : memref<24x3488xf32, #tpu.memory_space<vmem>>, vector<24x176xf32>
    tpu.vector_store %arg4[%c0, %c0_0], %0 {strides = array<i32>} : memref<24x3488xf32, #tpu.memory_space<vmem>>, vector<24x176xf32>,
    %cst_1 = arith.constant 0.000000e+00 : f32
    %2 = vector.broadcast %cst_1 : f32 to vector<24x176xf32>
    %c0_2 = arith.constant 0 : index
    %c3312 = arith.constant 3312 : index
    %3 = vector.load %arg4[%c0_2, %c3312] : memref<24x3488xf32, #tpu.memory_space<vmem>>, vector<24x176xf32>
    tpu.vector_store %arg4[%c0_2, %c3312], %2 {strides = array<i32>} : memref<24x3488xf32, #tpu.memory_space<vmem>>, vector<24x176xf32>,
    %c0_3 = arith.constant 0 : index
    %c0_4 = arith.constant 0 : index
    %4 = vector.load %arg1[%c0_3, %c0_4] : memref<24x3136xf32, #tpu.memory_space<vmem>>, vector<24x3024xf32>
    %c0_5 = arith.constant 0 : index
    %c288 = arith.constant 288 : index
    %5 = vector.load %arg4[%c0_5, %c288] : memref<24x3488xf32, #tpu.memory_space<vmem>>, vector<24x3024xf32>
    tpu.vector_store %arg4[%c0_5, %c288], %4 {strides = array<i32>} : memref<24x3488xf32, #tpu.memory_space<vmem>>, vector<24x3024xf32>,
    %c0_6 = arith.constant 0 : index
    %c3024 = arith.constant 3024 : index
    %6 = vector.load %arg1[%c0_6, %c3024] : memref<24x3136xf32, #tpu.memory_space<vmem>>, vector<24x112xf32>
    %c0_7 = arith.constant 0 : index
    %c176 = arith.constant 176 : index
    %7 = vector.load %arg4[%c0_7, %c176] : memref<24x3488xf32, #tpu.memory_space<vmem>>, vector<24x112xf32>
    tpu.vector_store %arg4[%c0_7, %c176], %6 {strides = array<i32>} : memref<24x3488xf32, #tpu.memory_space<vmem>>, vector<24x112xf32>,
    %8 = tpu.iota {dimensions = array<i32: 1>} : vector<24x3360xi32>
    %c56_i32 = arith.constant 56 : i32
    %c0_i32 = arith.constant 0 : i32
    %9 = arith.cmpi eq, %c56_i32, %c0_i32 : i32
    %c1_i32 = arith.constant 1 : i32
    %10 = arith.select %9, %c1_i32, %c56_i32 : i32
    %11 = vector.broadcast %10 : i32 to vector<24x3360xi32>
    %12 = arith.remsi %8, %11 : vector<24x3360xi32>
    %c0_i32_8 = arith.constant 0 : i32
    %13 = vector.broadcast %c0_i32_8 : i32 to vector<24x3360xi32>
    %14 = arith.cmpi ne, %12, %13 : vector<24x3360xi32>
    %c0_i32_9 = arith.constant 0 : i32
    %15 = vector.broadcast %c0_i32_9 : i32 to vector<24x3360xi32>
    %16 = arith.cmpi slt, %12, %15 : vector<24x3360xi32>
    %c0_i32_10 = arith.constant 0 : i32
    %17 = arith.cmpi slt, %10, %c0_i32_10 : i32
    %18 = vector.broadcast %17 : i1 to vector<24x3360xi1>
    %19 = vector.broadcast %18 : vector<24x3360xi1> to vector<24x3360xi1>
    %20 = arith.xori %16, %19 : vector<24x3360xi1>
    %21 = arith.andi %20, %14 : vector<24x3360xi1>
    %22 = vector.broadcast %10 : i32 to vector<24x3360xi32>
    %23 = arith.addi %12, %22 : vector<24x3360xi32>
    %24 = arith.select %21, %23, %12 : vector<24x3360xi1>, vector<24x3360xi32>
    %c0_i32_11 = arith.constant 0 : i32
    %25 = vector.broadcast %c0_i32_11 : i32 to vector<24x3360xi32>
    %26 = arith.cmpi eq, %24, %25 : vector<24x3360xi32>
    %c0_12 = arith.constant 0 : index
    %c63 = arith.constant 63 : index
    %27 = vector.load %arg4[%c0_12, %c63] : memref<24x3488xf32, #tpu.memory_space<vmem>>, vector<24x3360xf32>
    %c0_13 = arith.constant 0 : index
    %c119 = arith.constant 119 : index
    %28 = vector.load %arg4[%c0_13, %c119] : memref<24x3488xf32, #tpu.memory_space<vmem>>, vector<24x3360xf32>
    %29 = arith.select %26, %28, %27 : vector<24x3360xi1>, vector<24x3360xf32>
    %c0_14 = arith.constant 0 : index
    %c0_15 = arith.constant 0 : index
    %30 = vector.load %arg5[%c0_14, %c0_15] : memref<24x3360xf32, #tpu.memory_space<vmem>>, vector<24x3360xf32>
    tpu.vector_store %arg5[%c0_14, %c0_15], %29 {strides = array<i32>} : memref<24x3360xf32, #tpu.memory_space<vmem>>, vector<24x3360xf32>,
    %c0_16 = arith.constant 0 : index
    %c0_17 = arith.constant 0 : index
    %c0_18 = arith.constant 0 : index
    %31 = vector.load %arg2[%c0_16, %c0_17, %c0_18] : memref<3x96x24xf32, #tpu.memory_space<vmem>>, vector<1x96x24xf32>
    %32 = vector.shape_cast %31 : vector<1x96x24xf32> to vector<96x24xf32>
    %c0_19 = arith.constant 0 : index
    %c0_20 = arith.constant 0 : index
    %33 = vector.load %arg5[%c0_19, %c0_20] : memref<24x3360xf32, #tpu.memory_space<vmem>>, vector<24x3136xf32>
    %cst_21 = arith.constant dense<0.000000e+00> : vector<96x3136xf32>
    %34 = tpu.matmul %32, %33, %cst_21 {dimension_numbers = #tpu.dot_dimension_numbers<[1], [0], [0], [1], [0, 0, 1, 1], [], []>} : vector<96x24xf32>, vector<24x3136xf32>, vector<96x3136xf32> -> vector<96x3136xf32>
    %c1 = arith.constant 1 : index
    %c0_22 = arith.constant 0 : index
    %c0_23 = arith.constant 0 : index
    %35 = vector.load %arg2[%c1, %c0_22, %c0_23] : memref<3x96x24xf32, #tpu.memory_space<vmem>>, vector<1x96x24xf32>
    %36 = vector.shape_cast %35 : vector<1x96x24xf32> to vector<96x24xf32>
    %c0_24 = arith.constant 0 : index
    %c112 = arith.constant 112 : index
    %37 = vector.load %arg5[%c0_24, %c112] : memref<24x3360xf32, #tpu.memory_space<vmem>>, vector<24x3136xf32>
    %cst_25 = arith.constant dense<0.000000e+00> : vector<96x3136xf32>
    %38 = tpu.matmul %36, %37, %cst_25 {dimension_numbers = #tpu.dot_dimension_numbers<[1], [0], [0], [1], [0, 0, 1, 1], [], []>} : vector<96x24xf32>, vector<24x3136xf32>, vector<96x3136xf32> -> vector<96x3136xf32>
    %39 = arith.addf %34, %38 : vector<96x3136xf32>
    %c2 = arith.constant 2 : index
    %c0_26 = arith.constant 0 : index
    %c0_27 = arith.constant 0 : index
    %40 = vector.load %arg2[%c2, %c0_26, %c0_27] : memref<3x96x24xf32, #tpu.memory_space<vmem>>, vector<1x96x24xf32>
    %41 = vector.shape_cast %40 : vector<1x96x24xf32> to vector<96x24xf32>
    %c0_28 = arith.constant 0 : index
    %c224 = arith.constant 224 : index
    %42 = vector.load %arg5[%c0_28, %c224] : memref<24x3360xf32, #tpu.memory_space<vmem>>, vector<24x3136xf32>
    %cst_29 = arith.constant dense<0.000000e+00> : vector<96x3136xf32>
    %43 = tpu.matmul %41, %42, %cst_29 {dimension_numbers = #tpu.dot_dimension_numbers<[1], [0], [0], [1], [0, 0, 1, 1], [], []>} : vector<96x24xf32>, vector<24x3136xf32>, vector<96x3136xf32> -> vector<96x3136xf32>
    %44 = arith.addf %39, %43 : vector<96x3136xf32>
    %c0_30 = arith.constant 0 : index
    %c0_31 = arith.constant 0 : index
    %45 = vector.load %arg3[%c0_30, %c0_31] : memref<96x3136xf32, #tpu.memory_space<vmem>>, vector<96x3136xf32>
    tpu.vector_store %arg3[%c0_30, %c0_31], %44 {strides = array<i32>} : memref<96x3136xf32, #tpu.memory_space<vmem>>, vector<96x3136xf32>,
    return
  }
  func.func @transform_0(%arg0: i32) -> (i32, i32) {
    %c0_i32 = arith.constant 0 : i32
    %c0_i32_0 = arith.constant 0 : i32
    %c0_i32_1 = arith.constant 0 : i32
    return %c0_i32, %c0_i32_0 : i32, i32
  }
  func.func @transform_1(%arg0: i32) -> (i32, i32, i32) {
    %c0_i32 = arith.constant 0 : i32
    %c0_i32_0 = arith.constant 0 : i32
    %c0_i32_1 = arith.constant 0 : i32
    %c0_i32_2 = arith.constant 0 : i32
    return %c0_i32, %c0_i32_0, %c0_i32_1 : i32, i32, i32
  }
  func.func @transform_2(%arg0: i32) -> (i32, i32) {
    %c0_i32 = arith.constant 0 : i32
    %c0_i32_0 = arith.constant 0 : i32
    %c0_i32_1 = arith.constant 0 : i32
    return %c0_i32, %c0_i32_0 : i32, i32
  }
}

</mosaic_0001>

<llo_original>
// kernel: kernel_generated_1_forward.1
$region0: #{kernel_generated_1_forward.1}
  #allocation0 [shape = 'u32[]', space=smem, size = 0x4, offset = 0x4, fixed_abs, tag = 'smem constant byte address 0x4 - core index']
  #allocation1 [shape = 'u32[144,128]{1,0:T(1,128)}', space=vmem, size = 0x12000, scoped, tag = 'internal scratch']
  #allocation2 [shape = 'f32[24,3488]{1,0:T(8,128)}', space=vmem, size = 0x54000, scoped, tag = 'scratch operand']
  #allocation3 [shape = 'f32[24,3360]{1,0:T(8,128)}', space=vmem, size = 0x51000, scoped, tag = 'scratch operand']
  %s0 = inlined_call_operand.vmem [shape: f32[24,3136], index: 0, kind: input, shape index: {}]
  %s1 = inlined_call_operand.vmem [shape: f32[3,96,24], index: 1, kind: input, shape index: {}]
  %s2 = inlined_call_operand.vmem [shape: f32[96,3136], index: 2, kind: output, shape index: {}]
  %s3 = sld [smem:[#allocation0]]
  $region18: #{kernel_generated_1_forward.1} parent=0
    _
  %s5 = ssub.s32 1, %s3
  %s6 = scalar_select 0, %s5, %s3
  // Predicated region
  $region2: #{kernel_generated_1_forward.1} parent=0 // pred_check
    _
  $region3: #{kernel_generated_1_forward.1} parent=0 // pred_check_branch
    %8 = sbr.rel (0) target = $region5
  $region4: #{kernel_generated_1_forward.1} parent=0 // pred_region
    _
  $region5: #{kernel_generated_1_forward.1} parent=0 // pred_fallthru
    _
  // Predicated region
  $region6: #{kernel_generated_1_forward.1} parent=0 // pred_check
    _
  $region7: #{kernel_generated_1_forward.1} parent=0 // pred_check_branch
    %10 = sbr.rel (0) target = $region9
  $region8: #{kernel_generated_1_forward.1} parent=0 // pred_region
    _
  $region9: #{kernel_generated_1_forward.1} parent=0 // pred_fallthru
    _
  %11 = vst [vmem:[#allocation2] sm:$0xff] 0.0
  %vm12 = vcmask 392192
  %13 = vst.msk [vmem:[#allocation2 + $0x8] sm:$0xff] %vm12, 0.0
  %14 = vst [vmem:[#allocation2 + $0xe0] sm:$0xff] 0.0
  %15 = vst.msk [vmem:[#allocation2 + $0xe8] sm:$0xff] %vm12, 0.0
  %16 = vst [vmem:[#allocation2 + $0x1c0] sm:$0xff] 0.0
  %17 = vst.msk [vmem:[#allocation2 + $0x1c8] sm:$0xff] %vm12, 0.0
  %vm18 = vcmask 1048448
  %19 = vst.msk [vmem:[#allocation2 + $0xc8] sm:$0xff] %vm18, 0.0
  %20 = vst [vmem:[#allocation2 + $0xd0] sm:$0xff] 0.0
  %vm21 = vcmask 261120
  %22 = vst.msk [vmem:[#allocation2 + $0xd8] sm:$0xff] %vm21, 0.0
  %23 = vst.msk [vmem:[#allocation2 + $0x1a8] sm:$0xff] %vm18, 0.0
  %24 = vst [vmem:[#allocation2 + $0x1b0] sm:$0xff] 0.0
  %25 = vst.msk [vmem:[#allocation2 + $0x1b8] sm:$0xff] %vm21, 0.0
  %26 = vst.msk [vmem:[#allocation2 + $0x288] sm:$0xff] %vm18, 0.0
  %27 = vst [vmem:[#allocation2 + $0x290] sm:$0xff] 0.0
  %28 = vst.msk [vmem:[#allocation2 + $0x298] sm:$0xff] %vm21, 0.0
  %v29 = vld [vmem:[%s0] sm:$0xff]
  %v30 = vld [vmem:[%s0 + $0x8] sm:$0xff]
  %v31 = vld [vmem:[%s0 + $0x10] sm:$0xff]
  %v32 = vld [vmem:[%s0 + $0x18] sm:$0xff]
  %v33 = vld [vmem:[%s0 + $0x20] sm:$0xff]
  %v34 = vld [vmem:[%s0 + $0x28] sm:$0xff]
  %v35 = vld [vmem:[%s0 + $0x30] sm:$0xff]
  %v36 = vld [vmem:[%s0 + $0x38] sm:$0xff]
  %v37 = vld [vmem:[%s0 + $0x40] sm:$0xff]
  %v38 = vld [vmem:[%s0 + $0x48] sm:$0xff]
  %v39 = vld [vmem:[%s0 + $0x50] sm:$0xff]
  %v40 = vld [vmem:[%s0 + $0x58] sm:$0xff]
  %v41 = vld [vmem:[%s0 + $0x60] sm:$0xff]
  %v42 = vld [vmem:[%s0 + $0x68] sm:$0xff]
  %v43 = vld [vmem:[%s0 + $0x70] sm:$0xff]
  %v44 = vld [vmem:[%s0 + $0x78] sm:$0xff]
  %v45 = vld [vmem:[%s0 + $0x80] sm:$0xff]
  %v46 = vld [vmem:[%s0 + $0x88] sm:$0xff]
  %v47 = vld [vmem:[%s0 + $0x90] sm:$0xff]
  %v48 = vld [vmem:[%s0 + $0x98] sm:$0xff]
  %v49 = vld [vmem:[%s0 + $0xa0] sm:$0xff]
  %v50 = vld [vmem:[%s0 + $0xa8] sm:$0xff]
  %v51 = vld [vmem:[%s0 + $0xb0] sm:$0xff]
  %v52 = vld [vmem:[%s0 + $0xb8] sm:$0xff]
  %v53 = vld [vmem:[%s0 + $0xc8] sm:$0xff]
  %v54 = vld [vmem:[%s0 + $0xd0] sm:$0xff]
  %v55 = vld [vmem:[%s0 + $0xd8] sm:$0xff]
  %v56 = vld [vmem:[%s0 + $0xe0] sm:$0xff]
  %v57 = vld [vmem:[%s0 + $0xe8] sm:$0xff]
  %v58 = vld [vmem:[%s0 + $0xf0] sm:$0xff]
  %v59 = vld [vmem:[%s0 + $0xf8] sm:$0xff]
  %v60 = vld [vmem:[%s0 + $0x100] sm:$0xff]
  %v61 = vld [vmem:[%s0 + $0x108] sm:$0xff]
  %v62 = vld [vmem:[%s0 + $0x110] sm:$0xff]
  %v63 = vld [vmem:[%s0 + $0x118] sm:$0xff]
  %v64 = vld [vmem:[%s0 + $0x120] sm:$0xff]
  %v65 = vld [vmem:[%s0 + $0x128] sm:$0xff]
  %v66 = vld [vmem:[%s0 + $0x130] sm:$0xff]
  %v67 = vld [vmem:[%s0 + $0x138] sm:$0xff]
  %v68 = vld [vmem:[%s0 + $0x140] sm:$0xff]
  %v69 = vld [vmem:[%s0 + $0x148] sm:$0xff]
  %v70 = vld [vmem:[%s0 + $0x150] sm:$0xff]
  %v71 = vld [vmem:[%s0 + $0x158] sm:$0xff]
  %v72 = vld [vmem:[%s0 + $0x160] sm:$0xff]
  %v73 = vld [vmem:[%s0 + $0x168] sm:$0xff]
  %v74 = vld [vmem:[%s0 + $0x170] sm:$0xff]
  %v75 = vld [vmem:[%s0 + $0x178] sm:$0xff]
  %v76 = vld [vmem:[%s0 + $0x180] sm:$0xff]
  %v77 = vld [vmem:[%s0 + $0x190] sm:$0xff]
  %v78 = vld [vmem:[%s0 + $0x198] sm:$0xff]
  %v79 = vld [vmem:[%s0 + $0x1a0] sm:$0xff]
  %v80 = vld [vmem:[%s0 + $0x1a8] sm:$0xff]
  %v81 = vld [vmem:[%s0 + $0x1b0] sm:$0xff]
  %v82 = vld [vmem:[%s0 + $0x1b8] sm:$0xff]
  %v83 = vld [vmem:[%s0 + $0x1c0] sm:$0xff]
  %v84 = vld [vmem:[%s0 + $0x1c8] sm:$0xff]
  %v85 = vld [vmem:[%s0 + $0x1d0] sm:$0xff]
  %v86 = vld [vmem:[%s0 + $0x1d8] sm:$0xff]
  %v87 = vld [vmem:[%s0 + $0x1e0] sm:$0xff]
  %v88 = vld [vmem:[%s0 + $0x1e8] sm:$0xff]
  %v89 = vld [vmem:[%s0 + $0x1f0] sm:$0xff]
  %v90 = vld [vmem:[%s0 + $0x1f8] sm:$0xff]
  %v91 = vld [vmem:[%s0 + $0x200] sm:$0xff]
  %v92 = vld [vmem:[%s0 + $0x208] sm:$0xff]
  %v93 = vld [vmem:[%s0 + $0x210] sm:$0xff]
  %v94 = vld [vmem:[%s0 + $0x218] sm:$0xff]
  %v95 = vld [vmem:[%s0 + $0x220] sm:$0xff]
  %v96 = vld [vmem:[%s0 + $0x228] sm:$0xff]
  %v97 = vld [vmem:[%s0 + $0x230] sm:$0xff]
  %v98 = vld [vmem:[%s0 + $0x238] sm:$0xff]
  %v99 = vld [vmem:[%s0 + $0x240] sm:$0xff]
  %v100 = vld [vmem:[%s0 + $0x248] sm:$0xff]
  %173 = vrot.lane.b32.xlu0 %v29, 32
  %v174 = vpop.permute.xlu0 %173
  %175 = vrot.lane.b32.xlu0 %v30, 32
  %v176 = vpop.permute.xlu0 %175
  %177 = vrot.lane.b32.xlu0 %v31, 32
  %v178 = vpop.permute.xlu0 %177
  %179 = vrot.lane.b32.xlu0 %v32, 32
  %v180 = vpop.permute.xlu0 %179
  %181 = vrot.lane.b32.xlu0 %v33, 32
  %v182 = vpop.permute.xlu0 %181
  %183 = vrot.lane.b32.xlu0 %v34, 32
  %v184 = vpop.permute.xlu0 %183
  %185 = vrot.lane.b32.xlu0 %v35, 32
  %v186 = vpop.permute.xlu0 %185
  %187 = vrot.lane.b32.xlu0 %v36, 32
  %v188 = vpop.permute.xlu0 %187
  %189 = vrot.lane.b32.xlu0 %v37, 32
  %v190 = vpop.permute.xlu0 %189
  %191 = vrot.lane.b32.xlu0 %v38, 32
  %v192 = vpop.permute.xlu0 %191
  %193 = vrot.lane.b32.xlu0 %v39, 32
  %v194 = vpop.permute.xlu0 %193
  %195 = vrot.lane.b32.xlu0 %v40, 32
  %v196 = vpop.permute.xlu0 %195
  %197 = vrot.lane.b32.xlu0 %v41, 32
  %v198 = vpop.permute.xlu0 %197
  %199 = vrot.lane.b32.xlu0 %v42, 32
  %v200 = vpop.permute.xlu0 %199
  %201 = vrot.lane.b32.xlu0 %v43, 32
  %v202 = vpop.permute.xlu0 %201
  %203 = vrot.lane.b32.xlu0 %v44, 32
  %v204 = vpop.permute.xlu0 %203
  %205 = vrot.lane.b32.xlu0 %v45, 32
  %v206 = vpop.permute.xlu0 %205
  %207 = vrot.lane.b32.xlu0 %v46, 32
  %v208 = vpop.permute.xlu0 %207
  %209 = vrot.lane.b32.xlu0 %v47, 32
  %v210 = vpop.permute.xlu0 %209
  %211 = vrot.lane.b32.xlu0 %v48, 32
  %v212 = vpop.permute.xlu0 %211
  %213 = vrot.lane.b32.xlu0 %v49, 32
  %v214 = vpop.permute.xlu0 %213
  %215 = vrot.lane.b32.xlu0 %v50, 32
  %v216 = vpop.permute.xlu0 %215
  %217 = vrot.lane.b32.xlu0 %v51, 32
  %v218 = vpop.permute.xlu0 %217
  %219 = vrot.lane.b32.xlu0 %v52, 32
  %v220 = vpop.permute.xlu0 %219
  %221 = vrot.lane.b32.xlu0 %v53, 32
  %v222 = vpop.permute.xlu0 %221
  %223 = vrot.lane.b32.xlu0 %v54, 32
  %v224 = vpop.permute.xlu0 %223
  %225 = vrot.lane.b32.xlu0 %v55, 32
  %v226 = vpop.permute.xlu0 %225
  %227 = vrot.lane.b32.xlu0 %v56, 32
  %v228 = vpop.permute.xlu0 %227
  %229 = vrot.lane.b32.xlu0 %v57, 32
  %v230 = vpop.permute.xlu0 %229
  %231 = vrot.lane.b32.xlu0 %v58, 32
  %v232 = vpop.permute.xlu0 %231
  %233 = vrot.lane.b32.xlu0 %v59, 32
  %v234 = vpop.permute.xlu0 %233
  %235 = vrot.lane.b32.xlu0 %v60, 32
  %v236 = vpop.permute.xlu0 %235
  %237 = vrot.lane.b32.xlu0 %v61, 32
  %v238 = vpop.permute.xlu0 %237
  %239 = vrot.lane.b32.xlu0 %v62, 32
  %v240 = vpop.permute.xlu0 %239
  %241 = vrot.lane.b32.xlu0 %v63, 32
  %v242 = vpop.permute.xlu0 %241
  %243 = vrot.lane.b32.xlu0 %v64, 32
  %v244 = vpop.permute.xlu0 %243
  %245 = vrot.lane.b32.xlu0 %v65, 32
  %v246 = vpop.permute.xlu0 %245
  %247 = vrot.lane.b32.xlu0 %v66, 32
  %v248 = vpop.permute.xlu0 %247
  %249 = vrot.lane.b32.xlu0 %v67, 32
  %v250 = vpop.permute.xlu0 %249
  %251 = vrot.lane.b32.xlu0 %v68, 32
  %v252 = vpop.permute.xlu0 %251
  %253 = vrot.lane.b32.xlu0 %v69, 32
  %v254 = vpop.permute.xlu0 %253
  %255 = vrot.lane.b32.xlu0 %v70, 32
  %v256 = vpop.permute.xlu0 %255
  %257 = vrot.lane.b32.xlu0 %v71, 32
  %v258 = vpop.permute.xlu0 %257
  %259 = vrot.lane.b32.xlu0 %v72, 32
  %v260 = vpop.permute.xlu0 %259
  %261 = vrot.lane.b32.xlu0 %v73, 32
  %v262 = vpop.permute.xlu0 %261
  %263 = vrot.lane.b32.xlu0 %v74, 32
  %v264 = vpop.permute.xlu0 %263
  %265 = vrot.lane.b32.xlu0 %v75, 32
  %v266 = vpop.permute.xlu0 %265
  %267 = vrot.lane.b32.xlu0 %v76, 32
  %v268 = vpop.permute.xlu0 %267
  %269 = vrot.lane.b32.xlu0 %v77, 32
  %v270 = vpop.permute.xlu0 %269
  %271 = vrot.lane.b32.xlu0 %v78, 32
  %v272 = vpop.permute.xlu0 %271
  %273 = vrot.lane.b32.xlu0 %v79, 32
  %v274 = vpop.permute.xlu0 %273
  %275 = vrot.lane.b32.xlu0 %v80, 32
  %v276 = vpop.permute.xlu0 %275
  %277 = vrot.lane.b32.xlu0 %v81, 32
  %v278 = vpop.permute.xlu0 %277
  %279 = vrot.lane.b32.xlu0 %v82, 32
  %v280 = vpop.permute.xlu0 %279
  %281 = vrot.lane.b32.xlu0 %v83, 32
  %v282 = vpop.permute.xlu0 %281
  %283 = vrot.lane.b32.xlu0 %v84, 32
  %v284 = vpop.permute.xlu0 %283
  %285 = vrot.lane.b32.xlu0 %v85, 32
  %v286 = vpop.permute.xlu0 %285
  %287 = vrot.lane.b32.xlu0 %v86, 32
  %v288 = vpop.permute.xlu0 %287
  %289 = vrot.lane.b32.xlu0 %v87, 32
  %v290 = vpop.permute.xlu0 %289
  %291 = vrot.lane.b32.xlu0 %v88, 32
  %v292 = vpop.permute.xlu0 %291
  %293 = vrot.lane.b32.xlu0 %v89, 32
  %v294 = vpop.permute.xlu0 %293
  %295 = vrot.lane.b32.xlu0 %v90, 32
  %v296 = vpop.permute.xlu0 %295
  %297 = vrot.lane.b32.xlu0 %v91, 32
  %v298 = vpop.permute.xlu0 %297
  %299 = vrot.lane.b32.xlu0 %v92, 32
  %v300 = vpop.permute.xlu0 %299
  %301 = vrot.lane.b32.xlu0 %v93, 32
  %v302 = vpop.permute.xlu0 %301
  %303 = vrot.lane.b32.xlu0 %v94, 32
  %v304 = vpop.permute.xlu0 %303
  %305 = vrot.lane.b32.xlu0 %v95, 32
  %v306 = vpop.permute.xlu0 %305
  %307 = vrot.lane.b32.xlu0 %v96, 32
  %v308 = vpop.permute.xlu0 %307
  %309 = vrot.lane.b32.xlu0 %v97, 32
  %v310 = vpop.permute.xlu0 %309
  %311 = vrot.lane.b32.xlu0 %v98, 32
  %v312 = vpop.permute.xlu0 %311
  %313 = vrot.lane.b32.xlu0 %v99, 32
  %v314 = vpop.permute.xlu0 %313
  %315 = vrot.lane.b32.xlu0 %v100, 32
  %v316 = vpop.permute.xlu0 %315
  %v317 = vsel %vm21, %v174, %v176
  %v318 = vsel %vm21, %v176, %v178
  %v319 = vsel %vm21, %v178, %v180
  %v320 = vsel %vm21, %v180, %v182
  %v321 = vsel %vm21, %v182, %v184
  %v322 = vsel %vm21, %v184, %v186
  %v323 = vsel %vm21, %v186, %v188
  %v324 = vsel %vm21, %v188, %v190
  %v325 = vsel %vm21, %v190, %v192
  %v326 = vsel %vm21, %v192, %v194
  %v327 = vsel %vm21, %v194, %v196
  %v328 = vsel %vm21, %v196, %v198
  %v329 = vsel %vm21, %v198, %v200
  %v330 = vsel %vm21, %v200, %v202
  %v331 = vsel %vm21, %v202, %v204
  %v332 = vsel %vm21, %v204, %v206
  %v333 = vsel %vm21, %v206, %v208
  %v334 = vsel %vm21, %v208, %v210
  %v335 = vsel %vm21, %v210, %v212
  %v336 = vsel %vm21, %v212, %v214
  %v337 = vsel %vm21, %v214, %v216
  %v338 = vsel %vm21, %v216, %v218
  %v339 = vsel %vm21, %v218, %v220
  %v340 = vsel %vm21, %v222, %v224
  %v341 = vsel %vm21, %v224, %v226
  %v342 = vsel %vm21, %v226, %v228
  %v343 = vsel %vm21, %v228, %v230
  %v344 = vsel %vm21, %v230, %v232
  %v345 = vsel %vm21, %v232, %v234
  %v346 = vsel %vm21, %v234, %v236
  %v347 = vsel %vm21, %v236, %v238
  %v348 = vsel %vm21, %v238, %v240
  %v349 = vsel %vm21, %v240, %v242
  %v350 = vsel %vm21, %v242, %v244
  %v351 = vsel %vm21, %v244, %v246
  %v352 = vsel %vm21, %v246, %v248
  %v353 = vsel %vm21, %v248, %v250
  %v354 = vsel %vm21, %v250, %v252
  %v355 = vsel %vm21, %v252, %v254
  %v356 = vsel %vm21, %v254, %v256
  %v357 = vsel %vm21, %v256, %v258
  %v358 = vsel %vm21, %v258, %v260
  %v359 = vsel %vm21, %v260, %v262
  %v360 = vsel %vm21, %v262, %v264
  %v361 = vsel %vm21, %v264, %v266
  %v362 = vsel %vm21, %v266, %v268
  %v363 = vsel %vm21, %v270, %v272
  %v364 = vsel %vm21, %v272, %v274
  %v365 = vsel %vm21, %v274, %v276
  %v366 = vsel %vm21, %v276, %v278
  %v367 = vsel %vm21, %v278, %v280
  %v368 = vsel %vm21, %v280, %v282
  %v369 = vsel %vm21, %v282, %v284
  %v370 = vsel %vm21, %v284, %v286
  %v371 = vsel %vm21, %v286, %v288
  %v372 = vsel %vm21, %v288, %v290
  %v373 = vsel %vm21, %v290, %v292
  %v374 = vsel %vm21, %v292, %v294
  %v375 = vsel %vm21, %v294, %v296
  %v376 = vsel %vm21, %v296, %v298
  %v377 = vsel %vm21, %v298, %v300
  %v378 = vsel %vm21, %v300, %v302
  %v379 = vsel %vm21, %v302, %v304
  %v380 = vsel %vm21, %v304, %v306
  %v381 = vsel %vm21, %v306, %v308
  %v382 = vsel %vm21, %v308, %v310
  %v383 = vsel %vm21, %v310, %v312
  %v384 = vsel %vm21, %v312, %v314
  %v385 = vsel %vm21, %v314, %v316
  %vm458 = vcmask 1047808
  %459 = vst.msk [vmem:[#allocation2 + $0x10] sm:$0xff] %vm458, %v174
  %460 = vst [vmem:[#allocation2 + $0x18] sm:$0xff] %v317
  %461 = vst [vmem:[#allocation2 + $0x20] sm:$0xff] %v318
  %462 = vst [vmem:[#allocation2 + $0x28] sm:$0xff] %v319
  %463 = vst [vmem:[#allocation2 + $0x30] sm:$0xff] %v320
  %464 = vst [vmem:[#allocation2 + $0x38] sm:$0xff] %v321
  %465 = vst [vmem:[#allocation2 + $0x40] sm:$0xff] %v322
  %466 = vst [vmem:[#allocation2 + $0x48] sm:$0xff] %v323
  %467 = vst [vmem:[#allocation2 + $0x50] sm:$0xff] %v324
  %468 = vst [vmem:[#allocation2 + $0x58] sm:$0xff] %v325
  %469 = vst [vmem:[#allocation2 + $0x60] sm:$0xff] %v326
  %470 = vst [vmem:[#allocation2 + $0x68] sm:$0xff] %v327
  %471 = vst [vmem:[#allocation2 + $0x70] sm:$0xff] %v328
  %472 = vst [vmem:[#allocation2 + $0x78] sm:$0xff] %v329
  %473 = vst [vmem:[#allocation2 + $0x80] sm:$0xff] %v330
  %474 = vst [vmem:[#allocation2 + $0x88] sm:$0xff] %v331
  %475 = vst [vmem:[#allocation2 + $0x90] sm:$0xff] %v332
  %476 = vst [vmem:[#allocation2 + $0x98] sm:$0xff] %v333
  %477 = vst [vmem:[#allocation2 + $0xa0] sm:$0xff] %v334
  %478 = vst [vmem:[#allocation2 + $0xa8] sm:$0xff] %v335
  %479 = vst [vmem:[#allocation2 + $0xb0] sm:$0xff] %v336
  %480 = vst [vmem:[#allocation2 + $0xb8] sm:$0xff] %v337
  %481 = vst [vmem:[#allocation2 + $0xc0] sm:$0xff] %v338
  %vm482 = vcmask 916480
  %483 = vst.msk [vmem:[#allocation2 + $0xc8] sm:$0xff] %vm482, %v339
  %484 = vst.msk [vmem:[#allocation2 + $0xf0] sm:$0xff] %vm458, %v222
  %485 = vst [vmem:[#allocation2 + $0xf8] sm:$0xff] %v340
  %486 = vst [vmem:[#allocation2 + $0x100] sm:$0xff] %v341
  %487 = vst [vmem:[#allocation2 + $0x108] sm:$0xff] %v342
  %488 = vst [vmem:[#allocation2 + $0x110] sm:$0xff] %v343
  %489 = vst [vmem:[#allocation2 + $0x118] sm:$0xff] %v344
  %490 = vst [vmem:[#allocation2 + $0x120] sm:$0xff] %v345
  %491 = vst [vmem:[#allocation2 + $0x128] sm:$0xff] %v346
  %492 = vst [vmem:[#allocation2 + $0x130] sm:$0xff] %v347
  %493 = vst [vmem:[#allocation2 + $0x138] sm:$0xff] %v348
  %494 = vst [vmem:[#allocation2 + $0x140] sm:$0xff] %v349
  %495 = vst [vmem:[#allocation2 + $0x148] sm:$0xff] %v350
  %496 = vst [vmem:[#allocation2 + $0x150] sm:$0xff] %v351
  %497 = vst [vmem:[#allocation2 + $0x158] sm:$0xff] %v352
  %498 = vst [vmem:[#allocation2 + $0x160] sm:$0xff] %v353
  %499 = vst [vmem:[#allocation2 + $0x168] sm:$0xff] %v354
  %500 = vst [vmem:[#allocation2 + $0x170] sm:$0xff] %v355
  %501 = vst [vmem:[#allocation2 + $0x178] sm:$0xff] %v356
  %502 = vst [vmem:[#allocation2 + $0x180] sm:$0xff] %v357
  %503 = vst [vmem:[#allocation2 + $0x188] sm:$0xff] %v358
  %504 = vst [vmem:[#allocation2 + $0x190] sm:$0xff] %v359
  %505 = vst [vmem:[#allocation2 + $0x198] sm:$0xff] %v360
  %506 = vst [vmem:[#allocation2 + $0x1a0] sm:$0xff] %v361
  %507 = vst.msk [vmem:[#allocation2 + $0x1a8] sm:$0xff] %vm482, %v362
  %508 = vst.msk [vmem:[#allocation2 + $0x1d0] sm:$0xff] %vm458, %v270
  %509 = vst [vmem:[#allocation2 + $0x1d8] sm:$0xff] %v363
  %510 = vst [vmem:[#allocation2 + $0x1e0] sm:$0xff] %v364
  %511 = vst [vmem:[#allocation2 + $0x1e8] sm:$0xff] %v365
  %512 = vst [vmem:[#allocation2 + $0x1f0] sm:$0xff] %v366
  %513 = vst [vmem:[#allocation2 + $0x1f8] sm:$0xff] %v367
  %514 = vst [vmem:[#allocation2 + $0x200] sm:$0xff] %v368
  %515 = vst [vmem:[#allocation2 + $0x208] sm:$0xff] %v369
  %516 = vst [vmem:[#allocation2 + $0x210] sm:$0xff] %v370
  %517 = vst [vmem:[#allocation2 + $0x218] sm:$0xff] %v371
  %518 = vst [vmem:[#allocation2 + $0x220] sm:$0xff] %v372
  %519 = vst [vmem:[#allocation2 + $0x228] sm:$0xff] %v373
  %520 = vst [vmem:[#allocation2 + $0x230] sm:$0xff] %v374
  %521 = vst [vmem:[#allocation2 + $0x238] sm:$0xff] %v375
  %522 = vst [vmem:[#allocation2 + $0x240] sm:$0xff] %v376
  %523 = vst [vmem:[#allocation2 + $0x248] sm:$0xff] %v377
  %524 = vst [vmem:[#allocation2 + $0x250] sm:$0xff] %v378
  %525 = vst [vmem:[#allocation2 + $0x258] sm:$0xff] %v379
  %526 = vst [vmem:[#allocation2 + $0x260] sm:$0xff] %v380
  %527 = vst [vmem:[#allocation2 + $0x268] sm:$0xff] %v381
  %528 = vst [vmem:[#allocation2 + $0x270] sm:$0xff] %v382
  %529 = vst [vmem:[#allocation2 + $0x278] sm:$0xff] %v383
  %530 = vst [vmem:[#allocation2 + $0x280] sm:$0xff] %v384
  %531 = vst.msk [vmem:[#allocation2 + $0x288] sm:$0xff] %vm482, %v385
  %v532 = vld [vmem:[%s0 + $0xb8] sm:$0xff]
  %v533 = vld [vmem:[%s0 + $0xc0] sm:$0xff]
  %v534 = vld [vmem:[%s0 + $0x180] sm:$0xff]
  %v535 = vld [vmem:[%s0 + $0x188] sm:$0xff]
  %v536 = vld [vmem:[%s0 + $0x248] sm:$0xff]
  %v537 = vld [vmem:[%s0 + $0x250] sm:$0xff]
  %544 = vrot.lane.b32.xlu0 %v532, 96
  %v545 = vpop.permute.xlu0 %544
  %546 = vrot.lane.b32.xlu0 %v533, 96
  %v547 = vpop.permute.xlu0 %546
  %548 = vrot.lane.b32.xlu0 %v534, 96
  %v549 = vpop.permute.xlu0 %548
  %550 = vrot.lane.b32.xlu0 %v535, 96
  %v551 = vpop.permute.xlu0 %550
  %552 = vrot.lane.b32.xlu0 %v536, 96
  %v553 = vpop.permute.xlu0 %552
  %554 = vrot.lane.b32.xlu0 %v537, 96
  %v555 = vpop.permute.xlu0 %554
  %vm556 = vcmask 785408
  %v557 = vsel %vm556, %v545, %v547
  %v558 = vsel %vm556, %v549, %v551
  %v559 = vsel %vm556, %v553, %v555
  %vm566 = vcmask 1047936
  %567 = vst.msk [vmem:[#allocation2 + $0x8] sm:$0xff] %vm566, %v557
  %568 = vst.msk [vmem:[#allocation2 + $0x10] sm:$0xff] %vm21, %v547
  %569 = vst.msk [vmem:[#allocation2 + $0xe8] sm:$0xff] %vm566, %v558
  %570 = vst.msk [vmem:[#allocation2 + $0xf0] sm:$0xff] %vm21, %v551
  %571 = vst.msk [vmem:[#allocation2 + $0x1c8] sm:$0xff] %vm566, %v559
  %572 = vst.msk [vmem:[#allocation2 + $0x1d0] sm:$0xff] %vm21, %v555
  %v573 = vlaneseq
  %v574 = vand.u32 %v573, 127
  %v575 = vadd.s32 %v574, 128
  %v576 = vadd.s32 %v574, 256
  %v577 = vadd.s32 %v574, 384
  %v578 = vadd.s32 %v574, 512
  %v579 = vadd.s32 %v574, 640
  %v580 = vadd.s32 %v574, 768
  %v581 = vadd.s32 %v574, 896
  %v582 = vadd.s32 %v574, 1024
  %v583 = vadd.s32 %v574, 1152
  %v584 = vadd.s32 %v574, 1280
  %v585 = vadd.s32 %v574, 1408
  %v586 = vadd.s32 %v574, 1536
  %v587 = vadd.s32 %v574, 1664
  %v588 = vadd.s32 %v574, 1792
  %v589 = vadd.s32 %v574, 1920
  %v590 = vadd.s32 %v574, 2048
  %v591 = vadd.s32 %v574, 2176
  %v592 = vadd.s32 %v574, 2304
  %v593 = vadd.s32 %v574, 2432
  %v594 = vadd.s32 %v574, 2560
  %v595 = vadd.s32 %v574, 2688
  %v596 = vadd.s32 %v574, 2816
  %v597 = vadd.s32 %v574, 2944
  %v598 = vadd.s32 %v574, 3072
  %v599 = vadd.s32 %v574, 3200
  %v600 = vadd.s32 %v574, 3328
  %vm601 = vcmp.lt.s32.totalorder %v574, 0
  %v602 = vsub.s32 0, %v574
  %v603 = vsel %vm601, %v602, %v574
  %v604 = vmul.u32.u64.compose %v603, 2454267026
  %v605 = vextract.low.u32 %v604
  %v606 = vextract.high.u32 %v604
  %vm607 = vc.u32 %v605, 2454267026
  %v608 = vsel %vm607, 1, 0
  %v609 = vadd.s32 %v606, %v608
  %v610 = vshrl.u32 %v609, 5
  %v611 = vmul.u32 %v610, 56
  %v612 = vsub.s32 %v603, %v611
  %v613 = vsub.s32 0, %v612
  %v614 = vsel %vm601, %v613, %v612
  %vm615 = vcmp.lt.s32.totalorder %v575, 0
  %v616 = vsub.s32 0, %v575
  %v617 = vsel %vm615, %v616, %v575
  %v618 = vmul.u32.u64.compose %v617, 2454267026
  %v619 = vextract.low.u32 %v618
  %v620 = vextract.high.u32 %v618
  %vm621 = vc.u32 %v619, 2454267026
  %v622 = vsel %vm621, 1, 0
  %v623 = vadd.s32 %v620, %v622
  %v624 = vshrl.u32 %v623, 5
  %v625 = vmul.u32 %v624, 56
  %v626 = vsub.s32 %v617, %v625
  %v627 = vsub.s32 0, %v626
  %v628 = vsel %vm615, %v627, %v626
  %vm629 = vcmp.lt.s32.totalorder %v576, 0
  %v630 = vsub.s32 0, %v576
  %v631 = vsel %vm629, %v630, %v576
  %v632 = vmul.u32.u64.compose %v631, 2454267026
  %v633 = vextract.low.u32 %v632
  %v634 = vextract.high.u32 %v632
  %vm635 = vc.u32 %v633, 2454267026
  %v636 = vsel %vm635, 1, 0
  %v637 = vadd.s32 %v634, %v636
  %v638 = vshrl.u32 %v637, 5
  %v639 = vmul.u32 %v638, 56
  %v640 = vsub.s32 %v631, %v639
  %v641 = vsub.s32 0, %v640
  %v642 = vsel %vm629, %v641, %v640
  %vm643 = vcmp.lt.s32.totalorder %v577, 0
  %v644 = vsub.s32 0, %v577
  %v645 = vsel %vm643, %v644, %v577
  %v646 = vmul.u32.u64.compose %v645, 2454267026
  %v647 = vextract.low.u32 %v646
  %v648 = vextract.high.u32 %v646
  %vm649 = vc.u32 %v647, 2454267026
  %v650 = vsel %vm649, 1, 0
  %v651 = vadd.s32 %v648, %v650
  %v652 = vshrl.u32 %v651, 5
  %v653 = vmul.u32 %v652, 56
  %v654 = vsub.s32 %v645, %v653
  %v655 = vsub.s32 0, %v654
  %v656 = vsel %vm643, %v655, %v654
  %vm657 = vcmp.lt.s32.totalorder %v578, 0
  %v658 = vsub.s32 0, %v578
  %v659 = vsel %vm657, %v658, %v578
  %v660 = vmul.u32.u64.compose %v659, 2454267026
  %v661 = vextract.low.u32 %v660
  %v662 = vextract.high.u32 %v660
  %vm663 = vc.u32 %v661, 2454267026
  %v664 = vsel %vm663, 1, 0
  %v665 = vadd.s32 %v662, %v664
  %v666 = vshrl.u32 %v665, 5
  %v667 = vmul.u32 %v666, 56
  %v668 = vsub.s32 %v659, %v667
  %v669 = vsub.s32 0, %v668
  %v670 = vsel %vm657, %v669, %v668
  %vm671 = vcmp.lt.s32.totalorder %v579, 0
  %v672 = vsub.s32 0, %v579
  %v673 = vsel %vm671, %v672, %v579
  %v674 = vmul.u32.u64.compose %v673, 2454267026
  %v675 = vextract.low.u32 %v674
  %v676 = vextract.high.u32 %v674
  %vm677 = vc.u32 %v675, 2454267026
  %v678 = vsel %vm677, 1, 0
  %v679 = vadd.s32 %v676, %v678
  %v680 = vshrl.u32 %v679, 5
  %v681 = vmul.u32 %v680, 56
  %v682 = vsub.s32 %v673, %v681
  %v683 = vsub.s32 0, %v682
  %v684 = vsel %vm671, %v683, %v682
  %vm685 = vcmp.lt.s32.totalorder %v580, 0
  %v686 = vsub.s32 0, %v580
  %v687 = vsel %vm685, %v686, %v580
  %v688 = vmul.u32.u64.compose %v687, 2454267026
  %v689 = vextract.low.u32 %v688
  %v690 = vextract.high.u32 %v688
  %vm691 = vc.u32 %v689, 2454267026
  %v692 = vsel %vm691, 1, 0
  %v693 = vadd.s32 %v690, %v692
  %v694 = vshrl.u32 %v693, 5
  %v695 = vmul.u32 %v694, 56
  %v696 = vsub.s32 %v687, %v695
  %v697 = vsub.s32 0, %v696
  %v698 = vsel %vm685, %v697, %v696
  %vm699 = vcmp.lt.s32.totalorder %v581, 0
  %v700 = vsub.s32 0, %v581
  %v701 = vsel %vm699, %v700, %v581
  %v702 = vmul.u32.u64.compose %v701, 2454267026
  %v703 = vextract.low.u32 %v702
  %v704 = vextract.high.u32 %v702
  %vm705 = vc.u32 %v703, 2454267026
  %v706 = vsel %vm705, 1, 0
  %v707 = vadd.s32 %v704, %v706
  %v708 = vshrl.u32 %v707, 5
  %v709 = vmul.u32 %v708, 56
  %v710 = vsub.s32 %v701, %v709
  %v711 = vsub.s32 0, %v710
  %v712 = vsel %vm699, %v711, %v710
  %vm713 = vcmp.lt.s32.totalorder %v582, 0
  %v714 = vsub.s32 0, %v582
  %v715 = vsel %vm713, %v714, %v582
  %v716 = vmul.u32.u64.compose %v715, 2454267026
  %v717 = vextract.low.u32 %v716
  %v718 = vextract.high.u32 %v716
  %vm719 = vc.u32 %v717, 2454267026
  %v720 = vsel %vm719, 1, 0
  %v721 = vadd.s32 %v718, %v720
  %v722 = vshrl.u32 %v721, 5
  %v723 = vmul.u32 %v722, 56
  %v724 = vsub.s32 %v715, %v723
  %v725 = vsub.s32 0, %v724
  %v726 = vsel %vm713, %v725, %v724
  %vm727 = vcmp.lt.s32.totalorder %v583, 0
  %v728 = vsub.s32 0, %v583
  %v729 = vsel %vm727, %v728, %v583
  %v730 = vmul.u32.u64.compose %v729, 2454267026
  %v731 = vextract.low.u32 %v730
  %v732 = vextract.high.u32 %v730
  %vm733 = vc.u32 %v731, 2454267026
  %v734 = vsel %vm733, 1, 0
  %v735 = vadd.s32 %v732, %v734
  %v736 = vshrl.u32 %v735, 5
  %v737 = vmul.u32 %v736, 56
  %v738 = vsub.s32 %v729, %v737
  %v739 = vsub.s32 0, %v738
  %v740 = vsel %vm727, %v739, %v738
  %vm741 = vcmp.lt.s32.totalorder %v584, 0
  %v742 = vsub.s32 0, %v584
  %v743 = vsel %vm741, %v742, %v584
  %v744 = vmul.u32.u64.compose %v743, 2454267026
  %v745 = vextract.low.u32 %v744
  %v746 = vextract.high.u32 %v744
  %vm747 = vc.u32 %v745, 2454267026
  %v748 = vsel %vm747, 1, 0
  %v749 = vadd.s32 %v746, %v748
  %v750 = vshrl.u32 %v749, 5
  %v751 = vmul.u32 %v750, 56
  %v752 = vsub.s32 %v743, %v751
  %v753 = vsub.s32 0, %v752
  %v754 = vsel %vm741, %v753, %v752
  %vm755 = vcmp.lt.s32.totalorder %v585, 0
  %v756 = vsub.s32 0, %v585
  %v757 = vsel %vm755, %v756, %v585
  %v758 = vmul.u32.u64.compose %v757, 2454267026
  %v759 = vextract.low.u32 %v758
  %v760 = vextract.high.u32 %v758
  %vm761 = vc.u32 %v759, 2454267026
  %v762 = vsel %vm761, 1, 0
  %v763 = vadd.s32 %v760, %v762
  %v764 = vshrl.u32 %v763, 5
  %v765 = vmul.u32 %v764, 56
  %v766 = vsub.s32 %v757, %v765
  %v767 = vsub.s32 0, %v766
  %v768 = vsel %vm755, %v767, %v766
  %vm769 = vcmp.lt.s32.totalorder %v586, 0
  %v770 = vsub.s32 0, %v586
  %v771 = vsel %vm769, %v770, %v586
  %v772 = vmul.u32.u64.compose %v771, 2454267026
  %v773 = vextract.low.u32 %v772
  %v774 = vextract.high.u32 %v772
  %vm775 = vc.u32 %v773, 2454267026
  %v776 = vsel %vm775, 1, 0
  %v777 = vadd.s32 %v774, %v776
  %v778 = vshrl.u32 %v777, 5
  %v779 = vmul.u32 %v778, 56
  %v780 = vsub.s32 %v771, %v779
  %v781 = vsub.s32 0, %v780
  %v782 = vsel %vm769, %v781, %v780
  %vm783 = vcmp.lt.s32.totalorder %v587, 0
  %v784 = vsub.s32 0, %v587
  %v785 = vsel %vm783, %v784, %v587
  %v786 = vmul.u32.u64.compose %v785, 2454267026
  %v787 = vextract.low.u32 %v786
  %v788 = vextract.high.u32 %v786
  %vm789 = vc.u32 %v787, 2454267026
  %v790 = vsel %vm789, 1, 0
  %v791 = vadd.s32 %v788, %v790
  %v792 = vshrl.u32 %v791, 5
  %v793 = vmul.u32 %v792, 56
  %v794 = vsub.s32 %v785, %v793
  %v795 = vsub.s32 0, %v794
  %v796 = vsel %vm783, %v795, %v794
  %vm797 = vcmp.lt.s32.totalorder %v588, 0
  %v798 = vsub.s32 0, %v588
  %v799 = vsel %vm797, %v798, %v588
  %v800 = vmul.u32.u64.compose %v799, 2454267026
  %v801 = vextract.low.u32 %v800
  %v802 = vextract.high.u32 %v800
  %vm803 = vc.u32 %v801, 2454267026
  %v804 = vsel %vm803, 1, 0
  %v805 = vadd.s32 %v802, %v804
  %v806 = vshrl.u32 %v805, 5
  %v807 = vmul.u32 %v806, 56
  %v808 = vsub.s32 %v799, %v807
  %v809 = vsub.s32 0, %v808
  %v810 = vsel %vm797, %v809, %v808
  %vm811 = vcmp.lt.s32.totalorder %v589, 0
  %v812 = vsub.s32 0, %v589
  %v813 = vsel %vm811, %v812, %v589
  %v814 = vmul.u32.u64.compose %v813, 2454267026
  %v815 = vextract.low.u32 %v814
  %v816 = vextract.high.u32 %v814
  %vm817 = vc.u32 %v815, 2454267026
  %v818 = vsel %vm817, 1, 0
  %v819 = vadd.s32 %v816, %v818
  %v820 = vshrl.u32 %v819, 5
  %v821 = vmul.u32 %v820, 56
  %v822 = vsub.s32 %v813, %v821
  %v823 = vsub.s32 0, %v822
  %v824 = vsel %vm811, %v823, %v822
  %vm825 = vcmp.lt.s32.totalorder %v590, 0
  %v826 = vsub.s32 0, %v590
  %v827 = vsel %vm825, %v826, %v590
  %v828 = vmul.u32.u64.compose %v827, 2454267026
  %v829 = vextract.low.u32 %v828
  %v830 = vextract.high.u32 %v828
  %vm831 = vc.u32 %v829, 2454267026
  %v832 = vsel %vm831, 1, 0
  %v833 = vadd.s32 %v830, %v832
  %v834 = vshrl.u32 %v833, 5
  %v835 = vmul.u32 %v834, 56
  %v836 = vsub.s32 %v827, %v835
  %v837 = vsub.s32 0, %v836
  %v838 = vsel %vm825, %v837, %v836
  %vm839 = vcmp.lt.s32.totalorder %v591, 0
  %v840 = vsub.s32 0, %v591
  %v841 = vsel %vm839, %v840, %v591
  %v842 = vmul.u32.u64.compose %v841, 2454267026
  %v843 = vextract.low.u32 %v842
  %v844 = vextract.high.u32 %v842
  %vm845 = vc.u32 %v843, 2454267026
  %v846 = vsel %vm845, 1, 0
  %v847 = vadd.s32 %v844, %v846
  %v848 = vshrl.u32 %v847, 5
  %v849 = vmul.u32 %v848, 56
  %v850 = vsub.s32 %v841, %v849
  %v851 = vsub.s32 0, %v850
  %v852 = vsel %vm839, %v851, %v850
  %vm853 = vcmp.lt.s32.totalorder %v592, 0
  %v854 = vsub.s32 0, %v592
  %v855 = vsel %vm853, %v854, %v592
  %v856 = vmul.u32.u64.compose %v855, 2454267026
  %v857 = vextract.low.u32 %v856
  %v858 = vextract.high.u32 %v856
  %vm859 = vc.u32 %v857, 2454267026
  %v860 = vsel %vm859, 1, 0
  %v861 = vadd.s32 %v858, %v860
  %v862 = vshrl.u32 %v861, 5
  %v863 = vmul.u32 %v862, 56
  %v864 = vsub.s32 %v855, %v863
  %v865 = vsub.s32 0, %v864
  %v866 = vsel %vm853, %v865, %v864
  %vm867 = vcmp.lt.s32.totalorder %v593, 0
  %v868 = vsub.s32 0, %v593
  %v869 = vsel %vm867, %v868, %v593
  %v870 = vmul.u32.u64.compose %v869, 2454267026
  %v871 = vextract.low.u32 %v870
  %v872 = vextract.high.u32 %v870
  %vm873 = vc.u32 %v871, 2454267026
  %v874 = vsel %vm873, 1, 0
  %v875 = vadd.s32 %v872, %v874
  %v876 = vshrl.u32 %v875, 5
  %v877 = vmul.u32 %v876, 56
  %v878 = vsub.s32 %v869, %v877
  %v879 = vsub.s32 0, %v878
  %v880 = vsel %vm867, %v879, %v878
  %vm881 = vcmp.lt.s32.totalorder %v594, 0
  %v882 = vsub.s32 0, %v594
  %v883 = vsel %vm881, %v882, %v594
  %v884 = vmul.u32.u64.compose %v883, 2454267026
  %v885 = vextract.low.u32 %v884
  %v886 = vextract.high.u32 %v884
  %vm887 = vc.u32 %v885, 2454267026
  %v888 = vsel %vm887, 1, 0
  %v889 = vadd.s32 %v886, %v888
  %v890 = vshrl.u32 %v889, 5
  %v891 = vmul.u32 %v890, 56
  %v892 = vsub.s32 %v883, %v891
  %v893 = vsub.s32 0, %v892
  %v894 = vsel %vm881, %v893, %v892
  %vm895 = vcmp.lt.s32.totalorder %v595, 0
  %v896 = vsub.s32 0, %v595
  %v897 = vsel %vm895, %v896, %v595
  %v898 = vmul.u32.u64.compose %v897, 2454267026
  %v899 = vextract.low.u32 %v898
  %v900 = vextract.high.u32 %v898
  %vm901 = vc.u32 %v899, 2454267026
  %v902 = vsel %vm901, 1, 0
  %v903 = vadd.s32 %v900, %v902
  %v904 = vshrl.u32 %v903, 5
  %v905 = vmul.u32 %v904, 56
  %v906 = vsub.s32 %v897, %v905
  %v907 = vsub.s32 0, %v906
  %v908 = vsel %vm895, %v907, %v906
  %vm909 = vcmp.lt.s32.totalorder %v596, 0
  %v910 = vsub.s32 0, %v596
  %v911 = vsel %vm909, %v910, %v596
  %v912 = vmul.u32.u64.compose %v911, 2454267026
  %v913 = vextract.low.u32 %v912
  %v914 = vextract.high.u32 %v912
  %vm915 = vc.u32 %v913, 2454267026
  %v916 = vsel %vm915, 1, 0
  %v917 = vadd.s32 %v914, %v916
  %v918 = vshrl.u32 %v917, 5
  %v919 = vmul.u32 %v918, 56
  %v920 = vsub.s32 %v911, %v919
  %v921 = vsub.s32 0, %v920
  %v922 = vsel %vm909, %v921, %v920
  %vm923 = vcmp.lt.s32.totalorder %v597, 0
  %v924 = vsub.s32 0, %v597
  %v925 = vsel %vm923, %v924, %v597
  %v926 = vmul.u32.u64.compose %v925, 2454267026
  %v927 = vextract.low.u32 %v926
  %v928 = vextract.high.u32 %v926
  %vm929 = vc.u32 %v927, 2454267026
  %v930 = vsel %vm929, 1, 0
  %v931 = vadd.s32 %v928, %v930
  %v932 = vshrl.u32 %v931, 5
  %v933 = vmul.u32 %v932, 56
  %v934 = vsub.s32 %v925, %v933
  %v935 = vsub.s32 0, %v934
  %v936 = vsel %vm923, %v935, %v934
  %vm937 = vcmp.lt.s32.totalorder %v598, 0
  %v938 = vsub.s32 0, %v598
  %v939 = vsel %vm937, %v938, %v598
  %v940 = vmul.u32.u64.compose %v939, 2454267026
  %v941 = vextract.low.u32 %v940
  %v942 = vextract.high.u32 %v940
  %vm943 = vc.u32 %v941, 2454267026
  %v944 = vsel %vm943, 1, 0
  %v945 = vadd.s32 %v942, %v944
  %v946 = vshrl.u32 %v945, 5
  %v947 = vmul.u32 %v946, 56
  %v948 = vsub.s32 %v939, %v947
  %v949 = vsub.s32 0, %v948
  %v950 = vsel %vm937, %v949, %v948
  %vm951 = vcmp.lt.s32.totalorder %v599, 0
  %v952 = vsub.s32 0, %v599
  %v953 = vsel %vm951, %v952, %v599
  %v954 = vmul.u32.u64.compose %v953, 2454267026
  %v955 = vextract.low.u32 %v954
  %v956 = vextract.high.u32 %v954
  %vm957 = vc.u32 %v955, 2454267026
  %v958 = vsel %vm957, 1, 0
  %v959 = vadd.s32 %v956, %v958
  %v960 = vshrl.u32 %v959, 5
  %v961 = vmul.u32 %v960, 56
  %v962 = vsub.s32 %v953, %v961
  %v963 = vsub.s32 0, %v962
  %v964 = vsel %vm951, %v963, %v962
  %vm965 = vcmp.lt.s32.totalorder %v600, 0
  %v966 = vsub.s32 0, %v600
  %v967 = vsel %vm965, %v966, %v600
  %v968 = vmul.u32.u64.compose %v967, 2454267026
  %v969 = vextract.low.u32 %v968
  %v970 = vextract.high.u32 %v968
  %vm971 = vc.u32 %v969, 2454267026
  %v972 = vsel %vm971, 1, 0
  %v973 = vadd.s32 %v970, %v972
  %v974 = vshrl.u32 %v973, 5
  %v975 = vmul.u32 %v974, 56
  %v976 = vsub.s32 %v967, %v975
  %v977 = vsub.s32 0, %v976
  %v978 = vsel %vm965, %v977, %v976
  %vm979 = vcmp.ne.s32.totalorder %v614, 0
  %vm980 = vcmp.ne.s32.totalorder %v628, 0
  %vm981 = vcmp.ne.s32.totalorder %v642, 0
  %vm982 = vcmp.ne.s32.totalorder %v656, 0
  %vm983 = vcmp.ne.s32.totalorder %v670, 0
  %vm984 = vcmp.ne.s32.totalorder %v684, 0
  %vm985 = vcmp.ne.s32.totalorder %v698, 0
  %vm986 = vcmp.ne.s32.totalorder %v712, 0
  %vm987 = vcmp.ne.s32.totalorder %v726, 0
  %vm988 = vcmp.ne.s32.totalorder %v740, 0
  %vm989 = vcmp.ne.s32.totalorder %v754, 0
  %vm990 = vcmp.ne.s32.totalorder %v768, 0
  %vm991 = vcmp.ne.s32.totalorder %v782, 0
  %vm992 = vcmp.ne.s32.totalorder %v796, 0
  %vm993 = vcmp.ne.s32.totalorder %v810, 0
  %vm994 = vcmp.ne.s32.totalorder %v824, 0
  %vm995 = vcmp.ne.s32.totalorder %v838, 0
  %vm996 = vcmp.ne.s32.totalorder %v852, 0
  %vm997 = vcmp.ne.s32.totalorder %v866, 0
  %vm998 = vcmp.ne.s32.totalorder %v880, 0
  %vm999 = vcmp.ne.s32.totalorder %v894, 0
  %vm1000 = vcmp.ne.s32.totalorder %v908, 0
  %vm1001 = vcmp.ne.s32.totalorder %v922, 0
  %vm1002 = vcmp.ne.s32.totalorder %v936, 0
  %vm1003 = vcmp.ne.s32.totalorder %v950, 0
  %vm1004 = vcmp.ne.s32.totalorder %v964, 0
  %vm1005 = vcmp.ne.s32.totalorder %v978, 0
  %vm1006 = vcmp.lt.s32.totalorder %v614, 0
  %vm1007 = vcmp.lt.s32.totalorder %v628, 0
  %vm1008 = vcmp.lt.s32.totalorder %v642, 0
  %vm1009 = vcmp.lt.s32.totalorder %v656, 0
  %vm1010 = vcmp.lt.s32.totalorder %v670, 0
  %vm1011 = vcmp.lt.s32.totalorder %v684, 0
  %vm1012 = vcmp.lt.s32.totalorder %v698, 0
  %vm1013 = vcmp.lt.s32.totalorder %v712, 0
  %vm1014 = vcmp.lt.s32.totalorder %v726, 0
  %vm1015 = vcmp.lt.s32.totalorder %v740, 0
  %vm1016 = vcmp.lt.s32.totalorder %v754, 0
  %vm1017 = vcmp.lt.s32.totalorder %v768, 0
  %vm1018 = vcmp.lt.s32.totalorder %v782, 0
  %vm1019 = vcmp.lt.s32.totalorder %v796, 0
  %vm1020 = vcmp.lt.s32.totalorder %v810, 0
  %vm1021 = vcmp.lt.s32.totalorder %v824, 0
  %vm1022 = vcmp.lt.s32.totalorder %v838, 0
  %vm1023 = vcmp.lt.s32.totalorder %v852, 0
  %vm1024 = vcmp.lt.s32.totalorder %v866, 0
  %vm1025 = vcmp.lt.s32.totalorder %v880, 0
  %vm1026 = vcmp.lt.s32.totalorder %v894, 0
  %vm1027 = vcmp.lt.s32.totalorder %v908, 0
  %vm1028 = vcmp.lt.s32.totalorder %v922, 0
  %vm1029 = vcmp.lt.s32.totalorder %v936, 0
  %vm1030 = vcmp.lt.s32.totalorder %v950, 0
  %vm1031 = vcmp.lt.s32.totalorder %v964, 0
  %vm1032 = vcmp.lt.s32.totalorder %v978, 0
  %vm1033 = vmand %vm1006, %vm979
  %vm1034 = vmand %vm1007, %vm980
  %vm1035 = vmand %vm1008, %vm981
  %vm1036 = vmand %vm1009, %vm982
  %vm1037 = vmand %vm1010, %vm983
  %vm1038 = vmand %vm1011, %vm984
  %vm1039 = vmand %vm1012, %vm985
  %vm1040 = vmand %vm1013, %vm986
  %vm1041 = vmand %vm1014, %vm987
  %vm1042 = vmand %vm1015, %vm988
  %vm1043 = vmand %vm1016, %vm989
  %vm1044 = vmand %vm1017, %vm990
  %vm1045 = vmand %vm1018, %vm991
  %vm1046 = vmand %vm1019, %vm992
  %vm1047 = vmand %vm1020, %vm993
  %vm1048 = vmand %vm1021, %vm994
  %vm1049 = vmand %vm1022, %vm995
  %vm1050 = vmand %vm1023, %vm996
  %vm1051 = vmand %vm1024, %vm997
  %vm1052 = vmand %vm1025, %vm998
  %vm1053 = vmand %vm1026, %vm999
  %vm1054 = vmand %vm1027, %vm1000
  %vm1055 = vmand %vm1028, %vm1001
  %vm1056 = vmand %vm1029, %vm1002
  %vm1057 = vmand %vm1030, %vm1003
  %vm1058 = vmand %vm1031, %vm1004
  %vm1059 = vmand %vm1032, %vm1005
  %v1060 = vadd.s32 %v614, 56
  %v1061 = vadd.s32 %v628, 56
  %v1062 = vadd.s32 %v642, 56
  %v1063 = vadd.s32 %v656, 56
  %v1064 = vadd.s32 %v670, 56
  %v1065 = vadd.s32 %v684, 56
  %v1066 = vadd.s32 %v698, 56
  %v1067 = vadd.s32 %v712, 56
  %v1068 = vadd.s32 %v726, 56
  %v1069 = vadd.s32 %v740, 56
  %v1070 = vadd.s32 %v754, 56
  %v1071 = vadd.s32 %v768, 56
  %v1072 = vadd.s32 %v782, 56
  %v1073 = vadd.s32 %v796, 56
  %v1074 = vadd.s32 %v810, 56
  %v1075 = vadd.s32 %v824, 56
  %v1076 = vadd.s32 %v838, 56
  %v1077 = vadd.s32 %v852, 56
  %v1078 = vadd.s32 %v866, 56
  %v1079 = vadd.s32 %v880, 56
  %v1080 = vadd.s32 %v894, 56
  %v1081 = vadd.s32 %v908, 56
  %v1082 = vadd.s32 %v922, 56
  %v1083 = vadd.s32 %v936, 56
  %v1084 = vadd.s32 %v950, 56
  %v1085 = vadd.s32 %v964, 56
  %v1086 = vadd.s32 %v978, 56
  %v1087 = vsel %vm1033, %v1060, %v614
  %v1088 = vsel %vm1034, %v1061, %v628
  %v1089 = vsel %vm1035, %v1062, %v642
  %v1090 = vsel %vm1036, %v1063, %v656
  %v1091 = vsel %vm1037, %v1064, %v670
  %v1092 = vsel %vm1038, %v1065, %v684
  %v1093 = vsel %vm1039, %v1066, %v698
  %v1094 = vsel %vm1040, %v1067, %v712
  %v1095 = vsel %vm1041, %v1068, %v726
  %v1096 = vsel %vm1042, %v1069, %v740
  %v1097 = vsel %vm1043, %v1070, %v754
  %v1098 = vsel %vm1044, %v1071, %v768
  %v1099 = vsel %vm1045, %v1072, %v782
  %v1100 = vsel %vm1046, %v1073, %v796
  %v1101 = vsel %vm1047, %v1074, %v810
  %v1102 = vsel %vm1048, %v1075, %v824
  %v1103 = vsel %vm1049, %v1076, %v838
  %v1104 = vsel %vm1050, %v1077, %v852
  %v1105 = vsel %vm1051, %v1078, %v866
  %v1106 = vsel %vm1052, %v1079, %v880
  %v1107 = vsel %vm1053, %v1080, %v894
  %v1108 = vsel %vm1054, %v1081, %v908
  %v1109 = vsel %vm1055, %v1082, %v922
  %v1110 = vsel %vm1056, %v1083, %v936
  %v1111 = vsel %vm1057, %v1084, %v950
  %v1112 = vsel %vm1058, %v1085, %v964
  %v1113 = vsel %vm1059, %v1086, %v978
  %vm1114 = vcmp.eq.s32.totalorder %v1087, 0
  %vm1115 = vcmp.eq.s32.totalorder %v1088, 0
  %vm1116 = vcmp.eq.s32.totalorder %v1089, 0
  %vm1117 = vcmp.eq.s32.totalorder %v1090, 0
  %vm1118 = vcmp.eq.s32.totalorder %v1091, 0
  %vm1119 = vcmp.eq.s32.totalorder %v1092, 0
  %vm1120 = vcmp.eq.s32.totalorder %v1093, 0
  %vm1121 = vcmp.eq.s32.totalorder %v1094, 0
  %vm1122 = vcmp.eq.s32.totalorder %v1095, 0
  %vm1123 = vcmp.eq.s32.totalorder %v1096, 0
  %vm1124 = vcmp.eq.s32.totalorder %v1097, 0
  %vm1125 = vcmp.eq.s32.totalorder %v1098, 0
  %vm1126 = vcmp.eq.s32.totalorder %v1099, 0
  %vm1127 = vcmp.eq.s32.totalorder %v1100, 0
  %vm1128 = vcmp.eq.s32.totalorder %v1101, 0
  %vm1129 = vcmp.eq.s32.totalorder %v1102, 0
  %vm1130 = vcmp.eq.s32.totalorder %v1103, 0
  %vm1131 = vcmp.eq.s32.totalorder %v1104, 0
  %vm1132 = vcmp.eq.s32.totalorder %v1105, 0
  %vm1133 = vcmp.eq.s32.totalorder %v1106, 0
  %vm1134 = vcmp.eq.s32.totalorder %v1107, 0
  %vm1135 = vcmp.eq.s32.totalorder %v1108, 0
  %vm1136 = vcmp.eq.s32.totalorder %v1109, 0
  %vm1137 = vcmp.eq.s32.totalorder %v1110, 0
  %vm1138 = vcmp.eq.s32.totalorder %v1111, 0
  %vm1139 = vcmp.eq.s32.totalorder %v1112, 0
  %vm1140 = vcmp.eq.s32.totalorder %v1113, 0
  %v1141 = vld [vmem:[#allocation2] sm:$0xff]
  %v1142 = vld [vmem:[#allocation2 + $0x8] sm:$0xff]
  %v1143 = vld [vmem:[#allocation2 + $0x10] sm:$0xff]
  %v1144 = vld [vmem:[#allocation2 + $0x18] sm:$0xff]
  %v1145 = vld [vmem:[#allocation2 + $0x20] sm:$0xff]
  %v1146 = vld [vmem:[#allocation2 + $0x28] sm:$0xff]
  %v1147 = vld [vmem:[#allocation2 + $0x30] sm:$0xff]
  %v1148 = vld [vmem:[#allocation2 + $0x38] sm:$0xff]
  %v1149 = vld [vmem:[#allocation2 + $0x40] sm:$0xff]
  %v1150 = vld [vmem:[#allocation2 + $0x48] sm:$0xff]
  %v1151 = vld [vmem:[#allocation2 + $0x50] sm:$0xff]
  %v1152 = vld [vmem:[#allocation2 + $0x58] sm:$0xff]
  %v1153 = vld [vmem:[#allocation2 + $0x60] sm:$0xff]
  %v1154 = vld [vmem:[#allocation2 + $0x68] sm:$0xff]
  %v1155 = vld [vmem:[#allocation2 + $0x70] sm:$0xff]
  %v1156 = vld [vmem:[#allocation2 + $0x78] sm:$0xff]
  %v1157 = vld [vmem:[#allocation2 + $0x80] sm:$0xff]
  %v1158 = vld [vmem:[#allocation2 + $0x88] sm:$0xff]
  %v1159 = vld [vmem:[#allocation2 + $0x90] sm:$0xff]
  %v1160 = vld [vmem:[#allocation2 + $0x98] sm:$0xff]
  %v1161 = vld [vmem:[#allocation2 + $0xa0] sm:$0xff]
  %v1162 = vld [vmem:[#allocation2 + $0xa8] sm:$0xff]
  %v1163 = vld [vmem:[#allocation2 + $0xb0] sm:$0xff]
  %v1164 = vld [vmem:[#allocation2 + $0xb8] sm:$0xff]
  %v1165 = vld [vmem:[#allocation2 + $0xc0] sm:$0xff]
  %v1166 = vld [vmem:[#allocation2 + $0xc8] sm:$0xff]
  %v1167 = vld [vmem:[#allocation2 + $0xd0] sm:$0xff]
  %v1168 = vld [vmem:[#allocation2 + $0xe0] sm:$0xff]
  %v1169 = vld [vmem:[#allocation2 + $0xe8] sm:$0xff]
  %v1170 = vld [vmem:[#allocation2 + $0xf0] sm:$0xff]
  %v1171 = vld [vmem:[#allocation2 + $0xf8] sm:$0xff]
  %v1172 = vld [vmem:[#allocation2 + $0x100] sm:$0xff]
  %v1173 = vld [vmem:[#allocation2 + $0x108] sm:$0xff]
  %v1174 = vld [vmem:[#allocation2 + $0x110] sm:$0xff]
  %v1175 = vld [vmem:[#allocation2 + $0x118] sm:$0xff]
  %v1176 = vld [vmem:[#allocation2 + $0x120] sm:$0xff]
  %v1177 = vld [vmem:[#allocation2 + $0x128] sm:$0xff]
  %v1178 = vld [vmem:[#allocation2 + $0x130] sm:$0xff]
  %v1179 = vld [vmem:[#allocation2 + $0x138] sm:$0xff]
  %v1180 = vld [vmem:[#allocation2 + $0x140] sm:$0xff]
  %v1181 = vld [vmem:[#allocation2 + $0x148] sm:$0xff]
  %v1182 = vld [vmem:[#allocation2 + $0x150] sm:$0xff]
  %v1183 = vld [vmem:[#allocation2 + $0x158] sm:$0xff]
  %v1184 = vld [vmem:[#allocation2 + $0x160] sm:$0xff]
  %v1185 = vld [vmem:[#allocation2 + $0x168] sm:$0xff]
  %v1186 = vld [vmem:[#allocation2 + $0x170] sm:$0xff]
  %v1187 = vld [vmem:[#allocation2 + $0x178] sm:$0xff]
  %v1188 = vld [vmem:[#allocation2 + $0x180] sm:$0xff]
  %v1189 = vld [vmem:[#allocation2 + $0x188] sm:$0xff]
  %v1190 = vld [vmem:[#allocation2 + $0x190] sm:$0xff]
  %v1191 = vld [vmem:[#allocation2 + $0x198] sm:$0xff]
  %v1192 = vld [vmem:[#allocation2 + $0x1a0] sm:$0xff]
  %v1193 = vld [vmem:[#allocation2 + $0x1a8] sm:$0xff]
  %v1194 = vld [vmem:[#allocation2 + $0x1b0] sm:$0xff]
  %v1195 = vld [vmem:[#allocation2 + $0x1c0] sm:$0xff]
  %v1196 = vld [vmem:[#allocation2 + $0x1c8] sm:$0xff]
  %v1197 = vld [vmem:[#allocation2 + $0x1d0] sm:$0xff]
  %v1198 = vld [vmem:[#allocation2 + $0x1d8] sm:$0xff]
  %v1199 = vld [vmem:[#allocation2 + $0x1e0] sm:$0xff]
  %v1200 = vld [vmem:[#allocation2 + $0x1e8] sm:$0xff]
  %v1201 = vld [vmem:[#allocation2 + $0x1f0] sm:$0xff]
  %v1202 = vld [vmem:[#allocation2 + $0x1f8] sm:$0xff]
  %v1203 = vld [vmem:[#allocation2 + $0x200] sm:$0xff]
  %v1204 = vld [vmem:[#allocation2 + $0x208] sm:$0xff]
  %v1205 = vld [vmem:[#allocation2 + $0x210] sm:$0xff]
  %v1206 = vld [vmem:[#allocation2 + $0x218] sm:$0xff]
  %v1207 = vld [vmem:[#allocation2 + $0x220] sm:$0xff]
  %v1208 = vld [vmem:[#allocation2 + $0x228] sm:$0xff]
  %v1209 = vld [vmem:[#allocation2 + $0x230] sm:$0xff]
  %v1210 = vld [vmem:[#allocation2 + $0x238] sm:$0xff]
  %v1211 = vld [vmem:[#allocation2 + $0x240] sm:$0xff]
  %v1212 = vld [vmem:[#allocation2 + $0x248] sm:$0xff]
  %v1213 = vld [vmem:[#allocation2 + $0x250] sm:$0xff]
  %v1214 = vld [vmem:[#allocation2 + $0x258] sm:$0xff]
  %v1215 = vld [vmem:[#allocation2 + $0x260] sm:$0xff]
  %v1216 = vld [vmem:[#allocation2 + $0x268] sm:$0xff]
  %v1217 = vld [vmem:[#allocation2 + $0x270] sm:$0xff]
  %v1218 = vld [vmem:[#allocation2 + $0x278] sm:$0xff]
  %v1219 = vld [vmem:[#allocation2 + $0x280] sm:$0xff]
  %v1220 = vld [vmem:[#allocation2 + $0x288] sm:$0xff]
  %v1221 = vld [vmem:[#allocation2 + $0x290] sm:$0xff]
  %v1222 = vld [vmem:[#allocation2 + $0xd8] sm:$0xff]
  %v1223 = vld [vmem:[#allocation2 + $0x1b8] sm:$0xff]
  %v1224 = vld [vmem:[#allocation2 + $0x298] sm:$0xff]
  %1309 = vrot.lane.b32.xlu0 %v1141, 9
  %v1310 = vpop.permute.xlu0 %1309
  %1311 = vrot.lane.b32.xlu0 %v1142, 9
  %v1312 = vpop.permute.xlu0 %1311
  %1313 = vrot.lane.b32.xlu0 %v1143, 9
  %v1314 = vpop.permute.xlu0 %1313
  %1315 = vrot.lane.b32.xlu0 %v1144, 9
  %v1316 = vpop.permute.xlu0 %1315
  %1317 = vrot.lane.b32.xlu0 %v1145, 9
  %v1318 = vpop.permute.xlu0 %1317
  %1319 = vrot.lane.b32.xlu0 %v1146, 9
  %v1320 = vpop.permute.xlu0 %1319
  %1321 = vrot.lane.b32.xlu0 %v1147, 9
  %v1322 = vpop.permute.xlu0 %1321
  %1323 = vrot.lane.b32.xlu0 %v1148, 9
  %v1324 = vpop.permute.xlu0 %1323
  %1325 = vrot.lane.b32.xlu0 %v1149, 9
  %v1326 = vpop.permute.xlu0 %1325
  %1327 = vrot.lane.b32.xlu0 %v1150, 9
  %v1328 = vpop.permute.xlu0 %1327
  %1329 = vrot.lane.b32.xlu0 %v1151, 9
  %v1330 = vpop.permute.xlu0 %1329
  %1331 = vrot.lane.b32.xlu0 %v1152, 9
  %v1332 = vpop.permute.xlu0 %1331
  %1333 = vrot.lane.b32.xlu0 %v1153, 9
  %v1334 = vpop.permute.xlu0 %1333
  %1335 = vrot.lane.b32.xlu0 %v1154, 9
  %v1336 = vpop.permute.xlu0 %1335
  %1337 = vrot.lane.b32.xlu0 %v1155, 9
  %v1338 = vpop.permute.xlu0 %1337
  %1339 = vrot.lane.b32.xlu0 %v1156, 9
  %v1340 = vpop.permute.xlu0 %1339
  %1341 = vrot.lane.b32.xlu0 %v1157, 9
  %v1342 = vpop.permute.xlu0 %1341
  %1343 = vrot.lane.b32.xlu0 %v1158, 9
  %v1344 = vpop.permute.xlu0 %1343
  %1345 = vrot.lane.b32.xlu0 %v1159, 9
  %v1346 = vpop.permute.xlu0 %1345
  %1347 = vrot.lane.b32.xlu0 %v1160, 9
  %v1348 = vpop.permute.xlu0 %1347
  %1349 = vrot.lane.b32.xlu0 %v1161, 9
  %v1350 = vpop.permute.xlu0 %1349
  %1351 = vrot.lane.b32.xlu0 %v1162, 9
  %v1352 = vpop.permute.xlu0 %1351
  %1353 = vrot.lane.b32.xlu0 %v1163, 9
  %v1354 = vpop.permute.xlu0 %1353
  %1355 = vrot.lane.b32.xlu0 %v1164, 9
  %v1356 = vpop.permute.xlu0 %1355
  %1357 = vrot.lane.b32.xlu0 %v1165, 9
  %v1358 = vpop.permute.xlu0 %1357
  %1359 = vrot.lane.b32.xlu0 %v1166, 9
  %v1360 = vpop.permute.xlu0 %1359
  %1361 = vrot.lane.b32.xlu0 %v1167, 9
  %v1362 = vpop.permute.xlu0 %1361
  %1363 = vrot.lane.b32.xlu0 %v1222, 9
  %v1364 = vpop.permute.xlu0 %1363
  %1365 = vrot.lane.b32.xlu0 %v1168, 9
  %v1366 = vpop.permute.xlu0 %1365
  %1367 = vrot.lane.b32.xlu0 %v1169, 9
  %v1368 = vpop.permute.xlu0 %1367
  %1369 = vrot.lane.b32.xlu0 %v1170, 9
  %v1370 = vpop.permute.xlu0 %1369
  %1371 = vrot.lane.b32.xlu0 %v1171, 9
  %v1372 = vpop.permute.xlu0 %1371
  %1373 = vrot.lane.b32.xlu0 %v1172, 9
  %v1374 = vpop.permute.xlu0 %1373
  %1375 = vrot.lane.b32.xlu0 %v1173, 9
  %v1376 = vpop.permute.xlu0 %1375
  %1377 = vrot.lane.b32.xlu0 %v1174, 9
  %v1378 = vpop.permute.xlu0 %1377
  %1379 = vrot.lane.b32.xlu0 %v1175, 9
  %v1380 = vpop.permute.xlu0 %1379
  %1381 = vrot.lane.b32.xlu0 %v1176, 9
  %v1382 = vpop.permute.xlu0 %1381
  %1383 = vrot.lane.b32.xlu0 %v1177, 9
  %v1384 = vpop.permute.xlu0 %1383
  %1385 = vrot.lane.b32.xlu0 %v1178, 9
  %v1386 = vpop.permute.xlu0 %1385
  %1387 = vrot.lane.b32.xlu0 %v1179, 9
  %v1388 = vpop.permute.xlu0 %1387
  %1389 = vrot.lane.b32.xlu0 %v1180, 9
  %v1390 = vpop.permute.xlu0 %1389
  %1391 = vrot.lane.b32.xlu0 %v1181, 9
  %v1392 = vpop.permute.xlu0 %1391
  %1393 = vrot.lane.b32.xlu0 %v1182, 9
  %v1394 = vpop.permute.xlu0 %1393
  %1395 = vrot.lane.b32.xlu0 %v1183, 9
  %v1396 = vpop.permute.xlu0 %1395
  %1397 = vrot.lane.b32.xlu0 %v1184, 9
  %v1398 = vpop.permute.xlu0 %1397
  %1399 = vrot.lane.b32.xlu0 %v1185, 9
  %v1400 = vpop.permute.xlu0 %1399
  %1401 = vrot.lane.b32.xlu0 %v1186, 9
  %v1402 = vpop.permute.xlu0 %1401
  %1403 = vrot.lane.b32.xlu0 %v1187, 9
  %v1404 = vpop.permute.xlu0 %1403
  %1405 = vrot.lane.b32.xlu0 %v1188, 9
  %v1406 = vpop.permute.xlu0 %1405
  %1407 = vrot.lane.b32.xlu0 %v1189, 9
  %v1408 = vpop.permute.xlu0 %1407
  %1409 = vrot.lane.b32.xlu0 %v1190, 9
  %v1410 = vpop.permute.xlu0 %1409
  %1411 = vrot.lane.b32.xlu0 %v1191, 9
  %v1412 = vpop.permute.xlu0 %1411
  %1413 = vrot.lane.b32.xlu0 %v1192, 9
  %v1414 = vpop.permute.xlu0 %1413
  %1415 = vrot.lane.b32.xlu0 %v1193, 9
  %v1416 = vpop.permute.xlu0 %1415
  %1417 = vrot.lane.b32.xlu0 %v1194, 9
  %v1418 = vpop.permute.xlu0 %1417
  %1419 = vrot.lane.b32.xlu0 %v1223, 9
  %v1420 = vpop.permute.xlu0 %1419
  %1421 = vrot.lane.b32.xlu0 %v1195, 9
  %v1422 = vpop.permute.xlu0 %1421
  %1423 = vrot.lane.b32.xlu0 %v1196, 9
  %v1424 = vpop.permute.xlu0 %1423
  %1425 = vrot.lane.b32.xlu0 %v1197, 9
  %v1426 = vpop.permute.xlu0 %1425
  %1427 = vrot.lane.b32.xlu0 %v1198, 9
  %v1428 = vpop.permute.xlu0 %1427
  %1429 = vrot.lane.b32.xlu0 %v1199, 9
  %v1430 = vpop.permute.xlu0 %1429
  %1431 = vrot.lane.b32.xlu0 %v1200, 9
  %v1432 = vpop.permute.xlu0 %1431
  %1433 = vrot.lane.b32.xlu0 %v1201, 9
  %v1434 = vpop.permute.xlu0 %1433
  %1435 = vrot.lane.b32.xlu0 %v1202, 9
  %v1436 = vpop.permute.xlu0 %1435
  %1437 = vrot.lane.b32.xlu0 %v1203, 9
  %v1438 = vpop.permute.xlu0 %1437
  %1439 = vrot.lane.b32.xlu0 %v1204, 9
  %v1440 = vpop.permute.xlu0 %1439
  %1441 = vrot.lane.b32.xlu0 %v1205, 9
  %v1442 = vpop.permute.xlu0 %1441
  %1443 = vrot.lane.b32.xlu0 %v1206, 9
  %v1444 = vpop.permute.xlu0 %1443
  %1445 = vrot.lane.b32.xlu0 %v1207, 9
  %v1446 = vpop.permute.xlu0 %1445
  %1447 = vrot.lane.b32.xlu0 %v1208, 9
  %v1448 = vpop.permute.xlu0 %1447
  %1449 = vrot.lane.b32.xlu0 %v1209, 9
  %v1450 = vpop.permute.xlu0 %1449
  %1451 = vrot.lane.b32.xlu0 %v1210, 9
  %v1452 = vpop.permute.xlu0 %1451
  %1453 = vrot.lane.b32.xlu0 %v1211, 9
  %v1454 = vpop.permute.xlu0 %1453
  %1455 = vrot.lane.b32.xlu0 %v1212, 9
  %v1456 = vpop.permute.xlu0 %1455
  %1457 = vrot.lane.b32.xlu0 %v1213, 9
  %v1458 = vpop.permute.xlu0 %1457
  %1459 = vrot.lane.b32.xlu0 %v1214, 9
  %v1460 = vpop.permute.xlu0 %1459
  %1461 = vrot.lane.b32.xlu0 %v1215, 9
  %v1462 = vpop.permute.xlu0 %1461
  %1463 = vrot.lane.b32.xlu0 %v1216, 9
  %v1464 = vpop.permute.xlu0 %1463
  %1465 = vrot.lane.b32.xlu0 %v1217, 9
  %v1466 = vpop.permute.xlu0 %1465
  %1467 = vrot.lane.b32.xlu0 %v1218, 9
  %v1468 = vpop.permute.xlu0 %1467
  %1469 = vrot.lane.b32.xlu0 %v1219, 9
  %v1470 = vpop.permute.xlu0 %1469
  %1471 = vrot.lane.b32.xlu0 %v1220, 9
  %v1472 = vpop.permute.xlu0 %1471
  %1473 = vrot.lane.b32.xlu0 %v1221, 9
  %v1474 = vpop.permute.xlu0 %1473
  %1475 = vrot.lane.b32.xlu0 %v1224, 9
  %v1476 = vpop.permute.xlu0 %1475
  %vm1477 = vcmask 72704
  %v1478 = vsel %vm1477, %v1310, %v1312
  %v1479 = vsel %vm1477, %v1312, %v1314
  %v1480 = vsel %vm1477, %v1314, %v1316
  %v1481 = vsel %vm1477, %v1316, %v1318
  %v1482 = vsel %vm1477, %v1318, %v1320
  %v1483 = vsel %vm1477, %v1320, %v1322
  %v1484 = vsel %vm1477, %v1322, %v1324
  %v1485 = vsel %vm1477, %v1324, %v1326
  %v1486 = vsel %vm1477, %v1326, %v1328
  %v1487 = vsel %vm1477, %v1328, %v1330
  %v1488 = vsel %vm1477, %v1330, %v1332
  %v1489 = vsel %vm1477, %v1332, %v1334
  %v1490 = vsel %vm1477, %v1334, %v1336
  %v1491 = vsel %vm1477, %v1336, %v1338
  %v1492 = vsel %vm1477, %v1338, %v1340
  %v1493 = vsel %vm1477, %v1340, %v1342
  %v1494 = vsel %vm1477, %v1342, %v1344
  %v1495 = vsel %vm1477, %v1344, %v1346
  %v1496 = vsel %vm1477, %v1346, %v1348
  %v1497 = vsel %vm1477, %v1348, %v1350
  %v1498 = vsel %vm1477, %v1350, %v1352
  %v1499 = vsel %vm1477, %v1352, %v1354
  %v1500 = vsel %vm1477, %v1354, %v1356
  %v1501 = vsel %vm1477, %v1356, %v1358
  %v1502 = vsel %vm1477, %v1358, %v1360
  %v1503 = vsel %vm1477, %v1360, %v1362
  %v1504 = vsel %vm1477, %v1362, %v1364
  %v1505 = vsel %vm1477, %v1366, %v1368
  %v1506 = vsel %vm1477, %v1368, %v1370
  %v1507 = vsel %vm1477, %v1370, %v1372
  %v1508 = vsel %vm1477, %v1372, %v1374
  %v1509 = vsel %vm1477, %v1374, %v1376
  %v1510 = vsel %vm1477, %v1376, %v1378
  %v1511 = vsel %vm1477, %v1378, %v1380
  %v1512 = vsel %vm1477, %v1380, %v1382
  %v1513 = vsel %vm1477, %v1382, %v1384
  %v1514 = vsel %vm1477, %v1384, %v1386
  %v1515 = vsel %vm1477, %v1386, %v1388
  %v1516 = vsel %vm1477, %v1388, %v1390
  %v1517 = vsel %vm1477, %v1390, %v1392
  %v1518 = vsel %vm1477, %v1392, %v1394
  %v1519 = vsel %vm1477, %v1394, %v1396
  %v1520 = vsel %vm1477, %v1396, %v1398
  %v1521 = vsel %vm1477, %v1398, %v1400
  %v1522 = vsel %vm1477, %v1400, %v1402
  %v1523 = vsel %vm1477, %v1402, %v1404
  %v1524 = vsel %vm1477, %v1404, %v1406
  %v1525 = vsel %vm1477, %v1406, %v1408
  %v1526 = vsel %vm1477, %v1408, %v1410
  %v1527 = vsel %vm1477, %v1410, %v1412
  %v1528 = vsel %vm1477, %v1412, %v1414
  %v1529 = vsel %vm1477, %v1414, %v1416
  %v1530 = vsel %vm1477, %v1416, %v1418
  %v1531 = vsel %vm1477, %v1418, %v1420
  %v1532 = vsel %vm1477, %v1422, %v1424
  %v1533 = vsel %vm1477, %v1424, %v1426
  %v1534 = vsel %vm1477, %v1426, %v1428
  %v1535 = vsel %vm1477, %v1428, %v1430
  %v1536 = vsel %vm1477, %v1430, %v1432
  %v1537 = vsel %vm1477, %v1432, %v1434
  %v1538 = vsel %vm1477, %v1434, %v1436
  %v1539 = vsel %vm1477, %v1436, %v1438
  %v1540 = vsel %vm1477, %v1438, %v1440
  %v1541 = vsel %vm1477, %v1440, %v1442
  %v1542 = vsel %vm1477, %v1442, %v1444
  %v1543 = vsel %vm1477, %v1444, %v1446
  %v1544 = vsel %vm1477, %v1446, %v1448
  %v1545 = vsel %vm1477, %v1448, %v1450
  %v1546 = vsel %vm1477, %v1450, %v1452
  %v1547 = vsel %vm1477, %v1452, %v1454
  %v1548 = vsel %vm1477, %v1454, %v1456
  %v1549 = vsel %vm1477, %v1456, %v1458
  %v1550 = vsel %vm1477, %v1458, %v1460
  %v1551 = vsel %vm1477, %v1460, %v1462
  %v1552 = vsel %vm1477, %v1462, %v1464
  %v1553 = vsel %vm1477, %v1464, %v1466
  %v1554 = vsel %vm1477, %v1466, %v1468
  %v1555 = vsel %vm1477, %v1468, %v1470
  %v1556 = vsel %vm1477, %v1470, %v1472
  %v1557 = vsel %vm1477, %v1472, %v1474
  %v1558 = vsel %vm1477, %v1474, %v1476
  %1640 = vrot.lane.b32.xlu0 %v1141, 65
  %v1641 = vpop.permute.xlu0 %1640
  %1642 = vrot.lane.b32.xlu0 %v1142, 65
  %v1643 = vpop.permute.xlu0 %1642
  %1644 = vrot.lane.b32.xlu0 %v1143, 65
  %v1645 = vpop.permute.xlu0 %1644
  %1646 = vrot.lane.b32.xlu0 %v1144, 65
  %v1647 = vpop.permute.xlu0 %1646
  %1648 = vrot.lane.b32.xlu0 %v1145, 65
  %v1649 = vpop.permute.xlu0 %1648
  %1650 = vrot.lane.b32.xlu0 %v1146, 65
  %v1651 = vpop.permute.xlu0 %1650
  %1652 = vrot.lane.b32.xlu0 %v1147, 65
  %v1653 = vpop.permute.xlu0 %1652
  %1654 = vrot.lane.b32.xlu0 %v1148, 65
  %v1655 = vpop.permute.xlu0 %1654
  %1656 = vrot.lane.b32.xlu0 %v1149, 65
  %v1657 = vpop.permute.xlu0 %1656
  %1658 = vrot.lane.b32.xlu0 %v1150, 65
  %v1659 = vpop.permute.xlu0 %1658
  %1660 = vrot.lane.b32.xlu0 %v1151, 65
  %v1661 = vpop.permute.xlu0 %1660
  %1662 = vrot.lane.b32.xlu0 %v1152, 65
  %v1663 = vpop.permute.xlu0 %1662
  %1664 = vrot.lane.b32.xlu0 %v1153, 65
  %v1665 = vpop.permute.xlu0 %1664
  %1666 = vrot.lane.b32.xlu0 %v1154, 65
  %v1667 = vpop.permute.xlu0 %1666
  %1668 = vrot.lane.b32.xlu0 %v1155, 65
  %v1669 = vpop.permute.xlu0 %1668
  %1670 = vrot.lane.b32.xlu0 %v1156, 65
  %v1671 = vpop.permute.xlu0 %1670
  %1672 = vrot.lane.b32.xlu0 %v1157, 65
  %v1673 = vpop.permute.xlu0 %1672
  %1674 = vrot.lane.b32.xlu0 %v1158, 65
  %v1675 = vpop.permute.xlu0 %1674
  %1676 = vrot.lane.b32.xlu0 %v1159, 65
  %v1677 = vpop.permute.xlu0 %1676
  %1678 = vrot.lane.b32.xlu0 %v1160, 65
  %v1679 = vpop.permute.xlu0 %1678
  %1680 = vrot.lane.b32.xlu0 %v1161, 65
  %v1681 = vpop.permute.xlu0 %1680
  %1682 = vrot.lane.b32.xlu0 %v1162, 65
  %v1683 = vpop.permute.xlu0 %1682
  %1684 = vrot.lane.b32.xlu0 %v1163, 65
  %v1685 = vpop.permute.xlu0 %1684
  %1686 = vrot.lane.b32.xlu0 %v1164, 65
  %v1687 = vpop.permute.xlu0 %1686
  %1688 = vrot.lane.b32.xlu0 %v1165, 65
  %v1689 = vpop.permute.xlu0 %1688
  %1690 = vrot.lane.b32.xlu0 %v1166, 65
  %v1691 = vpop.permute.xlu0 %1690
  %1692 = vrot.lane.b32.xlu0 %v1167, 65
  %v1693 = vpop.permute.xlu0 %1692
  %1694 = vrot.lane.b32.xlu0 %v1168, 65
  %v1695 = vpop.permute.xlu0 %1694
  %1696 = vrot.lane.b32.xlu0 %v1169, 65
  %v1697 = vpop.permute.xlu0 %1696
  %1698 = vrot.lane.b32.xlu0 %v1170, 65
  %v1699 = vpop.permute.xlu0 %1698
  %1700 = vrot.lane.b32.xlu0 %v1171, 65
  %v1701 = vpop.permute.xlu0 %1700
  %1702 = vrot.lane.b32.xlu0 %v1172, 65
  %v1703 = vpop.permute.xlu0 %1702
  %1704 = vrot.lane.b32.xlu0 %v1173, 65
  %v1705 = vpop.permute.xlu0 %1704
  %1706 = vrot.lane.b32.xlu0 %v1174, 65
  %v1707 = vpop.permute.xlu0 %1706
  %1708 = vrot.lane.b32.xlu0 %v1175, 65
  %v1709 = vpop.permute.xlu0 %1708
  %1710 = vrot.lane.b32.xlu0 %v1176, 65
  %v1711 = vpop.permute.xlu0 %1710
  %1712 = vrot.lane.b32.xlu0 %v1177, 65
  %v1713 = vpop.permute.xlu0 %1712
  %1714 = vrot.lane.b32.xlu0 %v1178, 65
  %v1715 = vpop.permute.xlu0 %1714
  %1716 = vrot.lane.b32.xlu0 %v1179, 65
  %v1717 = vpop.permute.xlu0 %1716
  %1718 = vrot.lane.b32.xlu0 %v1180, 65
  %v1719 = vpop.permute.xlu0 %1718
  %1720 = vrot.lane.b32.xlu0 %v1181, 65
  %v1721 = vpop.permute.xlu0 %1720
  %1722 = vrot.lane.b32.xlu0 %v1182, 65
  %v1723 = vpop.permute.xlu0 %1722
  %1724 = vrot.lane.b32.xlu0 %v1183, 65
  %v1725 = vpop.permute.xlu0 %1724
  %1726 = vrot.lane.b32.xlu0 %v1184, 65
  %v1727 = vpop.permute.xlu0 %1726
  %1728 = vrot.lane.b32.xlu0 %v1185, 65
  %v1729 = vpop.permute.xlu0 %1728
  %1730 = vrot.lane.b32.xlu0 %v1186, 65
  %v1731 = vpop.permute.xlu0 %1730
  %1732 = vrot.lane.b32.xlu0 %v1187, 65
  %v1733 = vpop.permute.xlu0 %1732
  %1734 = vrot.lane.b32.xlu0 %v1188, 65
  %v1735 = vpop.permute.xlu0 %1734
  %1736 = vrot.lane.b32.xlu0 %v1189, 65
  %v1737 = vpop.permute.xlu0 %1736
  %1738 = vrot.lane.b32.xlu0 %v1190, 65
  %v1739 = vpop.permute.xlu0 %1738
  %1740 = vrot.lane.b32.xlu0 %v1191, 65
  %v1741 = vpop.permute.xlu0 %1740
  %1742 = vrot.lane.b32.xlu0 %v1192, 65
  %v1743 = vpop.permute.xlu0 %1742
  %1744 = vrot.lane.b32.xlu0 %v1193, 65
  %v1745 = vpop.permute.xlu0 %1744
  %1746 = vrot.lane.b32.xlu0 %v1194, 65
  %v1747 = vpop.permute.xlu0 %1746
  %1748 = vrot.lane.b32.xlu0 %v1195, 65
  %v1749 = vpop.permute.xlu0 %1748
  %1750 = vrot.lane.b32.xlu0 %v1196, 65
  %v1751 = vpop.permute.xlu0 %1750
  %1752 = vrot.lane.b32.xlu0 %v1197, 65
  %v1753 = vpop.permute.xlu0 %1752
  %1754 = vrot.lane.b32.xlu0 %v1198, 65
  %v1755 = vpop.permute.xlu0 %1754
  %1756 = vrot.lane.b32.xlu0 %v1199, 65
  %v1757 = vpop.permute.xlu0 %1756
  %1758 = vrot.lane.b32.xlu0 %v1200, 65
  %v1759 = vpop.permute.xlu0 %1758
  %1760 = vrot.lane.b32.xlu0 %v1201, 65
  %v1761 = vpop.permute.xlu0 %1760
  %1762 = vrot.lane.b32.xlu0 %v1202, 65
  %v1763 = vpop.permute.xlu0 %1762
  %1764 = vrot.lane.b32.xlu0 %v1203, 65
  %v1765 = vpop.permute.xlu0 %1764
  %1766 = vrot.lane.b32.xlu0 %v1204, 65
  %v1767 = vpop.permute.xlu0 %1766
  %1768 = vrot.lane.b32.xlu0 %v1205, 65
  %v1769 = vpop.permute.xlu0 %1768
  %1770 = vrot.lane.b32.xlu0 %v1206, 65
  %v1771 = vpop.permute.xlu0 %1770
  %1772 = vrot.lane.b32.xlu0 %v1207, 65
  %v1773 = vpop.permute.xlu0 %1772
  %1774 = vrot.lane.b32.xlu0 %v1208, 65
  %v1775 = vpop.permute.xlu0 %1774
  %1776 = vrot.lane.b32.xlu0 %v1209, 65
  %v1777 = vpop.permute.xlu0 %1776
  %1778 = vrot.lane.b32.xlu0 %v1210, 65
  %v1779 = vpop.permute.xlu0 %1778
  %1780 = vrot.lane.b32.xlu0 %v1211, 65
  %v1781 = vpop.permute.xlu0 %1780
  %1782 = vrot.lane.b32.xlu0 %v1212, 65
  %v1783 = vpop.permute.xlu0 %1782
  %1784 = vrot.lane.b32.xlu0 %v1213, 65
  %v1785 = vpop.permute.xlu0 %1784
  %1786 = vrot.lane.b32.xlu0 %v1214, 65
  %v1787 = vpop.permute.xlu0 %1786
  %1788 = vrot.lane.b32.xlu0 %v1215, 65
  %v1789 = vpop.permute.xlu0 %1788
  %1790 = vrot.lane.b32.xlu0 %v1216, 65
  %v1791 = vpop.permute.xlu0 %1790
  %1792 = vrot.lane.b32.xlu0 %v1217, 65
  %v1793 = vpop.permute.xlu0 %1792
  %1794 = vrot.lane.b32.xlu0 %v1218, 65
  %v1795 = vpop.permute.xlu0 %1794
  %1796 = vrot.lane.b32.xlu0 %v1219, 65
  %v1797 = vpop.permute.xlu0 %1796
  %1798 = vrot.lane.b32.xlu0 %v1220, 65
  %v1799 = vpop.permute.xlu0 %1798
  %1800 = vrot.lane.b32.xlu0 %v1221, 65
  %v1801 = vpop.permute.xlu0 %1800
  %vm1802 = vcmask 531456
  %v1803 = vsel %vm1802, %v1641, %v1643
  %v1804 = vsel %vm1802, %v1643, %v1645
  %v1805 = vsel %vm1802, %v1645, %v1647
  %v1806 = vsel %vm1802, %v1647, %v1649
  %v1807 = vsel %vm1802, %v1649, %v1651
  %v1808 = vsel %vm1802, %v1651, %v1653
  %v1809 = vsel %vm1802, %v1653, %v1655
  %v1810 = vsel %vm1802, %v1655, %v1657
  %v1811 = vsel %vm1802, %v1657, %v1659
  %v1812 = vsel %vm1802, %v1659, %v1661
  %v1813 = vsel %vm1802, %v1661, %v1663
  %v1814 = vsel %vm1802, %v1663, %v1665
  %v1815 = vsel %vm1802, %v1665, %v1667
  %v1816 = vsel %vm1802, %v1667, %v1669
  %v1817 = vsel %vm1802, %v1669, %v1671
  %v1818 = vsel %vm1802, %v1671, %v1673
  %v1819 = vsel %vm1802, %v1673, %v1675
  %v1820 = vsel %vm1802, %v1675, %v1677
  %v1821 = vsel %vm1802, %v1677, %v1679
  %v1822 = vsel %vm1802, %v1679, %v1681
  %v1823 = vsel %vm1802, %v1681, %v1683
  %v1824 = vsel %vm1802, %v1683, %v1685
  %v1825 = vsel %vm1802, %v1685, %v1687
  %v1826 = vsel %vm1802, %v1687, %v1689
  %v1827 = vsel %vm1802, %v1689, %v1691
  %v1828 = vsel %vm1802, %v1691, %v1693
  %v1829 = vsel %vm1802, %v1695, %v1697
  %v1830 = vsel %vm1802, %v1697, %v1699
  %v1831 = vsel %vm1802, %v1699, %v1701
  %v1832 = vsel %vm1802, %v1701, %v1703
  %v1833 = vsel %vm1802, %v1703, %v1705
  %v1834 = vsel %vm1802, %v1705, %v1707
  %v1835 = vsel %vm1802, %v1707, %v1709
  %v1836 = vsel %vm1802, %v1709, %v1711
  %v1837 = vsel %vm1802, %v1711, %v1713
  %v1838 = vsel %vm1802, %v1713, %v1715
  %v1839 = vsel %vm1802, %v1715, %v1717
  %v1840 = vsel %vm1802, %v1717, %v1719
  %v1841 = vsel %vm1802, %v1719, %v1721
  %v1842 = vsel %vm1802, %v1721, %v1723
  %v1843 = vsel %vm1802, %v1723, %v1725
  %v1844 = vsel %vm1802, %v1725, %v1727
  %v1845 = vsel %vm1802, %v1727, %v1729
  %v1846 = vsel %vm1802, %v1729, %v1731
  %v1847 = vsel %vm1802, %v1731, %v1733
  %v1848 = vsel %vm1802, %v1733, %v1735
  %v1849 = vsel %vm1802, %v1735, %v1737
  %v1850 = vsel %vm1802, %v1737, %v1739
  %v1851 = vsel %vm1802, %v1739, %v1741
  %v1852 = vsel %vm1802, %v1741, %v1743
  %v1853 = vsel %vm1802, %v1743, %v1745
  %v1854 = vsel %vm1802, %v1745, %v1747
  %v1855 = vsel %vm1802, %v1749, %v1751
  %v1856 = vsel %vm1802, %v1751, %v1753
  %v1857 = vsel %vm1802, %v1753, %v1755
  %v1858 = vsel %vm1802, %v1755, %v1757
  %v1859 = vsel %vm1802, %v1757, %v1759
  %v1860 = vsel %vm1802, %v1759, %v1761
  %v1861 = vsel %vm1802, %v1761, %v1763
  %v1862 = vsel %vm1802, %v1763, %v1765
  %v1863 = vsel %vm1802, %v1765, %v1767
  %v1864 = vsel %vm1802, %v1767, %v1769
  %v1865 = vsel %vm1802, %v1769, %v1771
  %v1866 = vsel %vm1802, %v1771, %v1773
  %v1867 = vsel %vm1802, %v1773, %v1775
  %v1868 = vsel %vm1802, %v1775, %v1777
  %v1869 = vsel %vm1802, %v1777, %v1779
  %v1870 = vsel %vm1802, %v1779, %v1781
  %v1871 = vsel %vm1802, %v1781, %v1783
  %v1872 = vsel %vm1802, %v1783, %v1785
  %v1873 = vsel %vm1802, %v1785, %v1787
  %v1874 = vsel %vm1802, %v1787, %v1789
  %v1875 = vsel %vm1802, %v1789, %v1791
  %v1876 = vsel %vm1802, %v1791, %v1793
  %v1877 = vsel %vm1802, %v1793, %v1795
  %v1878 = vsel %vm1802, %v1795, %v1797
  %v1879 = vsel %vm1802, %v1797, %v1799
  %v1880 = vsel %vm1802, %v1799, %v1801
  %v1962 = vsel %vm1114, %v1478, %v1803
  %v1963 = vsel %vm1115, %v1479, %v1804
  %v1964 = vsel %vm1116, %v1480, %v1805
  %v1965 = vsel %vm1117, %v1481, %v1806
  %v1966 = vsel %vm1118, %v1482, %v1807
  %v1967 = vsel %vm1119, %v1483, %v1808
  %v1968 = vsel %vm1120, %v1484, %v1809
  %v1969 = vsel %vm1121, %v1485, %v1810
  %v1970 = vsel %vm1122, %v1486, %v1811
  %v1971 = vsel %vm1123, %v1487, %v1812
  %v1972 = vsel %vm1124, %v1488, %v1813
  %v1973 = vsel %vm1125, %v1489, %v1814
  %v1974 = vsel %vm1126, %v1490, %v1815
  %v1975 = vsel %vm1127, %v1491, %v1816
  %v1976 = vsel %vm1128, %v1492, %v1817
  %v1977 = vsel %vm1129, %v1493, %v1818
  %v1978 = vsel %vm1130, %v1494, %v1819
  %v1979 = vsel %vm1131, %v1495, %v1820
  %v1980 = vsel %vm1132, %v1496, %v1821
  %v1981 = vsel %vm1133, %v1497, %v1822
  %v1982 = vsel %vm1134, %v1498, %v1823
  %v1983 = vsel %vm1135, %v1499, %v1824
  %v1984 = vsel %vm1136, %v1500, %v1825
  %v1985 = vsel %vm1137, %v1501, %v1826
  %v1986 = vsel %vm1138, %v1502, %v1827
  %v1987 = vsel %vm1139, %v1503, %v1828
  %v1988 = vsel %vm1140, %v1504, %v1693
  %v1989 = vsel %vm1114, %v1505, %v1829
  %v1990 = vsel %vm1115, %v1506, %v1830
  %v1991 = vsel %vm1116, %v1507, %v1831
  %v1992 = vsel %vm1117, %v1508, %v1832
  %v1993 = vsel %vm1118, %v1509, %v1833
  %v1994 = vsel %vm1119, %v1510, %v1834
  %v1995 = vsel %vm1120, %v1511, %v1835
  %v1996 = vsel %vm1121, %v1512, %v1836
  %v1997 = vsel %vm1122, %v1513, %v1837
  %v1998 = vsel %vm1123, %v1514, %v1838
  %v1999 = vsel %vm1124, %v1515, %v1839
  %v2000 = vsel %vm1125, %v1516, %v1840
  %v2001 = vsel %vm1126, %v1517, %v1841
  %v2002 = vsel %vm1127, %v1518, %v1842
  %v2003 = vsel %vm1128, %v1519, %v1843
  %v2004 = vsel %vm1129, %v1520, %v1844
  %v2005 = vsel %vm1130, %v1521, %v1845
  %v2006 = vsel %vm1131, %v1522, %v1846
  %v2007 = vsel %vm1132, %v1523, %v1847
  %v2008 = vsel %vm1133, %v1524, %v1848
  %v2009 = vsel %vm1134, %v1525, %v1849
  %v2010 = vsel %vm1135, %v1526, %v1850
  %v2011 = vsel %vm1136, %v1527, %v1851
  %v2012 = vsel %vm1137, %v1528, %v1852
  %v2013 = vsel %vm1138, %v1529, %v1853
  %v2014 = vsel %vm1139, %v1530, %v1854
  %v2015 = vsel %vm1140, %v1531, %v1747
  %v2016 = vsel %vm1114, %v1532, %v1855
  %v2017 = vsel %vm1115, %v1533, %v1856
  %v2018 = vsel %vm1116, %v1534, %v1857
  %v2019 = vsel %vm1117, %v1535, %v1858
  %v2020 = vsel %vm1118, %v1536, %v1859
  %v2021 = vsel %vm1119, %v1537, %v1860
  %v2022 = vsel %vm1120, %v1538, %v1861
  %v2023 = vsel %vm1121, %v1539, %v1862
  %v2024 = vsel %vm1122, %v1540, %v1863
  %v2025 = vsel %vm1123, %v1541, %v1864
  %v2026 = vsel %vm1124, %v1542, %v1865
  %v2027 = vsel %vm1125, %v1543, %v1866
  %v2028 = vsel %vm1126, %v1544, %v1867
  %v2029 = vsel %vm1127, %v1545, %v1868
  %v2030 = vsel %vm1128, %v1546, %v1869
  %v2031 = vsel %vm1129, %v1547, %v1870
  %v2032 = vsel %vm1130, %v1548, %v1871
  %v2033 = vsel %vm1131, %v1549, %v1872
  %v2034 = vsel %vm1132, %v1550, %v1873
  %v2035 = vsel %vm1133, %v1551, %v1874
  %v2036 = vsel %vm1134, %v1552, %v1875
  %v2037 = vsel %vm1135, %v1553, %v1876
  %v2038 = vsel %vm1136, %v1554, %v1877
  %v2039 = vsel %vm1137, %v1555, %v1878
  %v2040 = vsel %vm1138, %v1556, %v1879
  %v2041 = vsel %vm1139, %v1557, %v1880
  %v2042 = vsel %vm1140, %v1558, %v1801
  %2043 = vst [vmem:[#allocation3] sm:$0xff] %v1962
  %2044 = vst [vmem:[#allocation3 + $0x8] sm:$0xff] %v1963
  %2045 = vst [vmem:[#allocation3 + $0x10] sm:$0xff] %v1964
  %2046 = vst [vmem:[#allocation3 + $0x18] sm:$0xff] %v1965
  %2047 = vst [vmem:[#allocation3 + $0x20] sm:$0xff] %v1966
  %2048 = vst [vmem:[#allocation3 + $0x28] sm:$0xff] %v1967
  %2049 = vst [vmem:[#allocation3 + $0x30] sm:$0xff] %v1968
  %2050 = vst [vmem:[#allocation3 + $0x38] sm:$0xff] %v1969
  %2051 = vst [vmem:[#allocation3 + $0x40] sm:$0xff] %v1970
  %2052 = vst [vmem:[#allocation3 + $0x48] sm:$0xff] %v1971
  %2053 = vst [vmem:[#allocation3 + $0x50] sm:$0xff] %v1972
  %2054 = vst [vmem:[#allocation3 + $0x58] sm:$0xff] %v1973
  %2055 = vst [vmem:[#allocation3 + $0x60] sm:$0xff] %v1974
  %2056 = vst [vmem:[#allocation3 + $0x68] sm:$0xff] %v1975
  %2057 = vst [vmem:[#allocation3 + $0x70] sm:$0xff] %v1976
  %2058 = vst [vmem:[#allocation3 + $0x78] sm:$0xff] %v1977
  %2059 = vst [vmem:[#allocation3 + $0x80] sm:$0xff] %v1978
  %2060 = vst [vmem:[#allocation3 + $0x88] sm:$0xff] %v1979
  %2061 = vst [vmem:[#allocation3 + $0x90] sm:$0xff] %v1980
  %2062 = vst [vmem:[#allocation3 + $0x98] sm:$0xff] %v1981
  %2063 = vst [vmem:[#allocation3 + $0xa0] sm:$0xff] %v1982
  %2064 = vst [vmem:[#allocation3 + $0xa8] sm:$0xff] %v1983
  %2065 = vst [vmem:[#allocation3 + $0xb0] sm:$0xff] %v1984
  %2066 = vst [vmem:[#allocation3 + $0xb8] sm:$0xff] %v1985
  %2067 = vst [vmem:[#allocation3 + $0xc0] sm:$0xff] %v1986
  %2068 = vst [vmem:[#allocation3 + $0xc8] sm:$0xff] %v1987
  %2069 = vst.msk [vmem:[#allocation3 + $0xd0] sm:$0xff] %vm21, %v1988
  %2070 = vst [vmem:[#allocation3 + $0xd8] sm:$0xff] %v1989
  %2071 = vst [vmem:[#allocation3 + $0xe0] sm:$0xff] %v1990
  %2072 = vst [vmem:[#allocation3 + $0xe8] sm:$0xff] %v1991
  %2073 = vst [vmem:[#allocation3 + $0xf0] sm:$0xff] %v1992
  %2074 = vst [vmem:[#allocation3 + $0xf8] sm:$0xff] %v1993
  %2075 = vst [vmem:[#allocation3 + $0x100] sm:$0xff] %v1994
  %2076 = vst [vmem:[#allocation3 + $0x108] sm:$0xff] %v1995
  %2077 = vst [vmem:[#allocation3 + $0x110] sm:$0xff] %v1996
  %2078 = vst [vmem:[#allocation3 + $0x118] sm:$0xff] %v1997
  %2079 = vst [vmem:[#allocation3 + $0x120] sm:$0xff] %v1998
  %2080 = vst [vmem:[#allocation3 + $0x128] sm:$0xff] %v1999
  %2081 = vst [vmem:[#allocation3 + $0x130] sm:$0xff] %v2000
  %2082 = vst [vmem:[#allocation3 + $0x138] sm:$0xff] %v2001
  %2083 = vst [vmem:[#allocation3 + $0x140] sm:$0xff] %v2002
  %2084 = vst [vmem:[#allocation3 + $0x148] sm:$0xff] %v2003
  %2085 = vst [vmem:[#allocation3 + $0x150] sm:$0xff] %v2004
  %2086 = vst [vmem:[#allocation3 + $0x158] sm:$0xff] %v2005
  %2087 = vst [vmem:[#allocation3 + $0x160] sm:$0xff] %v2006
  %2088 = vst [vmem:[#allocation3 + $0x168] sm:$0xff] %v2007
  %2089 = vst [vmem:[#allocation3 + $0x170] sm:$0xff] %v2008
  %2090 = vst [vmem:[#allocation3 + $0x178] sm:$0xff] %v2009
  %2091 = vst [vmem:[#allocation3 + $0x180] sm:$0xff] %v2010
  %2092 = vst [vmem:[#allocation3 + $0x188] sm:$0xff] %v2011
  %2093 = vst [vmem:[#allocation3 + $0x190] sm:$0xff] %v2012
  %2094 = vst [vmem:[#allocation3 + $0x198] sm:$0xff] %v2013
  %2095 = vst [vmem:[#allocation3 + $0x1a0] sm:$0xff] %v2014
  %2096 = vst.msk [vmem:[#allocation3 + $0x1a8] sm:$0xff] %vm21, %v2015
  %2097 = vst [vmem:[#allocation3 + $0x1b0] sm:$0xff] %v2016
  %2098 = vst [vmem:[#allocation3 + $0x1b8] sm:$0xff] %v2017
  %2099 = vst [vmem:[#allocation3 + $0x1c0] sm:$0xff] %v2018
  %2100 = vst [vmem:[#allocation3 + $0x1c8] sm:$0xff] %v2019
  %2101 = vst [vmem:[#allocation3 + $0x1d0] sm:$0xff] %v2020
  %2102 = vst [vmem:[#allocation3 + $0x1d8] sm:$0xff] %v2021
  %2103 = vst [vmem:[#allocation3 + $0x1e0] sm:$0xff] %v2022
  %2104 = vst [vmem:[#allocation3 + $0x1e8] sm:$0xff] %v2023
  %2105 = vst [vmem:[#allocation3 + $0x1f0] sm:$0xff] %v2024
  %2106 = vst [vmem:[#allocation3 + $0x1f8] sm:$0xff] %v2025
  %2107 = vst [vmem:[#allocation3 + $0x200] sm:$0xff] %v2026
  %2108 = vst [vmem:[#allocation3 + $0x208] sm:$0xff] %v2027
  %2109 = vst [vmem:[#allocation3 + $0x210] sm:$0xff] %v2028
  %2110 = vst [vmem:[#allocation3 + $0x218] sm:$0xff] %v2029
  %2111 = vst [vmem:[#allocation3 + $0x220] sm:$0xff] %v2030
  %2112 = vst [vmem:[#allocation3 + $0x228] sm:$0xff] %v2031
  %2113 = vst [vmem:[#allocation3 + $0x230] sm:$0xff] %v2032
  %2114 = vst [vmem:[#allocation3 + $0x238] sm:$0xff] %v2033
  %2115 = vst [vmem:[#allocation3 + $0x240] sm:$0xff] %v2034
  %2116 = vst [vmem:[#allocation3 + $0x248] sm:$0xff] %v2035
  %2117 = vst [vmem:[#allocation3 + $0x250] sm:$0xff] %v2036
  %2118 = vst [vmem:[#allocation3 + $0x258] sm:$0xff] %v2037
  %2119 = vst [vmem:[#allocation3 + $0x260] sm:$0xff] %v2038
  %2120 = vst [vmem:[#allocation3 + $0x268] sm:$0xff] %v2039
  %2121 = vst [vmem:[#allocation3 + $0x270] sm:$0xff] %v2040
  %2122 = vst [vmem:[#allocation3 + $0x278] sm:$0xff] %v2041
  %2123 = vst.msk [vmem:[#allocation3 + $0x280] sm:$0xff] %vm21, %v2042
  %v2124 = vld [vmem:[%s1] sm:$0xff]
  %v2125 = vld [vmem:[%s1 + $0x8] sm:$0xff]
  %v2126 = vld [vmem:[%s1 + $0x10] sm:$0xff]
  %v2127 = vld [vmem:[%s1 + $0x18] sm:$0xff]
  %v2128 = vld [vmem:[%s1 + $0x20] sm:$0xff]
  %v2129 = vld [vmem:[%s1 + $0x28] sm:$0xff]
  %v2130 = vld [vmem:[%s1 + $0x30] sm:$0xff]
  %v2131 = vld [vmem:[%s1 + $0x38] sm:$0xff]
  %v2132 = vld [vmem:[%s1 + $0x40] sm:$0xff]
  %v2133 = vld [vmem:[%s1 + $0x48] sm:$0xff]
  %v2134 = vld [vmem:[%s1 + $0x50] sm:$0xff]
  %v2135 = vld [vmem:[%s1 + $0x58] sm:$0xff]
  %v2136 = vld [vmem:[#allocation3] sm:$0xff]
  %v2137 = vld [vmem:[#allocation3 + $0x8] sm:$0xff]
  %v2138 = vld [vmem:[#allocation3 + $0x10] sm:$0xff]
  %v2139 = vld [vmem:[#allocation3 + $0x18] sm:$0xff]
  %v2140 = vld [vmem:[#allocation3 + $0x20] sm:$0xff]
  %v2141 = vld [vmem:[#allocation3 + $0x28] sm:$0xff]
  %v2142 = vld [vmem:[#allocation3 + $0x30] sm:$0xff]
  %v2143 = vld [vmem:[#allocation3 + $0x38] sm:$0xff]
  %v2144 = vld [vmem:[#allocation3 + $0x40] sm:$0xff]
  %v2145 = vld [vmem:[#allocation3 + $0x48] sm:$0xff]
  %v2146 = vld [vmem:[#allocation3 + $0x50] sm:$0xff]
  %v2147 = vld [vmem:[#allocation3 + $0x58] sm:$0xff]
  %v2148 = vld [vmem:[#allocation3 + $0x60] sm:$0xff]
  %v2149 = vld [vmem:[#allocation3 + $0x68] sm:$0xff]
  %v2150 = vld [vmem:[#allocation3 + $0x70] sm:$0xff]
  %v2151 = vld [vmem:[#allocation3 + $0x78] sm:$0xff]
  %v2152 = vld [vmem:[#allocation3 + $0x80] sm:$0xff]
  %v2153 = vld [vmem:[#allocation3 + $0x88] sm:$0xff]
  %v2154 = vld [vmem:[#allocation3 + $0x90] sm:$0xff]
  %v2155 = vld [vmem:[#allocation3 + $0x98] sm:$0xff]
  %v2156 = vld [vmem:[#allocation3 + $0xa0] sm:$0xff]
  %v2157 = vld [vmem:[#allocation3 + $0xa8] sm:$0xff]
  %v2158 = vld [vmem:[#allocation3 + $0xb0] sm:$0xff]
  %v2159 = vld [vmem:[#allocation3 + $0xb8] sm:$0xff]
  %v2160 = vld [vmem:[#allocation3 + $0xc0] sm:$0xff]
  %v2161 = vld [vmem:[#allocation3 + $0xd8] sm:$0xff]
  %v2162 = vld [vmem:[#allocation3 + $0xe0] sm:$0xff]
  %v2163 = vld [vmem:[#allocation3 + $0xe8] sm:$0xff]
  %v2164 = vld [vmem:[#allocation3 + $0xf0] sm:$0xff]
  %v2165 = vld [vmem:[#allocation3 + $0xf8] sm:$0xff]
  %v2166 = vld [vmem:[#allocation3 + $0x100] sm:$0xff]
  %v2167 = vld [vmem:[#allocation3 + $0x108] sm:$0xff]
  %v2168 = vld [vmem:[#allocation3 + $0x110] sm:$0xff]
  %v2169 = vld [vmem:[#allocation3 + $0x118] sm:$0xff]
  %v2170 = vld [vmem:[#allocation3 + $0x120] sm:$0xff]
  %v2171 = vld [vmem:[#allocation3 + $0x128] sm:$0xff]
  %v2172 = vld [vmem:[#allocation3 + $0x130] sm:$0xff]
  %v2173 = vld [vmem:[#allocation3 + $0x138] sm:$0xff]
  %v2174 = vld [vmem:[#allocation3 + $0x140] sm:$0xff]
  %v2175 = vld [vmem:[#allocation3 + $0x148] sm:$0xff]
  %v2176 = vld [vmem:[#allocation3 + $0x150] sm:$0xff]
  %v2177 = vld [vmem:[#allocation3 + $0x158] sm:$0xff]
  %v2178 = vld [vmem:[#allocation3 + $0x160] sm:$0xff]
  %v2179 = vld [vmem:[#allocation3 + $0x168] sm:$0xff]
  %v2180 = vld [vmem:[#allocation3 + $0x170] sm:$0xff]
  %v2181 = vld [vmem:[#allocation3 + $0x178] sm:$0xff]
  %v2182 = vld [vmem:[#allocation3 + $0x180] sm:$0xff]
  %v2183 = vld [vmem:[#allocation3 + $0x188] sm:$0xff]
  %v2184 = vld [vmem:[#allocation3 + $0x190] sm:$0xff]
  %v2185 = vld [vmem:[#allocation3 + $0x198] sm:$0xff]
  %v2186 = vld [vmem:[#allocation3 + $0x1b0] sm:$0xff]
  %v2187 = vld [vmem:[#allocation3 + $0x1b8] sm:$0xff]
  %v2188 = vld [vmem:[#allocation3 + $0x1c0] sm:$0xff]
  %v2189 = vld [vmem:[#allocation3 + $0x1c8] sm:$0xff]
  %v2190 = vld [vmem:[#allocation3 + $0x1d0] sm:$0xff]
  %v2191 = vld [vmem:[#allocation3 + $0x1d8] sm:$0xff]
  %v2192 = vld [vmem:[#allocation3 + $0x1e0] sm:$0xff]
  %v2193 = vld [vmem:[#allocation3 + $0x1e8] sm:$0xff]
  %v2194 = vld [vmem:[#allocation3 + $0x1f0] sm:$0xff]
  %v2195 = vld [vmem:[#allocation3 + $0x1f8] sm:$0xff]
  %v2196 = vld [vmem:[#allocation3 + $0x200] sm:$0xff]
  %v2197 = vld [vmem:[#allocation3 + $0x208] sm:$0xff]
  %v2198 = vld [vmem:[#allocation3 + $0x210] sm:$0xff]
  %v2199 = vld [vmem:[#allocation3 + $0x218] sm:$0xff]
  %v2200 = vld [vmem:[#allocation3 + $0x220] sm:$0xff]
  %v2201 = vld [vmem:[#allocation3 + $0x228] sm:$0xff]
  %v2202 = vld [vmem:[#allocation3 + $0x230] sm:$0xff]
  %v2203 = vld [vmem:[#allocation3 + $0x238] sm:$0xff]
  %v2204 = vld [vmem:[#allocation3 + $0x240] sm:$0xff]
  %v2205 = vld [vmem:[#allocation3 + $0x248] sm:$0xff]
  %v2206 = vld [vmem:[#allocation3 + $0x250] sm:$0xff]
  %v2207 = vld [vmem:[#allocation3 + $0x258] sm:$0xff]
  %v2208 = vld [vmem:[#allocation3 + $0x260] sm:$0xff]
  %v2209 = vld [vmem:[#allocation3 + $0x268] sm:$0xff]
  %v2210 = vld [vmem:[#allocation3 + $0x270] sm:$0xff]
  %s2211 = scalar_lea.vmem %s1, 96
  %v2212 = vld [vmem:[%s2211] sm:$0xff]
  %v2213 = vld [vmem:[%s2211 + $0x8] sm:$0xff]
  %v2214 = vld [vmem:[%s2211 + $0x10] sm:$0xff]
  %v2215 = vld [vmem:[%s2211 + $0x18] sm:$0xff]
  %v2216 = vld [vmem:[%s2211 + $0x20] sm:$0xff]
  %v2217 = vld [vmem:[%s2211 + $0x28] sm:$0xff]
  %v2218 = vld [vmem:[%s2211 + $0x30] sm:$0xff]
  %v2219 = vld [vmem:[%s2211 + $0x38] sm:$0xff]
  %v2220 = vld [vmem:[%s2211 + $0x40] sm:$0xff]
  %v2221 = vld [vmem:[%s2211 + $0x48] sm:$0xff]
  %v2222 = vld [vmem:[%s2211 + $0x50] sm:$0xff]
  %v2223 = vld [vmem:[%s2211 + $0x58] sm:$0xff]
  %v2224 = vld [vmem:[#allocation3 + $0xc8] sm:$0xff]
  %v2225 = vld [vmem:[#allocation3 + $0x1a0] sm:$0xff]
  %v2226 = vld [vmem:[#allocation3 + $0x278] sm:$0xff]
  %2305 = vrot.lane.b32.xlu0 %v2136, 16
  %v2306 = vpop.permute.xlu0 %2305
  %2307 = vrot.lane.b32.xlu0 %v2137, 16
  %v2308 = vpop.permute.xlu0 %2307
  %2309 = vrot.lane.b32.xlu0 %v2138, 16
  %v2310 = vpop.permute.xlu0 %2309
  %2311 = vrot.lane.b32.xlu0 %v2139, 16
  %v2312 = vpop.permute.xlu0 %2311
  %2313 = vrot.lane.b32.xlu0 %v2140, 16
  %v2314 = vpop.permute.xlu0 %2313
  %2315 = vrot.lane.b32.xlu0 %v2141, 16
  %v2316 = vpop.permute.xlu0 %2315
  %2317 = vrot.lane.b32.xlu0 %v2142, 16
  %v2318 = vpop.permute.xlu0 %2317
  %2319 = vrot.lane.b32.xlu0 %v2143, 16
  %v2320 = vpop.permute.xlu0 %2319
  %2321 = vrot.lane.b32.xlu0 %v2144, 16
  %v2322 = vpop.permute.xlu0 %2321
  %2323 = vrot.lane.b32.xlu0 %v2145, 16
  %v2324 = vpop.permute.xlu0 %2323
  %2325 = vrot.lane.b32.xlu0 %v2146, 16
  %v2326 = vpop.permute.xlu0 %2325
  %2327 = vrot.lane.b32.xlu0 %v2147, 16
  %v2328 = vpop.permute.xlu0 %2327
  %2329 = vrot.lane.b32.xlu0 %v2148, 16
  %v2330 = vpop.permute.xlu0 %2329
  %2331 = vrot.lane.b32.xlu0 %v2149, 16
  %v2332 = vpop.permute.xlu0 %2331
  %2333 = vrot.lane.b32.xlu0 %v2150, 16
  %v2334 = vpop.permute.xlu0 %2333
  %2335 = vrot.lane.b32.xlu0 %v2151, 16
  %v2336 = vpop.permute.xlu0 %2335
  %2337 = vrot.lane.b32.xlu0 %v2152, 16
  %v2338 = vpop.permute.xlu0 %2337
  %2339 = vrot.lane.b32.xlu0 %v2153, 16
  %v2340 = vpop.permute.xlu0 %2339
  %2341 = vrot.lane.b32.xlu0 %v2154, 16
  %v2342 = vpop.permute.xlu0 %2341
  %2343 = vrot.lane.b32.xlu0 %v2155, 16
  %v2344 = vpop.permute.xlu0 %2343
  %2345 = vrot.lane.b32.xlu0 %v2156, 16
  %v2346 = vpop.permute.xlu0 %2345
  %2347 = vrot.lane.b32.xlu0 %v2157, 16
  %v2348 = vpop.permute.xlu0 %2347
  %2349 = vrot.lane.b32.xlu0 %v2158, 16
  %v2350 = vpop.permute.xlu0 %2349
  %2351 = vrot.lane.b32.xlu0 %v2159, 16
  %v2352 = vpop.permute.xlu0 %2351
  %2353 = vrot.lane.b32.xlu0 %v2160, 16
  %v2354 = vpop.permute.xlu0 %2353
  %2355 = vrot.lane.b32.xlu0 %v2224, 16
  %v2356 = vpop.permute.xlu0 %2355
  %2357 = vrot.lane.b32.xlu0 %v2161, 16
  %v2358 = vpop.permute.xlu0 %2357
  %2359 = vrot.lane.b32.xlu0 %v2162, 16
  %v2360 = vpop.permute.xlu0 %2359
  %2361 = vrot.lane.b32.xlu0 %v2163, 16
  %v2362 = vpop.permute.xlu0 %2361
  %2363 = vrot.lane.b32.xlu0 %v2164, 16
  %v2364 = vpop.permute.xlu0 %2363
  %2365 = vrot.lane.b32.xlu0 %v2165, 16
  %v2366 = vpop.permute.xlu0 %2365
  %2367 = vrot.lane.b32.xlu0 %v2166, 16
  %v2368 = vpop.permute.xlu0 %2367
  %2369 = vrot.lane.b32.xlu0 %v2167, 16
  %v2370 = vpop.permute.xlu0 %2369
  %2371 = vrot.lane.b32.xlu0 %v2168, 16
  %v2372 = vpop.permute.xlu0 %2371
  %2373 = vrot.lane.b32.xlu0 %v2169, 16
  %v2374 = vpop.permute.xlu0 %2373
  %2375 = vrot.lane.b32.xlu0 %v2170, 16
  %v2376 = vpop.permute.xlu0 %2375
  %2377 = vrot.lane.b32.xlu0 %v2171, 16
  %v2378 = vpop.permute.xlu0 %2377
  %2379 = vrot.lane.b32.xlu0 %v2172, 16
  %v2380 = vpop.permute.xlu0 %2379
  %2381 = vrot.lane.b32.xlu0 %v2173, 16
  %v2382 = vpop.permute.xlu0 %2381
  %2383 = vrot.lane.b32.xlu0 %v2174, 16
  %v2384 = vpop.permute.xlu0 %2383
  %2385 = vrot.lane.b32.xlu0 %v2175, 16
  %v2386 = vpop.permute.xlu0 %2385
  %2387 = vrot.lane.b32.xlu0 %v2176, 16
  %v2388 = vpop.permute.xlu0 %2387
  %2389 = vrot.lane.b32.xlu0 %v2177, 16
  %v2390 = vpop.permute.xlu0 %2389
  %2391 = vrot.lane.b32.xlu0 %v2178, 16
  %v2392 = vpop.permute.xlu0 %2391
  %2393 = vrot.lane.b32.xlu0 %v2179, 16
  %v2394 = vpop.permute.xlu0 %2393
  %2395 = vrot.lane.b32.xlu0 %v2180, 16
  %v2396 = vpop.permute.xlu0 %2395
  %2397 = vrot.lane.b32.xlu0 %v2181, 16
  %v2398 = vpop.permute.xlu0 %2397
  %2399 = vrot.lane.b32.xlu0 %v2182, 16
  %v2400 = vpop.permute.xlu0 %2399
  %2401 = vrot.lane.b32.xlu0 %v2183, 16
  %v2402 = vpop.permute.xlu0 %2401
  %2403 = vrot.lane.b32.xlu0 %v2184, 16
  %v2404 = vpop.permute.xlu0 %2403
  %2405 = vrot.lane.b32.xlu0 %v2185, 16
  %v2406 = vpop.permute.xlu0 %2405
  %2407 = vrot.lane.b32.xlu0 %v2225, 16
  %v2408 = vpop.permute.xlu0 %2407
  %2409 = vrot.lane.b32.xlu0 %v2186, 16
  %v2410 = vpop.permute.xlu0 %2409
  %2411 = vrot.lane.b32.xlu0 %v2187, 16
  %v2412 = vpop.permute.xlu0 %2411
  %2413 = vrot.lane.b32.xlu0 %v2188, 16
  %v2414 = vpop.permute.xlu0 %2413
  %2415 = vrot.lane.b32.xlu0 %v2189, 16
  %v2416 = vpop.permute.xlu0 %2415
  %2417 = vrot.lane.b32.xlu0 %v2190, 16
  %v2418 = vpop.permute.xlu0 %2417
  %2419 = vrot.lane.b32.xlu0 %v2191, 16
  %v2420 = vpop.permute.xlu0 %2419
  %2421 = vrot.lane.b32.xlu0 %v2192, 16
  %v2422 = vpop.permute.xlu0 %2421
  %2423 = vrot.lane.b32.xlu0 %v2193, 16
  %v2424 = vpop.permute.xlu0 %2423
  %2425 = vrot.lane.b32.xlu0 %v2194, 16
  %v2426 = vpop.permute.xlu0 %2425
  %2427 = vrot.lane.b32.xlu0 %v2195, 16
  %v2428 = vpop.permute.xlu0 %2427
  %2429 = vrot.lane.b32.xlu0 %v2196, 16
  %v2430 = vpop.permute.xlu0 %2429
  %2431 = vrot.lane.b32.xlu0 %v2197, 16
  %v2432 = vpop.permute.xlu0 %2431
  %2433 = vrot.lane.b32.xlu0 %v2198, 16
  %v2434 = vpop.permute.xlu0 %2433
  %2435 = vrot.lane.b32.xlu0 %v2199, 16
  %v2436 = vpop.permute.xlu0 %2435
  %2437 = vrot.lane.b32.xlu0 %v2200, 16
  %v2438 = vpop.permute.xlu0 %2437
  %2439 = vrot.lane.b32.xlu0 %v2201, 16
  %v2440 = vpop.permute.xlu0 %2439
  %2441 = vrot.lane.b32.xlu0 %v2202, 16
  %v2442 = vpop.permute.xlu0 %2441
  %2443 = vrot.lane.b32.xlu0 %v2203, 16
  %v2444 = vpop.permute.xlu0 %2443
  %2445 = vrot.lane.b32.xlu0 %v2204, 16
  %v2446 = vpop.permute.xlu0 %2445
  %2447 = vrot.lane.b32.xlu0 %v2205, 16
  %v2448 = vpop.permute.xlu0 %2447
  %2449 = vrot.lane.b32.xlu0 %v2206, 16
  %v2450 = vpop.permute.xlu0 %2449
  %2451 = vrot.lane.b32.xlu0 %v2207, 16
  %v2452 = vpop.permute.xlu0 %2451
  %2453 = vrot.lane.b32.xlu0 %v2208, 16
  %v2454 = vpop.permute.xlu0 %2453
  %2455 = vrot.lane.b32.xlu0 %v2209, 16
  %v2456 = vpop.permute.xlu0 %2455
  %2457 = vrot.lane.b32.xlu0 %v2210, 16
  %v2458 = vpop.permute.xlu0 %2457
  %2459 = vrot.lane.b32.xlu0 %v2226, 16
  %v2460 = vpop.permute.xlu0 %2459
  %vm2461 = vcmask 130048
  %v2462 = vsel %vm2461, %v2306, %v2308
  %v2463 = vsel %vm2461, %v2308, %v2310
  %v2464 = vsel %vm2461, %v2310, %v2312
  %v2465 = vsel %vm2461, %v2312, %v2314
  %v2466 = vsel %vm2461, %v2314, %v2316
  %v2467 = vsel %vm2461, %v2316, %v2318
  %v2468 = vsel %vm2461, %v2318, %v2320
  %v2469 = vsel %vm2461, %v2320, %v2322
  %v2470 = vsel %vm2461, %v2322, %v2324
  %v2471 = vsel %vm2461, %v2324, %v2326
  %v2472 = vsel %vm2461, %v2326, %v2328
  %v2473 = vsel %vm2461, %v2328, %v2330
  %v2474 = vsel %vm2461, %v2330, %v2332
  %v2475 = vsel %vm2461, %v2332, %v2334
  %v2476 = vsel %vm2461, %v2334, %v2336
  %v2477 = vsel %vm2461, %v2336, %v2338
  %v2478 = vsel %vm2461, %v2338, %v2340
  %v2479 = vsel %vm2461, %v2340, %v2342
  %v2480 = vsel %vm2461, %v2342, %v2344
  %v2481 = vsel %vm2461, %v2344, %v2346
  %v2482 = vsel %vm2461, %v2346, %v2348
  %v2483 = vsel %vm2461, %v2348, %v2350
  %v2484 = vsel %vm2461, %v2350, %v2352
  %v2485 = vsel %vm2461, %v2352, %v2354
  %v2486 = vsel %vm2461, %v2354, %v2356
  %v2487 = vsel %vm2461, %v2358, %v2360
  %v2488 = vsel %vm2461, %v2360, %v2362
  %v2489 = vsel %vm2461, %v2362, %v2364
  %v2490 = vsel %vm2461, %v2364, %v2366
  %v2491 = vsel %vm2461, %v2366, %v2368
  %v2492 = vsel %vm2461, %v2368, %v2370
  %v2493 = vsel %vm2461, %v2370, %v2372
  %v2494 = vsel %vm2461, %v2372, %v2374
  %v2495 = vsel %vm2461, %v2374, %v2376
  %v2496 = vsel %vm2461, %v2376, %v2378
  %v2497 = vsel %vm2461, %v2378, %v2380
  %v2498 = vsel %vm2461, %v2380, %v2382
  %v2499 = vsel %vm2461, %v2382, %v2384
  %v2500 = vsel %vm2461, %v2384, %v2386
  %v2501 = vsel %vm2461, %v2386, %v2388
  %v2502 = vsel %vm2461, %v2388, %v2390
  %v2503 = vsel %vm2461, %v2390, %v2392
  %v2504 = vsel %vm2461, %v2392, %v2394
  %v2505 = vsel %vm2461, %v2394, %v2396
  %v2506 = vsel %vm2461, %v2396, %v2398
  %v2507 = vsel %vm2461, %v2398, %v2400
  %v2508 = vsel %vm2461, %v2400, %v2402
  %v2509 = vsel %vm2461, %v2402, %v2404
  %v2510 = vsel %vm2461, %v2404, %v2406
  %v2511 = vsel %vm2461, %v2406, %v2408
  %v2512 = vsel %vm2461, %v2410, %v2412
  %v2513 = vsel %vm2461, %v2412, %v2414
  %v2514 = vsel %vm2461, %v2414, %v2416
  %v2515 = vsel %vm2461, %v2416, %v2418
  %v2516 = vsel %vm2461, %v2418, %v2420
  %v2517 = vsel %vm2461, %v2420, %v2422
  %v2518 = vsel %vm2461, %v2422, %v2424
  %v2519 = vsel %vm2461, %v2424, %v2426
  %v2520 = vsel %vm2461, %v2426, %v2428
  %v2521 = vsel %vm2461, %v2428, %v2430
  %v2522 = vsel %vm2461, %v2430, %v2432
  %v2523 = vsel %vm2461, %v2432, %v2434
  %v2524 = vsel %vm2461, %v2434, %v2436
  %v2525 = vsel %vm2461, %v2436, %v2438
  %v2526 = vsel %vm2461, %v2438, %v2440
  %v2527 = vsel %vm2461, %v2440, %v2442
  %v2528 = vsel %vm2461, %v2442, %v2444
  %v2529 = vsel %vm2461, %v2444, %v2446
  %v2530 = vsel %vm2461, %v2446, %v2448
  %v2531 = vsel %vm2461, %v2448, %v2450
  %v2532 = vsel %vm2461, %v2450, %v2452
  %v2533 = vsel %vm2461, %v2452, %v2454
  %v2534 = vsel %vm2461, %v2454, %v2456
  %v2535 = vsel %vm2461, %v2456, %v2458
  %v2536 = vsel %vm2461, %v2458, %v2460
  %vm2612 = vcmask 195584
  %v2614 = vsel %vm2612, %v2212, 0
  %v2617 = vsel %vm2612, %v2213, 0
  %v2620 = vsel %vm2612, %v2214, 0
  %v2623 = vsel %vm2612, %v2215, 0
  %v2626 = vsel %vm2612, %v2216, 0
  %v2629 = vsel %vm2612, %v2217, 0
  %v2632 = vsel %vm2612, %v2218, 0
  %v2635 = vsel %vm2612, %v2219, 0
  %v2638 = vsel %vm2612, %v2220, 0
  %v2641 = vsel %vm2612, %v2221, 0
  %v2644 = vsel %vm2612, %v2222, 0
  %v2647 = vsel %vm2612, %v2223, 0
  %2649 = vmatprep.subr.mxu0 %v2463
  %2650 = vmatpush1.msra.mxu0 %v2462
  %2651 = vmatprep.subr.mxu0 %v2488
  %2652 = vmatpush1.msra.mxu0 %v2487
  %2653 = vmatprep.subr.mxu0 %v2513
  %2654 = vmatpush1.msra.mxu0 %v2512
  %2655 = vmatprep.subr.mxu0 0.0
  %2656 = vmatpush1.msra.mxu0 0.0
  %2657 = vmatprep.subr.mxu0 0.0
  %2658 = vmatpush1.msra.mxu0 0.0
  %2659 = vmatprep.subr.mxu0 0.0
  %2660 = vmatpush1.msra.mxu0 0.0
  %2661 = vmatprep.subr.mxu0 0.0
  %2662 = vmatpush1.msra.mxu0 0.0
  %2663 = vmatprep.subr.mxu0 0.0
  %2664 = vmatpush1.msra.mxu0 0.0
  %2665 = vmatprep.subr.mxu0 0.0
  %2666 = vmatpush1.msra.mxu0 0.0
  %2667 = vmatprep.subr.mxu0 0.0
  %2668 = vmatpush1.msra.mxu0 0.0
  %2669 = vmatprep.subr.mxu0 0.0
  %2670 = vmatpush1.msra.mxu0 0.0
  %2671 = vmatprep.subr.mxu0 0.0
  %2672 = vmatpush1.msra.mxu0 0.0
  %2673 = vmatprep.subr.mxu0 0.0
  %2674 = vmatpush1.msra.mxu0 0.0
  %2675 = vmatprep.subr.mxu0 0.0
  %2676 = vmatpush1.msra.mxu0 0.0
  %2677 = vmatprep.subr.mxu0 0.0
  %2678 = vmatpush1.msra.mxu0 0.0
  %2679 = vmatprep.subr.mxu0 0.0
  %2680 = vmatpush1.msra.mxu0 0.0
  %2681 = vmatprep.subr.mxu0 0.0
  %2682 = vmatpush1.msra.mxu0 0.0
  %2683 = vmatprep.subr.mxu0 0.0
  %2684 = vmatpush1.msra.mxu0 0.0
  %2685 = vmatprep.subr.mxu0 0.0
  %2686 = vmatpush1.msra.mxu0 0.0
  %2687 = vmatprep.subr.mxu0 0.0
  %2688 = vmatpush1.msra.mxu0 0.0
  %2689 = vmatprep.subr.mxu0 0.0
  %2690 = vmatpush1.msra.mxu0 0.0
  %2691 = vmatprep.subr.mxu0 0.0
  %2692 = vmatpush1.msra.mxu0 0.0
  %2693 = vmatprep.subr.mxu0 0.0
  %2694 = vmatpush1.msra.mxu0 0.0
  %2695 = vmatprep.subr.mxu0 0.0
  %2696 = vmatpush1.msra.mxu0 0.0
  %2697 = vmatprep.subr.mxu0 0.0
  %2698 = vmatpush1.msra.mxu0 0.0
  %2699 = vmatprep.subr.mxu0 0.0
  %2700 = vmatpush1.msra.mxu0 0.0
  %2701 = vmatprep.subr.mxu0 0.0
  %2702 = vmatpush1.msra.mxu0 0.0
  %2703 = vmatprep.subr.mxu0 0.0
  %2704 = vmatpush1.msra.mxu0 0.0
  %2705 = vmatprep.subr.mxu0 0.0
  %2706 = vmatpush1.msra.mxu0 0.0
  %2707 = vmatprep.subr.mxu0 0.0
  %2708 = vmatpush1.msra.mxu0 0.0
  %2709 = vmatprep.subr.mxu0 0.0
  %2710 = vmatpush1.msra.mxu0 0.0
  %2711 = vmatprep.subr.mxu0 0.0
  %2712 = vmatpush1.msra.mxu0 0.0
  %2713 = vmatprep.mubr.f32.mxu0 0.0
  %2714 = vmatmul.mubr.f32.gmra.mrb[0].mxu0 %v2614
  %v2715 = vpop.f32.mrb[0].mxu0
  %v2716 = vadd.f32 0.0, %v2715
  %v2717 = vpop.f32.mrb[0].mxu0
  %v2718 = vadd.f32 0.0, %v2717
  %2719 = vmatprep.mubr.f32.mxu0 0.0
  %2720 = vmatmul.mubr.f32.gmra.mrb[0].mxu0 %v2617
  %v2721 = vpop.f32.mrb[0].mxu0
  %v2722 = vadd.f32 0.0, %v2721
  %v2723 = vpop.f32.mrb[0].mxu0
  %v2724 = vadd.f32 0.0, %v2723
  %2725 = vmatprep.mubr.f32.mxu0 0.0
  %2726 = vmatmul.mubr.f32.gmra.mrb[0].mxu0 %v2620
  %v2727 = vpop.f32.mrb[0].mxu0
  %v2728 = vadd.f32 0.0, %v2727
  %v2729 = vpop.f32.mrb[0].mxu0
  %v2730 = vadd.f32 0.0, %v2729
  %2731 = vmatprep.mubr.f32.mxu0 0.0
  %2732 = vmatmul.mubr.f32.gmra.mrb[0].mxu0 %v2623
  %v2733 = vpop.f32.mrb[0].mxu0
  %v2734 = vadd.f32 0.0, %v2733
  %v2735 = vpop.f32.mrb[0].mxu0
  %v2736 = vadd.f32 0.0, %v2735
  %2737 = vmatprep.mubr.f32.mxu0 0.0
  %2738 = vmatmul.mubr.f32.gmra.mrb[0].mxu0 %v2626
  %v2739 = vpop.f32.mrb[0].mxu0
  %v2740 = vadd.f32 0.0, %v2739
  %v2741 = vpop.f32.mrb[0].mxu0
  %v2742 = vadd.f32 0.0, %v2741
  %2743 = vmatprep.mubr.f32.mxu0 0.0
  %2744 = vmatmul.mubr.f32.gmra.mrb[0].mxu0 %v2629
  %v2745 = vpop.f32.mrb[0].mxu0
  %v2746 = vadd.f32 0.0, %v2745
  %v2747 = vpop.f32.mrb[0].mxu0
  %v2748 = vadd.f32 0.0, %v2747
  %2749 = vmatprep.mubr.f32.mxu0 0.0
  %2750 = vmatmul.mubr.f32.gmra.mrb[0].mxu0 %v2632
  %v2751 = vpop.f32.mrb[0].mxu0
  %v2752 = vadd.f32 0.0, %v2751
  %v2753 = vpop.f32.mrb[0].mxu0
  %v2754 = vadd.f32 0.0, %v2753
  %2755 = vmatprep.mubr.f32.mxu0 0.0
  %2756 = vmatmul.mubr.f32.gmra.mrb[0].mxu0 %v2635
  %v2757 = vpop.f32.mrb[0].mxu0
  %v2758 = vadd.f32 0.0, %v2757
  %v2759 = vpop.f32.mrb[0].mxu0
  %v2760 = vadd.f32 0.0, %v2759
  %2761 = vmatprep.mubr.f32.mxu0 0.0
  %2762 = vmatmul.mubr.f32.gmra.mrb[0].mxu0 %v2638
  %v2763 = vpop.f32.mrb[0].mxu0
  %v2764 = vadd.f32 0.0, %v2763
  %v2765 = vpop.f32.mrb[0].mxu0
  %v2766 = vadd.f32 0.0, %v2765
  %2767 = vmatprep.mubr.f32.mxu0 0.0
  %2768 = vmatmul.mubr.f32.gmra.mrb[0].mxu0 %v2641
  %v2769 = vpop.f32.mrb[0].mxu0
  %v2770 = vadd.f32 0.0, %v2769
  %v2771 = vpop.f32.mrb[0].mxu0
  %v2772 = vadd.f32 0.0, %v2771
  %2773 = vmatprep.mubr.f32.mxu0 0.0
  %2774 = vmatmul.mubr.f32.gmra.mrb[0].mxu0 %v2644
  %v2775 = vpop.f32.mrb[0].mxu0
  %v2776 = vadd.f32 0.0, %v2775
  %v2777 = vpop.f32.mrb[0].mxu0
  %v2778 = vadd.f32 0.0, %v2777
  %2779 = vmatprep.mubr.f32.mxu0 0.0
  %2780 = vmatmul.mubr.f32.gmra.mrb[0].mxu0 %v2647
  %v2781 = vpop.f32.mrb[0].mxu0
  %v2782 = vadd.f32 0.0, %v2781
  %v2783 = vpop.f32.mrb[0].mxu0
  %v2784 = vadd.f32 0.0, %v2783
  %2785 = vdwg.mxu0
  %2786 = vmatprep.subr.mxu0 %v2465
  %2787 = vmatpush1.msra.mxu0 %v2464
  %2788 = vmatprep.subr.mxu0 %v2490
  %2789 = vmatpush1.msra.mxu0 %v2489
  %2790 = vmatprep.subr.mxu0 %v2515
  %2791 = vmatpush1.msra.mxu0 %v2514
  %2792 = vmatprep.subr.mxu0 0.0
  %2793 = vmatpush1.msra.mxu0 0.0
  %2794 = vmatprep.subr.mxu0 0.0
  %2795 = vmatpush1.msra.mxu0 0.0
  %2796 = vmatprep.subr.mxu0 0.0
  %2797 = vmatpush1.msra.mxu0 0.0
  %2798 = vmatprep.subr.mxu0 0.0
  %2799 = vmatpush1.msra.mxu0 0.0
  %2800 = vmatprep.subr.mxu0 0.0
  %2801 = vmatpush1.msra.mxu0 0.0
  %2802 = vmatprep.subr.mxu0 0.0
  %2803 = vmatpush1.msra.mxu0 0.0
  %2804 = vmatprep.subr.mxu0 0.0
  %2805 = vmatpush1.msra.mxu0 0.0
  %2806 = vmatprep.subr.mxu0 0.0
  %2807 = vmatpush1.msra.mxu0 0.0
  %2808 = vmatprep.subr.mxu0 0.0
  %2809 = vmatpush1.msra.mxu0 0.0
  %2810 = vmatprep.subr.mxu0 0.0
  %2811 = vmatpush1.msra.mxu0 0.0
  %2812 = vmatprep.subr.mxu0 0.0
  %2813 = vmatpush1.msra.mxu0 0.0
  %2814 = vmatprep.subr.mxu0 0.0
  %2815 = vmatpush1.msra.mxu0 0.0
  %2816 = vmatprep.subr.mxu0 0.0
  %2817 = vmatpush1.msra.mxu0 0.0
  %2818 = vmatprep.subr.mxu0 0.0
  %2819 = vmatpush1.msra.mxu0 0.0
  %2820 = vmatprep.subr.mxu0 0.0
  %2821 = vmatpush1.msra.mxu0 0.0
  %2822 = vmatprep.subr.mxu0 0.0
  %2823 = vmatpush1.msra.mxu0 0.0
  %2824 = vmatprep.subr.mxu0 0.0
  %2825 = vmatpush1.msra.mxu0 0.0
  %2826 = vmatprep.subr.mxu0 0.0
  %2827 = vmatpush1.msra.mxu0 0.0
  %2828 = vmatprep.subr.mxu0 0.0
  %2829 = vmatpush1.msra.mxu0 0.0
  %2830 = vmatprep.subr.mxu0 0.0
  %2831 = vmatpush1.msra.mxu0 0.0
  %2832 = vmatprep.subr.mxu0 0.0
  %2833 = vmatpush1.msra.mxu0 0.0
  %2834 = vmatprep.subr.mxu0 0.0
  %2835 = vmatpush1.msra.mxu0 0.0
  %2836 = vmatprep.subr.mxu0 0.0
  %2837 = vmatpush1.msra.mxu0 0.0
  %2838 = vmatprep.subr.mxu0 0.0
  %2839 = vmatpush1.msra.mxu0 0.0
  %2840 = vmatprep.subr.mxu0 0.0
  %2841 = vmatpush1.msra.mxu0 0.0
  %2842 = vmatprep.subr.mxu0 0.0
  %2843 = vmatpush1.msra.mxu0 0.0
  %2844 = vmatprep.subr.mxu0 0.0
  %2845 = vmatpush1.msra.mxu0 0.0
  %2846 = vmatprep.subr.mxu0 0.0
  %2847 = vmatpush1.msra.mxu0 0.0
  %2848 = vmatprep.subr.mxu0 0.0
  %2849 = vmatpush1.msra.mxu0 0.0
  %2850 = vmatprep.mubr.f32.mxu0 0.0
  %2851 = vmatmul.mubr.f32.gmra.mrb[0].mxu0 %v2614
  %v2852 = vpop.f32.mrb[0].mxu0
  %v2853 = vadd.f32 0.0, %v2852
  %v2854 = vpop.f32.mrb[0].mxu0
  %v2855 = vadd.f32 0.0, %v2854
  %2856 = vmatprep.mubr.f32.mxu0 0.0
  %2857 = vmatmul.mubr.f32.gmra.mrb[0].mxu0 %v2617
  %v2858 = vpop.f32.mrb[0].mxu0
  %v2859 = vadd.f32 0.0, %v2858
  %v2860 = vpop.f32.mrb[0].mxu0
  %v2861 = vadd.f32 0.0, %v2860
  %2862 = vmatprep.mubr.f32.mxu0 0.0
  %2863 = vmatmul.mubr.f32.gmra.mrb[0].mxu0 %v2620
  %v2864 = vpop.f32.mrb[0].mxu0
  %v2865 = vadd.f32 0.0, %v2864
  %v2866 = vpop.f32.mrb[0].mxu0
  %v2867 = vadd.f32 0.0, %v2866
  %2868 = vmatprep.mubr.f32.mxu0 0.0
  %2869 = vmatmul.mubr.f32.gmra.mrb[0].mxu0 %v2623
  %v2870 = vpop.f32.mrb[0].mxu0
  %v2871 = vadd.f32 0.0, %v2870
  %v2872 = vpop.f32.mrb[0].mxu0
  %v2873 = vadd.f32 0.0, %v2872
  %2874 = vmatprep.mubr.f32.mxu0 0.0
  %2875 = vmatmul.mubr.f32.gmra.mrb[0].mxu0 %v2626
  %v2876 = vpop.f32.mrb[0].mxu0
  %v2877 = vadd.f32 0.0, %v2876
  %v2878 = vpop.f32.mrb[0].mxu0
  %v2879 = vadd.f32 0.0, %v2878
  %2880 = vmatprep.mubr.f32.mxu0 0.0
  %2881 = vmatmul.mubr.f32.gmra.mrb[0].mxu0 %v2629
  %v2882 = vpop.f32.mrb[0].mxu0
  %v2883 = vadd.f32 0.0, %v2882
  %v2884 = vpop.f32.mrb[0].mxu0
  %v2885 = vadd.f32 0.0, %v2884
  %2886 = vmatprep.mubr.f32.mxu0 0.0
  %2887 = vmatmul.mubr.f32.gmra.mrb[0].mxu0 %v2632
  %v2888 = vpop.f32.mrb[0].mxu0
  %v2889 = vadd.f32 0.0, %v2888
  %v2890 = vpop.f32.mrb[0].mxu0
  %v2891 = vadd.f32 0.0, %v2890
  %2892 = vmatprep.mubr.f32.mxu0 0.0
  %2893 = vmatmul.mubr.f32.gmra.mrb[0].mxu0 %v2635
  %v2894 = vpop.f32.mrb[0].mxu0
  %v2895 = vadd.f32 0.0, %v2894
  %v2896 = vpop.f32.mrb[0].mxu0
  %v2897 = vadd.f32 0.0, %v2896
  %2898 = vmatprep.mubr.f32.mxu0 0.0
  %2899 = vmatmul.mubr.f32.gmra.mrb[0].mxu0 %v2638
  %v2900 = vpop.f32.mrb[0].mxu0
  %v2901 = vadd.f32 0.0, %v2900
  %v2902 = vpop.f32.mrb[0].mxu0
  %v2903 = vadd.f32 0.0, %v2902
  %2904 = vmatprep.mubr.f32.mxu0 0.0
  %2905 = vmatmul.mubr.f32.gmra.mrb[0].mxu0 %v2641
  %v2906 = vpop.f32.mrb[0].mxu0
  %v2907 = vadd.f32 0.0, %v2906
  %v2908 = vpop.f32.mrb[0].mxu0
  %v2909 = vadd.f32 0.0, %v2908
  %2910 = vmatprep.mubr.f32.mxu0 0.0
  %2911 = vmatmul.mubr.f32.gmra.mrb[0].mxu0 %v2644
  %v2912 = vpop.f32.mrb[0].mxu0
  %v2913 = vadd.f32 0.0, %v2912
  %v2914 = vpop.f32.mrb[0].mxu0
  %v2915 = vadd.f32 0.0, %v2914
  %2916 = vmatprep.mubr.f32.mxu0 0.0
  %2917 = vmatmul.mubr.f32.gmra.mrb[0].mxu0 %v2647
  %v2918 = vpop.f32.mrb[0].mxu0
  %v2919 = vadd.f32 0.0, %v2918
  %v2920 = vpop.f32.mrb[0].mxu0
  %v2921 = vadd.f32 0.0, %v2920
  %2922 = vdwg.mxu0
  %2923 = vmatprep.subr.mxu0 %v2467
  %2924 = vmatpush1.msra.mxu0 %v2466
  %2925 = vmatprep.subr.mxu0 %v2492
  %2926 = vmatpush1.msra.mxu0 %v2491
  %2927 = vmatprep.subr.mxu0 %v2517
  %2928 = vmatpush1.msra.mxu0 %v2516
  %2929 = vmatprep.subr.mxu0 0.0
  %2930 = vmatpush1.msra.mxu0 0.0
  %2931 = vmatprep.subr.mxu0 0.0
  %2932 = vmatpush1.msra.mxu0 0.0
  %2933 = vmatprep.subr.mxu0 0.0
  %2934 = vmatpush1.msra.mxu0 0.0
  %2935 = vmatprep.subr.mxu0 0.0
  %2936 = vmatpush1.msra.mxu0 0.0
  %2937 = vmatprep.subr.mxu0 0.0
  %2938 = vmatpush1.msra.mxu0 0.0
  %2939 = vmatprep.subr.mxu0 0.0
  %2940 = vmatpush1.msra.mxu0 0.0
  %2941 = vmatprep.subr.mxu0 0.0
  %2942 = vmatpush1.msra.mxu0 0.0
  %2943 = vmatprep.subr.mxu0 0.0
  %2944 = vmatpush1.msra.mxu0 0.0
  %2945 = vmatprep.subr.mxu0 0.0
  %2946 = vmatpush1.msra.mxu0 0.0
  %2947 = vmatprep.subr.mxu0 0.0
  %2948 = vmatpush1.msra.mxu0 0.0
  %2949 = vmatprep.subr.mxu0 0.0
  %2950 = vmatpush1.msra.mxu0 0.0
  %2951 = vmatprep.subr.mxu0 0.0
  %2952 = vmatpush1.msra.mxu0 0.0
  %2953 = vmatprep.subr.mxu0 0.0
  %2954 = vmatpush1.msra.mxu0 0.0
  %2955 = vmatprep.subr.mxu0 0.0
  %2956 = vmatpush1.msra.mxu0 0.0
  %2957 = vmatprep.subr.mxu0 0.0
  %2958 = vmatpush1.msra.mxu0 0.0
  %2959 = vmatprep.subr.mxu0 0.0
  %2960 = vmatpush1.msra.mxu0 0.0
  %2961 = vmatprep.subr.mxu0 0.0
  %2962 = vmatpush1.msra.mxu0 0.0
  %2963 = vmatprep.subr.mxu0 0.0
  %2964 = vmatpush1.msra.mxu0 0.0
  %2965 = vmatprep.subr.mxu0 0.0
  %2966 = vmatpush1.msra.mxu0 0.0
  %2967 = vmatprep.subr.mxu0 0.0
  %2968 = vmatpush1.msra.mxu0 0.0
  %2969 = vmatprep.subr.mxu0 0.0
  %2970 = vmatpush1.msra.mxu0 0.0
  %2971 = vmatprep.subr.mxu0 0.0
  %2972 = vmatpush1.msra.mxu0 0.0
  %2973 = vmatprep.subr.mxu0 0.0
  %2974 = vmatpush1.msra.mxu0 0.0
  %2975 = vmatprep.subr.mxu0 0.0
  %2976 = vmatpush1.msra.mxu0 0.0
  %2977 = vmatprep.subr.mxu0 0.0
  %2978 = vmatpush1.msra.mxu0 0.0
  %2979 = vmatprep.subr.mxu0 0.0
  %2980 = vmatpush1.msra.mxu0 0.0
  %2981 = vmatprep.subr.mxu0 0.0
  %2982 = vmatpush1.msra.mxu0 0.0
  %2983 = vmatprep.subr.mxu0 0.0
  %2984 = vmatpush1.msra.mxu0 0.0
  %2985 = vmatprep.subr.mxu0 0.0
  %2986 = vmatpush1.msra.mxu0 0.0
  %2987 = vmatprep.mubr.f32.mxu0 0.0
  %2988 = vmatmul.mubr.f32.gmra.mrb[0].mxu0 %v2614
  %v2989 = vpop.f32.mrb[0].mxu0
  %v2990 = vadd.f32 0.0, %v2989
  %v2991 = vpop.f32.mrb[0].mxu0
  %v2992 = vadd.f32 0.0, %v2991
  %2993 = vmatprep.mubr.f32.mxu0 0.0
  %2994 = vmatmul.mubr.f32.gmra.mrb[0].mxu0 %v2617
  %v2995 = vpop.f32.mrb[0].mxu0
  %v2996 = vadd.f32 0.0, %v2995
  %v2997 = vpop.f32.mrb[0].mxu0
  %v2998 = vadd.f32 0.0, %v2997
  %2999 = vmatprep.mubr.f32.mxu0 0.0
  %3000 = vmatmul.mubr.f32.gmra.mrb[0].mxu0 %v2620
  %v3001 = vpop.f32.mrb[0].mxu0
  %v3002 = vadd.f32 0.0, %v3001
  %v3003 = vpop.f32.mrb[0].mxu0
  %v3004 = vadd.f32 0.0, %v3003
  %3005 = vmatprep.mubr.f32.mxu0 0.0
  %3006 = vmatmul.mubr.f32.gmra.mrb[0].mxu0 %v2623
  %v3007 = vpop.f32.mrb[0].mxu0
  %v3008 = vadd.f32 0.0, %v3007
  %v3009 = vpop.f32.mrb[0].mxu0
  %v3010 = vadd.f32 0.0, %v3009
  %3011 = vmatprep.mubr.f32.mxu0 0.0
  %3012 = vmatmul.mubr.f32.gmra.mrb[0].mxu0 %v2626
  %v3013 = vpop.f32.mrb[0].mxu0
  %v3014 = vadd.f32 0.0, %v3013
  %v3015 = vpop.f32.mrb[0].mxu0
  %v3016 = vadd.f32 0.0, %v3015
  %3017 = vmatprep.mubr.f32.mxu0 0.0
  %3018 = vmatmul.mubr.f32.gmra.mrb[0].mxu0 %v2629
  %v3019 = vpop.f32.mrb[0].mxu0
  %v3020 = vadd.f32 0.0, %v3019
  %v3021 = vpop.f32.mrb[0].mxu0
  %v3022 = vadd.f32 0.0, %v3021
  %3023 = vmatprep.mubr.f32.mxu0 0.0
  %3024 = vmatmul.mubr.f32.gmra.mrb[0].mxu0 %v2632
  %v3025 = vpop.f32.mrb[0].mxu0
  %v3026 = vadd.f32 0.0, %v3025
  %v3027 = vpop.f32.mrb[0].mxu0
  %v3028 = vadd.f32 0.0, %v3027
  %3029 = vmatprep.mubr.f32.mxu0 0.0
  %3030 = vmatmul.mubr.f32.gmra.mrb[0].mxu0 %v2635
  %v3031 = vpop.f32.mrb[0].mxu0
  %v3032 = vadd.f32 0.0, %v3031
  %v3033 = vpop.f32.mrb[0].mxu0
  %v3034 = vadd.f32 0.0, %v3033
  %3035 = vmatprep.mubr.f32.mxu0 0.0
  %3036 = vmatmul.mubr.f32.gmra.mrb[0].mxu0 %v2638
  %v3037 = vpop.f32.mrb[0].mxu0
  %v3038 = vadd.f32 0.0, %v3037
  %v3039 = vpop.f32.mrb[0].mxu0
  %v3040 = vadd.f32 0.0, %v3039
  %3041 = vmatprep.mubr.f32.mxu0 0.0
  %3042 = vmatmul.mubr.f32.gmra.mrb[0].mxu0 %v2641
  %v3043 = vpop.f32.mrb[0].mxu0
  %v3044 = vadd.f32 0.0, %v3043
  %v3045 = vpop.f32.mrb[0].mxu0
  %v3046 = vadd.f32 0.0, %v3045
  %3047 = vmatprep.mubr.f32.mxu0 0.0
  %3048 = vmatmul.mubr.f32.gmra.mrb[0].mxu0 %v2644
  %v3049 = vpop.f32.mrb[0].mxu0
  %v3050 = vadd.f32 0.0, %v3049
  %v3051 = vpop.f32.mrb[0].mxu0
  %v3052 = vadd.f32 0.0, %v3051
  %3053 = vmatprep.mubr.f32.mxu0 0.0
  %3054 = vmatmul.mubr.f32.gmra.mrb[0].mxu0 %v2647
  %v3055 = vpop.f32.mrb[0].mxu0
  %v3056 = vadd.f32 0.0, %v3055
  %v3057 = vpop.f32.mrb[0].mxu0
  %v3058 = vadd.f32 0.0, %v3057
  %3059 = vdwg.mxu0
  %3060 = vmatprep.subr.mxu0 %v2469
  %3061 = vmatpush1.msra.mxu0 %v2468
  %3062 = vmatprep.subr.mxu0 %v2494
  %3063 = vmatpush1.msra.mxu0 %v2493
  %3064 = vmatprep.subr.mxu0 %v2519
  %3065 = vmatpush1.msra.mxu0 %v2518
  %3066 = vmatprep.subr.mxu0 0.0
  %3067 = vmatpush1.msra.mxu0 0.0
  %3068 = vmatprep.subr.mxu0 0.0
  %3069 = vmatpush1.msra.mxu0 0.0
  %3070 = vmatprep.subr.mxu0 0.0
  %3071 = vmatpush1.msra.mxu0 0.0
  %3072 = vmatprep.subr.mxu0 0.0
  %3073 = vmatpush1.msra.mxu0 0.0
  %3074 = vmatprep.subr.mxu0 0.0
  %3075 = vmatpush1.msra.mxu0 0.0
  %3076 = vmatprep.subr.mxu0 0.0
  %3077 = vmatpush1.msra.mxu0 0.0
  %3078 = vmatprep.subr.mxu0 0.0
  %3079 = vmatpush1.msra.mxu0 0.0
  %3080 = vmatprep.subr.mxu0 0.0
  %3081 = vmatpush1.msra.mxu0 0.0
  %3082 = vmatprep.subr.mxu0 0.0
  %3083 = vmatpush1.msra.mxu0 0.0
  %3084 = vmatprep.subr.mxu0 0.0
  %3085 = vmatpush1.msra.mxu0 0.0
  %3086 = vmatprep.subr.mxu0 0.0
  %3087 = vmatpush1.msra.mxu0 0.0
  %3088 = vmatprep.subr.mxu0 0.0
  %3089 = vmatpush1.msra.mxu0 0.0
  %3090 = vmatprep.subr.mxu0 0.0
  %3091 = vmatpush1.msra.mxu0 0.0
  %3092 = vmatprep.subr.mxu0 0.0
  %3093 = vmatpush1.msra.mxu0 0.0
  %3094 = vmatprep.subr.mxu0 0.0
  %3095 = vmatpush1.msra.mxu0 0.0
  %3096 = vmatprep.subr.mxu0 0.0
  %3097 = vmatpush1.msra.mxu0 0.0
  %3098 = vmatprep.subr.mxu0 0.0
  %3099 = vmatpush1.msra.mxu0 0.0
  %3100 = vmatprep.subr.mxu0 0.0
  %3101 = vmatpush1.msra.mxu0 0.0
  %3102 = vmatprep.subr.mxu0 0.0
  %3103 = vmatpush1.msra.mxu0 0.0
  %3104 = vmatprep.subr.mxu0 0.0
  %3105 = vmatpush1.msra.mxu0 0.0
  %3106 = vmatprep.subr.mxu0 0.0
  %3107 = vmatpush1.msra.mxu0 0.0
  %3108 = vmatprep.subr.mxu0 0.0
  %3109 = vmatpush1.msra.mxu0 0.0
  %3110 = vmatprep.subr.mxu0 0.0
  %3111 = vmatpush1.msra.mxu0 0.0
  %3112 = vmatprep.subr.mxu0 0.0
  %3113 = vmatpush1.msra.mxu0 0.0
  %3114 = vmatprep.subr.mxu0 0.0
  %3115 = vmatpush1.msra.mxu0 0.0
  %3116 = vmatprep.subr.mxu0 0.0
  %3117 = vmatpush1.msra.mxu0 0.0
  %3118 = vmatprep.subr.mxu0 0.0
  %3119 = vmatpush1.msra.mxu0 0.0
  %3120 = vmatprep.subr.mxu0 0.0
  %3121 = vmatpush1.msra.mxu0 0.0
  %3122 = vmatprep.subr.mxu0 0.0
  %3123 = vmatpush1.msra.mxu0 0.0
  %3124 = vmatprep.mubr.f32.mxu0 0.0
  %3125 = vmatmul.mubr.f32.gmra.mrb[0].mxu0 %v2614
  %v3126 = vpop.f32.mrb[0].mxu0
  %v3127 = vadd.f32 0.0, %v3126
  %v3128 = vpop.f32.mrb[0].mxu0
  %v3129 = vadd.f32 0.0, %v3128
  %3130 = vmatprep.mubr.f32.mxu0 0.0
  %3131 = vmatmul.mubr.f32.gmra.mrb[0].mxu0 %v2617
  %v3132 = vpop.f32.mrb[0].mxu0
  %v3133 = vadd.f32 0.0, %v3132
  %v3134 = vpop.f32.mrb[0].mxu0
  %v3135 = vadd.f32 0.0, %v3134
  %3136 = vmatprep.mubr.f32.mxu0 0.0
  %3137 = vmatmul.mubr.f32.gmra.mrb[0].mxu0 %v2620
  %v3138 = vpop.f32.mrb[0].mxu0
  %v3139 = vadd.f32 0.0, %v3138
  %v3140 = vpop.f32.mrb[0].mxu0
  %v3141 = vadd.f32 0.0, %v3140
  %3142 = vmatprep.mubr.f32.mxu0 0.0
  %3143 = vmatmul.mubr.f32.gmra.mrb[0].mxu0 %v2623
  %v3144 = vpop.f32.mrb[0].mxu0
  %v3145 = vadd.f32 0.0, %v3144
  %v3146 = vpop.f32.mrb[0].mxu0
  %v3147 = vadd.f32 0.0, %v3146
  %3148 = vmatprep.mubr.f32.mxu0 0.0
  %3149 = vmatmul.mubr.f32.gmra.mrb[0].mxu0 %v2626
  %v3150 = vpop.f32.mrb[0].mxu0
  %v3151 = vadd.f32 0.0, %v3150
  %v3152 = vpop.f32.mrb[0].mxu0
  %v3153 = vadd.f32 0.0, %v3152
  %3154 = vmatprep.mubr.f32.mxu0 0.0
  %3155 = vmatmul.mubr.f32.gmra.mrb[0].mxu0 %v2629
  %v3156 = vpop.f32.mrb[0].mxu0
  %v3157 = vadd.f32 0.0, %v3156
  %v3158 = vpop.f32.mrb[0].mxu0
  %v3159 = vadd.f32 0.0, %v3158
  %3160 = vmatprep.mubr.f32.mxu0 0.0
  %3161 = vmatmul.mubr.f32.gmra.mrb[0].mxu0 %v2632
  %v3162 = vpop.f32.mrb[0].mxu0
  %v3163 = vadd.f32 0.0, %v3162
  %v3164 = vpop.f32.mrb[0].mxu0
  %v3165 = vadd.f32 0.0, %v3164
  %3166 = vmatprep.mubr.f32.mxu0 0.0
  %3167 = vmatmul.mubr.f32.gmra.mrb[0].mxu0 %v2635
  %v3168 = vpop.f32.mrb[0].mxu0
  %v3169 = vadd.f32 0.0, %v3168
  %v3170 = vpop.f32.mrb[0].mxu0
  %v3171 = vadd.f32 0.0, %v3170
  %3172 = vmatprep.mubr.f32.mxu0 0.0
  %3173 = vmatmul.mubr.f32.gmra.mrb[0].mxu0 %v2638
  %v3174 = vpop.f32.mrb[0].mxu0
  %v3175 = vadd.f32 0.0, %v3174
  %v3176 = vpop.f32.mrb[0].mxu0
  %v3177 = vadd.f32 0.0, %v3176
  %3178 = vmatprep.mubr.f32.mxu0 0.0
  %3179 = vmatmul.mubr.f32.gmra.mrb[0].mxu0 %v2641
  %v3180 = vpop.f32.mrb[0].mxu0
  %v3181 = vadd.f32 0.0, %v3180
  %v3182 = vpop.f32.mrb[0].mxu0
  %v3183 = vadd.f32 0.0, %v3182
  %3184 = vmatprep.mubr.f32.mxu0 0.0
  %3185 = vmatmul.mubr.f32.gmra.mrb[0].mxu0 %v2644
  %v3186 = vpop.f32.mrb[0].mxu0
  %v3187 = vadd.f32 0.0, %v3186
  %v3188 = vpop.f32.mrb[0].mxu0
  %v3189 = vadd.f32 0.0, %v3188
  %3190 = vmatprep.mubr.f32.mxu0 0.0
  %3191 = vmatmul.mubr.f32.gmra.mrb[0].mxu0 %v2647
  %v3192 = vpop.f32.mrb[0].mxu0
  %v3193 = vadd.f32 0.0, %v3192
  %v3194 = vpop.f32.mrb[0].mxu0
  %v3195 = vadd.f32 0.0, %v3194
  %3196 = vdwg.mxu0
  %3197 = vmatprep.subr.mxu0 %v2471
  %3198 = vmatpush1.msra.mxu0 %v2470
  %3199 = vmatprep.subr.mxu0 %v2496
  %3200 = vmatpush1.msra.mxu0 %v2495
  %3201 = vmatprep.subr.mxu0 %v2521
  %3202 = vmatpush1.msra.mxu0 %v2520
  %3203 = vmatprep.subr.mxu0 0.0
  %3204 = vmatpush1.msra.mxu0 0.0
  %3205 = vmatprep.subr.mxu0 0.0
  %3206 = vmatpush1.msra.mxu0 0.0
  %3207 = vmatprep.subr.mxu0 0.0
  %3208 = vmatpush1.msra.mxu0 0.0
  %3209 = vmatprep.subr.mxu0 0.0
  %3210 = vmatpush1.msra.mxu0 0.0
  %3211 = vmatprep.subr.mxu0 0.0
  %3212 = vmatpush1.msra.mxu0 0.0
  %3213 = vmatprep.subr.mxu0 0.0
  %3214 = vmatpush1.msra.mxu0 0.0
  %3215 = vmatprep.subr.mxu0 0.0
  %3216 = vmatpush1.msra.mxu0 0.0
  %3217 = vmatprep.subr.mxu0 0.0
  %3218 = vmatpush1.msra.mxu0 0.0
  %3219 = vmatprep.subr.mxu0 0.0
  %3220 = vmatpush1.msra.mxu0 0.0
  %3221 = vmatprep.subr.mxu0 0.0
  %3222 = vmatpush1.msra.mxu0 0.0
  %3223 = vmatprep.subr.mxu0 0.0
  %3224 = vmatpush1.msra.mxu0 0.0
  %3225 = vmatprep.subr.mxu0 0.0
  %3226 = vmatpush1.msra.mxu0 0.0
  %3227 = vmatprep.subr.mxu0 0.0
  %3228 = vmatpush1.msra.mxu0 0.0
  %3229 = vmatprep.subr.mxu0 0.0
  %3230 = vmatpush1.msra.mxu0 0.0
  %3231 = vmatprep.subr.mxu0 0.0
  %3232 = vmatpush1.msra.mxu0 0.0
  %3233 = vmatprep.subr.mxu0 0.0
  %3234 = vmatpush1.msra.mxu0 0.0
  %3235 = vmatprep.subr.mxu0 0.0
  %3236 = vmatpush1.msra.mxu0 0.0
  %3237 = vmatprep.subr.mxu0 0.0
  %3238 = vmatpush1.msra.mxu0 0.0
  %3239 = vmatprep.subr.mxu0 0.0
  %3240 = vmatpush1.msra.mxu0 0.0
  %3241 = vmatprep.subr.mxu0 0.0
  %3242 = vmatpush1.msra.mxu0 0.0
  %3243 = vmatprep.subr.mxu0 0.0
  %3244 = vmatpush1.msra.mxu0 0.0
  %3245 = vmatprep.subr.mxu0 0.0
  %3246 = vmatpush1.msra.mxu0 0.0
  %3247 = vmatprep.subr.mxu0 0.0
  %3248 = vmatpush1.msra.mxu0 0.0
  %3249 = vmatprep.subr.mxu0 0.0
  %3250 = vmatpush1.msra.mxu0 0.0
  %3251 = vmatprep.subr.mxu0 0.0
  %3252 = vmatpush1.msra.mxu0 0.0
  %3253 = vmatprep.subr.mxu0 0.0
  %3254 = vmatpush1.msra.mxu0 0.0
  %3255 = vmatprep.subr.mxu0 0.0
  %3256 = vmatpush1.msra.mxu0 0.0
  %3257 = vmatprep.subr.mxu0 0.0
  %3258 = vmatpush1.msra.mxu0 0.0
  %3259 = vmatprep.subr.mxu0 0.0
  %3260 = vmatpush1.msra.mxu0 0.0
  %3261 = vmatprep.mubr.f32.mxu0 0.0
  %3262 = vmatmul.mubr.f32.gmra.mrb[0].mxu0 %v2614
  %v3263 = vpop.f32.mrb[0].mxu0
  %v3264 = vadd.f32 0.0, %v3263
  %v3265 = vpop.f32.mrb[0].mxu0
  %v3266 = vadd.f32 0.0, %v3265
  %3267 = vmatprep.mubr.f32.mxu0 0.0
  %3268 = vmatmul.mubr.f32.gmra.mrb[0].mxu0 %v2617
  %v3269 = vpop.f32.mrb[0].mxu0
  %v3270 = vadd.f32 0.0, %v3269
  %v3271 = vpop.f32.mrb[0].mxu0
  %v3272 = vadd.f32 0.0, %v3271
  %3273 = vmatprep.mubr.f32.mxu0 0.0
  %3274 = vmatmul.mubr.f32.gmra.mrb[0].mxu0 %v2620
  %v3275 = vpop.f32.mrb[0].mxu0
  %v3276 = vadd.f32 0.0, %v3275
  %v3277 = vpop.f32.mrb[0].mxu0
  %v3278 = vadd.f32 0.0, %v3277
  %3279 = vmatprep.mubr.f32.mxu0 0.0
  %3280 = vmatmul.mubr.f32.gmra.mrb[0].mxu0 %v2623
  %v3281 = vpop.f32.mrb[0].mxu0
  %v3282 = vadd.f32 0.0, %v3281
  %v3283 = vpop.f32.mrb[0].mxu0
  %v3284 = vadd.f32 0.0, %v3283
  %3285 = vmatprep.mubr.f32.mxu0 0.0
  %3286 = vmatmul.mubr.f32.gmra.mrb[0].mxu0 %v2626
  %v3287 = vpop.f32.mrb[0].mxu0
  %v3288 = vadd.f32 0.0, %v3287
  %v3289 = vpop.f32.mrb[0].mxu0
  %v3290 = vadd.f32 0.0, %v3289
  %3291 = vmatprep.mubr.f32.mxu0 0.0
  %3292 = vmatmul.mubr.f32.gmra.mrb[0].mxu0 %v2629
  %v3293 = vpop.f32.mrb[0].mxu0
  %v3294 = vadd.f32 0.0, %v3293
  %v3295 = vpop.f32.mrb[0].mxu0
  %v3296 = vadd.f32 0.0, %v3295
  %3297 = vmatprep.mubr.f32.mxu0 0.0
  %3298 = vmatmul.mubr.f32.gmra.mrb[0].mxu0 %v2632
  %v3299 = vpop.f32.mrb[0].mxu0
  %v3300 = vadd.f32 0.0, %v3299
  %v3301 = vpop.f32.mrb[0].mxu0
  %v3302 = vadd.f32 0.0, %v3301
  %3303 = vmatprep.mubr.f32.mxu0 0.0
  %3304 = vmatmul.mubr.f32.gmra.mrb[0].mxu0 %v2635
  %v3305 = vpop.f32.mrb[0].mxu0
  %v3306 = vadd.f32 0.0, %v3305
  %v3307 = vpop.f32.mrb[0].mxu0
  %v3308 = vadd.f32 0.0, %v3307
  %3309 = vmatprep.mubr.f32.mxu0 0.0
  %3310 = vmatmul.mubr.f32.gmra.mrb[0].mxu0 %v2638
  %v3311 = vpop.f32.mrb[0].mxu0
  %v3312 = vadd.f32 0.0, %v3311
  %v3313 = vpop.f32.mrb[0].mxu0
  %v3314 = vadd.f32 0.0, %v3313
  %3315 = vmatprep.mubr.f32.mxu0 0.0
  %3316 = vmatmul.mubr.f32.gmra.mrb[0].mxu0 %v2641
  %v3317 = vpop.f32.mrb[0].mxu0
  %v3318 = vadd.f32 0.0, %v3317
  %v3319 = vpop.f32.mrb[0].mxu0
  %v3320 = vadd.f32 0.0, %v3319
  %3321 = vmatprep.mubr.f32.mxu0 0.0
  %3322 = vmatmul.mubr.f32.gmra.mrb[0].mxu0 %v2644
  %v3323 = vpop.f32.mrb[0].mxu0
  %v3324 = vadd.f32 0.0, %v3323
  %v3325 = vpop.f32.mrb[0].mxu0
  %v3326 = vadd.f32 0.0, %v3325
  %3327 = vmatprep.mubr.f32.mxu0 0.0
  %3328 = vmatmul.mubr.f32.gmra.mrb[0].mxu0 %v2647
  %v3329 = vpop.f32.mrb[0].mxu0
  %v3330 = vadd.f32 0.0, %v3329
  %v3331 = vpop.f32.mrb[0].mxu0
  %v3332 = vadd.f32 0.0, %v3331
  %3333 = vdwg.mxu0
  %3334 = vmatprep.subr.mxu0 %v2473
  %3335 = vmatpush1.msra.mxu0 %v2472
  %3336 = vmatprep.subr.mxu0 %v2498
  %3337 = vmatpush1.msra.mxu0 %v2497
  %3338 = vmatprep.subr.mxu0 %v2523
  %3339 = vmatpush1.msra.mxu0 %v2522
  %3340 = vmatprep.subr.mxu0 0.0
  %3341 = vmatpush1.msra.mxu0 0.0
  %3342 = vmatprep.subr.mxu0 0.0
  %3343 = vmatpush1.msra.mxu0 0.0
  %3344 = vmatprep.subr.mxu0 0.0
  %3345 = vmatpush1.msra.mxu0 0.0
  %3346 = vmatprep.subr.mxu0 0.0
  %3347 = vmatpush1.msra.mxu0 0.0
  %3348 = vmatprep.subr.mxu0 0.0
  %3349 = vmatpush1.msra.mxu0 0.0
  %3350 = vmatprep.subr.mxu0 0.0
  %3351 = vmatpush1.msra.mxu0 0.0
  %3352 = vmatprep.subr.mxu0 0.0
  %3353 = vmatpush1.msra.mxu0 0.0
  %3354 = vmatprep.subr.mxu0 0.0
  %3355 = vmatpush1.msra.mxu0 0.0
  %3356 = vmatprep.subr.mxu0 0.0
  %3357 = vmatpush1.msra.mxu0 0.0
  %3358 = vmatprep.subr.mxu0 0.0
  %3359 = vmatpush1.msra.mxu0 0.0
  %3360 = vmatprep.subr.mxu0 0.0
  %3361 = vmatpush1.msra.mxu0 0.0
  %3362 = vmatprep.subr.mxu0 0.0
  %3363 = vmatpush1.msra.mxu0 0.0
  %3364 = vmatprep.subr.mxu0 0.0
  %3365 = vmatpush1.msra.mxu0 0.0
  %3366 = vmatprep.subr.mxu0 0.0
  %3367 = vmatpush1.msra.mxu0 0.0
  %3368 = vmatprep.subr.mxu0 0.0
  %3369 = vmatpush1.msra.mxu0 0.0
  %3370 = vmatprep.subr.mxu0 0.0
  %3371 = vmatpush1.msra.mxu0 0.0
  %3372 = vmatprep.subr.mxu0 0.0
  %3373 = vmatpush1.msra.mxu0 0.0
  %3374 = vmatprep.subr.mxu0 0.0
  %3375 = vmatpush1.msra.mxu0 0.0
  %3376 = vmatprep.subr.mxu0 0.0
  %3377 = vmatpush1.msra.mxu0 0.0
  %3378 = vmatprep.subr.mxu0 0.0
  %3379 = vmatpush1.msra.mxu0 0.0
  %3380 = vmatprep.subr.mxu0 0.0
  %3381 = vmatpush1.msra.mxu0 0.0
  %3382 = vmatprep.subr.mxu0 0.0
  %3383 = vmatpush1.msra.mxu0 0.0
  %3384 = vmatprep.subr.mxu0 0.0
  %3385 = vmatpush1.msra.mxu0 0.0
  %3386 = vmatprep.subr.mxu0 0.0
  %3387 = vmatpush1.msra.mxu0 0.0
  %3388 = vmatprep.subr.mxu0 0.0
  %3389 = vmatpush1.msra.mxu0 0.0
  %3390 = vmatprep.subr.mxu0 0.0
  %3391 = vmatpush1.msra.mxu0 0.0
  %3392 = vmatprep.subr.mxu0 0.0
  %3393 = vmatpush1.msra.mxu0 0.0
  %3394 = vmatprep.subr.mxu0 0.0
  %3395 = vmatpush1.msra.mxu0 0.0
  %3396 = vmatprep.subr.mxu0 0.0
  %3397 = vmatpush1.msra.mxu0 0.0
  %3398 = vmatprep.mubr.f32.mxu0 0.0
  %3399 = vmatmul.mubr.f32.gmra.mrb[0].mxu0 %v2614
  %v3400 = vpop.f32.mrb[0].mxu0
  %v3401 = vadd.f32 0.0, %v3400
  %v3402 = vpop.f32.mrb[0].mxu0
  %v3403 = vadd.f32 0.0, %v3402
  %3404 = vmatprep.mubr.f32.mxu0 0.0
  %3405 = vmatmul.mubr.f32.gmra.mrb[0].mxu0 %v2617
  %v3406 = vpop.f32.mrb[0].mxu0
  %v3407 = vadd.f32 0.0, %v3406
  %v3408 = vpop.f32.mrb[0].mxu0
  %v3409 = vadd.f32 0.0, %v3408
  %3410 = vmatprep.mubr.f32.mxu0 0.0
  %3411 = vmatmul.mubr.f32.gmra.mrb[0].mxu0 %v2620
  %v3412 = vpop.f32.mrb[0].mxu0
  %v3413 = vadd.f32 0.0, %v3412
  %v3414 = vpop.f32.mrb[0].mxu0
  %v3415 = vadd.f32 0.0, %v3414
  %3416 = vmatprep.mubr.f32.mxu0 0.0
  %3417 = vmatmul.mubr.f32.gmra.mrb[0].mxu0 %v2623
  %v3418 = vpop.f32.mrb[0].mxu0
  %v3419 = vadd.f32 0.0, %v3418
  %v3420 = vpop.f32.mrb[0].mxu0
  %v3421 = vadd.f32 0.0, %v3420
  %3422 = vmatprep.mubr.f32.mxu0 0.0
  %3423 = vmatmul.mubr.f32.gmra.mrb[0].mxu0 %v2626
  %v3424 = vpop.f32.mrb[0].mxu0
  %v3425 = vadd.f32 0.0, %v3424
  %v3426 = vpop.f32.mrb[0].mxu0
  %v3427 = vadd.f32 0.0, %v3426
  %3428 = vmatprep.mubr.f32.mxu0 0.0
  %3429 = vmatmul.mubr.f32.gmra.mrb[0].mxu0 %v2629
  %v3430 = vpop.f32.mrb[0].mxu0
  %v3431 = vadd.f32 0.0, %v3430
  %v3432 = vpop.f32.mrb[0].mxu0
  %v3433 = vadd.f32 0.0, %v3432
  %3434 = vmatprep.mubr.f32.mxu0 0.0
  %3435 = vmatmul.mubr.f32.gmra.mrb[0].mxu0 %v2632
  %v3436 = vpop.f32.mrb[0].mxu0
  %v3437 = vadd.f32 0.0, %v3436
  %v3438 = vpop.f32.mrb[0].mxu0
  %v3439 = vadd.f32 0.0, %v3438
  %3440 = vmatprep.mubr.f32.mxu0 0.0
  %3441 = vmatmul.mubr.f32.gmra.mrb[0].mxu0 %v2635
  %v3442 = vpop.f32.mrb[0].mxu0
  %v3443 = vadd.f32 0.0, %v3442
  %v3444 = vpop.f32.mrb[0].mxu0
  %v3445 = vadd.f32 0.0, %v3444
  %3446 = vmatprep.mubr.f32.mxu0 0.0
  %3447 = vmatmul.mubr.f32.gmra.mrb[0].mxu0 %v2638
  %v3448 = vpop.f32.mrb[0].mxu0
  %v3449 = vadd.f32 0.0, %v3448
  %v3450 = vpop.f32.mrb[0].mxu0
  %v3451 = vadd.f32 0.0, %v3450
  %3452 = vmatprep.mubr.f32.mxu0 0.0
  %3453 = vmatmul.mubr.f32.gmra.mrb[0].mxu0 %v2641
  %v3454 = vpop.f32.mrb[0].mxu0
  %v3455 = vadd.f32 0.0, %v3454
  %v3456 = vpop.f32.mrb[0].mxu0
  %v3457 = vadd.f32 0.0, %v3456
  %3458 = vmatprep.mubr.f32.mxu0 0.0
  %3459 = vmatmul.mubr.f32.gmra.mrb[0].mxu0 %v2644
  %v3460 = vpop.f32.mrb[0].mxu0
  %v3461 = vadd.f32 0.0, %v3460
  %v3462 = vpop.f32.mrb[0].mxu0
  %v3463 = vadd.f32 0.0, %v3462
  %3464 = vmatprep.mubr.f32.mxu0 0.0
  %3465 = vmatmul.mubr.f32.gmra.mrb[0].mxu0 %v2647
  %v3466 = vpop.f32.mrb[0].mxu0
  %v3467 = vadd.f32 0.0, %v3466
  %v3468 = vpop.f32.mrb[0].mxu0
  %v3469 = vadd.f32 0.0, %v3468
  %3470 = vdwg.mxu0
  %3471 = vmatprep.subr.mxu0 %v2475
  %3472 = vmatpush1.msra.mxu0 %v2474
  %3473 = vmatprep.subr.mxu0 %v2500
  %3474 = vmatpush1.msra.mxu0 %v2499
  %3475 = vmatprep.subr.mxu0 %v2525
  %3476 = vmatpush1.msra.mxu0 %v2524
  %3477 = vmatprep.subr.mxu0 0.0
  %3478 = vmatpush1.msra.mxu0 0.0
  %3479 = vmatprep.subr.mxu0 0.0
  %3480 = vmatpush1.msra.mxu0 0.0
  %3481 = vmatprep.subr.mxu0 0.0
  %3482 = vmatpush1.msra.mxu0 0.0
  %3483 = vmatprep.subr.mxu0 0.0
  %3484 = vmatpush1.msra.mxu0 0.0
  %3485 = vmatprep.subr.mxu0 0.0
  %3486 = vmatpush1.msra.mxu0 0.0
  %3487 = vmatprep.subr.mxu0 0.0
  %3488 = vmatpush1.msra.mxu0 0.0
  %3489 = vmatprep.subr.mxu0 0.0
  %3490 = vmatpush1.msra.mxu0 0.0
  %3491 = vmatprep.subr.mxu0 0.0
  %3492 = vmatpush1.msra.mxu0 0.0
  %3493 = vmatprep.subr.mxu0 0.0
  %3494 = vmatpush1.msra.mxu0 0.0
  %3495 = vmatprep.subr.mxu0 0.0
  %3496 = vmatpush1.msra.mxu0 0.0
  %3497 = vmatprep.subr.mxu0 0.0
  %3498 = vmatpush1.msra.mxu0 0.0
  %3499 = vmatprep.subr.mxu0 0.0
  %3500 = vmatpush1.msra.mxu0 0.0
  %3501 = vmatprep.subr.mxu0 0.0
  %3502 = vmatpush1.msra.mxu0 0.0
  %3503 = vmatprep.subr.mxu0 0.0
  %3504 = vmatpush1.msra.mxu0 0.0
  %3505 = vmatprep.subr.mxu0 0.0
  %3506 = vmatpush1.msra.mxu0 0.0
  %3507 = vmatprep.subr.mxu0 0.0
  %3508 = vmatpush1.msra.mxu0 0.0
  %3509 = vmatprep.subr.mxu0 0.0
  %3510 = vmatpush1.msra.mxu0 0.0
  %3511 = vmatprep.subr.mxu0 0.0
  %3512 = vmatpush1.msra.mxu0 0.0
  %3513 = vmatprep.subr.mxu0 0.0
  %3514 = vmatpush1.msra.mxu0 0.0
  %3515 = vmatprep.subr.mxu0 0.0
  %3516 = vmatpush1.msra.mxu0 0.0
  %3517 = vmatprep.subr.mxu0 0.0
  %3518 = vmatpush1.msra.mxu0 0.0
  %3519 = vmatprep.subr.mxu0 0.0
  %3520 = vmatpush1.msra.mxu0 0.0
  %3521 = vmatprep.subr.mxu0 0.0
  %3522 = vmatpush1.msra.mxu0 0.0
  %3523 = vmatprep.subr.mxu0 0.0
  %3524 = vmatpush1.msra.mxu0 0.0
  %3525 = vmatprep.subr.mxu0 0.0
  %3526 = vmatpush1.msra.mxu0 0.0
  %3527 = vmatprep.subr.mxu0 0.0
  %3528 = vmatpush1.msra.mxu0 0.0
  %3529 = vmatprep.subr.mxu0 0.0
  %3530 = vmatpush1.msra.mxu0 0.0
  %3531 = vmatprep.subr.mxu0 0.0
  %3532 = vmatpush1.msra.mxu0 0.0
  %3533 = vmatprep.subr.mxu0 0.0
  %3534 = vmatpush1.msra.mxu0 0.0
  %3535 = vmatprep.mubr.f32.mxu0 0.0
  %3536 = vmatmul.mubr.f32.gmra.mrb[0].mxu0 %v2614
  %v3537 = vpop.f32.mrb[0].mxu0
  %v3538 = vadd.f32 0.0, %v3537
  %v3539 = vpop.f32.mrb[0].mxu0
  %v3540 = vadd.f32 0.0, %v3539
  %3541 = vmatprep.mubr.f32.mxu0 0.0
  %3542 = vmatmul.mubr.f32.gmra.mrb[0].mxu0 %v2617
  %v3543 = vpop.f32.mrb[0].mxu0
  %v3544 = vadd.f32 0.0, %v3543
  %v3545 = vpop.f32.mrb[0].mxu0
  %v3546 = vadd.f32 0.0, %v3545
  %3547 = vmatprep.mubr.f32.mxu0 0.0
  %3548 = vmatmul.mubr.f32.gmra.mrb[0].mxu0 %v2620
  %v3549 = vpop.f32.mrb[0].mxu0
  %v3550 = vadd.f32 0.0, %v3549
  %v3551 = vpop.f32.mrb[0].mxu0
  %v3552 = vadd.f32 0.0, %v3551
  %3553 = vmatprep.mubr.f32.mxu0 0.0
  %3554 = vmatmul.mubr.f32.gmra.mrb[0].mxu0 %v2623
  %v3555 = vpop.f32.mrb[0].mxu0
  %v3556 = vadd.f32 0.0, %v3555
  %v3557 = vpop.f32.mrb[0].mxu0
  %v3558 = vadd.f32 0.0, %v3557
  %3559 = vmatprep.mubr.f32.mxu0 0.0
  %3560 = vmatmul.mubr.f32.gmra.mrb[0].mxu0 %v2626
  %v3561 = vpop.f32.mrb[0].mxu0
  %v3562 = vadd.f32 0.0, %v3561
  %v3563 = vpop.f32.mrb[0].mxu0
  %v3564 = vadd.f32 0.0, %v3563
  %3565 = vmatprep.mubr.f32.mxu0 0.0
  %3566 = vmatmul.mubr.f32.gmra.mrb[0].mxu0 %v2629
  %v3567 = vpop.f32.mrb[0].mxu0
  %v3568 = vadd.f32 0.0, %v3567
  %v3569 = vpop.f32.mrb[0].mxu0
  %v3570 = vadd.f32 0.0, %v3569
  %3571 = vmatprep.mubr.f32.mxu0 0.0
  %3572 = vmatmul.mubr.f32.gmra.mrb[0].mxu0 %v2632
  %v3573 = vpop.f32.mrb[0].mxu0
  %v3574 = vadd.f32 0.0, %v3573
  %v3575 = vpop.f32.mrb[0].mxu0
  %v3576 = vadd.f32 0.0, %v3575
  %3577 = vmatprep.mubr.f32.mxu0 0.0
  %3578 = vmatmul.mubr.f32.gmra.mrb[0].mxu0 %v2635
  %v3579 = vpop.f32.mrb[0].mxu0
  %v3580 = vadd.f32 0.0, %v3579
  %v3581 = vpop.f32.mrb[0].mxu0
  %v3582 = vadd.f32 0.0, %v3581
  %3583 = vmatprep.mubr.f32.mxu0 0.0
  %3584 = vmatmul.mubr.f32.gmra.mrb[0].mxu0 %v2638
  %v3585 = vpop.f32.mrb[0].mxu0
  %v3586 = vadd.f32 0.0, %v3585
  %v3587 = vpop.f32.mrb[0].mxu0
  %v3588 = vadd.f32 0.0, %v3587
  %3589 = vmatprep.mubr.f32.mxu0 0.0
  %3590 = vmatmul.mubr.f32.gmra.mrb[0].mxu0 %v2641
  %v3591 = vpop.f32.mrb[0].mxu0
  %v3592 = vadd.f32 0.0, %v3591
  %v3593 = vpop.f32.mrb[0].mxu0
  %v3594 = vadd.f32 0.0, %v3593
  %3595 = vmatprep.mubr.f32.mxu0 0.0
  %3596 = vmatmul.mubr.f32.gmra.mrb[0].mxu0 %v2644
  %v3597 = vpop.f32.mrb[0].mxu0
  %v3598 = vadd.f32 0.0, %v3597
  %v3599 = vpop.f32.mrb[0].mxu0
  %v3600 = vadd.f32 0.0, %v3599
  %3601 = vmatprep.mubr.f32.mxu0 0.0
  %3602 = vmatmul.mubr.f32.gmra.mrb[0].mxu0 %v2647
  %v3603 = vpop.f32.mrb[0].mxu0
  %v3604 = vadd.f32 0.0, %v3603
  %v3605 = vpop.f32.mrb[0].mxu0
  %v3606 = vadd.f32 0.0, %v3605
  %3607 = vdwg.mxu0
  %3608 = vmatprep.subr.mxu0 %v2477
  %3609 = vmatpush1.msra.mxu0 %v2476
  %3610 = vmatprep.subr.mxu0 %v2502
  %3611 = vmatpush1.msra.mxu0 %v2501
  %3612 = vmatprep.subr.mxu0 %v2527
  %3613 = vmatpush1.msra.mxu0 %v2526
  %3614 = vmatprep.subr.mxu0 0.0
  %3615 = vmatpush1.msra.mxu0 0.0
  %3616 = vmatprep.subr.mxu0 0.0
  %3617 = vmatpush1.msra.mxu0 0.0
  %3618 = vmatprep.subr.mxu0 0.0
  %3619 = vmatpush1.msra.mxu0 0.0
  %3620 = vmatprep.subr.mxu0 0.0
  %3621 = vmatpush1.msra.mxu0 0.0
  %3622 = vmatprep.subr.mxu0 0.0
  %3623 = vmatpush1.msra.mxu0 0.0
  %3624 = vmatprep.subr.mxu0 0.0
  %3625 = vmatpush1.msra.mxu0 0.0
  %3626 = vmatprep.subr.mxu0 0.0
  %3627 = vmatpush1.msra.mxu0 0.0
  %3628 = vmatprep.subr.mxu0 0.0
  %3629 = vmatpush1.msra.mxu0 0.0
  %3630 = vmatprep.subr.mxu0 0.0
  %3631 = vmatpush1.msra.mxu0 0.0
  %3632 = vmatprep.subr.mxu0 0.0
  %3633 = vmatpush1.msra.mxu0 0.0
  %3634 = vmatprep.subr.mxu0 0.0
  %3635 = vmatpush1.msra.mxu0 0.0
  %3636 = vmatprep.subr.mxu0 0.0
  %3637 = vmatpush1.msra.mxu0 0.0
  %3638 = vmatprep.subr.mxu0 0.0
  %3639 = vmatpush1.msra.mxu0 0.0
  %3640 = vmatprep.subr.mxu0 0.0
  %3641 = vmatpush1.msra.mxu0 0.0
  %3642 = vmatprep.subr.mxu0 0.0
  %3643 = vmatpush1.msra.mxu0 0.0
  %3644 = vmatprep.subr.mxu0 0.0
  %3645 = vmatpush1.msra.mxu0 0.0
  %3646 = vmatprep.subr.mxu0 0.0
  %3647 = vmatpush1.msra.mxu0 0.0
  %3648 = vmatprep.subr.mxu0 0.0
  %3649 = vmatpush1.msra.mxu0 0.0
  %3650 = vmatprep.subr.mxu0 0.0
  %3651 = vmatpush1.msra.mxu0 0.0
  %3652 = vmatprep.subr.mxu0 0.0
  %3653 = vmatpush1.msra.mxu0 0.0
  %3654 = vmatprep.subr.mxu0 0.0
  %3655 = vmatpush1.msra.mxu0 0.0
  %3656 = vmatprep.subr.mxu0 0.0
  %3657 = vmatpush1.msra.mxu0 0.0
  %3658 = vmatprep.subr.mxu0 0.0
  %3659 = vmatpush1.msra.mxu0 0.0
  %3660 = vmatprep.subr.mxu0 0.0
  %3661 = vmatpush1.msra.mxu0 0.0
  %3662 = vmatprep.subr.mxu0 0.0
  %3663 = vmatpush1.msra.mxu0 0.0
  %3664 = vmatprep.subr.mxu0 0.0
  %3665 = vmatpush1.msra.mxu0 0.0
  %3666 = vmatprep.subr.mxu0 0.0
  %3667 = vmatpush1.msra.mxu0 0.0
  %3668 = vmatprep.subr.mxu0 0.0
  %3669 = vmatpush1.msra.mxu0 0.0
  %3670 = vmatprep.subr.mxu0 0.0
  %3671 = vmatpush1.msra.mxu0 0.0
  %3672 = vmatprep.mubr.f32.mxu0 0.0
  %3673 = vmatmul.mubr.f32.gmra.mrb[0].mxu0 %v2614
  %v3674 = vpop.f32.mrb[0].mxu0
  %v3675 = vadd.f32 0.0, %v3674
  %v3676 = vpop.f32.mrb[0].mxu0
  %v3677 = vadd.f32 0.0, %v3676
  %3678 = vmatprep.mubr.f32.mxu0 0.0
  %3679 = vmatmul.mubr.f32.gmra.mrb[0].mxu0 %v2617
  %v3680 = vpop.f32.mrb[0].mxu0
  %v3681 = vadd.f32 0.0, %v3680
  %v3682 = vpop.f32.mrb[0].mxu0
  %v3683 = vadd.f32 0.0, %v3682
  %3684 = vmatprep.mubr.f32.mxu0 0.0
  %3685 = vmatmul.mubr.f32.gmra.mrb[0].mxu0 %v2620
  %v3686 = vpop.f32.mrb[0].mxu0
  %v3687 = vadd.f32 0.0, %v3686
  %v3688 = vpop.f32.mrb[0].mxu0
  %v3689 = vadd.f32 0.0, %v3688
  %3690 = vmatprep.mubr.f32.mxu0 0.0
  %3691 = vmatmul.mubr.f32.gmra.mrb[0].mxu0 %v2623
  %v3692 = vpop.f32.mrb[0].mxu0
  %v3693 = vadd.f32 0.0, %v3692
  %v3694 = vpop.f32.mrb[0].mxu0
  %v3695 = vadd.f32 0.0, %v3694
  %3696 = vmatprep.mubr.f32.mxu0 0.0
  %3697 = vmatmul.mubr.f32.gmra.mrb[0].mxu0 %v2626
  %v3698 = vpop.f32.mrb[0].mxu0
  %v3699 = vadd.f32 0.0, %v3698
  %v3700 = vpop.f32.mrb[0].mxu0
  %v3701 = vadd.f32 0.0, %v3700
  %3702 = vmatprep.mubr.f32.mxu0 0.0
  %3703 = vmatmul.mubr.f32.gmra.mrb[0].mxu0 %v2629
  %v3704 = vpop.f32.mrb[0].mxu0
  %v3705 = vadd.f32 0.0, %v3704
  %v3706 = vpop.f32.mrb[0].mxu0
  %v3707 = vadd.f32 0.0, %v3706
  %3708 = vmatprep.mubr.f32.mxu0 0.0
  %3709 = vmatmul.mubr.f32.gmra.mrb[0].mxu0 %v2632
  %v3710 = vpop.f32.mrb[0].mxu0
  %v3711 = vadd.f32 0.0, %v3710
  %v3712 = vpop.f32.mrb[0].mxu0
  %v3713 = vadd.f32 0.0, %v3712
  %3714 = vmatprep.mubr.f32.mxu0 0.0
  %3715 = vmatmul.mubr.f32.gmra.mrb[0].mxu0 %v2635
  %v3716 = vpop.f32.mrb[0].mxu0
  %v3717 = vadd.f32 0.0, %v3716
  %v3718 = vpop.f32.mrb[0].mxu0
  %v3719 = vadd.f32 0.0, %v3718
  %3720 = vmatprep.mubr.f32.mxu0 0.0
  %3721 = vmatmul.mubr.f32.gmra.mrb[0].mxu0 %v2638
  %v3722 = vpop.f32.mrb[0].mxu0
  %v3723 = vadd.f32 0.0, %v3722
  %v3724 = vpop.f32.mrb[0].mxu0
  %v3725 = vadd.f32 0.0, %v3724
  %3726 = vmatprep.mubr.f32.mxu0 0.0
  %3727 = vmatmul.mubr.f32.gmra.mrb[0].mxu0 %v2641
  %v3728 = vpop.f32.mrb[0].mxu0
  %v3729 = vadd.f32 0.0, %v3728
  %v3730 = vpop.f32.mrb[0].mxu0
  %v3731 = vadd.f32 0.0, %v3730
  %3732 = vmatprep.mubr.f32.mxu0 0.0
  %3733 = vmatmul.mubr.f32.gmra.mrb[0].mxu0 %v2644
  %v3734 = vpop.f32.mrb[0].mxu0
  %v3735 = vadd.f32 0.0, %v3734
  %v3736 = vpop.f32.mrb[0].mxu0
  %v3737 = vadd.f32 0.0, %v3736
  %3738 = vmatprep.mubr.f32.mxu0 0.0
  %3739 = vmatmul.mubr.f32.gmra.mrb[0].mxu0 %v2647
  %v3740 = vpop.f32.mrb[0].mxu0
  %v3741 = vadd.f32 0.0, %v3740
  %v3742 = vpop.f32.mrb[0].mxu0
  %v3743 = vadd.f32 0.0, %v3742
  %3744 = vdwg.mxu0
  %3745 = vmatprep.subr.mxu0 %v2479
  %3746 = vmatpush1.msra.mxu0 %v2478
  %3747 = vmatprep.subr.mxu0 %v2504
  %3748 = vmatpush1.msra.mxu0 %v2503
  %3749 = vmatprep.subr.mxu0 %v2529
  %3750 = vmatpush1.msra.mxu0 %v2528
  %3751 = vmatprep.subr.mxu0 0.0
  %3752 = vmatpush1.msra.mxu0 0.0
  %3753 = vmatprep.subr.mxu0 0.0
  %3754 = vmatpush1.msra.mxu0 0.0
  %3755 = vmatprep.subr.mxu0 0.0
  %3756 = vmatpush1.msra.mxu0 0.0
  %3757 = vmatprep.subr.mxu0 0.0
  %3758 = vmatpush1.msra.mxu0 0.0
  %3759 = vmatprep.subr.mxu0 0.0
  %3760 = vmatpush1.msra.mxu0 0.0
  %3761 = vmatprep.subr.mxu0 0.0
  %3762 = vmatpush1.msra.mxu0 0.0
  %3763 = vmatprep.subr.mxu0 0.0
  %3764 = vmatpush1.msra.mxu0 0.0
  %3765 = vmatprep.subr.mxu0 0.0
  %3766 = vmatpush1.msra.mxu0 0.0
  %3767 = vmatprep.subr.mxu0 0.0
  %3768 = vmatpush1.msra.mxu0 0.0
  %3769 = vmatprep.subr.mxu0 0.0
  %3770 = vmatpush1.msra.mxu0 0.0
  %3771 = vmatprep.subr.mxu0 0.0
  %3772 = vmatpush1.msra.mxu0 0.0
  %3773 = vmatprep.subr.mxu0 0.0
  %3774 = vmatpush1.msra.mxu0 0.0
  %3775 = vmatprep.subr.mxu0 0.0
  %3776 = vmatpush1.msra.mxu0 0.0
  %3777 = vmatprep.subr.mxu0 0.0
  %3778 = vmatpush1.msra.mxu0 0.0
  %3779 = vmatprep.subr.mxu0 0.0
  %3780 = vmatpush1.msra.mxu0 0.0
  %3781 = vmatprep.subr.mxu0 0.0
  %3782 = vmatpush1.msra.mxu0 0.0
  %3783 = vmatprep.subr.mxu0 0.0
  %3784 = vmatpush1.msra.mxu0 0.0
  %3785 = vmatprep.subr.mxu0 0.0
  %3786 = vmatpush1.msra.mxu0 0.0
  %3787 = vmatprep.subr.mxu0 0.0
  %3788 = vmatpush1.msra.mxu0 0.0
  %3789 = vmatprep.subr.mxu0 0.0
  %3790 = vmatpush1.msra.mxu0 0.0
  %3791 = vmatprep.subr.mxu0 0.0
  %3792 = vmatpush1.msra.mxu0 0.0
  %3793 = vmatprep.subr.mxu0 0.0
  %3794 = vmatpush1.msra.mxu0 0.0
  %3795 = vmatprep.subr.mxu0 0.0
  %3796 = vmatpush1.msra.mxu0 0.0
  %3797 = vmatprep.subr.mxu0 0.0
  %3798 = vmatpush1.msra.mxu0 0.0
  %3799 = vmatprep.subr.mxu0 0.0
  %3800 = vmatpush1.msra.mxu0 0.0
  %3801 = vmatprep.subr.mxu0 0.0
  %3802 = vmatpush1.msra.mxu0 0.0
  %3803 = vmatprep.subr.mxu0 0.0
  %3804 = vmatpush1.msra.mxu0 0.0
  %3805 = vmatprep.subr.mxu0 0.0
  %3806 = vmatpush1.msra.mxu0 0.0
  %3807 = vmatprep.subr.mxu0 0.0
  %3808 = vmatpush1.msra.mxu0 0.0
  %3809 = vmatprep.mubr.f32.mxu0 0.0
  %3810 = vmatmul.mubr.f32.gmra.mrb[0].mxu0 %v2614
  %v3811 = vpop.f32.mrb[0].mxu0
  %v3812 = vadd.f32 0.0, %v3811
  %v3813 = vpop.f32.mrb[0].mxu0
  %v3814 = vadd.f32 0.0, %v3813
  %3815 = vmatprep.mubr.f32.mxu0 0.0
  %3816 = vmatmul.mubr.f32.gmra.mrb[0].mxu0 %v2617
  %v3817 = vpop.f32.mrb[0].mxu0
  %v3818 = vadd.f32 0.0, %v3817
  %v3819 = vpop.f32.mrb[0].mxu0
  %v3820 = vadd.f32 0.0, %v3819
  %3821 = vmatprep.mubr.f32.mxu0 0.0
  %3822 = vmatmul.mubr.f32.gmra.mrb[0].mxu0 %v2620
  %v3823 = vpop.f32.mrb[0].mxu0
  %v3824 = vadd.f32 0.0, %v3823
  %v3825 = vpop.f32.mrb[0].mxu0
  %v3826 = vadd.f32 0.0, %v3825
  %3827 = vmatprep.mubr.f32.mxu0 0.0
  %3828 = vmatmul.mubr.f32.gmra.mrb[0].mxu0 %v2623
  %v3829 = vpop.f32.mrb[0].mxu0
  %v3830 = vadd.f32 0.0, %v3829
  %v3831 = vpop.f32.mrb[0].mxu0
  %v3832 = vadd.f32 0.0, %v3831
  %3833 = vmatprep.mubr.f32.mxu0 0.0
  %3834 = vmatmul.mubr.f32.gmra.mrb[0].mxu0 %v2626
  %v3835 = vpop.f32.mrb[0].mxu0
  %v3836 = vadd.f32 0.0, %v3835
  %v3837 = vpop.f32.mrb[0].mxu0
  %v3838 = vadd.f32 0.0, %v3837
  %3839 = vmatprep.mubr.f32.mxu0 0.0
  %3840 = vmatmul.mubr.f32.gmra.mrb[0].mxu0 %v2629
  %v3841 = vpop.f32.mrb[0].mxu0
  %v3842 = vadd.f32 0.0, %v3841
  %v3843 = vpop.f32.mrb[0].mxu0
  %v3844 = vadd.f32 0.0, %v3843
  %3845 = vmatprep.mubr.f32.mxu0 0.0
  %3846 = vmatmul.mubr.f32.gmra.mrb[0].mxu0 %v2632
  %v3847 = vpop.f32.mrb[0].mxu0
  %v3848 = vadd.f32 0.0, %v3847
  %v3849 = vpop.f32.mrb[0].mxu0
  %v3850 = vadd.f32 0.0, %v3849
  %3851 = vmatprep.mubr.f32.mxu0 0.0
  %3852 = vmatmul.mubr.f32.gmra.mrb[0].mxu0 %v2635
  %v3853 = vpop.f32.mrb[0].mxu0
  %v3854 = vadd.f32 0.0, %v3853
  %v3855 = vpop.f32.mrb[0].mxu0
  %v3856 = vadd.f32 0.0, %v3855
  %3857 = vmatprep.mubr.f32.mxu0 0.0
  %3858 = vmatmul.mubr.f32.gmra.mrb[0].mxu0 %v2638
  %v3859 = vpop.f32.mrb[0].mxu0
  %v3860 = vadd.f32 0.0, %v3859
  %v3861 = vpop.f32.mrb[0].mxu0
  %v3862 = vadd.f32 0.0, %v3861
  %3863 = vmatprep.mubr.f32.mxu0 0.0
  %3864 = vmatmul.mubr.f32.gmra.mrb[0].mxu0 %v2641
  %v3865 = vpop.f32.mrb[0].mxu0
  %v3866 = vadd.f32 0.0, %v3865
  %v3867 = vpop.f32.mrb[0].mxu0
  %v3868 = vadd.f32 0.0, %v3867
  %3869 = vmatprep.mubr.f32.mxu0 0.0
  %3870 = vmatmul.mubr.f32.gmra.mrb[0].mxu0 %v2644
  %v3871 = vpop.f32.mrb[0].mxu0
  %v3872 = vadd.f32 0.0, %v3871
  %v3873 = vpop.f32.mrb[0].mxu0
  %v3874 = vadd.f32 0.0, %v3873
  %3875 = vmatprep.mubr.f32.mxu0 0.0
  %3876 = vmatmul.mubr.f32.gmra.mrb[0].mxu0 %v2647
  %v3877 = vpop.f32.mrb[0].mxu0
  %v3878 = vadd.f32 0.0, %v3877
  %v3879 = vpop.f32.mrb[0].mxu0
  %v3880 = vadd.f32 0.0, %v3879
  %3881 = vdwg.mxu0
  %3882 = vmatprep.subr.mxu0 %v2481
  %3883 = vmatpush1.msra.mxu0 %v2480
  %3884 = vmatprep.subr.mxu0 %v2506
  %3885 = vmatpush1.msra.mxu0 %v2505
  %3886 = vmatprep.subr.mxu0 %v2531
  %3887 = vmatpush1.msra.mxu0 %v2530
  %3888 = vmatprep.subr.mxu0 0.0
  %3889 = vmatpush1.msra.mxu0 0.0
  %3890 = vmatprep.subr.mxu0 0.0
  %3891 = vmatpush1.msra.mxu0 0.0
  %3892 = vmatprep.subr.mxu0 0.0
  %3893 = vmatpush1.msra.mxu0 0.0
  %3894 = vmatprep.subr.mxu0 0.0
  %3895 = vmatpush1.msra.mxu0 0.0
  %3896 = vmatprep.subr.mxu0 0.0
  %3897 = vmatpush1.msra.mxu0 0.0
  %3898 = vmatprep.subr.mxu0 0.0
  %3899 = vmatpush1.msra.mxu0 0.0
  %3900 = vmatprep.subr.mxu0 0.0
  %3901 = vmatpush1.msra.mxu0 0.0
  %3902 = vmatprep.subr.mxu0 0.0
  %3903 = vmatpush1.msra.mxu0 0.0
  %3904 = vmatprep.subr.mxu0 0.0
  %3905 = vmatpush1.msra.mxu0 0.0
  %3906 = vmatprep.subr.mxu0 0.0
  %3907 = vmatpush1.msra.mxu0 0.0
  %3908 = vmatprep.subr.mxu0 0.0
  %3909 = vmatpush1.msra.mxu0 0.0
  %3910 = vmatprep.subr.mxu0 0.0
  %3911 = vmatpush1.msra.mxu0 0.0
  %3912 = vmatprep.subr.mxu0 0.0
  %3913 = vmatpush1.msra.mxu0 0.0
  %3914 = vmatprep.subr.mxu0 0.0
  %3915 = vmatpush1.msra.mxu0 0.0
  %3916 = vmatprep.subr.mxu0 0.0
  %3917 = vmatpush1.msra.mxu0 0.0
  %3918 = vmatprep.subr.mxu0 0.0
  %3919 = vmatpush1.msra.mxu0 0.0
  %3920 = vmatprep.subr.mxu0 0.0
  %3921 = vmatpush1.msra.mxu0 0.0
  %3922 = vmatprep.subr.mxu0 0.0
  %3923 = vmatpush1.msra.mxu0 0.0
  %3924 = vmatprep.subr.mxu0 0.0
  %3925 = vmatpush1.msra.mxu0 0.0
  %3926 = vmatprep.subr.mxu0 0.0
  %3927 = vmatpush1.msra.mxu0 0.0
  %3928 = vmatprep.subr.mxu0 0.0
  %3929 = vmatpush1.msra.mxu0 0.0
  %3930 = vmatprep.subr.mxu0 0.0
  %3931 = vmatpush1.msra.mxu0 0.0
  %3932 = vmatprep.subr.mxu0 0.0
  %3933 = vmatpush1.msra.mxu0 0.0
  %3934 = vmatprep.subr.mxu0 0.0
  %3935 = vmatpush1.msra.mxu0 0.0
  %3936 = vmatprep.subr.mxu0 0.0
  %3937 = vmatpush1.msra.mxu0 0.0
  %3938 = vmatprep.subr.mxu0 0.0
  %3939 = vmatpush1.msra.mxu0 0.0
  %3940 = vmatprep.subr.mxu0 0.0
  %3941 = vmatpush1.msra.mxu0 0.0
  %3942 = vmatprep.subr.mxu0 0.0
  %3943 = vmatpush1.msra.mxu0 0.0
  %3944 = vmatprep.subr.mxu0 0.0
  %3945 = vmatpush1.msra.mxu0 0.0
  %3946 = vmatprep.mubr.f32.mxu0 0.0
  %3947 = vmatmul.mubr.f32.gmra.mrb[0].mxu0 %v2614
  %v3948 = vpop.f32.mrb[0].mxu0
  %v3949 = vadd.f32 0.0, %v3948
  %v3950 = vpop.f32.mrb[0].mxu0
  %v3951 = vadd.f32 0.0, %v3950
  %3952 = vmatprep.mubr.f32.mxu0 0.0
  %3953 = vmatmul.mubr.f32.gmra.mrb[0].mxu0 %v2617
  %v3954 = vpop.f32.mrb[0].mxu0
  %v3955 = vadd.f32 0.0, %v3954
  %v3956 = vpop.f32.mrb[0].mxu0
  %v3957 = vadd.f32 0.0, %v3956
  %3958 = vmatprep.mubr.f32.mxu0 0.0
  %3959 = vmatmul.mubr.f32.gmra.mrb[0].mxu0 %v2620
  %v3960 = vpop.f32.mrb[0].mxu0
  %v3961 = vadd.f32 0.0, %v3960
  %v3962 = vpop.f32.mrb[0].mxu0
  %v3963 = vadd.f32 0.0, %v3962
  %3964 = vmatprep.mubr.f32.mxu0 0.0
  %3965 = vmatmul.mubr.f32.gmra.mrb[0].mxu0 %v2623
  %v3966 = vpop.f32.mrb[0].mxu0
  %v3967 = vadd.f32 0.0, %v3966
  %v3968 = vpop.f32.mrb[0].mxu0
  %v3969 = vadd.f32 0.0, %v3968
  %3970 = vmatprep.mubr.f32.mxu0 0.0
  %3971 = vmatmul.mubr.f32.gmra.mrb[0].mxu0 %v2626
  %v3972 = vpop.f32.mrb[0].mxu0
  %v3973 = vadd.f32 0.0, %v3972
  %v3974 = vpop.f32.mrb[0].mxu0
  %v3975 = vadd.f32 0.0, %v3974
  %3976 = vmatprep.mubr.f32.mxu0 0.0
  %3977 = vmatmul.mubr.f32.gmra.mrb[0].mxu0 %v2629
  %v3978 = vpop.f32.mrb[0].mxu0
  %v3979 = vadd.f32 0.0, %v3978
  %v3980 = vpop.f32.mrb[0].mxu0
  %v3981 = vadd.f32 0.0, %v3980
  %3982 = vmatprep.mubr.f32.mxu0 0.0
  %3983 = vmatmul.mubr.f32.gmra.mrb[0].mxu0 %v2632
  %v3984 = vpop.f32.mrb[0].mxu0
  %v3985 = vadd.f32 0.0, %v3984
  %v3986 = vpop.f32.mrb[0].mxu0
  %v3987 = vadd.f32 0.0, %v3986
  %3988 = vmatprep.mubr.f32.mxu0 0.0
  %3989 = vmatmul.mubr.f32.gmra.mrb[0].mxu0 %v2635
  %v3990 = vpop.f32.mrb[0].mxu0
  %v3991 = vadd.f32 0.0, %v3990
  %v3992 = vpop.f32.mrb[0].mxu0
  %v3993 = vadd.f32 0.0, %v3992
  %3994 = vmatprep.mubr.f32.mxu0 0.0
  %3995 = vmatmul.mubr.f32.gmra.mrb[0].mxu0 %v2638
  %v3996 = vpop.f32.mrb[0].mxu0
  %v3997 = vadd.f32 0.0, %v3996
  %v3998 = vpop.f32.mrb[0].mxu0
  %v3999 = vadd.f32 0.0, %v3998
  %4000 = vmatprep.mubr.f32.mxu0 0.0
  %4001 = vmatmul.mubr.f32.gmra.mrb[0].mxu0 %v2641
  %v4002 = vpop.f32.mrb[0].mxu0
  %v4003 = vadd.f32 0.0, %v4002
  %v4004 = vpop.f32.mrb[0].mxu0
  %v4005 = vadd.f32 0.0, %v4004
  %4006 = vmatprep.mubr.f32.mxu0 0.0
  %4007 = vmatmul.mubr.f32.gmra.mrb[0].mxu0 %v2644
  %v4008 = vpop.f32.mrb[0].mxu0
  %v4009 = vadd.f32 0.0, %v4008
  %v4010 = vpop.f32.mrb[0].mxu0
  %v4011 = vadd.f32 0.0, %v4010
  %4012 = vmatprep.mubr.f32.mxu0 0.0
  %4013 = vmatmul.mubr.f32.gmra.mrb[0].mxu0 %v2647
  %v4014 = vpop.f32.mrb[0].mxu0
  %v4015 = vadd.f32 0.0, %v4014
  %v4016 = vpop.f32.mrb[0].mxu0
  %v4017 = vadd.f32 0.0, %v4016
  %4018 = vdwg.mxu0
  %4019 = vmatprep.subr.mxu0 %v2483
  %4020 = vmatpush1.msra.mxu0 %v2482
  %4021 = vmatprep.subr.mxu0 %v2508
  %4022 = vmatpush1.msra.mxu0 %v2507
  %4023 = vmatprep.subr.mxu0 %v2533
  %4024 = vmatpush1.msra.mxu0 %v2532
  %4025 = vmatprep.subr.mxu0 0.0
  %4026 = vmatpush1.msra.mxu0 0.0
  %4027 = vmatprep.subr.mxu0 0.0
  %4028 = vmatpush1.msra.mxu0 0.0
  %4029 = vmatprep.subr.mxu0 0.0
  %4030 = vmatpush1.msra.mxu0 0.0
  %4031 = vmatprep.subr.mxu0 0.0
  %4032 = vmatpush1.msra.mxu0 0.0
  %4033 = vmatprep.subr.mxu0 0.0
  %4034 = vmatpush1.msra.mxu0 0.0
  %4035 = vmatprep.subr.mxu0 0.0
  %4036 = vmatpush1.msra.mxu0 0.0
  %4037 = vmatprep.subr.mxu0 0.0
  %4038 = vmatpush1.msra.mxu0 0.0
  %4039 = vmatprep.subr.mxu0 0.0
  %4040 = vmatpush1.msra.mxu0 0.0
  %4041 = vmatprep.subr.mxu0 0.0
  %4042 = vmatpush1.msra.mxu0 0.0
  %4043 = vmatprep.subr.mxu0 0.0
  %4044 = vmatpush1.msra.mxu0 0.0
  %4045 = vmatprep.subr.mxu0 0.0
  %4046 = vmatpush1.msra.mxu0 0.0
  %4047 = vmatprep.subr.mxu0 0.0
  %4048 = vmatpush1.msra.mxu0 0.0
  %4049 = vmatprep.subr.mxu0 0.0
  %4050 = vmatpush1.msra.mxu0 0.0
  %4051 = vmatprep.subr.mxu0 0.0
  %4052 = vmatpush1.msra.mxu0 0.0
  %4053 = vmatprep.subr.mxu0 0.0
  %4054 = vmatpush1.msra.mxu0 0.0
  %4055 = vmatprep.subr.mxu0 0.0
  %4056 = vmatpush1.msra.mxu0 0.0
  %4057 = vmatprep.subr.mxu0 0.0
  %4058 = vmatpush1.msra.mxu0 0.0
  %4059 = vmatprep.subr.mxu0 0.0
  %4060 = vmatpush1.msra.mxu0 0.0
  %4061 = vmatprep.subr.mxu0 0.0
  %4062 = vmatpush1.msra.mxu0 0.0
  %4063 = vmatprep.subr.mxu0 0.0
  %4064 = vmatpush1.msra.mxu0 0.0
  %4065 = vmatprep.subr.mxu0 0.0
  %4066 = vmatpush1.msra.mxu0 0.0
  %4067 = vmatprep.subr.mxu0 0.0
  %4068 = vmatpush1.msra.mxu0 0.0
  %4069 = vmatprep.subr.mxu0 0.0
  %4070 = vmatpush1.msra.mxu0 0.0
  %4071 = vmatprep.subr.mxu0 0.0
  %4072 = vmatpush1.msra.mxu0 0.0
  %4073 = vmatprep.subr.mxu0 0.0
  %4074 = vmatpush1.msra.mxu0 0.0
  %4075 = vmatprep.subr.mxu0 0.0
  %4076 = vmatpush1.msra.mxu0 0.0
  %4077 = vmatprep.subr.mxu0 0.0
  %4078 = vmatpush1.msra.mxu0 0.0
  %4079 = vmatprep.subr.mxu0 0.0
  %4080 = vmatpush1.msra.mxu0 0.0
  %4081 = vmatprep.subr.mxu0 0.0
  %4082 = vmatpush1.msra.mxu0 0.0
  %4083 = vmatprep.mubr.f32.mxu0 0.0
  %4084 = vmatmul.mubr.f32.gmra.mrb[0].mxu0 %v2614
  %v4085 = vpop.f32.mrb[0].mxu0
  %v4086 = vadd.f32 0.0, %v4085
  %v4087 = vpop.f32.mrb[0].mxu0
  %v4088 = vadd.f32 0.0, %v4087
  %4089 = vmatprep.mubr.f32.mxu0 0.0
  %4090 = vmatmul.mubr.f32.gmra.mrb[0].mxu0 %v2617
  %v4091 = vpop.f32.mrb[0].mxu0
  %v4092 = vadd.f32 0.0, %v4091
  %v4093 = vpop.f32.mrb[0].mxu0
  %v4094 = vadd.f32 0.0, %v4093
  %4095 = vmatprep.mubr.f32.mxu0 0.0
  %4096 = vmatmul.mubr.f32.gmra.mrb[0].mxu0 %v2620
  %v4097 = vpop.f32.mrb[0].mxu0
  %v4098 = vadd.f32 0.0, %v4097
  %v4099 = vpop.f32.mrb[0].mxu0
  %v4100 = vadd.f32 0.0, %v4099
  %4101 = vmatprep.mubr.f32.mxu0 0.0
  %4102 = vmatmul.mubr.f32.gmra.mrb[0].mxu0 %v2623
  %v4103 = vpop.f32.mrb[0].mxu0
  %v4104 = vadd.f32 0.0, %v4103
  %v4105 = vpop.f32.mrb[0].mxu0
  %v4106 = vadd.f32 0.0, %v4105
  %4107 = vmatprep.mubr.f32.mxu0 0.0
  %4108 = vmatmul.mubr.f32.gmra.mrb[0].mxu0 %v2626
  %v4109 = vpop.f32.mrb[0].mxu0
  %v4110 = vadd.f32 0.0, %v4109
  %v4111 = vpop.f32.mrb[0].mxu0
  %v4112 = vadd.f32 0.0, %v4111
  %4113 = vmatprep.mubr.f32.mxu0 0.0
  %4114 = vmatmul.mubr.f32.gmra.mrb[0].mxu0 %v2629
  %v4115 = vpop.f32.mrb[0].mxu0
  %v4116 = vadd.f32 0.0, %v4115
  %v4117 = vpop.f32.mrb[0].mxu0
  %v4118 = vadd.f32 0.0, %v4117
  %4119 = vmatprep.mubr.f32.mxu0 0.0
  %4120 = vmatmul.mubr.f32.gmra.mrb[0].mxu0 %v2632
  %v4121 = vpop.f32.mrb[0].mxu0
  %v4122 = vadd.f32 0.0, %v4121
  %v4123 = vpop.f32.mrb[0].mxu0
  %v4124 = vadd.f32 0.0, %v4123
  %4125 = vmatprep.mubr.f32.mxu0 0.0
  %4126 = vmatmul.mubr.f32.gmra.mrb[0].mxu0 %v2635
  %v4127 = vpop.f32.mrb[0].mxu0
  %v4128 = vadd.f32 0.0, %v4127
  %v4129 = vpop.f32.mrb[0].mxu0
  %v4130 = vadd.f32 0.0, %v4129
  %4131 = vmatprep.mubr.f32.mxu0 0.0
  %4132 = vmatmul.mubr.f32.gmra.mrb[0].mxu0 %v2638
  %v4133 = vpop.f32.mrb[0].mxu0
  %v4134 = vadd.f32 0.0, %v4133
  %v4135 = vpop.f32.mrb[0].mxu0
  %v4136 = vadd.f32 0.0, %v4135
  %4137 = vmatprep.mubr.f32.mxu0 0.0
  %4138 = vmatmul.mubr.f32.gmra.mrb[0].mxu0 %v2641
  %v4139 = vpop.f32.mrb[0].mxu0
  %v4140 = vadd.f32 0.0, %v4139
  %v4141 = vpop.f32.mrb[0].mxu0
  %v4142 = vadd.f32 0.0, %v4141
  %4143 = vmatprep.mubr.f32.mxu0 0.0
  %4144 = vmatmul.mubr.f32.gmra.mrb[0].mxu0 %v2644
  %v4145 = vpop.f32.mrb[0].mxu0
  %v4146 = vadd.f32 0.0, %v4145
  %v4147 = vpop.f32.mrb[0].mxu0
  %v4148 = vadd.f32 0.0, %v4147
  %4149 = vmatprep.mubr.f32.mxu0 0.0
  %4150 = vmatmul.mubr.f32.gmra.mrb[0].mxu0 %v2647
  %v4151 = vpop.f32.mrb[0].mxu0
  %v4152 = vadd.f32 0.0, %v4151
  %v4153 = vpop.f32.mrb[0].mxu0
  %v4154 = vadd.f32 0.0, %v4153
  %4155 = vdwg.mxu0
  %4156 = vmatprep.subr.mxu0 %v2485
  %4157 = vmatpush1.msra.mxu0 %v2484
  %4158 = vmatprep.subr.mxu0 %v2510
  %4159 = vmatpush1.msra.mxu0 %v2509
  %4160 = vmatprep.subr.mxu0 %v2535
  %4161 = vmatpush1.msra.mxu0 %v2534
  %4162 = vmatprep.subr.mxu0 0.0
  %4163 = vmatpush1.msra.mxu0 0.0
  %4164 = vmatprep.subr.mxu0 0.0
  %4165 = vmatpush1.msra.mxu0 0.0
  %4166 = vmatprep.subr.mxu0 0.0
  %4167 = vmatpush1.msra.mxu0 0.0
  %4168 = vmatprep.subr.mxu0 0.0
  %4169 = vmatpush1.msra.mxu0 0.0
  %4170 = vmatprep.subr.mxu0 0.0
  %4171 = vmatpush1.msra.mxu0 0.0
  %4172 = vmatprep.subr.mxu0 0.0
  %4173 = vmatpush1.msra.mxu0 0.0
  %4174 = vmatprep.subr.mxu0 0.0
  %4175 = vmatpush1.msra.mxu0 0.0
  %4176 = vmatprep.subr.mxu0 0.0
  %4177 = vmatpush1.msra.mxu0 0.0
  %4178 = vmatprep.subr.mxu0 0.0
  %4179 = vmatpush1.msra.mxu0 0.0
  %4180 = vmatprep.subr.mxu0 0.0
  %4181 = vmatpush1.msra.mxu0 0.0
  %4182 = vmatprep.subr.mxu0 0.0
  %4183 = vmatpush1.msra.mxu0 0.0
  %4184 = vmatprep.subr.mxu0 0.0
  %4185 = vmatpush1.msra.mxu0 0.0
  %4186 = vmatprep.subr.mxu0 0.0
  %4187 = vmatpush1.msra.mxu0 0.0
  %4188 = vmatprep.subr.mxu0 0.0
  %4189 = vmatpush1.msra.mxu0 0.0
  %4190 = vmatprep.subr.mxu0 0.0
  %4191 = vmatpush1.msra.mxu0 0.0
  %4192 = vmatprep.subr.mxu0 0.0
  %4193 = vmatpush1.msra.mxu0 0.0
  %4194 = vmatprep.subr.mxu0 0.0
  %4195 = vmatpush1.msra.mxu0 0.0
  %4196 = vmatprep.subr.mxu0 0.0
  %4197 = vmatpush1.msra.mxu0 0.0
  %4198 = vmatprep.subr.mxu0 0.0
  %4199 = vmatpush1.msra.mxu0 0.0
  %4200 = vmatprep.subr.mxu0 0.0
  %4201 = vmatpush1.msra.mxu0 0.0
  %4202 = vmatprep.subr.mxu0 0.0
  %4203 = vmatpush1.msra.mxu0 0.0
  %4204 = vmatprep.subr.mxu0 0.0
  %4205 = vmatpush1.msra.mxu0 0.0
  %4206 = vmatprep.subr.mxu0 0.0
  %4207 = vmatpush1.msra.mxu0 0.0
  %4208 = vmatprep.subr.mxu0 0.0
  %4209 = vmatpush1.msra.mxu0 0.0
  %4210 = vmatprep.subr.mxu0 0.0
  %4211 = vmatpush1.msra.mxu0 0.0
  %4212 = vmatprep.subr.mxu0 0.0
  %4213 = vmatpush1.msra.mxu0 0.0
  %4214 = vmatprep.subr.mxu0 0.0
  %4215 = vmatpush1.msra.mxu0 0.0
  %4216 = vmatprep.subr.mxu0 0.0
  %4217 = vmatpush1.msra.mxu0 0.0
  %4218 = vmatprep.subr.mxu0 0.0
  %4219 = vmatpush1.msra.mxu0 0.0
  %4220 = vmatprep.mubr.f32.mxu0 0.0
  %4221 = vmatmul.mubr.f32.gmra.mrb[0].mxu0 %v2614
  %v4222 = vpop.f32.mrb[0].mxu0
  %v4223 = vadd.f32 0.0, %v4222
  %v4224 = vpop.f32.mrb[0].mxu0
  %v4225 = vadd.f32 0.0, %v4224
  %4226 = vmatprep.mubr.f32.mxu0 0.0
  %4227 = vmatmul.mubr.f32.gmra.mrb[0].mxu0 %v2617
  %v4228 = vpop.f32.mrb[0].mxu0
  %v4229 = vadd.f32 0.0, %v4228
  %v4230 = vpop.f32.mrb[0].mxu0
  %v4231 = vadd.f32 0.0, %v4230
  %4232 = vmatprep.mubr.f32.mxu0 0.0
  %4233 = vmatmul.mubr.f32.gmra.mrb[0].mxu0 %v2620
  %v4234 = vpop.f32.mrb[0].mxu0
  %v4235 = vadd.f32 0.0, %v4234
  %v4236 = vpop.f32.mrb[0].mxu0
  %v4237 = vadd.f32 0.0, %v4236
  %4238 = vmatprep.mubr.f32.mxu0 0.0
  %4239 = vmatmul.mubr.f32.gmra.mrb[0].mxu0 %v2623
  %v4240 = vpop.f32.mrb[0].mxu0
  %v4241 = vadd.f32 0.0, %v4240
  %v4242 = vpop.f32.mrb[0].mxu0
  %v4243 = vadd.f32 0.0, %v4242
  %4244 = vmatprep.mubr.f32.mxu0 0.0
  %4245 = vmatmul.mubr.f32.gmra.mrb[0].mxu0 %v2626
  %v4246 = vpop.f32.mrb[0].mxu0
  %v4247 = vadd.f32 0.0, %v4246
  %v4248 = vpop.f32.mrb[0].mxu0
  %v4249 = vadd.f32 0.0, %v4248
  %4250 = vmatprep.mubr.f32.mxu0 0.0
  %4251 = vmatmul.mubr.f32.gmra.mrb[0].mxu0 %v2629
  %v4252 = vpop.f32.mrb[0].mxu0
  %v4253 = vadd.f32 0.0, %v4252
  %v4254 = vpop.f32.mrb[0].mxu0
  %v4255 = vadd.f32 0.0, %v4254
  %4256 = vmatprep.mubr.f32.mxu0 0.0
  %4257 = vmatmul.mubr.f32.gmra.mrb[0].mxu0 %v2632
  %v4258 = vpop.f32.mrb[0].mxu0
  %v4259 = vadd.f32 0.0, %v4258
  %v4260 = vpop.f32.mrb[0].mxu0
  %v4261 = vadd.f32 0.0, %v4260
  %4262 = vmatprep.mubr.f32.mxu0 0.0
  %4263 = vmatmul.mubr.f32.gmra.mrb[0].mxu0 %v2635
  %v4264 = vpop.f32.mrb[0].mxu0
  %v4265 = vadd.f32 0.0, %v4264
  %v4266 = vpop.f32.mrb[0].mxu0
  %v4267 = vadd.f32 0.0, %v4266
  %4268 = vmatprep.mubr.f32.mxu0 0.0
  %4269 = vmatmul.mubr.f32.gmra.mrb[0].mxu0 %v2638
  %v4270 = vpop.f32.mrb[0].mxu0
  %v4271 = vadd.f32 0.0, %v4270
  %v4272 = vpop.f32.mrb[0].mxu0
  %v4273 = vadd.f32 0.0, %v4272
  %4274 = vmatprep.mubr.f32.mxu0 0.0
  %4275 = vmatmul.mubr.f32.gmra.mrb[0].mxu0 %v2641
  %v4276 = vpop.f32.mrb[0].mxu0
  %v4277 = vadd.f32 0.0, %v4276
  %v4278 = vpop.f32.mrb[0].mxu0
  %v4279 = vadd.f32 0.0, %v4278
  %4280 = vmatprep.mubr.f32.mxu0 0.0
  %4281 = vmatmul.mubr.f32.gmra.mrb[0].mxu0 %v2644
  %v4282 = vpop.f32.mrb[0].mxu0
  %v4283 = vadd.f32 0.0, %v4282
  %v4284 = vpop.f32.mrb[0].mxu0
  %v4285 = vadd.f32 0.0, %v4284
  %4286 = vmatprep.mubr.f32.mxu0 0.0
  %4287 = vmatmul.mubr.f32.gmra.mrb[0].mxu0 %v2647
  %v4288 = vpop.f32.mrb[0].mxu0
  %v4289 = vadd.f32 0.0, %v4288
  %v4290 = vpop.f32.mrb[0].mxu0
  %v4291 = vadd.f32 0.0, %v4290
  %4292 = vdwg.mxu0
  %4293 = vmatprep.subr.mxu0 0.0
  %4294 = vmatpush1.msra.mxu0 %v2486
  %4295 = vmatprep.subr.mxu0 0.0
  %4296 = vmatpush1.msra.mxu0 %v2511
  %4297 = vmatprep.subr.mxu0 0.0
  %4298 = vmatpush1.msra.mxu0 %v2536
  %4299 = vmatprep.subr.mxu0 0.0
  %4300 = vmatpush1.msra.mxu0 0.0
  %4301 = vmatprep.subr.mxu0 0.0
  %4302 = vmatpush1.msra.mxu0 0.0
  %4303 = vmatprep.subr.mxu0 0.0
  %4304 = vmatpush1.msra.mxu0 0.0
  %4305 = vmatprep.subr.mxu0 0.0
  %4306 = vmatpush1.msra.mxu0 0.0
  %4307 = vmatprep.subr.mxu0 0.0
  %4308 = vmatpush1.msra.mxu0 0.0
  %4309 = vmatprep.subr.mxu0 0.0
  %4310 = vmatpush1.msra.mxu0 0.0
  %4311 = vmatprep.subr.mxu0 0.0
  %4312 = vmatpush1.msra.mxu0 0.0
  %4313 = vmatprep.subr.mxu0 0.0
  %4314 = vmatpush1.msra.mxu0 0.0
  %4315 = vmatprep.subr.mxu0 0.0
  %4316 = vmatpush1.msra.mxu0 0.0
  %4317 = vmatprep.subr.mxu0 0.0
  %4318 = vmatpush1.msra.mxu0 0.0
  %4319 = vmatprep.subr.mxu0 0.0
  %4320 = vmatpush1.msra.mxu0 0.0
  %4321 = vmatprep.subr.mxu0 0.0
  %4322 = vmatpush1.msra.mxu0 0.0
  %4323 = vmatprep.subr.mxu0 0.0
  %4324 = vmatpush1.msra.mxu0 0.0
  %4325 = vmatprep.subr.mxu0 0.0
  %4326 = vmatpush1.msra.mxu0 0.0
  %4327 = vmatprep.subr.mxu0 0.0
  %4328 = vmatpush1.msra.mxu0 0.0
  %4329 = vmatprep.subr.mxu0 0.0
  %4330 = vmatpush1.msra.mxu0 0.0
  %4331 = vmatprep.subr.mxu0 0.0
  %4332 = vmatpush1.msra.mxu0 0.0
  %4333 = vmatprep.subr.mxu0 0.0
  %4334 = vmatpush1.msra.mxu0 0.0
  %4335 = vmatprep.subr.mxu0 0.0
  %4336 = vmatpush1.msra.mxu0 0.0
  %4337 = vmatprep.subr.mxu0 0.0
  %4338 = vmatpush1.msra.mxu0 0.0
  %4339 = vmatprep.subr.mxu0 0.0
  %4340 = vmatpush1.msra.mxu0 0.0
  %4341 = vmatprep.subr.mxu0 0.0
  %4342 = vmatpush1.msra.mxu0 0.0
  %4343 = vmatprep.subr.mxu0 0.0
  %4344 = vmatpush1.msra.mxu0 0.0
  %4345 = vmatprep.subr.mxu0 0.0
  %4346 = vmatpush1.msra.mxu0 0.0
  %4347 = vmatprep.subr.mxu0 0.0
  %4348 = vmatpush1.msra.mxu0 0.0
  %4349 = vmatprep.subr.mxu0 0.0
  %4350 = vmatpush1.msra.mxu0 0.0
  %4351 = vmatprep.subr.mxu0 0.0
  %4352 = vmatpush1.msra.mxu0 0.0
  %4353 = vmatprep.subr.mxu0 0.0
  %4354 = vmatpush1.msra.mxu0 0.0
  %4355 = vmatprep.subr.mxu0 0.0
  %4356 = vmatpush1.msra.mxu0 0.0
  %4357 = vmatprep.mubr.f32.mxu0 0.0
  %4358 = vmatmul.mubr.f32.gmra.mrb[0].mxu0 %v2614
  %v4359 = vpop.f32.mrb[0].mxu0
  %v4360 = vadd.f32 0.0, %v4359
  %v4361 = vpop.f32.mrb[0].mxu0
  %4362 = vmatprep.mubr.f32.mxu0 0.0
  %4363 = vmatmul.mubr.f32.gmra.mrb[0].mxu0 %v2617
  %v4364 = vpop.f32.mrb[0].mxu0
  %v4365 = vadd.f32 0.0, %v4364
  %v4366 = vpop.f32.mrb[0].mxu0
  %4367 = vmatprep.mubr.f32.mxu0 0.0
  %4368 = vmatmul.mubr.f32.gmra.mrb[0].mxu0 %v2620
  %v4369 = vpop.f32.mrb[0].mxu0
  %v4370 = vadd.f32 0.0, %v4369
  %v4371 = vpop.f32.mrb[0].mxu0
  %4372 = vmatprep.mubr.f32.mxu0 0.0
  %4373 = vmatmul.mubr.f32.gmra.mrb[0].mxu0 %v2623
  %v4374 = vpop.f32.mrb[0].mxu0
  %v4375 = vadd.f32 0.0, %v4374
  %v4376 = vpop.f32.mrb[0].mxu0
  %4377 = vmatprep.mubr.f32.mxu0 0.0
  %4378 = vmatmul.mubr.f32.gmra.mrb[0].mxu0 %v2626
  %v4379 = vpop.f32.mrb[0].mxu0
  %v4380 = vadd.f32 0.0, %v4379
  %v4381 = vpop.f32.mrb[0].mxu0
  %4382 = vmatprep.mubr.f32.mxu0 0.0
  %4383 = vmatmul.mubr.f32.gmra.mrb[0].mxu0 %v2629
  %v4384 = vpop.f32.mrb[0].mxu0
  %v4385 = vadd.f32 0.0, %v4384
  %v4386 = vpop.f32.mrb[0].mxu0
  %4387 = vmatprep.mubr.f32.mxu0 0.0
  %4388 = vmatmul.mubr.f32.gmra.mrb[0].mxu0 %v2632
  %v4389 = vpop.f32.mrb[0].mxu0
  %v4390 = vadd.f32 0.0, %v4389
  %v4391 = vpop.f32.mrb[0].mxu0
  %4392 = vmatprep.mubr.f32.mxu0 0.0
  %4393 = vmatmul.mubr.f32.gmra.mrb[0].mxu0 %v2635
  %v4394 = vpop.f32.mrb[0].mxu0
  %v4395 = vadd.f32 0.0, %v4394
  %v4396 = vpop.f32.mrb[0].mxu0
  %4397 = vmatprep.mubr.f32.mxu0 0.0
  %4398 = vmatmul.mubr.f32.gmra.mrb[0].mxu0 %v2638
  %v4399 = vpop.f32.mrb[0].mxu0
  %v4400 = vadd.f32 0.0, %v4399
  %v4401 = vpop.f32.mrb[0].mxu0
  %4402 = vmatprep.mubr.f32.mxu0 0.0
  %4403 = vmatmul.mubr.f32.gmra.mrb[0].mxu0 %v2641
  %v4404 = vpop.f32.mrb[0].mxu0
  %v4405 = vadd.f32 0.0, %v4404
  %v4406 = vpop.f32.mrb[0].mxu0
  %4407 = vmatprep.mubr.f32.mxu0 0.0
  %4408 = vmatmul.mubr.f32.gmra.mrb[0].mxu0 %v2644
  %v4409 = vpop.f32.mrb[0].mxu0
  %v4410 = vadd.f32 0.0, %v4409
  %v4411 = vpop.f32.mrb[0].mxu0
  %4412 = vmatprep.mubr.f32.mxu0 0.0
  %4413 = vmatmul.mubr.f32.gmra.mrb[0].mxu0 %v2647
  %v4414 = vpop.f32.mrb[0].mxu0
  %v4415 = vadd.f32 0.0, %v4414
  %v4416 = vpop.f32.mrb[0].mxu0
  %4417 = vdwg.mxu0
  %v4419 = vsel %vm2612, %v2124, 0
  %v4422 = vsel %vm2612, %v2125, 0
  %v4425 = vsel %vm2612, %v2126, 0
  %v4428 = vsel %vm2612, %v2127, 0
  %v4431 = vsel %vm2612, %v2128, 0
  %v4434 = vsel %vm2612, %v2129, 0
  %v4437 = vsel %vm2612, %v2130, 0
  %v4440 = vsel %vm2612, %v2131, 0
  %v4443 = vsel %vm2612, %v2132, 0
  %v4446 = vsel %vm2612, %v2133, 0
  %v4449 = vsel %vm2612, %v2134, 0
  %v4452 = vsel %vm2612, %v2135, 0
  %4454 = vmatprep.subr.mxu0 %v2137
  %4455 = vmatpush1.msra.mxu0 %v2136
  %4456 = vmatprep.subr.mxu0 %v2162
  %4457 = vmatpush1.msra.mxu0 %v2161
  %4458 = vmatprep.subr.mxu0 %v2187
  %4459 = vmatpush1.msra.mxu0 %v2186
  %4460 = vmatprep.subr.mxu0 0.0
  %4461 = vmatpush1.msra.mxu0 0.0
  %4462 = vmatprep.subr.mxu0 0.0
  %4463 = vmatpush1.msra.mxu0 0.0
  %4464 = vmatprep.subr.mxu0 0.0
  %4465 = vmatpush1.msra.mxu0 0.0
  %4466 = vmatprep.subr.mxu0 0.0
  %4467 = vmatpush1.msra.mxu0 0.0
  %4468 = vmatprep.subr.mxu0 0.0
  %4469 = vmatpush1.msra.mxu0 0.0
  %4470 = vmatprep.subr.mxu0 0.0
  %4471 = vmatpush1.msra.mxu0 0.0
  %4472 = vmatprep.subr.mxu0 0.0
  %4473 = vmatpush1.msra.mxu0 0.0
  %4474 = vmatprep.subr.mxu0 0.0
  %4475 = vmatpush1.msra.mxu0 0.0
  %4476 = vmatprep.subr.mxu0 0.0
  %4477 = vmatpush1.msra.mxu0 0.0
  %4478 = vmatprep.subr.mxu0 0.0
  %4479 = vmatpush1.msra.mxu0 0.0
  %4480 = vmatprep.subr.mxu0 0.0
  %4481 = vmatpush1.msra.mxu0 0.0
  %4482 = vmatprep.subr.mxu0 0.0
  %4483 = vmatpush1.msra.mxu0 0.0
  %4484 = vmatprep.subr.mxu0 0.0
  %4485 = vmatpush1.msra.mxu0 0.0
  %4486 = vmatprep.subr.mxu0 0.0
  %4487 = vmatpush1.msra.mxu0 0.0
  %4488 = vmatprep.subr.mxu0 0.0
  %4489 = vmatpush1.msra.mxu0 0.0
  %4490 = vmatprep.subr.mxu0 0.0
  %4491 = vmatpush1.msra.mxu0 0.0
  %4492 = vmatprep.subr.mxu0 0.0
  %4493 = vmatpush1.msra.mxu0 0.0
  %4494 = vmatprep.subr.mxu0 0.0
  %4495 = vmatpush1.msra.mxu0 0.0
  %4496 = vmatprep.subr.mxu0 0.0
  %4497 = vmatpush1.msra.mxu0 0.0
  %4498 = vmatprep.subr.mxu0 0.0
  %4499 = vmatpush1.msra.mxu0 0.0
  %4500 = vmatprep.subr.mxu0 0.0
  %4501 = vmatpush1.msra.mxu0 0.0
  %4502 = vmatprep.subr.mxu0 0.0
  %4503 = vmatpush1.msra.mxu0 0.0
  %4504 = vmatprep.subr.mxu0 0.0
  %4505 = vmatpush1.msra.mxu0 0.0
  %4506 = vmatprep.subr.mxu0 0.0
  %4507 = vmatpush1.msra.mxu0 0.0
  %4508 = vmatprep.subr.mxu0 0.0
  %4509 = vmatpush1.msra.mxu0 0.0
  %4510 = vmatprep.subr.mxu0 0.0
  %4511 = vmatpush1.msra.mxu0 0.0
  %4512 = vmatprep.subr.mxu0 0.0
  %4513 = vmatpush1.msra.mxu0 0.0
  %4514 = vmatprep.subr.mxu0 0.0
  %4515 = vmatpush1.msra.mxu0 0.0
  %4516 = vmatprep.subr.mxu0 0.0
  %4517 = vmatpush1.msra.mxu0 0.0
  %4518 = vmatprep.mubr.f32.mxu0 0.0
  %4519 = vmatmul.mubr.f32.gmra.mrb[0].mxu0 %v4419
  %v4520 = vpop.f32.mrb[0].mxu0
  %v4521 = vadd.f32 %v2716, %v4520
  %v4522 = vpop.f32.mrb[0].mxu0
  %v4523 = vadd.f32 %v2718, %v4522
  %4524 = vmatprep.mubr.f32.mxu0 0.0
  %4525 = vmatmul.mubr.f32.gmra.mrb[0].mxu0 %v4422
  %v4526 = vpop.f32.mrb[0].mxu0
  %v4527 = vadd.f32 %v2722, %v4526
  %v4528 = vpop.f32.mrb[0].mxu0
  %v4529 = vadd.f32 %v2724, %v4528
  %4530 = vmatprep.mubr.f32.mxu0 0.0
  %4531 = vmatmul.mubr.f32.gmra.mrb[0].mxu0 %v4425
  %v4532 = vpop.f32.mrb[0].mxu0
  %v4533 = vadd.f32 %v2728, %v4532
  %v4534 = vpop.f32.mrb[0].mxu0
  %v4535 = vadd.f32 %v2730, %v4534
  %4536 = vmatprep.mubr.f32.mxu0 0.0
  %4537 = vmatmul.mubr.f32.gmra.mrb[0].mxu0 %v4428
  %v4538 = vpop.f32.mrb[0].mxu0
  %v4539 = vadd.f32 %v2734, %v4538
  %v4540 = vpop.f32.mrb[0].mxu0
  %v4541 = vadd.f32 %v2736, %v4540
  %4542 = vmatprep.mubr.f32.mxu0 0.0
  %4543 = vmatmul.mubr.f32.gmra.mrb[0].mxu0 %v4431
  %v4544 = vpop.f32.mrb[0].mxu0
  %v4545 = vadd.f32 %v2740, %v4544
  %v4546 = vpop.f32.mrb[0].mxu0
  %v4547 = vadd.f32 %v2742, %v4546
  %4548 = vmatprep.mubr.f32.mxu0 0.0
  %4549 = vmatmul.mubr.f32.gmra.mrb[0].mxu0 %v4434
  %v4550 = vpop.f32.mrb[0].mxu0
  %v4551 = vadd.f32 %v2746, %v4550
  %v4552 = vpop.f32.mrb[0].mxu0
  %v4553 = vadd.f32 %v2748, %v4552
  %4554 = vmatprep.mubr.f32.mxu0 0.0
  %4555 = vmatmul.mubr.f32.gmra.mrb[0].mxu0 %v4437
  %v4556 = vpop.f32.mrb[0].mxu0
  %v4557 = vadd.f32 %v2752, %v4556
  %v4558 = vpop.f32.mrb[0].mxu0
  %v4559 = vadd.f32 %v2754, %v4558
  %4560 = vmatprep.mubr.f32.mxu0 0.0
  %4561 = vmatmul.mubr.f32.gmra.mrb[0].mxu0 %v4440
  %v4562 = vpop.f32.mrb[0].mxu0
  %v4563 = vadd.f32 %v2758, %v4562
  %v4564 = vpop.f32.mrb[0].mxu0
  %v4565 = vadd.f32 %v2760, %v4564
  %4566 = vmatprep.mubr.f32.mxu0 0.0
  %4567 = vmatmul.mubr.f32.gmra.mrb[0].mxu0 %v4443
  %v4568 = vpop.f32.mrb[0].mxu0
  %v4569 = vadd.f32 %v2764, %v4568
  %v4570 = vpop.f32.mrb[0].mxu0
  %v4571 = vadd.f32 %v2766, %v4570
  %4572 = vmatprep.mubr.f32.mxu0 0.0
  %4573 = vmatmul.mubr.f32.gmra.mrb[0].mxu0 %v4446
  %v4574 = vpop.f32.mrb[0].mxu0
  %v4575 = vadd.f32 %v2770, %v4574
  %v4576 = vpop.f32.mrb[0].mxu0
  %v4577 = vadd.f32 %v2772, %v4576
  %4578 = vmatprep.mubr.f32.mxu0 0.0
  %4579 = vmatmul.mubr.f32.gmra.mrb[0].mxu0 %v4449
  %v4580 = vpop.f32.mrb[0].mxu0
  %v4581 = vadd.f32 %v2776, %v4580
  %v4582 = vpop.f32.mrb[0].mxu0
  %v4583 = vadd.f32 %v2778, %v4582
  %4584 = vmatprep.mubr.f32.mxu0 0.0
  %4585 = vmatmul.mubr.f32.gmra.mrb[0].mxu0 %v4452
  %v4586 = vpop.f32.mrb[0].mxu0
  %v4587 = vadd.f32 %v2782, %v4586
  %v4588 = vpop.f32.mrb[0].mxu0
  %v4589 = vadd.f32 %v2784, %v4588
  %4590 = vdwg.mxu0
  %4591 = vmatprep.subr.mxu0 %v2139
  %4592 = vmatpush1.msra.mxu0 %v2138
  %4593 = vmatprep.subr.mxu0 %v2164
  %4594 = vmatpush1.msra.mxu0 %v2163
  %4595 = vmatprep.subr.mxu0 %v2189
  %4596 = vmatpush1.msra.mxu0 %v2188
  %4597 = vmatprep.subr.mxu0 0.0
  %4598 = vmatpush1.msra.mxu0 0.0
  %4599 = vmatprep.subr.mxu0 0.0
  %4600 = vmatpush1.msra.mxu0 0.0
  %4601 = vmatprep.subr.mxu0 0.0
  %4602 = vmatpush1.msra.mxu0 0.0
  %4603 = vmatprep.subr.mxu0 0.0
  %4604 = vmatpush1.msra.mxu0 0.0
  %4605 = vmatprep.subr.mxu0 0.0
  %4606 = vmatpush1.msra.mxu0 0.0
  %4607 = vmatprep.subr.mxu0 0.0
  %4608 = vmatpush1.msra.mxu0 0.0
  %4609 = vmatprep.subr.mxu0 0.0
  %4610 = vmatpush1.msra.mxu0 0.0
  %4611 = vmatprep.subr.mxu0 0.0
  %4612 = vmatpush1.msra.mxu0 0.0
  %4613 = vmatprep.subr.mxu0 0.0
  %4614 = vmatpush1.msra.mxu0 0.0
  %4615 = vmatprep.subr.mxu0 0.0
  %4616 = vmatpush1.msra.mxu0 0.0
  %4617 = vmatprep.subr.mxu0 0.0
  %4618 = vmatpush1.msra.mxu0 0.0
  %4619 = vmatprep.subr.mxu0 0.0
  %4620 = vmatpush1.msra.mxu0 0.0
  %4621 = vmatprep.subr.mxu0 0.0
  %4622 = vmatpush1.msra.mxu0 0.0
  %4623 = vmatprep.subr.mxu0 0.0
  %4624 = vmatpush1.msra.mxu0 0.0
  %4625 = vmatprep.subr.mxu0 0.0
  %4626 = vmatpush1.msra.mxu0 0.0
  %4627 = vmatprep.subr.mxu0 0.0
  %4628 = vmatpush1.msra.mxu0 0.0
  %4629 = vmatprep.subr.mxu0 0.0
  %4630 = vmatpush1.msra.mxu0 0.0
  %4631 = vmatprep.subr.mxu0 0.0
  %4632 = vmatpush1.msra.mxu0 0.0
  %4633 = vmatprep.subr.mxu0 0.0
  %4634 = vmatpush1.msra.mxu0 0.0
  %4635 = vmatprep.subr.mxu0 0.0
  %4636 = vmatpush1.msra.mxu0 0.0
  %4637 = vmatprep.subr.mxu0 0.0
  %4638 = vmatpush1.msra.mxu0 0.0
  %4639 = vmatprep.subr.mxu0 0.0
  %4640 = vmatpush1.msra.mxu0 0.0
  %4641 = vmatprep.subr.mxu0 0.0
  %4642 = vmatpush1.msra.mxu0 0.0
  %4643 = vmatprep.subr.mxu0 0.0
  %4644 = vmatpush1.msra.mxu0 0.0
  %4645 = vmatprep.subr.mxu0 0.0
  %4646 = vmatpush1.msra.mxu0 0.0
  %4647 = vmatprep.subr.mxu0 0.0
  %4648 = vmatpush1.msra.mxu0 0.0
  %4649 = vmatprep.subr.mxu0 0.0
  %4650 = vmatpush1.msra.mxu0 0.0
  %4651 = vmatprep.subr.mxu0 0.0
  %4652 = vmatpush1.msra.mxu0 0.0
  %4653 = vmatprep.subr.mxu0 0.0
  %4654 = vmatpush1.msra.mxu0 0.0
  %4655 = vmatprep.mubr.f32.mxu0 0.0
  %4656 = vmatmul.mubr.f32.gmra.mrb[0].mxu0 %v4419
  %v4657 = vpop.f32.mrb[0].mxu0
  %v4658 = vadd.f32 %v2853, %v4657
  %v4659 = vpop.f32.mrb[0].mxu0
  %v4660 = vadd.f32 %v2855, %v4659
  %4661 = vmatprep.mubr.f32.mxu0 0.0
  %4662 = vmatmul.mubr.f32.gmra.mrb[0].mxu0 %v4422
  %v4663 = vpop.f32.mrb[0].mxu0
  %v4664 = vadd.f32 %v2859, %v4663
  %v4665 = vpop.f32.mrb[0].mxu0
  %v4666 = vadd.f32 %v2861, %v4665
  %4667 = vmatprep.mubr.f32.mxu0 0.0
  %4668 = vmatmul.mubr.f32.gmra.mrb[0].mxu0 %v4425
  %v4669 = vpop.f32.mrb[0].mxu0
  %v4670 = vadd.f32 %v2865, %v4669
  %v4671 = vpop.f32.mrb[0].mxu0
  %v4672 = vadd.f32 %v2867, %v4671
  %4673 = vmatprep.mubr.f32.mxu0 0.0
  %4674 = vmatmul.mubr.f32.gmra.mrb[0].mxu0 %v4428
  %v4675 = vpop.f32.mrb[0].mxu0
  %v4676 = vadd.f32 %v2871, %v4675
  %v4677 = vpop.f32.mrb[0].mxu0
  %v4678 = vadd.f32 %v2873, %v4677
  %4679 = vmatprep.mubr.f32.mxu0 0.0
  %4680 = vmatmul.mubr.f32.gmra.mrb[0].mxu0 %v4431
  %v4681 = vpop.f32.mrb[0].mxu0
  %v4682 = vadd.f32 %v2877, %v4681
  %v4683 = vpop.f32.mrb[0].mxu0
  %v4684 = vadd.f32 %v2879, %v4683
  %4685 = vmatprep.mubr.f32.mxu0 0.0
  %4686 = vmatmul.mubr.f32.gmra.mrb[0].mxu0 %v4434
  %v4687 = vpop.f32.mrb[0].mxu0
  %v4688 = vadd.f32 %v2883, %v4687
  %v4689 = vpop.f32.mrb[0].mxu0
  %v4690 = vadd.f32 %v2885, %v4689
  %4691 = vmatprep.mubr.f32.mxu0 0.0
  %4692 = vmatmul.mubr.f32.gmra.mrb[0].mxu0 %v4437
  %v4693 = vpop.f32.mrb[0].mxu0
  %v4694 = vadd.f32 %v2889, %v4693
  %v4695 = vpop.f32.mrb[0].mxu0
  %v4696 = vadd.f32 %v2891, %v4695
  %4697 = vmatprep.mubr.f32.mxu0 0.0
  %4698 = vmatmul.mubr.f32.gmra.mrb[0].mxu0 %v4440
  %v4699 = vpop.f32.mrb[0].mxu0
  %v4700 = vadd.f32 %v2895, %v4699
  %v4701 = vpop.f32.mrb[0].mxu0
  %v4702 = vadd.f32 %v2897, %v4701
  %4703 = vmatprep.mubr.f32.mxu0 0.0
  %4704 = vmatmul.mubr.f32.gmra.mrb[0].mxu0 %v4443
  %v4705 = vpop.f32.mrb[0].mxu0
  %v4706 = vadd.f32 %v2901, %v4705
  %v4707 = vpop.f32.mrb[0].mxu0
  %v4708 = vadd.f32 %v2903, %v4707
  %4709 = vmatprep.mubr.f32.mxu0 0.0
  %4710 = vmatmul.mubr.f32.gmra.mrb[0].mxu0 %v4446
  %v4711 = vpop.f32.mrb[0].mxu0
  %v4712 = vadd.f32 %v2907, %v4711
  %v4713 = vpop.f32.mrb[0].mxu0
  %v4714 = vadd.f32 %v2909, %v4713
  %4715 = vmatprep.mubr.f32.mxu0 0.0
  %4716 = vmatmul.mubr.f32.gmra.mrb[0].mxu0 %v4449
  %v4717 = vpop.f32.mrb[0].mxu0
  %v4718 = vadd.f32 %v2913, %v4717
  %v4719 = vpop.f32.mrb[0].mxu0
  %v4720 = vadd.f32 %v2915, %v4719
  %4721 = vmatprep.mubr.f32.mxu0 0.0
  %4722 = vmatmul.mubr.f32.gmra.mrb[0].mxu0 %v4452
  %v4723 = vpop.f32.mrb[0].mxu0
  %v4724 = vadd.f32 %v2919, %v4723
  %v4725 = vpop.f32.mrb[0].mxu0
  %v4726 = vadd.f32 %v2921, %v4725
  %4727 = vdwg.mxu0
  %4728 = vmatprep.subr.mxu0 %v2141
  %4729 = vmatpush1.msra.mxu0 %v2140
  %4730 = vmatprep.subr.mxu0 %v2166
  %4731 = vmatpush1.msra.mxu0 %v2165
  %4732 = vmatprep.subr.mxu0 %v2191
  %4733 = vmatpush1.msra.mxu0 %v2190
  %4734 = vmatprep.subr.mxu0 0.0
  %4735 = vmatpush1.msra.mxu0 0.0
  %4736 = vmatprep.subr.mxu0 0.0
  %4737 = vmatpush1.msra.mxu0 0.0
  %4738 = vmatprep.subr.mxu0 0.0
  %4739 = vmatpush1.msra.mxu0 0.0
  %4740 = vmatprep.subr.mxu0 0.0
  %4741 = vmatpush1.msra.mxu0 0.0
  %4742 = vmatprep.subr.mxu0 0.0
  %4743 = vmatpush1.msra.mxu0 0.0
  %4744 = vmatprep.subr.mxu0 0.0
  %4745 = vmatpush1.msra.mxu0 0.0
  %4746 = vmatprep.subr.mxu0 0.0
  %4747 = vmatpush1.msra.mxu0 0.0
  %4748 = vmatprep.subr.mxu0 0.0
  %4749 = vmatpush1.msra.mxu0 0.0
  %4750 = vmatprep.subr.mxu0 0.0
  %4751 = vmatpush1.msra.mxu0 0.0
  %4752 = vmatprep.subr.mxu0 0.0
  %4753 = vmatpush1.msra.mxu0 0.0
  %4754 = vmatprep.subr.mxu0 0.0
  %4755 = vmatpush1.msra.mxu0 0.0
  %4756 = vmatprep.subr.mxu0 0.0
  %4757 = vmatpush1.msra.mxu0 0.0
  %4758 = vmatprep.subr.mxu0 0.0
  %4759 = vmatpush1.msra.mxu0 0.0
  %4760 = vmatprep.subr.mxu0 0.0
  %4761 = vmatpush1.msra.mxu0 0.0
  %4762 = vmatprep.subr.mxu0 0.0
  %4763 = vmatpush1.msra.mxu0 0.0
  %4764 = vmatprep.subr.mxu0 0.0
  %4765 = vmatpush1.msra.mxu0 0.0
  %4766 = vmatprep.subr.mxu0 0.0
  %4767 = vmatpush1.msra.mxu0 0.0
  %4768 = vmatprep.subr.mxu0 0.0
  %4769 = vmatpush1.msra.mxu0 0.0
  %4770 = vmatprep.subr.mxu0 0.0
  %4771 = vmatpush1.msra.mxu0 0.0
  %4772 = vmatprep.subr.mxu0 0.0
  %4773 = vmatpush1.msra.mxu0 0.0
  %4774 = vmatprep.subr.mxu0 0.0
  %4775 = vmatpush1.msra.mxu0 0.0
  %4776 = vmatprep.subr.mxu0 0.0
  %4777 = vmatpush1.msra.mxu0 0.0
  %4778 = vmatprep.subr.mxu0 0.0
  %4779 = vmatpush1.msra.mxu0 0.0
  %4780 = vmatprep.subr.mxu0 0.0
  %4781 = vmatpush1.msra.mxu0 0.0
  %4782 = vmatprep.subr.mxu0 0.0
  %4783 = vmatpush1.msra.mxu0 0.0
  %4784 = vmatprep.subr.mxu0 0.0
  %4785 = vmatpush1.msra.mxu0 0.0
  %4786 = vmatprep.subr.mxu0 0.0
  %4787 = vmatpush1.msra.mxu0 0.0
  %4788 = vmatprep.subr.mxu0 0.0
  %4789 = vmatpush1.msra.mxu0 0.0
  %4790 = vmatprep.subr.mxu0 0.0
  %4791 = vmatpush1.msra.mxu0 0.0
  %4792 = vmatprep.mubr.f32.mxu0 0.0
  %4793 = vmatmul.mubr.f32.gmra.mrb[0].mxu0 %v4419
  %v4794 = vpop.f32.mrb[0].mxu0
  %v4795 = vadd.f32 %v2990, %v4794
  %v4796 = vpop.f32.mrb[0].mxu0
  %v4797 = vadd.f32 %v2992, %v4796
  %4798 = vmatprep.mubr.f32.mxu0 0.0
  %4799 = vmatmul.mubr.f32.gmra.mrb[0].mxu0 %v4422
  %v4800 = vpop.f32.mrb[0].mxu0
  %v4801 = vadd.f32 %v2996, %v4800
  %v4802 = vpop.f32.mrb[0].mxu0
  %v4803 = vadd.f32 %v2998, %v4802
  %4804 = vmatprep.mubr.f32.mxu0 0.0
  %4805 = vmatmul.mubr.f32.gmra.mrb[0].mxu0 %v4425
  %v4806 = vpop.f32.mrb[0].mxu0
  %v4807 = vadd.f32 %v3002, %v4806
  %v4808 = vpop.f32.mrb[0].mxu0
  %v4809 = vadd.f32 %v3004, %v4808
  %4810 = vmatprep.mubr.f32.mxu0 0.0
  %4811 = vmatmul.mubr.f32.gmra.mrb[0].mxu0 %v4428
  %v4812 = vpop.f32.mrb[0].mxu0
  %v4813 = vadd.f32 %v3008, %v4812
  %v4814 = vpop.f32.mrb[0].mxu0
  %v4815 = vadd.f32 %v3010, %v4814
  %4816 = vmatprep.mubr.f32.mxu0 0.0
  %4817 = vmatmul.mubr.f32.gmra.mrb[0].mxu0 %v4431
  %v4818 = vpop.f32.mrb[0].mxu0
  %v4819 = vadd.f32 %v3014, %v4818
  %v4820 = vpop.f32.mrb[0].mxu0
  %v4821 = vadd.f32 %v3016, %v4820
  %4822 = vmatprep.mubr.f32.mxu0 0.0
  %4823 = vmatmul.mubr.f32.gmra.mrb[0].mxu0 %v4434
  %v4824 = vpop.f32.mrb[0].mxu0
  %v4825 = vadd.f32 %v3020, %v4824
  %v4826 = vpop.f32.mrb[0].mxu0
  %v4827 = vadd.f32 %v3022, %v4826
  %4828 = vmatprep.mubr.f32.mxu0 0.0
  %4829 = vmatmul.mubr.f32.gmra.mrb[0].mxu0 %v4437
  %v4830 = vpop.f32.mrb[0].mxu0
  %v4831 = vadd.f32 %v3026, %v4830
  %v4832 = vpop.f32.mrb[0].mxu0
  %v4833 = vadd.f32 %v3028, %v4832
  %4834 = vmatprep.mubr.f32.mxu0 0.0
  %4835 = vmatmul.mubr.f32.gmra.mrb[0].mxu0 %v4440
  %v4836 = vpop.f32.mrb[0].mxu0
  %v4837 = vadd.f32 %v3032, %v4836
  %v4838 = vpop.f32.mrb[0].mxu0
  %v4839 = vadd.f32 %v3034, %v4838
  %4840 = vmatprep.mubr.f32.mxu0 0.0
  %4841 = vmatmul.mubr.f32.gmra.mrb[0].mxu0 %v4443
  %v4842 = vpop.f32.mrb[0].mxu0
  %v4843 = vadd.f32 %v3038, %v4842
  %v4844 = vpop.f32.mrb[0].mxu0
  %v4845 = vadd.f32 %v3040, %v4844
  %4846 = vmatprep.mubr.f32.mxu0 0.0
  %4847 = vmatmul.mubr.f32.gmra.mrb[0].mxu0 %v4446
  %v4848 = vpop.f32.mrb[0].mxu0
  %v4849 = vadd.f32 %v3044, %v4848
  %v4850 = vpop.f32.mrb[0].mxu0
  %v4851 = vadd.f32 %v3046, %v4850
  %4852 = vmatprep.mubr.f32.mxu0 0.0
  %4853 = vmatmul.mubr.f32.gmra.mrb[0].mxu0 %v4449
  %v4854 = vpop.f32.mrb[0].mxu0
  %v4855 = vadd.f32 %v3050, %v4854
  %v4856 = vpop.f32.mrb[0].mxu0
  %v4857 = vadd.f32 %v3052, %v4856
  %4858 = vmatprep.mubr.f32.mxu0 0.0
  %4859 = vmatmul.mubr.f32.gmra.mrb[0].mxu0 %v4452
  %v4860 = vpop.f32.mrb[0].mxu0
  %v4861 = vadd.f32 %v3056, %v4860
  %v4862 = vpop.f32.mrb[0].mxu0
  %v4863 = vadd.f32 %v3058, %v4862
  %4864 = vdwg.mxu0
  %4865 = vmatprep.subr.mxu0 %v2143
  %4866 = vmatpush1.msra.mxu0 %v2142
  %4867 = vmatprep.subr.mxu0 %v2168
  %4868 = vmatpush1.msra.mxu0 %v2167
  %4869 = vmatprep.subr.mxu0 %v2193
  %4870 = vmatpush1.msra.mxu0 %v2192
  %4871 = vmatprep.subr.mxu0 0.0
  %4872 = vmatpush1.msra.mxu0 0.0
  %4873 = vmatprep.subr.mxu0 0.0
  %4874 = vmatpush1.msra.mxu0 0.0
  %4875 = vmatprep.subr.mxu0 0.0
  %4876 = vmatpush1.msra.mxu0 0.0
  %4877 = vmatprep.subr.mxu0 0.0
  %4878 = vmatpush1.msra.mxu0 0.0
  %4879 = vmatprep.subr.mxu0 0.0
  %4880 = vmatpush1.msra.mxu0 0.0
  %4881 = vmatprep.subr.mxu0 0.0
  %4882 = vmatpush1.msra.mxu0 0.0
  %4883 = vmatprep.subr.mxu0 0.0
  %4884 = vmatpush1.msra.mxu0 0.0
  %4885 = vmatprep.subr.mxu0 0.0
  %4886 = vmatpush1.msra.mxu0 0.0
  %4887 = vmatprep.subr.mxu0 0.0
  %4888 = vmatpush1.msra.mxu0 0.0
  %4889 = vmatprep.subr.mxu0 0.0
  %4890 = vmatpush1.msra.mxu0 0.0
  %4891 = vmatprep.subr.mxu0 0.0
  %4892 = vmatpush1.msra.mxu0 0.0
  %4893 = vmatprep.subr.mxu0 0.0
  %4894 = vmatpush1.msra.mxu0 0.0
  %4895 = vmatprep.subr.mxu0 0.0
  %4896 = vmatpush1.msra.mxu0 0.0
  %4897 = vmatprep.subr.mxu0 0.0
  %4898 = vmatpush1.msra.mxu0 0.0
  %4899 = vmatprep.subr.mxu0 0.0
  %4900 = vmatpush1.msra.mxu0 0.0
  %4901 = vmatprep.subr.mxu0 0.0
  %4902 = vmatpush1.msra.mxu0 0.0
  %4903 = vmatprep.subr.mxu0 0.0
  %4904 = vmatpush1.msra.mxu0 0.0
  %4905 = vmatprep.subr.mxu0 0.0
  %4906 = vmatpush1.msra.mxu0 0.0
  %4907 = vmatprep.subr.mxu0 0.0
  %4908 = vmatpush1.msra.mxu0 0.0
  %4909 = vmatprep.subr.mxu0 0.0
  %4910 = vmatpush1.msra.mxu0 0.0
  %4911 = vmatprep.subr.mxu0 0.0
  %4912 = vmatpush1.msra.mxu0 0.0
  %4913 = vmatprep.subr.mxu0 0.0
  %4914 = vmatpush1.msra.mxu0 0.0
  %4915 = vmatprep.subr.mxu0 0.0
  %4916 = vmatpush1.msra.mxu0 0.0
  %4917 = vmatprep.subr.mxu0 0.0
  %4918 = vmatpush1.msra.mxu0 0.0
  %4919 = vmatprep.subr.mxu0 0.0
  %4920 = vmatpush1.msra.mxu0 0.0
  %4921 = vmatprep.subr.mxu0 0.0
  %4922 = vmatpush1.msra.mxu0 0.0
  %4923 = vmatprep.subr.mxu0 0.0
  %4924 = vmatpush1.msra.mxu0 0.0
  %4925 = vmatprep.subr.mxu0 0.0
  %4926 = vmatpush1.msra.mxu0 0.0
  %4927 = vmatprep.subr.mxu0 0.0
  %4928 = vmatpush1.msra.mxu0 0.0
  %4929 = vmatprep.mubr.f32.mxu0 0.0
  %4930 = vmatmul.mubr.f32.gmra.mrb[0].mxu0 %v4419
  %v4931 = vpop.f32.mrb[0].mxu0
  %v4932 = vadd.f32 %v3127, %v4931
  %v4933 = vpop.f32.mrb[0].mxu0
  %v4934 = vadd.f32 %v3129, %v4933
  %4935 = vmatprep.mubr.f32.mxu0 0.0
  %4936 = vmatmul.mubr.f32.gmra.mrb[0].mxu0 %v4422
  %v4937 = vpop.f32.mrb[0].mxu0
  %v4938 = vadd.f32 %v3133, %v4937
  %v4939 = vpop.f32.mrb[0].mxu0
  %v4940 = vadd.f32 %v3135, %v4939
  %4941 = vmatprep.mubr.f32.mxu0 0.0
  %4942 = vmatmul.mubr.f32.gmra.mrb[0].mxu0 %v4425
  %v4943 = vpop.f32.mrb[0].mxu0
  %v4944 = vadd.f32 %v3139, %v4943
  %v4945 = vpop.f32.mrb[0].mxu0
  %v4946 = vadd.f32 %v3141, %v4945
  %4947 = vmatprep.mubr.f32.mxu0 0.0
  %4948 = vmatmul.mubr.f32.gmra.mrb[0].mxu0 %v4428
  %v4949 = vpop.f32.mrb[0].mxu0
  %v4950 = vadd.f32 %v3145, %v4949
  %v4951 = vpop.f32.mrb[0].mxu0
  %v4952 = vadd.f32 %v3147, %v4951
  %4953 = vmatprep.mubr.f32.mxu0 0.0
  %4954 = vmatmul.mubr.f32.gmra.mrb[0].mxu0 %v4431
  %v4955 = vpop.f32.mrb[0].mxu0
  %v4956 = vadd.f32 %v3151, %v4955
  %v4957 = vpop.f32.mrb[0].mxu0
  %v4958 = vadd.f32 %v3153, %v4957
  %4959 = vmatprep.mubr.f32.mxu0 0.0
  %4960 = vmatmul.mubr.f32.gmra.mrb[0].mxu0 %v4434
  %v4961 = vpop.f32.mrb[0].mxu0
  %v4962 = vadd.f32 %v3157, %v4961
  %v4963 = vpop.f32.mrb[0].mxu0
  %v4964 = vadd.f32 %v3159, %v4963
  %4965 = vmatprep.mubr.f32.mxu0 0.0
  %4966 = vmatmul.mubr.f32.gmra.mrb[0].mxu0 %v4437
  %v4967 = vpop.f32.mrb[0].mxu0
  %v4968 = vadd.f32 %v3163, %v4967
  %v4969 = vpop.f32.mrb[0].mxu0
  %v4970 = vadd.f32 %v3165, %v4969
  %4971 = vmatprep.mubr.f32.mxu0 0.0
  %4972 = vmatmul.mubr.f32.gmra.mrb[0].mxu0 %v4440
  %v4973 = vpop.f32.mrb[0].mxu0
  %v4974 = vadd.f32 %v3169, %v4973
  %v4975 = vpop.f32.mrb[0].mxu0
  %v4976 = vadd.f32 %v3171, %v4975
  %4977 = vmatprep.mubr.f32.mxu0 0.0
  %4978 = vmatmul.mubr.f32.gmra.mrb[0].mxu0 %v4443
  %v4979 = vpop.f32.mrb[0].mxu0
  %v4980 = vadd.f32 %v3175, %v4979
  %v4981 = vpop.f32.mrb[0].mxu0
  %v4982 = vadd.f32 %v3177, %v4981
  %4983 = vmatprep.mubr.f32.mxu0 0.0
  %4984 = vmatmul.mubr.f32.gmra.mrb[0].mxu0 %v4446
  %v4985 = vpop.f32.mrb[0].mxu0
  %v4986 = vadd.f32 %v3181, %v4985
  %v4987 = vpop.f32.mrb[0].mxu0
  %v4988 = vadd.f32 %v3183, %v4987
  %4989 = vmatprep.mubr.f32.mxu0 0.0
  %4990 = vmatmul.mubr.f32.gmra.mrb[0].mxu0 %v4449
  %v4991 = vpop.f32.mrb[0].mxu0
  %v4992 = vadd.f32 %v3187, %v4991
  %v4993 = vpop.f32.mrb[0].mxu0
  %v4994 = vadd.f32 %v3189, %v4993
  %4995 = vmatprep.mubr.f32.mxu0 0.0
  %4996 = vmatmul.mubr.f32.gmra.mrb[0].mxu0 %v4452
  %v4997 = vpop.f32.mrb[0].mxu0
  %v4998 = vadd.f32 %v3193, %v4997
  %v4999 = vpop.f32.mrb[0].mxu0
  %v5000 = vadd.f32 %v3195, %v4999
  %5001 = vdwg.mxu0
  %5002 = vmatprep.subr.mxu0 %v2145
  %5003 = vmatpush1.msra.mxu0 %v2144
  %5004 = vmatprep.subr.mxu0 %v2170
  %5005 = vmatpush1.msra.mxu0 %v2169
  %5006 = vmatprep.subr.mxu0 %v2195
  %5007 = vmatpush1.msra.mxu0 %v2194
  %5008 = vmatprep.subr.mxu0 0.0
  %5009 = vmatpush1.msra.mxu0 0.0
  %5010 = vmatprep.subr.mxu0 0.0
  %5011 = vmatpush1.msra.mxu0 0.0
  %5012 = vmatprep.subr.mxu0 0.0
  %5013 = vmatpush1.msra.mxu0 0.0
  %5014 = vmatprep.subr.mxu0 0.0
  %5015 = vmatpush1.msra.mxu0 0.0
  %5016 = vmatprep.subr.mxu0 0.0
  %5017 = vmatpush1.msra.mxu0 0.0
  %5018 = vmatprep.subr.mxu0 0.0
  %5019 = vmatpush1.msra.mxu0 0.0
  %5020 = vmatprep.subr.mxu0 0.0
  %5021 = vmatpush1.msra.mxu0 0.0
  %5022 = vmatprep.subr.mxu0 0.0
  %5023 = vmatpush1.msra.mxu0 0.0
  %5024 = vmatprep.subr.mxu0 0.0
  %5025 = vmatpush1.msra.mxu0 0.0
  %5026 = vmatprep.subr.mxu0 0.0
  %5027 = vmatpush1.msra.mxu0 0.0
  %5028 = vmatprep.subr.mxu0 0.0
  %5029 = vmatpush1.msra.mxu0 0.0
  %5030 = vmatprep.subr.mxu0 0.0
  %5031 = vmatpush1.msra.mxu0 0.0
  %5032 = vmatprep.subr.mxu0 0.0
  %5033 = vmatpush1.msra.mxu0 0.0
  %5034 = vmatprep.subr.mxu0 0.0
  %5035 = vmatpush1.msra.mxu0 0.0
  %5036 = vmatprep.subr.mxu0 0.0
  %5037 = vmatpush1.msra.mxu0 0.0
  %5038 = vmatprep.subr.mxu0 0.0
  %5039 = vmatpush1.msra.mxu0 0.0
  %5040 = vmatprep.subr.mxu0 0.0
  %5041 = vmatpush1.msra.mxu0 0.0
  %5042 = vmatprep.subr.mxu0 0.0
  %5043 = vmatpush1.msra.mxu0 0.0
  %5044 = vmatprep.subr.mxu0 0.0
  %5045 = vmatpush1.msra.mxu0 0.0
  %5046 = vmatprep.subr.mxu0 0.0
  %5047 = vmatpush1.msra.mxu0 0.0
  %5048 = vmatprep.subr.mxu0 0.0
  %5049 = vmatpush1.msra.mxu0 0.0
  %5050 = vmatprep.subr.mxu0 0.0
  %5051 = vmatpush1.msra.mxu0 0.0
  %5052 = vmatprep.subr.mxu0 0.0
  %5053 = vmatpush1.msra.mxu0 0.0
  %5054 = vmatprep.subr.mxu0 0.0
  %5055 = vmatpush1.msra.mxu0 0.0
  %5056 = vmatprep.subr.mxu0 0.0
  %5057 = vmatpush1.msra.mxu0 0.0
  %5058 = vmatprep.subr.mxu0 0.0
  %5059 = vmatpush1.msra.mxu0 0.0
  %5060 = vmatprep.subr.mxu0 0.0
  %5061 = vmatpush1.msra.mxu0 0.0
  %5062 = vmatprep.subr.mxu0 0.0
  %5063 = vmatpush1.msra.mxu0 0.0
  %5064 = vmatprep.subr.mxu0 0.0
  %5065 = vmatpush1.msra.mxu0 0.0
  %5066 = vmatprep.mubr.f32.mxu0 0.0
  %5067 = vmatmul.mubr.f32.gmra.mrb[0].mxu0 %v4419
  %v5068 = vpop.f32.mrb[0].mxu0
  %v5069 = vadd.f32 %v3264, %v5068
  %v5070 = vpop.f32.mrb[0].mxu0
  %v5071 = vadd.f32 %v3266, %v5070
  %5072 = vmatprep.mubr.f32.mxu0 0.0
  %5073 = vmatmul.mubr.f32.gmra.mrb[0].mxu0 %v4422
  %v5074 = vpop.f32.mrb[0].mxu0
  %v5075 = vadd.f32 %v3270, %v5074
  %v5076 = vpop.f32.mrb[0].mxu0
  %v5077 = vadd.f32 %v3272, %v5076
  %5078 = vmatprep.mubr.f32.mxu0 0.0
  %5079 = vmatmul.mubr.f32.gmra.mrb[0].mxu0 %v4425
  %v5080 = vpop.f32.mrb[0].mxu0
  %v5081 = vadd.f32 %v3276, %v5080
  %v5082 = vpop.f32.mrb[0].mxu0
  %v5083 = vadd.f32 %v3278, %v5082
  %5084 = vmatprep.mubr.f32.mxu0 0.0
  %5085 = vmatmul.mubr.f32.gmra.mrb[0].mxu0 %v4428
  %v5086 = vpop.f32.mrb[0].mxu0
  %v5087 = vadd.f32 %v3282, %v5086
  %v5088 = vpop.f32.mrb[0].mxu0
  %v5089 = vadd.f32 %v3284, %v5088
  %5090 = vmatprep.mubr.f32.mxu0 0.0
  %5091 = vmatmul.mubr.f32.gmra.mrb[0].mxu0 %v4431
  %v5092 = vpop.f32.mrb[0].mxu0
  %v5093 = vadd.f32 %v3288, %v5092
  %v5094 = vpop.f32.mrb[0].mxu0
  %v5095 = vadd.f32 %v3290, %v5094
  %5096 = vmatprep.mubr.f32.mxu0 0.0
  %5097 = vmatmul.mubr.f32.gmra.mrb[0].mxu0 %v4434
  %v5098 = vpop.f32.mrb[0].mxu0
  %v5099 = vadd.f32 %v3294, %v5098
  %v5100 = vpop.f32.mrb[0].mxu0
  %v5101 = vadd.f32 %v3296, %v5100
  %5102 = vmatprep.mubr.f32.mxu0 0.0
  %5103 = vmatmul.mubr.f32.gmra.mrb[0].mxu0 %v4437
  %v5104 = vpop.f32.mrb[0].mxu0
  %v5105 = vadd.f32 %v3300, %v5104
  %v5106 = vpop.f32.mrb[0].mxu0
  %v5107 = vadd.f32 %v3302, %v5106
  %5108 = vmatprep.mubr.f32.mxu0 0.0
  %5109 = vmatmul.mubr.f32.gmra.mrb[0].mxu0 %v4440
  %v5110 = vpop.f32.mrb[0].mxu0
  %v5111 = vadd.f32 %v3306, %v5110
  %v5112 = vpop.f32.mrb[0].mxu0
  %v5113 = vadd.f32 %v3308, %v5112
  %5114 = vmatprep.mubr.f32.mxu0 0.0
  %5115 = vmatmul.mubr.f32.gmra.mrb[0].mxu0 %v4443
  %v5116 = vpop.f32.mrb[0].mxu0
  %v5117 = vadd.f32 %v3312, %v5116
  %v5118 = vpop.f32.mrb[0].mxu0
  %v5119 = vadd.f32 %v3314, %v5118
  %5120 = vmatprep.mubr.f32.mxu0 0.0
  %5121 = vmatmul.mubr.f32.gmra.mrb[0].mxu0 %v4446
  %v5122 = vpop.f32.mrb[0].mxu0
  %v5123 = vadd.f32 %v3318, %v5122
  %v5124 = vpop.f32.mrb[0].mxu0
  %v5125 = vadd.f32 %v3320, %v5124
  %5126 = vmatprep.mubr.f32.mxu0 0.0
  %5127 = vmatmul.mubr.f32.gmra.mrb[0].mxu0 %v4449
  %v5128 = vpop.f32.mrb[0].mxu0
  %v5129 = vadd.f32 %v3324, %v5128
  %v5130 = vpop.f32.mrb[0].mxu0
  %v5131 = vadd.f32 %v3326, %v5130
  %5132 = vmatprep.mubr.f32.mxu0 0.0
  %5133 = vmatmul.mubr.f32.gmra.mrb[0].mxu0 %v4452
  %v5134 = vpop.f32.mrb[0].mxu0
  %v5135 = vadd.f32 %v3330, %v5134
  %v5136 = vpop.f32.mrb[0].mxu0
  %v5137 = vadd.f32 %v3332, %v5136
  %5138 = vdwg.mxu0
  %5139 = vmatprep.subr.mxu0 %v2147
  %5140 = vmatpush1.msra.mxu0 %v2146
  %5141 = vmatprep.subr.mxu0 %v2172
  %5142 = vmatpush1.msra.mxu0 %v2171
  %5143 = vmatprep.subr.mxu0 %v2197
  %5144 = vmatpush1.msra.mxu0 %v2196
  %5145 = vmatprep.subr.mxu0 0.0
  %5146 = vmatpush1.msra.mxu0 0.0
  %5147 = vmatprep.subr.mxu0 0.0
  %5148 = vmatpush1.msra.mxu0 0.0
  %5149 = vmatprep.subr.mxu0 0.0
  %5150 = vmatpush1.msra.mxu0 0.0
  %5151 = vmatprep.subr.mxu0 0.0
  %5152 = vmatpush1.msra.mxu0 0.0
  %5153 = vmatprep.subr.mxu0 0.0
  %5154 = vmatpush1.msra.mxu0 0.0
  %5155 = vmatprep.subr.mxu0 0.0
  %5156 = vmatpush1.msra.mxu0 0.0
  %5157 = vmatprep.subr.mxu0 0.0
  %5158 = vmatpush1.msra.mxu0 0.0
  %5159 = vmatprep.subr.mxu0 0.0
  %5160 = vmatpush1.msra.mxu0 0.0
  %5161 = vmatprep.subr.mxu0 0.0
  %5162 = vmatpush1.msra.mxu0 0.0
  %5163 = vmatprep.subr.mxu0 0.0
  %5164 = vmatpush1.msra.mxu0 0.0
  %5165 = vmatprep.subr.mxu0 0.0
  %5166 = vmatpush1.msra.mxu0 0.0
  %5167 = vmatprep.subr.mxu0 0.0
  %5168 = vmatpush1.msra.mxu0 0.0
  %5169 = vmatprep.subr.mxu0 0.0
  %5170 = vmatpush1.msra.mxu0 0.0
  %5171 = vmatprep.subr.mxu0 0.0
  %5172 = vmatpush1.msra.mxu0 0.0
  %5173 = vmatprep.subr.mxu0 0.0
  %5174 = vmatpush1.msra.mxu0 0.0
  %5175 = vmatprep.subr.mxu0 0.0
  %5176 = vmatpush1.msra.mxu0 0.0
  %5177 = vmatprep.subr.mxu0 0.0
  %5178 = vmatpush1.msra.mxu0 0.0
  %5179 = vmatprep.subr.mxu0 0.0
  %5180 = vmatpush1.msra.mxu0 0.0
  %5181 = vmatprep.subr.mxu0 0.0
  %5182 = vmatpush1.msra.mxu0 0.0
  %5183 = vmatprep.subr.mxu0 0.0
  %5184 = vmatpush1.msra.mxu0 0.0
  %5185 = vmatprep.subr.mxu0 0.0
  %5186 = vmatpush1.msra.mxu0 0.0
  %5187 = vmatprep.subr.mxu0 0.0
  %5188 = vmatpush1.msra.mxu0 0.0
  %5189 = vmatprep.subr.mxu0 0.0
  %5190 = vmatpush1.msra.mxu0 0.0
  %5191 = vmatprep.subr.mxu0 0.0
  %5192 = vmatpush1.msra.mxu0 0.0
  %5193 = vmatprep.subr.mxu0 0.0
  %5194 = vmatpush1.msra.mxu0 0.0
  %5195 = vmatprep.subr.mxu0 0.0
  %5196 = vmatpush1.msra.mxu0 0.0
  %5197 = vmatprep.subr.mxu0 0.0
  %5198 = vmatpush1.msra.mxu0 0.0
  %5199 = vmatprep.subr.mxu0 0.0
  %5200 = vmatpush1.msra.mxu0 0.0
  %5201 = vmatprep.subr.mxu0 0.0
  %5202 = vmatpush1.msra.mxu0 0.0
  %5203 = vmatprep.mubr.f32.mxu0 0.0
  %5204 = vmatmul.mubr.f32.gmra.mrb[0].mxu0 %v4419
  %v5205 = vpop.f32.mrb[0].mxu0
  %v5206 = vadd.f32 %v3401, %v5205
  %v5207 = vpop.f32.mrb[0].mxu0
  %v5208 = vadd.f32 %v3403, %v5207
  %5209 = vmatprep.mubr.f32.mxu0 0.0
  %5210 = vmatmul.mubr.f32.gmra.mrb[0].mxu0 %v4422
  %v5211 = vpop.f32.mrb[0].mxu0
  %v5212 = vadd.f32 %v3407, %v5211
  %v5213 = vpop.f32.mrb[0].mxu0
  %v5214 = vadd.f32 %v3409, %v5213
  %5215 = vmatprep.mubr.f32.mxu0 0.0
  %5216 = vmatmul.mubr.f32.gmra.mrb[0].mxu0 %v4425
  %v5217 = vpop.f32.mrb[0].mxu0
  %v5218 = vadd.f32 %v3413, %v5217
  %v5219 = vpop.f32.mrb[0].mxu0
  %v5220 = vadd.f32 %v3415, %v5219
  %5221 = vmatprep.mubr.f32.mxu0 0.0
  %5222 = vmatmul.mubr.f32.gmra.mrb[0].mxu0 %v4428
  %v5223 = vpop.f32.mrb[0].mxu0
  %v5224 = vadd.f32 %v3419, %v5223
  %v5225 = vpop.f32.mrb[0].mxu0
  %v5226 = vadd.f32 %v3421, %v5225
  %5227 = vmatprep.mubr.f32.mxu0 0.0
  %5228 = vmatmul.mubr.f32.gmra.mrb[0].mxu0 %v4431
  %v5229 = vpop.f32.mrb[0].mxu0
  %v5230 = vadd.f32 %v3425, %v5229
  %v5231 = vpop.f32.mrb[0].mxu0
  %v5232 = vadd.f32 %v3427, %v5231
  %5233 = vmatprep.mubr.f32.mxu0 0.0
  %5234 = vmatmul.mubr.f32.gmra.mrb[0].mxu0 %v4434
  %v5235 = vpop.f32.mrb[0].mxu0
  %v5236 = vadd.f32 %v3431, %v5235
  %v5237 = vpop.f32.mrb[0].mxu0
  %v5238 = vadd.f32 %v3433, %v5237
  %5239 = vmatprep.mubr.f32.mxu0 0.0
  %5240 = vmatmul.mubr.f32.gmra.mrb[0].mxu0 %v4437
  %v5241 = vpop.f32.mrb[0].mxu0
  %v5242 = vadd.f32 %v3437, %v5241
  %v5243 = vpop.f32.mrb[0].mxu0
  %v5244 = vadd.f32 %v3439, %v5243
  %5245 = vmatprep.mubr.f32.mxu0 0.0
  %5246 = vmatmul.mubr.f32.gmra.mrb[0].mxu0 %v4440
  %v5247 = vpop.f32.mrb[0].mxu0
  %v5248 = vadd.f32 %v3443, %v5247
  %v5249 = vpop.f32.mrb[0].mxu0
  %v5250 = vadd.f32 %v3445, %v5249
  %5251 = vmatprep.mubr.f32.mxu0 0.0
  %5252 = vmatmul.mubr.f32.gmra.mrb[0].mxu0 %v4443
  %v5253 = vpop.f32.mrb[0].mxu0
  %v5254 = vadd.f32 %v3449, %v5253
  %v5255 = vpop.f32.mrb[0].mxu0
  %v5256 = vadd.f32 %v3451, %v5255
  %5257 = vmatprep.mubr.f32.mxu0 0.0
  %5258 = vmatmul.mubr.f32.gmra.mrb[0].mxu0 %v4446
  %v5259 = vpop.f32.mrb[0].mxu0
  %v5260 = vadd.f32 %v3455, %v5259
  %v5261 = vpop.f32.mrb[0].mxu0
  %v5262 = vadd.f32 %v3457, %v5261
  %5263 = vmatprep.mubr.f32.mxu0 0.0
  %5264 = vmatmul.mubr.f32.gmra.mrb[0].mxu0 %v4449
  %v5265 = vpop.f32.mrb[0].mxu0
  %v5266 = vadd.f32 %v3461, %v5265
  %v5267 = vpop.f32.mrb[0].mxu0
  %v5268 = vadd.f32 %v3463, %v5267
  %5269 = vmatprep.mubr.f32.mxu0 0.0
  %5270 = vmatmul.mubr.f32.gmra.mrb[0].mxu0 %v4452
  %v5271 = vpop.f32.mrb[0].mxu0
  %v5272 = vadd.f32 %v3467, %v5271
  %v5273 = vpop.f32.mrb[0].mxu0
  %v5274 = vadd.f32 %v3469, %v5273
  %5275 = vdwg.mxu0
  %5276 = vmatprep.subr.mxu0 %v2149
  %5277 = vmatpush1.msra.mxu0 %v2148
  %5278 = vmatprep.subr.mxu0 %v2174
  %5279 = vmatpush1.msra.mxu0 %v2173
  %5280 = vmatprep.subr.mxu0 %v2199
  %5281 = vmatpush1.msra.mxu0 %v2198
  %5282 = vmatprep.subr.mxu0 0.0
  %5283 = vmatpush1.msra.mxu0 0.0
  %5284 = vmatprep.subr.mxu0 0.0
  %5285 = vmatpush1.msra.mxu0 0.0
  %5286 = vmatprep.subr.mxu0 0.0
  %5287 = vmatpush1.msra.mxu0 0.0
  %5288 = vmatprep.subr.mxu0 0.0
  %5289 = vmatpush1.msra.mxu0 0.0
  %5290 = vmatprep.subr.mxu0 0.0
  %5291 = vmatpush1.msra.mxu0 0.0
  %5292 = vmatprep.subr.mxu0 0.0
  %5293 = vmatpush1.msra.mxu0 0.0
  %5294 = vmatprep.subr.mxu0 0.0
  %5295 = vmatpush1.msra.mxu0 0.0
  %5296 = vmatprep.subr.mxu0 0.0
  %5297 = vmatpush1.msra.mxu0 0.0
  %5298 = vmatprep.subr.mxu0 0.0
  %5299 = vmatpush1.msra.mxu0 0.0
  %5300 = vmatprep.subr.mxu0 0.0
  %5301 = vmatpush1.msra.mxu0 0.0
  %5302 = vmatprep.subr.mxu0 0.0
  %5303 = vmatpush1.msra.mxu0 0.0
  %5304 = vmatprep.subr.mxu0 0.0
  %5305 = vmatpush1.msra.mxu0 0.0
  %5306 = vmatprep.subr.mxu0 0.0
  %5307 = vmatpush1.msra.mxu0 0.0
  %5308 = vmatprep.subr.mxu0 0.0
  %5309 = vmatpush1.msra.mxu0 0.0
  %5310 = vmatprep.subr.mxu0 0.0
  %5311 = vmatpush1.msra.mxu0 0.0
  %5312 = vmatprep.subr.mxu0 0.0
  %5313 = vmatpush1.msra.mxu0 0.0
  %5314 = vmatprep.subr.mxu0 0.0
  %5315 = vmatpush1.msra.mxu0 0.0
  %5316 = vmatprep.subr.mxu0 0.0
  %5317 = vmatpush1.msra.mxu0 0.0
  %5318 = vmatprep.subr.mxu0 0.0
  %5319 = vmatpush1.msra.mxu0 0.0
  %5320 = vmatprep.subr.mxu0 0.0
  %5321 = vmatpush1.msra.mxu0 0.0
  %5322 = vmatprep.subr.mxu0 0.0
  %5323 = vmatpush1.msra.mxu0 0.0
  %5324 = vmatprep.subr.mxu0 0.0
  %5325 = vmatpush1.msra.mxu0 0.0
  %5326 = vmatprep.subr.mxu0 0.0
  %5327 = vmatpush1.msra.mxu0 0.0
  %5328 = vmatprep.subr.mxu0 0.0
  %5329 = vmatpush1.msra.mxu0 0.0
  %5330 = vmatprep.subr.mxu0 0.0
  %5331 = vmatpush1.msra.mxu0 0.0
  %5332 = vmatprep.subr.mxu0 0.0
  %5333 = vmatpush1.msra.mxu0 0.0
  %5334 = vmatprep.subr.mxu0 0.0
  %5335 = vmatpush1.msra.mxu0 0.0
  %5336 = vmatprep.subr.mxu0 0.0
  %5337 = vmatpush1.msra.mxu0 0.0
  %5338 = vmatprep.subr.mxu0 0.0
  %5339 = vmatpush1.msra.mxu0 0.0
  %5340 = vmatprep.mubr.f32.mxu0 0.0
  %5341 = vmatmul.mubr.f32.gmra.mrb[0].mxu0 %v4419
  %v5342 = vpop.f32.mrb[0].mxu0
  %v5343 = vadd.f32 %v3538, %v5342
  %v5344 = vpop.f32.mrb[0].mxu0
  %v5345 = vadd.f32 %v3540, %v5344
  %5346 = vmatprep.mubr.f32.mxu0 0.0
  %5347 = vmatmul.mubr.f32.gmra.mrb[0].mxu0 %v4422
  %v5348 = vpop.f32.mrb[0].mxu0
  %v5349 = vadd.f32 %v3544, %v5348
  %v5350 = vpop.f32.mrb[0].mxu0
  %v5351 = vadd.f32 %v3546, %v5350
  %5352 = vmatprep.mubr.f32.mxu0 0.0
  %5353 = vmatmul.mubr.f32.gmra.mrb[0].mxu0 %v4425
  %v5354 = vpop.f32.mrb[0].mxu0
  %v5355 = vadd.f32 %v3550, %v5354
  %v5356 = vpop.f32.mrb[0].mxu0
  %v5357 = vadd.f32 %v3552, %v5356
  %5358 = vmatprep.mubr.f32.mxu0 0.0
  %5359 = vmatmul.mubr.f32.gmra.mrb[0].mxu0 %v4428
  %v5360 = vpop.f32.mrb[0].mxu0
  %v5361 = vadd.f32 %v3556, %v5360
  %v5362 = vpop.f32.mrb[0].mxu0
  %v5363 = vadd.f32 %v3558, %v5362
  %5364 = vmatprep.mubr.f32.mxu0 0.0
  %5365 = vmatmul.mubr.f32.gmra.mrb[0].mxu0 %v4431
  %v5366 = vpop.f32.mrb[0].mxu0
  %v5367 = vadd.f32 %v3562, %v5366
  %v5368 = vpop.f32.mrb[0].mxu0
  %v5369 = vadd.f32 %v3564, %v5368
  %5370 = vmatprep.mubr.f32.mxu0 0.0
  %5371 = vmatmul.mubr.f32.gmra.mrb[0].mxu0 %v4434
  %v5372 = vpop.f32.mrb[0].mxu0
  %v5373 = vadd.f32 %v3568, %v5372
  %v5374 = vpop.f32.mrb[0].mxu0
  %v5375 = vadd.f32 %v3570, %v5374
  %5376 = vmatprep.mubr.f32.mxu0 0.0
  %5377 = vmatmul.mubr.f32.gmra.mrb[0].mxu0 %v4437
  %v5378 = vpop.f32.mrb[0].mxu0
  %v5379 = vadd.f32 %v3574, %v5378
  %v5380 = vpop.f32.mrb[0].mxu0
  %v5381 = vadd.f32 %v3576, %v5380
  %5382 = vmatprep.mubr.f32.mxu0 0.0
  %5383 = vmatmul.mubr.f32.gmra.mrb[0].mxu0 %v4440
  %v5384 = vpop.f32.mrb[0].mxu0
  %v5385 = vadd.f32 %v3580, %v5384
  %v5386 = vpop.f32.mrb[0].mxu0
  %v5387 = vadd.f32 %v3582, %v5386
  %5388 = vmatprep.mubr.f32.mxu0 0.0
  %5389 = vmatmul.mubr.f32.gmra.mrb[0].mxu0 %v4443
  %v5390 = vpop.f32.mrb[0].mxu0
  %v5391 = vadd.f32 %v3586, %v5390
  %v5392 = vpop.f32.mrb[0].mxu0
  %v5393 = vadd.f32 %v3588, %v5392
  %5394 = vmatprep.mubr.f32.mxu0 0.0
  %5395 = vmatmul.mubr.f32.gmra.mrb[0].mxu0 %v4446
  %v5396 = vpop.f32.mrb[0].mxu0
  %v5397 = vadd.f32 %v3592, %v5396
  %v5398 = vpop.f32.mrb[0].mxu0
  %v5399 = vadd.f32 %v3594, %v5398
  %5400 = vmatprep.mubr.f32.mxu0 0.0
  %5401 = vmatmul.mubr.f32.gmra.mrb[0].mxu0 %v4449
  %v5402 = vpop.f32.mrb[0].mxu0
  %v5403 = vadd.f32 %v3598, %v5402
  %v5404 = vpop.f32.mrb[0].mxu0
  %v5405 = vadd.f32 %v3600, %v5404
  %5406 = vmatprep.mubr.f32.mxu0 0.0
  %5407 = vmatmul.mubr.f32.gmra.mrb[0].mxu0 %v4452
  %v5408 = vpop.f32.mrb[0].mxu0
  %v5409 = vadd.f32 %v3604, %v5408
  %v5410 = vpop.f32.mrb[0].mxu0
  %v5411 = vadd.f32 %v3606, %v5410
  %5412 = vdwg.mxu0
  %5413 = vmatprep.subr.mxu0 %v2151
  %5414 = vmatpush1.msra.mxu0 %v2150
  %5415 = vmatprep.subr.mxu0 %v2176
  %5416 = vmatpush1.msra.mxu0 %v2175
  %5417 = vmatprep.subr.mxu0 %v2201
  %5418 = vmatpush1.msra.mxu0 %v2200
  %5419 = vmatprep.subr.mxu0 0.0
  %5420 = vmatpush1.msra.mxu0 0.0
  %5421 = vmatprep.subr.mxu0 0.0
  %5422 = vmatpush1.msra.mxu0 0.0
  %5423 = vmatprep.subr.mxu0 0.0
  %5424 = vmatpush1.msra.mxu0 0.0
  %5425 = vmatprep.subr.mxu0 0.0
  %5426 = vmatpush1.msra.mxu0 0.0
  %5427 = vmatprep.subr.mxu0 0.0
  %5428 = vmatpush1.msra.mxu0 0.0
  %5429 = vmatprep.subr.mxu0 0.0
  %5430 = vmatpush1.msra.mxu0 0.0
  %5431 = vmatprep.subr.mxu0 0.0
  %5432 = vmatpush1.msra.mxu0 0.0
  %5433 = vmatprep.subr.mxu0 0.0
  %5434 = vmatpush1.msra.mxu0 0.0
  %5435 = vmatprep.subr.mxu0 0.0
  %5436 = vmatpush1.msra.mxu0 0.0
  %5437 = vmatprep.subr.mxu0 0.0
  %5438 = vmatpush1.msra.mxu0 0.0
  %5439 = vmatprep.subr.mxu0 0.0
  %5440 = vmatpush1.msra.mxu0 0.0
  %5441 = vmatprep.subr.mxu0 0.0
  %5442 = vmatpush1.msra.mxu0 0.0
  %5443 = vmatprep.subr.mxu0 0.0
  %5444 = vmatpush1.msra.mxu0 0.0
  %5445 = vmatprep.subr.mxu0 0.0
  %5446 = vmatpush1.msra.mxu0 0.0
  %5447 = vmatprep.subr.mxu0 0.0
  %5448 = vmatpush1.msra.mxu0 0.0
  %5449 = vmatprep.subr.mxu0 0.0
  %5450 = vmatpush1.msra.mxu0 0.0
  %5451 = vmatprep.subr.mxu0 0.0
  %5452 = vmatpush1.msra.mxu0 0.0
  %5453 = vmatprep.subr.mxu0 0.0
  %5454 = vmatpush1.msra.mxu0 0.0
  %5455 = vmatprep.subr.mxu0 0.0
  %5456 = vmatpush1.msra.mxu0 0.0
  %5457 = vmatprep.subr.mxu0 0.0
  %5458 = vmatpush1.msra.mxu0 0.0
  %5459 = vmatprep.subr.mxu0 0.0
  %5460 = vmatpush1.msra.mxu0 0.0
  %5461 = vmatprep.subr.mxu0 0.0
  %5462 = vmatpush1.msra.mxu0 0.0
  %5463 = vmatprep.subr.mxu0 0.0
  %5464 = vmatpush1.msra.mxu0 0.0
  %5465 = vmatprep.subr.mxu0 0.0
  %5466 = vmatpush1.msra.mxu0 0.0
  %5467 = vmatprep.subr.mxu0 0.0
  %5468 = vmatpush1.msra.mxu0 0.0
  %5469 = vmatprep.subr.mxu0 0.0
  %5470 = vmatpush1.msra.mxu0 0.0
  %5471 = vmatprep.subr.mxu0 0.0
  %5472 = vmatpush1.msra.mxu0 0.0
  %5473 = vmatprep.subr.mxu0 0.0
  %5474 = vmatpush1.msra.mxu0 0.0
  %5475 = vmatprep.subr.mxu0 0.0
  %5476 = vmatpush1.msra.mxu0 0.0
  %5477 = vmatprep.mubr.f32.mxu0 0.0
  %5478 = vmatmul.mubr.f32.gmra.mrb[0].mxu0 %v4419
  %v5479 = vpop.f32.mrb[0].mxu0
  %v5480 = vadd.f32 %v3675, %v5479
  %v5481 = vpop.f32.mrb[0].mxu0
  %v5482 = vadd.f32 %v3677, %v5481
  %5483 = vmatprep.mubr.f32.mxu0 0.0
  %5484 = vmatmul.mubr.f32.gmra.mrb[0].mxu0 %v4422
  %v5485 = vpop.f32.mrb[0].mxu0
  %v5486 = vadd.f32 %v3681, %v5485
  %v5487 = vpop.f32.mrb[0].mxu0
  %v5488 = vadd.f32 %v3683, %v5487
  %5489 = vmatprep.mubr.f32.mxu0 0.0
  %5490 = vmatmul.mubr.f32.gmra.mrb[0].mxu0 %v4425
  %v5491 = vpop.f32.mrb[0].mxu0
  %v5492 = vadd.f32 %v3687, %v5491
  %v5493 = vpop.f32.mrb[0].mxu0
  %v5494 = vadd.f32 %v3689, %v5493
  %5495 = vmatprep.mubr.f32.mxu0 0.0
  %5496 = vmatmul.mubr.f32.gmra.mrb[0].mxu0 %v4428
  %v5497 = vpop.f32.mrb[0].mxu0
  %v5498 = vadd.f32 %v3693, %v5497
  %v5499 = vpop.f32.mrb[0].mxu0
  %v5500 = vadd.f32 %v3695, %v5499
  %5501 = vmatprep.mubr.f32.mxu0 0.0
  %5502 = vmatmul.mubr.f32.gmra.mrb[0].mxu0 %v4431
  %v5503 = vpop.f32.mrb[0].mxu0
  %v5504 = vadd.f32 %v3699, %v5503
  %v5505 = vpop.f32.mrb[0].mxu0
  %v5506 = vadd.f32 %v3701, %v5505
  %5507 = vmatprep.mubr.f32.mxu0 0.0
  %5508 = vmatmul.mubr.f32.gmra.mrb[0].mxu0 %v4434
  %v5509 = vpop.f32.mrb[0].mxu0
  %v5510 = vadd.f32 %v3705, %v5509
  %v5511 = vpop.f32.mrb[0].mxu0
  %v5512 = vadd.f32 %v3707, %v5511
  %5513 = vmatprep.mubr.f32.mxu0 0.0
  %5514 = vmatmul.mubr.f32.gmra.mrb[0].mxu0 %v4437
  %v5515 = vpop.f32.mrb[0].mxu0
  %v5516 = vadd.f32 %v3711, %v5515
  %v5517 = vpop.f32.mrb[0].mxu0
  %v5518 = vadd.f32 %v3713, %v5517
  %5519 = vmatprep.mubr.f32.mxu0 0.0
  %5520 = vmatmul.mubr.f32.gmra.mrb[0].mxu0 %v4440
  %v5521 = vpop.f32.mrb[0].mxu0
  %v5522 = vadd.f32 %v3717, %v5521
  %v5523 = vpop.f32.mrb[0].mxu0
  %v5524 = vadd.f32 %v3719, %v5523
  %5525 = vmatprep.mubr.f32.mxu0 0.0
  %5526 = vmatmul.mubr.f32.gmra.mrb[0].mxu0 %v4443
  %v5527 = vpop.f32.mrb[0].mxu0
  %v5528 = vadd.f32 %v3723, %v5527
  %v5529 = vpop.f32.mrb[0].mxu0
  %v5530 = vadd.f32 %v3725, %v5529
  %5531 = vmatprep.mubr.f32.mxu0 0.0
  %5532 = vmatmul.mubr.f32.gmra.mrb[0].mxu0 %v4446
  %v5533 = vpop.f32.mrb[0].mxu0
  %v5534 = vadd.f32 %v3729, %v5533
  %v5535 = vpop.f32.mrb[0].mxu0
  %v5536 = vadd.f32 %v3731, %v5535
  %5537 = vmatprep.mubr.f32.mxu0 0.0
  %5538 = vmatmul.mubr.f32.gmra.mrb[0].mxu0 %v4449
  %v5539 = vpop.f32.mrb[0].mxu0
  %v5540 = vadd.f32 %v3735, %v5539
  %v5541 = vpop.f32.mrb[0].mxu0
  %v5542 = vadd.f32 %v3737, %v5541
  %5543 = vmatprep.mubr.f32.mxu0 0.0
  %5544 = vmatmul.mubr.f32.gmra.mrb[0].mxu0 %v4452
  %v5545 = vpop.f32.mrb[0].mxu0
  %v5546 = vadd.f32 %v3741, %v5545
  %v5547 = vpop.f32.mrb[0].mxu0
  %v5548 = vadd.f32 %v3743, %v5547
  %5549 = vdwg.mxu0
  %5550 = vmatprep.subr.mxu0 %v2153
  %5551 = vmatpush1.msra.mxu0 %v2152
  %5552 = vmatprep.subr.mxu0 %v2178
  %5553 = vmatpush1.msra.mxu0 %v2177
  %5554 = vmatprep.subr.mxu0 %v2203
  %5555 = vmatpush1.msra.mxu0 %v2202
  %5556 = vmatprep.subr.mxu0 0.0
  %5557 = vmatpush1.msra.mxu0 0.0
  %5558 = vmatprep.subr.mxu0 0.0
  %5559 = vmatpush1.msra.mxu0 0.0
  %5560 = vmatprep.subr.mxu0 0.0
  %5561 = vmatpush1.msra.mxu0 0.0
  %5562 = vmatprep.subr.mxu0 0.0
  %5563 = vmatpush1.msra.mxu0 0.0
  %5564 = vmatprep.subr.mxu0 0.0
  %5565 = vmatpush1.msra.mxu0 0.0
  %5566 = vmatprep.subr.mxu0 0.0
  %5567 = vmatpush1.msra.mxu0 0.0
  %5568 = vmatprep.subr.mxu0 0.0
  %5569 = vmatpush1.msra.mxu0 0.0
  %5570 = vmatprep.subr.mxu0 0.0
  %5571 = vmatpush1.msra.mxu0 0.0
  %5572 = vmatprep.subr.mxu0 0.0
  %5573 = vmatpush1.msra.mxu0 0.0
  %5574 = vmatprep.subr.mxu0 0.0
  %5575 = vmatpush1.msra.mxu0 0.0
  %5576 = vmatprep.subr.mxu0 0.0
  %5577 = vmatpush1.msra.mxu0 0.0
  %5578 = vmatprep.subr.mxu0 0.0
  %5579 = vmatpush1.msra.mxu0 0.0
  %5580 = vmatprep.subr.mxu0 0.0
  %5581 = vmatpush1.msra.mxu0 0.0
  %5582 = vmatprep.subr.mxu0 0.0
  %5583 = vmatpush1.msra.mxu0 0.0
  %5584 = vmatprep.subr.mxu0 0.0
  %5585 = vmatpush1.msra.mxu0 0.0
  %5586 = vmatprep.subr.mxu0 0.0
  %5587 = vmatpush1.msra.mxu0 0.0
  %5588 = vmatprep.subr.mxu0 0.0
  %5589 = vmatpush1.msra.mxu0 0.0
  %5590 = vmatprep.subr.mxu0 0.0
  %5591 = vmatpush1.msra.mxu0 0.0
  %5592 = vmatprep.subr.mxu0 0.0
  %5593 = vmatpush1.msra.mxu0 0.0
  %5594 = vmatprep.subr.mxu0 0.0
  %5595 = vmatpush1.msra.mxu0 0.0
  %5596 = vmatprep.subr.mxu0 0.0
  %5597 = vmatpush1.msra.mxu0 0.0
  %5598 = vmatprep.subr.mxu0 0.0
  %5599 = vmatpush1.msra.mxu0 0.0
  %5600 = vmatprep.subr.mxu0 0.0
  %5601 = vmatpush1.msra.mxu0 0.0
  %5602 = vmatprep.subr.mxu0 0.0
  %5603 = vmatpush1.msra.mxu0 0.0
  %5604 = vmatprep.subr.mxu0 0.0
  %5605 = vmatpush1.msra.mxu0 0.0
  %5606 = vmatprep.subr.mxu0 0.0
  %5607 = vmatpush1.msra.mxu0 0.0
  %5608 = vmatprep.subr.mxu0 0.0
  %5609 = vmatpush1.msra.mxu0 0.0
  %5610 = vmatprep.subr.mxu0 0.0
  %5611 = vmatpush1.msra.mxu0 0.0
  %5612 = vmatprep.subr.mxu0 0.0
  %5613 = vmatpush1.msra.mxu0 0.0
  %5614 = vmatprep.mubr.f32.mxu0 0.0
  %5615 = vmatmul.mubr.f32.gmra.mrb[0].mxu0 %v4419
  %v5616 = vpop.f32.mrb[0].mxu0
  %v5617 = vadd.f32 %v3812, %v5616
  %v5618 = vpop.f32.mrb[0].mxu0
  %v5619 = vadd.f32 %v3814, %v5618
  %5620 = vmatprep.mubr.f32.mxu0 0.0
  %5621 = vmatmul.mubr.f32.gmra.mrb[0].mxu0 %v4422
  %v5622 = vpop.f32.mrb[0].mxu0
  %v5623 = vadd.f32 %v3818, %v5622
  %v5624 = vpop.f32.mrb[0].mxu0
  %v5625 = vadd.f32 %v3820, %v5624
  %5626 = vmatprep.mubr.f32.mxu0 0.0
  %5627 = vmatmul.mubr.f32.gmra.mrb[0].mxu0 %v4425
  %v5628 = vpop.f32.mrb[0].mxu0
  %v5629 = vadd.f32 %v3824, %v5628
  %v5630 = vpop.f32.mrb[0].mxu0
  %v5631 = vadd.f32 %v3826, %v5630
  %5632 = vmatprep.mubr.f32.mxu0 0.0
  %5633 = vmatmul.mubr.f32.gmra.mrb[0].mxu0 %v4428
  %v5634 = vpop.f32.mrb[0].mxu0
  %v5635 = vadd.f32 %v3830, %v5634
  %v5636 = vpop.f32.mrb[0].mxu0
  %v5637 = vadd.f32 %v3832, %v5636
  %5638 = vmatprep.mubr.f32.mxu0 0.0
  %5639 = vmatmul.mubr.f32.gmra.mrb[0].mxu0 %v4431
  %v5640 = vpop.f32.mrb[0].mxu0
  %v5641 = vadd.f32 %v3836, %v5640
  %v5642 = vpop.f32.mrb[0].mxu0
  %v5643 = vadd.f32 %v3838, %v5642
  %5644 = vmatprep.mubr.f32.mxu0 0.0
  %5645 = vmatmul.mubr.f32.gmra.mrb[0].mxu0 %v4434
  %v5646 = vpop.f32.mrb[0].mxu0
  %v5647 = vadd.f32 %v3842, %v5646
  %v5648 = vpop.f32.mrb[0].mxu0
  %v5649 = vadd.f32 %v3844, %v5648
  %5650 = vmatprep.mubr.f32.mxu0 0.0
  %5651 = vmatmul.mubr.f32.gmra.mrb[0].mxu0 %v4437
  %v5652 = vpop.f32.mrb[0].mxu0
  %v5653 = vadd.f32 %v3848, %v5652
  %v5654 = vpop.f32.mrb[0].mxu0
  %v5655 = vadd.f32 %v3850, %v5654
  %5656 = vmatprep.mubr.f32.mxu0 0.0
  %5657 = vmatmul.mubr.f32.gmra.mrb[0].mxu0 %v4440
  %v5658 = vpop.f32.mrb[0].mxu0
  %v5659 = vadd.f32 %v3854, %v5658
  %v5660 = vpop.f32.mrb[0].mxu0
  %v5661 = vadd.f32 %v3856, %v5660
  %5662 = vmatprep.mubr.f32.mxu0 0.0
  %5663 = vmatmul.mubr.f32.gmra.mrb[0].mxu0 %v4443
  %v5664 = vpop.f32.mrb[0].mxu0
  %v5665 = vadd.f32 %v3860, %v5664
  %v5666 = vpop.f32.mrb[0].mxu0
  %v5667 = vadd.f32 %v3862, %v5666
  %5668 = vmatprep.mubr.f32.mxu0 0.0
  %5669 = vmatmul.mubr.f32.gmra.mrb[0].mxu0 %v4446
  %v5670 = vpop.f32.mrb[0].mxu0
  %v5671 = vadd.f32 %v3866, %v5670
  %v5672 = vpop.f32.mrb[0].mxu0
  %v5673 = vadd.f32 %v3868, %v5672
  %5674 = vmatprep.mubr.f32.mxu0 0.0
  %5675 = vmatmul.mubr.f32.gmra.mrb[0].mxu0 %v4449
  %v5676 = vpop.f32.mrb[0].mxu0
  %v5677 = vadd.f32 %v3872, %v5676
  %v5678 = vpop.f32.mrb[0].mxu0
  %v5679 = vadd.f32 %v3874, %v5678
  %5680 = vmatprep.mubr.f32.mxu0 0.0
  %5681 = vmatmul.mubr.f32.gmra.mrb[0].mxu0 %v4452
  %v5682 = vpop.f32.mrb[0].mxu0
  %v5683 = vadd.f32 %v3878, %v5682
  %v5684 = vpop.f32.mrb[0].mxu0
  %v5685 = vadd.f32 %v3880, %v5684
  %5686 = vdwg.mxu0
  %5687 = vmatprep.subr.mxu0 %v2155
  %5688 = vmatpush1.msra.mxu0 %v2154
  %5689 = vmatprep.subr.mxu0 %v2180
  %5690 = vmatpush1.msra.mxu0 %v2179
  %5691 = vmatprep.subr.mxu0 %v2205
  %5692 = vmatpush1.msra.mxu0 %v2204
  %5693 = vmatprep.subr.mxu0 0.0
  %5694 = vmatpush1.msra.mxu0 0.0
  %5695 = vmatprep.subr.mxu0 0.0
  %5696 = vmatpush1.msra.mxu0 0.0
  %5697 = vmatprep.subr.mxu0 0.0
  %5698 = vmatpush1.msra.mxu0 0.0
  %5699 = vmatprep.subr.mxu0 0.0
  %5700 = vmatpush1.msra.mxu0 0.0
  %5701 = vmatprep.subr.mxu0 0.0
  %5702 = vmatpush1.msra.mxu0 0.0
  %5703 = vmatprep.subr.mxu0 0.0
  %5704 = vmatpush1.msra.mxu0 0.0
  %5705 = vmatprep.subr.mxu0 0.0
  %5706 = vmatpush1.msra.mxu0 0.0
  %5707 = vmatprep.subr.mxu0 0.0
  %5708 = vmatpush1.msra.mxu0 0.0
  %5709 = vmatprep.subr.mxu0 0.0
  %5710 = vmatpush1.msra.mxu0 0.0
  %5711 = vmatprep.subr.mxu0 0.0
  %5712 = vmatpush1.msra.mxu0 0.0
  %5713 = vmatprep.subr.mxu0 0.0
  %5714 = vmatpush1.msra.mxu0 0.0
  %5715 = vmatprep.subr.mxu0 0.0
  %5716 = vmatpush1.msra.mxu0 0.0
  %5717 = vmatprep.subr.mxu0 0.0
  %5718 = vmatpush1.msra.mxu0 0.0
  %5719 = vmatprep.subr.mxu0 0.0
  %5720 = vmatpush1.msra.mxu0 0.0
  %5721 = vmatprep.subr.mxu0 0.0
  %5722 = vmatpush1.msra.mxu0 0.0
  %5723 = vmatprep.subr.mxu0 0.0
  %5724 = vmatpush1.msra.mxu0 0.0
  %5725 = vmatprep.subr.mxu0 0.0
  %5726 = vmatpush1.msra.mxu0 0.0
  %5727 = vmatprep.subr.mxu0 0.0
  %5728 = vmatpush1.msra.mxu0 0.0
  %5729 = vmatprep.subr.mxu0 0.0
  %5730 = vmatpush1.msra.mxu0 0.0
  %5731 = vmatprep.subr.mxu0 0.0
  %5732 = vmatpush1.msra.mxu0 0.0
  %5733 = vmatprep.subr.mxu0 0.0
  %5734 = vmatpush1.msra.mxu0 0.0
  %5735 = vmatprep.subr.mxu0 0.0
  %5736 = vmatpush1.msra.mxu0 0.0
  %5737 = vmatprep.subr.mxu0 0.0
  %5738 = vmatpush1.msra.mxu0 0.0
  %5739 = vmatprep.subr.mxu0 0.0
  %5740 = vmatpush1.msra.mxu0 0.0
  %5741 = vmatprep.subr.mxu0 0.0
  %5742 = vmatpush1.msra.mxu0 0.0
  %5743 = vmatprep.subr.mxu0 0.0
  %5744 = vmatpush1.msra.mxu0 0.0
  %5745 = vmatprep.subr.mxu0 0.0
  %5746 = vmatpush1.msra.mxu0 0.0
  %5747 = vmatprep.subr.mxu0 0.0
  %5748 = vmatpush1.msra.mxu0 0.0
  %5749 = vmatprep.subr.mxu0 0.0
  %5750 = vmatpush1.msra.mxu0 0.0
  %5751 = vmatprep.mubr.f32.mxu0 0.0
  %5752 = vmatmul.mubr.f32.gmra.mrb[0].mxu0 %v4419
  %v5753 = vpop.f32.mrb[0].mxu0
  %v5754 = vadd.f32 %v3949, %v5753
  %v5755 = vpop.f32.mrb[0].mxu0
  %v5756 = vadd.f32 %v3951, %v5755
  %5757 = vmatprep.mubr.f32.mxu0 0.0
  %5758 = vmatmul.mubr.f32.gmra.mrb[0].mxu0 %v4422
  %v5759 = vpop.f32.mrb[0].mxu0
  %v5760 = vadd.f32 %v3955, %v5759
  %v5761 = vpop.f32.mrb[0].mxu0
  %v5762 = vadd.f32 %v3957, %v5761
  %5763 = vmatprep.mubr.f32.mxu0 0.0
  %5764 = vmatmul.mubr.f32.gmra.mrb[0].mxu0 %v4425
  %v5765 = vpop.f32.mrb[0].mxu0
  %v5766 = vadd.f32 %v3961, %v5765
  %v5767 = vpop.f32.mrb[0].mxu0
  %v5768 = vadd.f32 %v3963, %v5767
  %5769 = vmatprep.mubr.f32.mxu0 0.0
  %5770 = vmatmul.mubr.f32.gmra.mrb[0].mxu0 %v4428
  %v5771 = vpop.f32.mrb[0].mxu0
  %v5772 = vadd.f32 %v3967, %v5771
  %v5773 = vpop.f32.mrb[0].mxu0
  %v5774 = vadd.f32 %v3969, %v5773
  %5775 = vmatprep.mubr.f32.mxu0 0.0
  %5776 = vmatmul.mubr.f32.gmra.mrb[0].mxu0 %v4431
  %v5777 = vpop.f32.mrb[0].mxu0
  %v5778 = vadd.f32 %v3973, %v5777
  %v5779 = vpop.f32.mrb[0].mxu0
  %v5780 = vadd.f32 %v3975, %v5779
  %5781 = vmatprep.mubr.f32.mxu0 0.0
  %5782 = vmatmul.mubr.f32.gmra.mrb[0].mxu0 %v4434
  %v5783 = vpop.f32.mrb[0].mxu0
  %v5784 = vadd.f32 %v3979, %v5783
  %v5785 = vpop.f32.mrb[0].mxu0
  %v5786 = vadd.f32 %v3981, %v5785
  %5787 = vmatprep.mubr.f32.mxu0 0.0
  %5788 = vmatmul.mubr.f32.gmra.mrb[0].mxu0 %v4437
  %v5789 = vpop.f32.mrb[0].mxu0
  %v5790 = vadd.f32 %v3985, %v5789
  %v5791 = vpop.f32.mrb[0].mxu0
  %v5792 = vadd.f32 %v3987, %v5791
  %5793 = vmatprep.mubr.f32.mxu0 0.0
  %5794 = vmatmul.mubr.f32.gmra.mrb[0].mxu0 %v4440
  %v5795 = vpop.f32.mrb[0].mxu0
  %v5796 = vadd.f32 %v3991, %v5795
  %v5797 = vpop.f32.mrb[0].mxu0
  %v5798 = vadd.f32 %v3993, %v5797
  %5799 = vmatprep.mubr.f32.mxu0 0.0
  %5800 = vmatmul.mubr.f32.gmra.mrb[0].mxu0 %v4443
  %v5801 = vpop.f32.mrb[0].mxu0
  %v5802 = vadd.f32 %v3997, %v5801
  %v5803 = vpop.f32.mrb[0].mxu0
  %v5804 = vadd.f32 %v3999, %v5803
  %5805 = vmatprep.mubr.f32.mxu0 0.0
  %5806 = vmatmul.mubr.f32.gmra.mrb[0].mxu0 %v4446
  %v5807 = vpop.f32.mrb[0].mxu0
  %v5808 = vadd.f32 %v4003, %v5807
  %v5809 = vpop.f32.mrb[0].mxu0
  %v5810 = vadd.f32 %v4005, %v5809
  %5811 = vmatprep.mubr.f32.mxu0 0.0
  %5812 = vmatmul.mubr.f32.gmra.mrb[0].mxu0 %v4449
  %v5813 = vpop.f32.mrb[0].mxu0
  %v5814 = vadd.f32 %v4009, %v5813
  %v5815 = vpop.f32.mrb[0].mxu0
  %v5816 = vadd.f32 %v4011, %v5815
  %5817 = vmatprep.mubr.f32.mxu0 0.0
  %5818 = vmatmul.mubr.f32.gmra.mrb[0].mxu0 %v4452
  %v5819 = vpop.f32.mrb[0].mxu0
  %v5820 = vadd.f32 %v4015, %v5819
  %v5821 = vpop.f32.mrb[0].mxu0
  %v5822 = vadd.f32 %v4017, %v5821
  %5823 = vdwg.mxu0
  %5824 = vmatprep.subr.mxu0 %v2157
  %5825 = vmatpush1.msra.mxu0 %v2156
  %5826 = vmatprep.subr.mxu0 %v2182
  %5827 = vmatpush1.msra.mxu0 %v2181
  %5828 = vmatprep.subr.mxu0 %v2207
  %5829 = vmatpush1.msra.mxu0 %v2206
  %5830 = vmatprep.subr.mxu0 0.0
  %5831 = vmatpush1.msra.mxu0 0.0
  %5832 = vmatprep.subr.mxu0 0.0
  %5833 = vmatpush1.msra.mxu0 0.0
  %5834 = vmatprep.subr.mxu0 0.0
  %5835 = vmatpush1.msra.mxu0 0.0
  %5836 = vmatprep.subr.mxu0 0.0
  %5837 = vmatpush1.msra.mxu0 0.0
  %5838 = vmatprep.subr.mxu0 0.0
  %5839 = vmatpush1.msra.mxu0 0.0
  %5840 = vmatprep.subr.mxu0 0.0
  %5841 = vmatpush1.msra.mxu0 0.0
  %5842 = vmatprep.subr.mxu0 0.0
  %5843 = vmatpush1.msra.mxu0 0.0
  %5844 = vmatprep.subr.mxu0 0.0
  %5845 = vmatpush1.msra.mxu0 0.0
  %5846 = vmatprep.subr.mxu0 0.0
  %5847 = vmatpush1.msra.mxu0 0.0
  %5848 = vmatprep.subr.mxu0 0.0
  %5849 = vmatpush1.msra.mxu0 0.0
  %5850 = vmatprep.subr.mxu0 0.0
  %5851 = vmatpush1.msra.mxu0 0.0
  %5852 = vmatprep.subr.mxu0 0.0
  %5853 = vmatpush1.msra.mxu0 0.0
  %5854 = vmatprep.subr.mxu0 0.0
  %5855 = vmatpush1.msra.mxu0 0.0
  %5856 = vmatprep.subr.mxu0 0.0
  %5857 = vmatpush1.msra.mxu0 0.0
  %5858 = vmatprep.subr.mxu0 0.0
  %5859 = vmatpush1.msra.mxu0 0.0
  %5860 = vmatprep.subr.mxu0 0.0
  %5861 = vmatpush1.msra.mxu0 0.0
  %5862 = vmatprep.subr.mxu0 0.0
  %5863 = vmatpush1.msra.mxu0 0.0
  %5864 = vmatprep.subr.mxu0 0.0
  %5865 = vmatpush1.msra.mxu0 0.0
  %5866 = vmatprep.subr.mxu0 0.0
  %5867 = vmatpush1.msra.mxu0 0.0
  %5868 = vmatprep.subr.mxu0 0.0
  %5869 = vmatpush1.msra.mxu0 0.0
  %5870 = vmatprep.subr.mxu0 0.0
  %5871 = vmatpush1.msra.mxu0 0.0
  %5872 = vmatprep.subr.mxu0 0.0
  %5873 = vmatpush1.msra.mxu0 0.0
  %5874 = vmatprep.subr.mxu0 0.0
  %5875 = vmatpush1.msra.mxu0 0.0
  %5876 = vmatprep.subr.mxu0 0.0
  %5877 = vmatpush1.msra.mxu0 0.0
  %5878 = vmatprep.subr.mxu0 0.0
  %5879 = vmatpush1.msra.mxu0 0.0
  %5880 = vmatprep.subr.mxu0 0.0
  %5881 = vmatpush1.msra.mxu0 0.0
  %5882 = vmatprep.subr.mxu0 0.0
  %5883 = vmatpush1.msra.mxu0 0.0
  %5884 = vmatprep.subr.mxu0 0.0
  %5885 = vmatpush1.msra.mxu0 0.0
  %5886 = vmatprep.subr.mxu0 0.0
  %5887 = vmatpush1.msra.mxu0 0.0
  %5888 = vmatprep.mubr.f32.mxu0 0.0
  %5889 = vmatmul.mubr.f32.gmra.mrb[0].mxu0 %v4419
  %v5890 = vpop.f32.mrb[0].mxu0
  %v5891 = vadd.f32 %v4086, %v5890
  %v5892 = vpop.f32.mrb[0].mxu0
  %v5893 = vadd.f32 %v4088, %v5892
  %5894 = vmatprep.mubr.f32.mxu0 0.0
  %5895 = vmatmul.mubr.f32.gmra.mrb[0].mxu0 %v4422
  %v5896 = vpop.f32.mrb[0].mxu0
  %v5897 = vadd.f32 %v4092, %v5896
  %v5898 = vpop.f32.mrb[0].mxu0
  %v5899 = vadd.f32 %v4094, %v5898
  %5900 = vmatprep.mubr.f32.mxu0 0.0
  %5901 = vmatmul.mubr.f32.gmra.mrb[0].mxu0 %v4425
  %v5902 = vpop.f32.mrb[0].mxu0
  %v5903 = vadd.f32 %v4098, %v5902
  %v5904 = vpop.f32.mrb[0].mxu0
  %v5905 = vadd.f32 %v4100, %v5904
  %5906 = vmatprep.mubr.f32.mxu0 0.0
  %5907 = vmatmul.mubr.f32.gmra.mrb[0].mxu0 %v4428
  %v5908 = vpop.f32.mrb[0].mxu0
  %v5909 = vadd.f32 %v4104, %v5908
  %v5910 = vpop.f32.mrb[0].mxu0
  %v5911 = vadd.f32 %v4106, %v5910
  %5912 = vmatprep.mubr.f32.mxu0 0.0
  %5913 = vmatmul.mubr.f32.gmra.mrb[0].mxu0 %v4431
  %v5914 = vpop.f32.mrb[0].mxu0
  %v5915 = vadd.f32 %v4110, %v5914
  %v5916 = vpop.f32.mrb[0].mxu0
  %v5917 = vadd.f32 %v4112, %v5916
  %5918 = vmatprep.mubr.f32.mxu0 0.0
  %5919 = vmatmul.mubr.f32.gmra.mrb[0].mxu0 %v4434
  %v5920 = vpop.f32.mrb[0].mxu0
  %v5921 = vadd.f32 %v4116, %v5920
  %v5922 = vpop.f32.mrb[0].mxu0
  %v5923 = vadd.f32 %v4118, %v5922
  %5924 = vmatprep.mubr.f32.mxu0 0.0
  %5925 = vmatmul.mubr.f32.gmra.mrb[0].mxu0 %v4437
  %v5926 = vpop.f32.mrb[0].mxu0
  %v5927 = vadd.f32 %v4122, %v5926
  %v5928 = vpop.f32.mrb[0].mxu0
  %v5929 = vadd.f32 %v4124, %v5928
  %5930 = vmatprep.mubr.f32.mxu0 0.0
  %5931 = vmatmul.mubr.f32.gmra.mrb[0].mxu0 %v4440
  %v5932 = vpop.f32.mrb[0].mxu0
  %v5933 = vadd.f32 %v4128, %v5932
  %v5934 = vpop.f32.mrb[0].mxu0
  %v5935 = vadd.f32 %v4130, %v5934
  %5936 = vmatprep.mubr.f32.mxu0 0.0
  %5937 = vmatmul.mubr.f32.gmra.mrb[0].mxu0 %v4443
  %v5938 = vpop.f32.mrb[0].mxu0
  %v5939 = vadd.f32 %v4134, %v5938
  %v5940 = vpop.f32.mrb[0].mxu0
  %v5941 = vadd.f32 %v4136, %v5940
  %5942 = vmatprep.mubr.f32.mxu0 0.0
  %5943 = vmatmul.mubr.f32.gmra.mrb[0].mxu0 %v4446
  %v5944 = vpop.f32.mrb[0].mxu0
  %v5945 = vadd.f32 %v4140, %v5944
  %v5946 = vpop.f32.mrb[0].mxu0
  %v5947 = vadd.f32 %v4142, %v5946
  %5948 = vmatprep.mubr.f32.mxu0 0.0
  %5949 = vmatmul.mubr.f32.gmra.mrb[0].mxu0 %v4449
  %v5950 = vpop.f32.mrb[0].mxu0
  %v5951 = vadd.f32 %v4146, %v5950
  %v5952 = vpop.f32.mrb[0].mxu0
  %v5953 = vadd.f32 %v4148, %v5952
  %5954 = vmatprep.mubr.f32.mxu0 0.0
  %5955 = vmatmul.mubr.f32.gmra.mrb[0].mxu0 %v4452
  %v5956 = vpop.f32.mrb[0].mxu0
  %v5957 = vadd.f32 %v4152, %v5956
  %v5958 = vpop.f32.mrb[0].mxu0
  %v5959 = vadd.f32 %v4154, %v5958
  %5960 = vdwg.mxu0
  %5961 = vmatprep.subr.mxu0 %v2159
  %5962 = vmatpush1.msra.mxu0 %v2158
  %5963 = vmatprep.subr.mxu0 %v2184
  %5964 = vmatpush1.msra.mxu0 %v2183
  %5965 = vmatprep.subr.mxu0 %v2209
  %5966 = vmatpush1.msra.mxu0 %v2208
  %5967 = vmatprep.subr.mxu0 0.0
  %5968 = vmatpush1.msra.mxu0 0.0
  %5969 = vmatprep.subr.mxu0 0.0
  %5970 = vmatpush1.msra.mxu0 0.0
  %5971 = vmatprep.subr.mxu0 0.0
  %5972 = vmatpush1.msra.mxu0 0.0
  %5973 = vmatprep.subr.mxu0 0.0
  %5974 = vmatpush1.msra.mxu0 0.0
  %5975 = vmatprep.subr.mxu0 0.0
  %5976 = vmatpush1.msra.mxu0 0.0
  %5977 = vmatprep.subr.mxu0 0.0
  %5978 = vmatpush1.msra.mxu0 0.0
  %5979 = vmatprep.subr.mxu0 0.0
  %5980 = vmatpush1.msra.mxu0 0.0
  %5981 = vmatprep.subr.mxu0 0.0
  %5982 = vmatpush1.msra.mxu0 0.0
  %5983 = vmatprep.subr.mxu0 0.0
  %5984 = vmatpush1.msra.mxu0 0.0
  %5985 = vmatprep.subr.mxu0 0.0
  %5986 = vmatpush1.msra.mxu0 0.0
  %5987 = vmatprep.subr.mxu0 0.0
  %5988 = vmatpush1.msra.mxu0 0.0
  %5989 = vmatprep.subr.mxu0 0.0
  %5990 = vmatpush1.msra.mxu0 0.0
  %5991 = vmatprep.subr.mxu0 0.0
  %5992 = vmatpush1.msra.mxu0 0.0
  %5993 = vmatprep.subr.mxu0 0.0
  %5994 = vmatpush1.msra.mxu0 0.0
  %5995 = vmatprep.subr.mxu0 0.0
  %5996 = vmatpush1.msra.mxu0 0.0
  %5997 = vmatprep.subr.mxu0 0.0
  %5998 = vmatpush1.msra.mxu0 0.0
  %5999 = vmatprep.subr.mxu0 0.0
  %6000 = vmatpush1.msra.mxu0 0.0
  %6001 = vmatprep.subr.mxu0 0.0
  %6002 = vmatpush1.msra.mxu0 0.0
  %6003 = vmatprep.subr.mxu0 0.0
  %6004 = vmatpush1.msra.mxu0 0.0
  %6005 = vmatprep.subr.mxu0 0.0
  %6006 = vmatpush1.msra.mxu0 0.0
  %6007 = vmatprep.subr.mxu0 0.0
  %6008 = vmatpush1.msra.mxu0 0.0
  %6009 = vmatprep.subr.mxu0 0.0
  %6010 = vmatpush1.msra.mxu0 0.0
  %6011 = vmatprep.subr.mxu0 0.0
  %6012 = vmatpush1.msra.mxu0 0.0
  %6013 = vmatprep.subr.mxu0 0.0
  %6014 = vmatpush1.msra.mxu0 0.0
  %6015 = vmatprep.subr.mxu0 0.0
  %6016 = vmatpush1.msra.mxu0 0.0
  %6017 = vmatprep.subr.mxu0 0.0
  %6018 = vmatpush1.msra.mxu0 0.0
  %6019 = vmatprep.subr.mxu0 0.0
  %6020 = vmatpush1.msra.mxu0 0.0
  %6021 = vmatprep.subr.mxu0 0.0
  %6022 = vmatpush1.msra.mxu0 0.0
  %6023 = vmatprep.subr.mxu0 0.0
  %6024 = vmatpush1.msra.mxu0 0.0
  %6025 = vmatprep.mubr.f32.mxu0 0.0
  %6026 = vmatmul.mubr.f32.gmra.mrb[0].mxu0 %v4419
  %v6027 = vpop.f32.mrb[0].mxu0
  %v6028 = vadd.f32 %v4223, %v6027
  %v6029 = vpop.f32.mrb[0].mxu0
  %v6030 = vadd.f32 %v4225, %v6029
  %6031 = vmatprep.mubr.f32.mxu0 0.0
  %6032 = vmatmul.mubr.f32.gmra.mrb[0].mxu0 %v4422
  %v6033 = vpop.f32.mrb[0].mxu0
  %v6034 = vadd.f32 %v4229, %v6033
  %v6035 = vpop.f32.mrb[0].mxu0
  %v6036 = vadd.f32 %v4231, %v6035
  %6037 = vmatprep.mubr.f32.mxu0 0.0
  %6038 = vmatmul.mubr.f32.gmra.mrb[0].mxu0 %v4425
  %v6039 = vpop.f32.mrb[0].mxu0
  %v6040 = vadd.f32 %v4235, %v6039
  %v6041 = vpop.f32.mrb[0].mxu0
  %v6042 = vadd.f32 %v4237, %v6041
  %6043 = vmatprep.mubr.f32.mxu0 0.0
  %6044 = vmatmul.mubr.f32.gmra.mrb[0].mxu0 %v4428
  %v6045 = vpop.f32.mrb[0].mxu0
  %v6046 = vadd.f32 %v4241, %v6045
  %v6047 = vpop.f32.mrb[0].mxu0
  %v6048 = vadd.f32 %v4243, %v6047
  %6049 = vmatprep.mubr.f32.mxu0 0.0
  %6050 = vmatmul.mubr.f32.gmra.mrb[0].mxu0 %v4431
  %v6051 = vpop.f32.mrb[0].mxu0
  %v6052 = vadd.f32 %v4247, %v6051
  %v6053 = vpop.f32.mrb[0].mxu0
  %v6054 = vadd.f32 %v4249, %v6053
  %6055 = vmatprep.mubr.f32.mxu0 0.0
  %6056 = vmatmul.mubr.f32.gmra.mrb[0].mxu0 %v4434
  %v6057 = vpop.f32.mrb[0].mxu0
  %v6058 = vadd.f32 %v4253, %v6057
  %v6059 = vpop.f32.mrb[0].mxu0
  %v6060 = vadd.f32 %v4255, %v6059
  %6061 = vmatprep.mubr.f32.mxu0 0.0
  %6062 = vmatmul.mubr.f32.gmra.mrb[0].mxu0 %v4437
  %v6063 = vpop.f32.mrb[0].mxu0
  %v6064 = vadd.f32 %v4259, %v6063
  %v6065 = vpop.f32.mrb[0].mxu0
  %v6066 = vadd.f32 %v4261, %v6065
  %6067 = vmatprep.mubr.f32.mxu0 0.0
  %6068 = vmatmul.mubr.f32.gmra.mrb[0].mxu0 %v4440
  %v6069 = vpop.f32.mrb[0].mxu0
  %v6070 = vadd.f32 %v4265, %v6069
  %v6071 = vpop.f32.mrb[0].mxu0
  %v6072 = vadd.f32 %v4267, %v6071
  %6073 = vmatprep.mubr.f32.mxu0 0.0
  %6074 = vmatmul.mubr.f32.gmra.mrb[0].mxu0 %v4443
  %v6075 = vpop.f32.mrb[0].mxu0
  %v6076 = vadd.f32 %v4271, %v6075
  %v6077 = vpop.f32.mrb[0].mxu0
  %v6078 = vadd.f32 %v4273, %v6077
  %6079 = vmatprep.mubr.f32.mxu0 0.0
  %6080 = vmatmul.mubr.f32.gmra.mrb[0].mxu0 %v4446
  %v6081 = vpop.f32.mrb[0].mxu0
  %v6082 = vadd.f32 %v4277, %v6081
  %v6083 = vpop.f32.mrb[0].mxu0
  %v6084 = vadd.f32 %v4279, %v6083
  %6085 = vmatprep.mubr.f32.mxu0 0.0
  %6086 = vmatmul.mubr.f32.gmra.mrb[0].mxu0 %v4449
  %v6087 = vpop.f32.mrb[0].mxu0
  %v6088 = vadd.f32 %v4283, %v6087
  %v6089 = vpop.f32.mrb[0].mxu0
  %v6090 = vadd.f32 %v4285, %v6089
  %6091 = vmatprep.mubr.f32.mxu0 0.0
  %6092 = vmatmul.mubr.f32.gmra.mrb[0].mxu0 %v4452
  %v6093 = vpop.f32.mrb[0].mxu0
  %v6094 = vadd.f32 %v4289, %v6093
  %v6095 = vpop.f32.mrb[0].mxu0
  %v6096 = vadd.f32 %v4291, %v6095
  %6097 = vdwg.mxu0
  %6098 = vmatprep.subr.mxu0 0.0
  %6099 = vmatpush1.msra.mxu0 %v2160
  %6100 = vmatprep.subr.mxu0 0.0
  %6101 = vmatpush1.msra.mxu0 %v2185
  %6102 = vmatprep.subr.mxu0 0.0
  %6103 = vmatpush1.msra.mxu0 %v2210
  %6104 = vmatprep.subr.mxu0 0.0
  %6105 = vmatpush1.msra.mxu0 0.0
  %6106 = vmatprep.subr.mxu0 0.0
  %6107 = vmatpush1.msra.mxu0 0.0
  %6108 = vmatprep.subr.mxu0 0.0
  %6109 = vmatpush1.msra.mxu0 0.0
  %6110 = vmatprep.subr.mxu0 0.0
  %6111 = vmatpush1.msra.mxu0 0.0
  %6112 = vmatprep.subr.mxu0 0.0
  %6113 = vmatpush1.msra.mxu0 0.0
  %6114 = vmatprep.subr.mxu0 0.0
  %6115 = vmatpush1.msra.mxu0 0.0
  %6116 = vmatprep.subr.mxu0 0.0
  %6117 = vmatpush1.msra.mxu0 0.0
  %6118 = vmatprep.subr.mxu0 0.0
  %6119 = vmatpush1.msra.mxu0 0.0
  %6120 = vmatprep.subr.mxu0 0.0
  %6121 = vmatpush1.msra.mxu0 0.0
  %6122 = vmatprep.subr.mxu0 0.0
  %6123 = vmatpush1.msra.mxu0 0.0
  %6124 = vmatprep.subr.mxu0 0.0
  %6125 = vmatpush1.msra.mxu0 0.0
  %6126 = vmatprep.subr.mxu0 0.0
  %6127 = vmatpush1.msra.mxu0 0.0
  %6128 = vmatprep.subr.mxu0 0.0
  %6129 = vmatpush1.msra.mxu0 0.0
  %6130 = vmatprep.subr.mxu0 0.0
  %6131 = vmatpush1.msra.mxu0 0.0
  %6132 = vmatprep.subr.mxu0 0.0
  %6133 = vmatpush1.msra.mxu0 0.0
  %6134 = vmatprep.subr.mxu0 0.0
  %6135 = vmatpush1.msra.mxu0 0.0
  %6136 = vmatprep.subr.mxu0 0.0
  %6137 = vmatpush1.msra.mxu0 0.0
  %6138 = vmatprep.subr.mxu0 0.0
  %6139 = vmatpush1.msra.mxu0 0.0
  %6140 = vmatprep.subr.mxu0 0.0
  %6141 = vmatpush1.msra.mxu0 0.0
  %6142 = vmatprep.subr.mxu0 0.0
  %6143 = vmatpush1.msra.mxu0 0.0
  %6144 = vmatprep.subr.mxu0 0.0
  %6145 = vmatpush1.msra.mxu0 0.0
  %6146 = vmatprep.subr.mxu0 0.0
  %6147 = vmatpush1.msra.mxu0 0.0
  %6148 = vmatprep.subr.mxu0 0.0
  %6149 = vmatpush1.msra.mxu0 0.0
  %6150 = vmatprep.subr.mxu0 0.0
  %6151 = vmatpush1.msra.mxu0 0.0
  %6152 = vmatprep.subr.mxu0 0.0
  %6153 = vmatpush1.msra.mxu0 0.0
  %6154 = vmatprep.subr.mxu0 0.0
  %6155 = vmatpush1.msra.mxu0 0.0
  %6156 = vmatprep.subr.mxu0 0.0
  %6157 = vmatpush1.msra.mxu0 0.0
  %6158 = vmatprep.subr.mxu0 0.0
  %6159 = vmatpush1.msra.mxu0 0.0
  %6160 = vmatprep.subr.mxu0 0.0
  %6161 = vmatpush1.msra.mxu0 0.0
  %6162 = vmatprep.mubr.f32.mxu0 0.0
  %6163 = vmatmul.mubr.f32.gmra.mrb[0].mxu0 %v4419
  %v6164 = vpop.f32.mrb[0].mxu0
  %v6165 = vadd.f32 %v4360, %v6164
  %v6166 = vpop.f32.mrb[0].mxu0
  %6167 = vmatprep.mubr.f32.mxu0 0.0
  %6168 = vmatmul.mubr.f32.gmra.mrb[0].mxu0 %v4422
  %v6169 = vpop.f32.mrb[0].mxu0
  %v6170 = vadd.f32 %v4365, %v6169
  %v6171 = vpop.f32.mrb[0].mxu0
  %6172 = vmatprep.mubr.f32.mxu0 0.0
  %6173 = vmatmul.mubr.f32.gmra.mrb[0].mxu0 %v4425
  %v6174 = vpop.f32.mrb[0].mxu0
  %v6175 = vadd.f32 %v4370, %v6174
  %v6176 = vpop.f32.mrb[0].mxu0
  %6177 = vmatprep.mubr.f32.mxu0 0.0
  %6178 = vmatmul.mubr.f32.gmra.mrb[0].mxu0 %v4428
  %v6179 = vpop.f32.mrb[0].mxu0
  %v6180 = vadd.f32 %v4375, %v6179
  %v6181 = vpop.f32.mrb[0].mxu0
  %6182 = vmatprep.mubr.f32.mxu0 0.0
  %6183 = vmatmul.mubr.f32.gmra.mrb[0].mxu0 %v4431
  %v6184 = vpop.f32.mrb[0].mxu0
  %v6185 = vadd.f32 %v4380, %v6184
  %v6186 = vpop.f32.mrb[0].mxu0
  %6187 = vmatprep.mubr.f32.mxu0 0.0
  %6188 = vmatmul.mubr.f32.gmra.mrb[0].mxu0 %v4434
  %v6189 = vpop.f32.mrb[0].mxu0
  %v6190 = vadd.f32 %v4385, %v6189
  %v6191 = vpop.f32.mrb[0].mxu0
  %6192 = vmatprep.mubr.f32.mxu0 0.0
  %6193 = vmatmul.mubr.f32.gmra.mrb[0].mxu0 %v4437
  %v6194 = vpop.f32.mrb[0].mxu0
  %v6195 = vadd.f32 %v4390, %v6194
  %v6196 = vpop.f32.mrb[0].mxu0
  %6197 = vmatprep.mubr.f32.mxu0 0.0
  %6198 = vmatmul.mubr.f32.gmra.mrb[0].mxu0 %v4440
  %v6199 = vpop.f32.mrb[0].mxu0
  %v6200 = vadd.f32 %v4395, %v6199
  %v6201 = vpop.f32.mrb[0].mxu0
  %6202 = vmatprep.mubr.f32.mxu0 0.0
  %6203 = vmatmul.mubr.f32.gmra.mrb[0].mxu0 %v4443
  %v6204 = vpop.f32.mrb[0].mxu0
  %v6205 = vadd.f32 %v4400, %v6204
  %v6206 = vpop.f32.mrb[0].mxu0
  %6207 = vmatprep.mubr.f32.mxu0 0.0
  %6208 = vmatmul.mubr.f32.gmra.mrb[0].mxu0 %v4446
  %v6209 = vpop.f32.mrb[0].mxu0
  %v6210 = vadd.f32 %v4405, %v6209
  %v6211 = vpop.f32.mrb[0].mxu0
  %6212 = vmatprep.mubr.f32.mxu0 0.0
  %6213 = vmatmul.mubr.f32.gmra.mrb[0].mxu0 %v4449
  %v6214 = vpop.f32.mrb[0].mxu0
  %v6215 = vadd.f32 %v4410, %v6214
  %v6216 = vpop.f32.mrb[0].mxu0
  %6217 = vmatprep.mubr.f32.mxu0 0.0
  %6218 = vmatmul.mubr.f32.gmra.mrb[0].mxu0 %v4452
  %v6219 = vpop.f32.mrb[0].mxu0
  %v6220 = vadd.f32 %v4415, %v6219
  %v6221 = vpop.f32.mrb[0].mxu0
  %6222 = vdwg.mxu0
  %s6223 = scalar_lea.vmem %s1, 192
  %v6224 = vld [vmem:[%s6223] sm:$0xff]
  %v6225 = vld [vmem:[%s6223 + $0x8] sm:$0xff]
  %v6226 = vld [vmem:[%s6223 + $0x10] sm:$0xff]
  %v6227 = vld [vmem:[%s6223 + $0x18] sm:$0xff]
  %v6228 = vld [vmem:[%s6223 + $0x20] sm:$0xff]
  %v6229 = vld [vmem:[%s6223 + $0x28] sm:$0xff]
  %v6230 = vld [vmem:[%s6223 + $0x30] sm:$0xff]
  %v6231 = vld [vmem:[%s6223 + $0x38] sm:$0xff]
  %v6232 = vld [vmem:[%s6223 + $0x40] sm:$0xff]
  %v6233 = vld [vmem:[%s6223 + $0x48] sm:$0xff]
  %v6234 = vld [vmem:[%s6223 + $0x50] sm:$0xff]
  %v6235 = vld [vmem:[%s6223 + $0x58] sm:$0xff]
  %v6236 = vld [vmem:[#allocation3 + $0x8] sm:$0xff]
  %v6237 = vld [vmem:[#allocation3 + $0x10] sm:$0xff]
  %v6238 = vld [vmem:[#allocation3 + $0x18] sm:$0xff]
  %v6239 = vld [vmem:[#allocation3 + $0x20] sm:$0xff]
  %v6240 = vld [vmem:[#allocation3 + $0x28] sm:$0xff]
  %v6241 = vld [vmem:[#allocation3 + $0x30] sm:$0xff]
  %v6242 = vld [vmem:[#allocation3 + $0x38] sm:$0xff]
  %v6243 = vld [vmem:[#allocation3 + $0x40] sm:$0xff]
  %v6244 = vld [vmem:[#allocation3 + $0x48] sm:$0xff]
  %v6245 = vld [vmem:[#allocation3 + $0x50] sm:$0xff]
  %v6246 = vld [vmem:[#allocation3 + $0x58] sm:$0xff]
  %v6247 = vld [vmem:[#allocation3 + $0x60] sm:$0xff]
  %v6248 = vld [vmem:[#allocation3 + $0x68] sm:$0xff]
  %v6249 = vld [vmem:[#allocation3 + $0x70] sm:$0xff]
  %v6250 = vld [vmem:[#allocation3 + $0x78] sm:$0xff]
  %v6251 = vld [vmem:[#allocation3 + $0x80] sm:$0xff]
  %v6252 = vld [vmem:[#allocation3 + $0x88] sm:$0xff]
  %v6253 = vld [vmem:[#allocation3 + $0x90] sm:$0xff]
  %v6254 = vld [vmem:[#allocation3 + $0x98] sm:$0xff]
  %v6255 = vld [vmem:[#allocation3 + $0xa0] sm:$0xff]
  %v6256 = vld [vmem:[#allocation3 + $0xa8] sm:$0xff]
  %v6257 = vld [vmem:[#allocation3 + $0xb0] sm:$0xff]
  %v6258 = vld [vmem:[#allocation3 + $0xb8] sm:$0xff]
  %v6259 = vld [vmem:[#allocation3 + $0xc0] sm:$0xff]
  %v6260 = vld [vmem:[#allocation3 + $0xc8] sm:$0xff]
  %v6261 = vld [vmem:[#allocation3 + $0xd0] sm:$0xff]
  %v6262 = vld [vmem:[#allocation3 + $0xe0] sm:$0xff]
  %v6263 = vld [vmem:[#allocation3 + $0xe8] sm:$0xff]
  %v6264 = vld [vmem:[#allocation3 + $0xf0] sm:$0xff]
  %v6265 = vld [vmem:[#allocation3 + $0xf8] sm:$0xff]
  %v6266 = vld [vmem:[#allocation3 + $0x100] sm:$0xff]
  %v6267 = vld [vmem:[#allocation3 + $0x108] sm:$0xff]
  %v6268 = vld [vmem:[#allocation3 + $0x110] sm:$0xff]
  %v6269 = vld [vmem:[#allocation3 + $0x118] sm:$0xff]
  %v6270 = vld [vmem:[#allocation3 + $0x120] sm:$0xff]
  %v6271 = vld [vmem:[#allocation3 + $0x128] sm:$0xff]
  %v6272 = vld [vmem:[#allocation3 + $0x130] sm:$0xff]
  %v6273 = vld [vmem:[#allocation3 + $0x138] sm:$0xff]
  %v6274 = vld [vmem:[#allocation3 + $0x140] sm:$0xff]
  %v6275 = vld [vmem:[#allocation3 + $0x148] sm:$0xff]
  %v6276 = vld [vmem:[#allocation3 + $0x150] sm:$0xff]
  %v6277 = vld [vmem:[#allocation3 + $0x158] sm:$0xff]
  %v6278 = vld [vmem:[#allocation3 + $0x160] sm:$0xff]
  %v6279 = vld [vmem:[#allocation3 + $0x168] sm:$0xff]
  %v6280 = vld [vmem:[#allocation3 + $0x170] sm:$0xff]
  %v6281 = vld [vmem:[#allocation3 + $0x178] sm:$0xff]
  %v6282 = vld [vmem:[#allocation3 + $0x180] sm:$0xff]
  %v6283 = vld [vmem:[#allocation3 + $0x188] sm:$0xff]
  %v6284 = vld [vmem:[#allocation3 + $0x190] sm:$0xff]
  %v6285 = vld [vmem:[#allocation3 + $0x198] sm:$0xff]
  %v6286 = vld [vmem:[#allocation3 + $0x1a0] sm:$0xff]
  %v6287 = vld [vmem:[#allocation3 + $0x1a8] sm:$0xff]
  %v6288 = vld [vmem:[#allocation3 + $0x1b8] sm:$0xff]
  %v6289 = vld [vmem:[#allocation3 + $0x1c0] sm:$0xff]
  %v6290 = vld [vmem:[#allocation3 + $0x1c8] sm:$0xff]
  %v6291 = vld [vmem:[#allocation3 + $0x1d0] sm:$0xff]
  %v6292 = vld [vmem:[#allocation3 + $0x1d8] sm:$0xff]
  %v6293 = vld [vmem:[#allocation3 + $0x1e0] sm:$0xff]
  %v6294 = vld [vmem:[#allocation3 + $0x1e8] sm:$0xff]
  %v6295 = vld [vmem:[#allocation3 + $0x1f0] sm:$0xff]
  %v6296 = vld [vmem:[#allocation3 + $0x1f8] sm:$0xff]
  %v6297 = vld [vmem:[#allocation3 + $0x200] sm:$0xff]
  %v6298 = vld [vmem:[#allocation3 + $0x208] sm:$0xff]
  %v6299 = vld [vmem:[#allocation3 + $0x210] sm:$0xff]
  %v6300 = vld [vmem:[#allocation3 + $0x218] sm:$0xff]
  %v6301 = vld [vmem:[#allocation3 + $0x220] sm:$0xff]
  %v6302 = vld [vmem:[#allocation3 + $0x228] sm:$0xff]
  %v6303 = vld [vmem:[#allocation3 + $0x230] sm:$0xff]
  %v6304 = vld [vmem:[#allocation3 + $0x238] sm:$0xff]
  %v6305 = vld [vmem:[#allocation3 + $0x240] sm:$0xff]
  %v6306 = vld [vmem:[#allocation3 + $0x248] sm:$0xff]
  %v6307 = vld [vmem:[#allocation3 + $0x250] sm:$0xff]
  %v6308 = vld [vmem:[#allocation3 + $0x258] sm:$0xff]
  %v6309 = vld [vmem:[#allocation3 + $0x260] sm:$0xff]
  %v6310 = vld [vmem:[#allocation3 + $0x268] sm:$0xff]
  %v6311 = vld [vmem:[#allocation3 + $0x270] sm:$0xff]
  %v6312 = vld [vmem:[#allocation3 + $0x278] sm:$0xff]
  %v6313 = vld [vmem:[#allocation3 + $0x280] sm:$0xff]
  %6392 = vrot.lane.b32.xlu0 %v6236, 32
  %v6393 = vpop.permute.xlu0 %6392
  %6394 = vrot.lane.b32.xlu0 %v6237, 32
  %v6395 = vpop.permute.xlu0 %6394
  %6396 = vrot.lane.b32.xlu0 %v6238, 32
  %v6397 = vpop.permute.xlu0 %6396
  %6398 = vrot.lane.b32.xlu0 %v6239, 32
  %v6399 = vpop.permute.xlu0 %6398
  %6400 = vrot.lane.b32.xlu0 %v6240, 32
  %v6401 = vpop.permute.xlu0 %6400
  %6402 = vrot.lane.b32.xlu0 %v6241, 32
  %v6403 = vpop.permute.xlu0 %6402
  %6404 = vrot.lane.b32.xlu0 %v6242, 32
  %v6405 = vpop.permute.xlu0 %6404
  %6406 = vrot.lane.b32.xlu0 %v6243, 32
  %v6407 = vpop.permute.xlu0 %6406
  %6408 = vrot.lane.b32.xlu0 %v6244, 32
  %v6409 = vpop.permute.xlu0 %6408
  %6410 = vrot.lane.b32.xlu0 %v6245, 32
  %v6411 = vpop.permute.xlu0 %6410
  %6412 = vrot.lane.b32.xlu0 %v6246, 32
  %v6413 = vpop.permute.xlu0 %6412
  %6414 = vrot.lane.b32.xlu0 %v6247, 32
  %v6415 = vpop.permute.xlu0 %6414
  %6416 = vrot.lane.b32.xlu0 %v6248, 32
  %v6417 = vpop.permute.xlu0 %6416
  %6418 = vrot.lane.b32.xlu0 %v6249, 32
  %v6419 = vpop.permute.xlu0 %6418
  %6420 = vrot.lane.b32.xlu0 %v6250, 32
  %v6421 = vpop.permute.xlu0 %6420
  %6422 = vrot.lane.b32.xlu0 %v6251, 32
  %v6423 = vpop.permute.xlu0 %6422
  %6424 = vrot.lane.b32.xlu0 %v6252, 32
  %v6425 = vpop.permute.xlu0 %6424
  %6426 = vrot.lane.b32.xlu0 %v6253, 32
  %v6427 = vpop.permute.xlu0 %6426
  %6428 = vrot.lane.b32.xlu0 %v6254, 32
  %v6429 = vpop.permute.xlu0 %6428
  %6430 = vrot.lane.b32.xlu0 %v6255, 32
  %v6431 = vpop.permute.xlu0 %6430
  %6432 = vrot.lane.b32.xlu0 %v6256, 32
  %v6433 = vpop.permute.xlu0 %6432
  %6434 = vrot.lane.b32.xlu0 %v6257, 32
  %v6435 = vpop.permute.xlu0 %6434
  %6436 = vrot.lane.b32.xlu0 %v6258, 32
  %v6437 = vpop.permute.xlu0 %6436
  %6438 = vrot.lane.b32.xlu0 %v6259, 32
  %v6439 = vpop.permute.xlu0 %6438
  %6440 = vrot.lane.b32.xlu0 %v6260, 32
  %v6441 = vpop.permute.xlu0 %6440
  %6442 = vrot.lane.b32.xlu0 %v6261, 32
  %v6443 = vpop.permute.xlu0 %6442
  %6444 = vrot.lane.b32.xlu0 %v6262, 32
  %v6445 = vpop.permute.xlu0 %6444
  %6446 = vrot.lane.b32.xlu0 %v6263, 32
  %v6447 = vpop.permute.xlu0 %6446
  %6448 = vrot.lane.b32.xlu0 %v6264, 32
  %v6449 = vpop.permute.xlu0 %6448
  %6450 = vrot.lane.b32.xlu0 %v6265, 32
  %v6451 = vpop.permute.xlu0 %6450
  %6452 = vrot.lane.b32.xlu0 %v6266, 32
  %v6453 = vpop.permute.xlu0 %6452
  %6454 = vrot.lane.b32.xlu0 %v6267, 32
  %v6455 = vpop.permute.xlu0 %6454
  %6456 = vrot.lane.b32.xlu0 %v6268, 32
  %v6457 = vpop.permute.xlu0 %6456
  %6458 = vrot.lane.b32.xlu0 %v6269, 32
  %v6459 = vpop.permute.xlu0 %6458
  %6460 = vrot.lane.b32.xlu0 %v6270, 32
  %v6461 = vpop.permute.xlu0 %6460
  %6462 = vrot.lane.b32.xlu0 %v6271, 32
  %v6463 = vpop.permute.xlu0 %6462
  %6464 = vrot.lane.b32.xlu0 %v6272, 32
  %v6465 = vpop.permute.xlu0 %6464
  %6466 = vrot.lane.b32.xlu0 %v6273, 32
  %v6467 = vpop.permute.xlu0 %6466
  %6468 = vrot.lane.b32.xlu0 %v6274, 32
  %v6469 = vpop.permute.xlu0 %6468
  %6470 = vrot.lane.b32.xlu0 %v6275, 32
  %v6471 = vpop.permute.xlu0 %6470
  %6472 = vrot.lane.b32.xlu0 %v6276, 32
  %v6473 = vpop.permute.xlu0 %6472
  %6474 = vrot.lane.b32.xlu0 %v6277, 32
  %v6475 = vpop.permute.xlu0 %6474
  %6476 = vrot.lane.b32.xlu0 %v6278, 32
  %v6477 = vpop.permute.xlu0 %6476
  %6478 = vrot.lane.b32.xlu0 %v6279, 32
  %v6479 = vpop.permute.xlu0 %6478
  %6480 = vrot.lane.b32.xlu0 %v6280, 32
  %v6481 = vpop.permute.xlu0 %6480
  %6482 = vrot.lane.b32.xlu0 %v6281, 32
  %v6483 = vpop.permute.xlu0 %6482
  %6484 = vrot.lane.b32.xlu0 %v6282, 32
  %v6485 = vpop.permute.xlu0 %6484
  %6486 = vrot.lane.b32.xlu0 %v6283, 32
  %v6487 = vpop.permute.xlu0 %6486
  %6488 = vrot.lane.b32.xlu0 %v6284, 32
  %v6489 = vpop.permute.xlu0 %6488
  %6490 = vrot.lane.b32.xlu0 %v6285, 32
  %v6491 = vpop.permute.xlu0 %6490
  %6492 = vrot.lane.b32.xlu0 %v6286, 32
  %v6493 = vpop.permute.xlu0 %6492
  %6494 = vrot.lane.b32.xlu0 %v6287, 32
  %v6495 = vpop.permute.xlu0 %6494
  %6496 = vrot.lane.b32.xlu0 %v6288, 32
  %v6497 = vpop.permute.xlu0 %6496
  %6498 = vrot.lane.b32.xlu0 %v6289, 32
  %v6499 = vpop.permute.xlu0 %6498
  %6500 = vrot.lane.b32.xlu0 %v6290, 32
  %v6501 = vpop.permute.xlu0 %6500
  %6502 = vrot.lane.b32.xlu0 %v6291, 32
  %v6503 = vpop.permute.xlu0 %6502
  %6504 = vrot.lane.b32.xlu0 %v6292, 32
  %v6505 = vpop.permute.xlu0 %6504
  %6506 = vrot.lane.b32.xlu0 %v6293, 32
  %v6507 = vpop.permute.xlu0 %6506
  %6508 = vrot.lane.b32.xlu0 %v6294, 32
  %v6509 = vpop.permute.xlu0 %6508
  %6510 = vrot.lane.b32.xlu0 %v6295, 32
  %v6511 = vpop.permute.xlu0 %6510
  %6512 = vrot.lane.b32.xlu0 %v6296, 32
  %v6513 = vpop.permute.xlu0 %6512
  %6514 = vrot.lane.b32.xlu0 %v6297, 32
  %v6515 = vpop.permute.xlu0 %6514
  %6516 = vrot.lane.b32.xlu0 %v6298, 32
  %v6517 = vpop.permute.xlu0 %6516
  %6518 = vrot.lane.b32.xlu0 %v6299, 32
  %v6519 = vpop.permute.xlu0 %6518
  %6520 = vrot.lane.b32.xlu0 %v6300, 32
  %v6521 = vpop.permute.xlu0 %6520
  %6522 = vrot.lane.b32.xlu0 %v6301, 32
  %v6523 = vpop.permute.xlu0 %6522
  %6524 = vrot.lane.b32.xlu0 %v6302, 32
  %v6525 = vpop.permute.xlu0 %6524
  %6526 = vrot.lane.b32.xlu0 %v6303, 32
  %v6527 = vpop.permute.xlu0 %6526
  %6528 = vrot.lane.b32.xlu0 %v6304, 32
  %v6529 = vpop.permute.xlu0 %6528
  %6530 = vrot.lane.b32.xlu0 %v6305, 32
  %v6531 = vpop.permute.xlu0 %6530
  %6532 = vrot.lane.b32.xlu0 %v6306, 32
  %v6533 = vpop.permute.xlu0 %6532
  %6534 = vrot.lane.b32.xlu0 %v6307, 32
  %v6535 = vpop.permute.xlu0 %6534
  %6536 = vrot.lane.b32.xlu0 %v6308, 32
  %v6537 = vpop.permute.xlu0 %6536
  %6538 = vrot.lane.b32.xlu0 %v6309, 32
  %v6539 = vpop.permute.xlu0 %6538
  %6540 = vrot.lane.b32.xlu0 %v6310, 32
  %v6541 = vpop.permute.xlu0 %6540
  %6542 = vrot.lane.b32.xlu0 %v6311, 32
  %v6543 = vpop.permute.xlu0 %6542
  %6544 = vrot.lane.b32.xlu0 %v6312, 32
  %v6545 = vpop.permute.xlu0 %6544
  %6546 = vrot.lane.b32.xlu0 %v6313, 32
  %v6547 = vpop.permute.xlu0 %6546
  %v6548 = vsel %vm21, %v6393, %v6395
  %v6549 = vsel %vm21, %v6395, %v6397
  %v6550 = vsel %vm21, %v6397, %v6399
  %v6551 = vsel %vm21, %v6399, %v6401
  %v6552 = vsel %vm21, %v6401, %v6403
  %v6553 = vsel %vm21, %v6403, %v6405
  %v6554 = vsel %vm21, %v6405, %v6407
  %v6555 = vsel %vm21, %v6407, %v6409
  %v6556 = vsel %vm21, %v6409, %v6411
  %v6557 = vsel %vm21, %v6411, %v6413
  %v6558 = vsel %vm21, %v6413, %v6415
  %v6559 = vsel %vm21, %v6415, %v6417
  %v6560 = vsel %vm21, %v6417, %v6419
  %v6561 = vsel %vm21, %v6419, %v6421
  %v6562 = vsel %vm21, %v6421, %v6423
  %v6563 = vsel %vm21, %v6423, %v6425
  %v6564 = vsel %vm21, %v6425, %v6427
  %v6565 = vsel %vm21, %v6427, %v6429
  %v6566 = vsel %vm21, %v6429, %v6431
  %v6567 = vsel %vm21, %v6431, %v6433
  %v6568 = vsel %vm21, %v6433, %v6435
  %v6569 = vsel %vm21, %v6435, %v6437
  %v6570 = vsel %vm21, %v6437, %v6439
  %v6571 = vsel %vm21, %v6439, %v6441
  %v6572 = vsel %vm21, %v6441, %v6443
  %v6573 = vsel %vm21, %v6445, %v6447
  %v6574 = vsel %vm21, %v6447, %v6449
  %v6575 = vsel %vm21, %v6449, %v6451
  %v6576 = vsel %vm21, %v6451, %v6453
  %v6577 = vsel %vm21, %v6453, %v6455
  %v6578 = vsel %vm21, %v6455, %v6457
  %v6579 = vsel %vm21, %v6457, %v6459
  %v6580 = vsel %vm21, %v6459, %v6461
  %v6581 = vsel %vm21, %v6461, %v6463
  %v6582 = vsel %vm21, %v6463, %v6465
  %v6583 = vsel %vm21, %v6465, %v6467
  %v6584 = vsel %vm21, %v6467, %v6469
  %v6585 = vsel %vm21, %v6469, %v6471
  %v6586 = vsel %vm21, %v6471, %v6473
  %v6587 = vsel %vm21, %v6473, %v6475
  %v6588 = vsel %vm21, %v6475, %v6477
  %v6589 = vsel %vm21, %v6477, %v6479
  %v6590 = vsel %vm21, %v6479, %v6481
  %v6591 = vsel %vm21, %v6481, %v6483
  %v6592 = vsel %vm21, %v6483, %v6485
  %v6593 = vsel %vm21, %v6485, %v6487
  %v6594 = vsel %vm21, %v6487, %v6489
  %v6595 = vsel %vm21, %v6489, %v6491
  %v6596 = vsel %vm21, %v6491, %v6493
  %v6597 = vsel %vm21, %v6493, %v6495
  %v6598 = vsel %vm21, %v6497, %v6499
  %v6599 = vsel %vm21, %v6499, %v6501
  %v6600 = vsel %vm21, %v6501, %v6503
  %v6601 = vsel %vm21, %v6503, %v6505
  %v6602 = vsel %vm21, %v6505, %v6507
  %v6603 = vsel %vm21, %v6507, %v6509
  %v6604 = vsel %vm21, %v6509, %v6511
  %v6605 = vsel %vm21, %v6511, %v6513
  %v6606 = vsel %vm21, %v6513, %v6515
  %v6607 = vsel %vm21, %v6515, %v6517
  %v6608 = vsel %vm21, %v6517, %v6519
  %v6609 = vsel %vm21, %v6519, %v6521
  %v6610 = vsel %vm21, %v6521, %v6523
  %v6611 = vsel %vm21, %v6523, %v6525
  %v6612 = vsel %vm21, %v6525, %v6527
  %v6613 = vsel %vm21, %v6527, %v6529
  %v6614 = vsel %vm21, %v6529, %v6531
  %v6615 = vsel %vm21, %v6531, %v6533
  %v6616 = vsel %vm21, %v6533, %v6535
  %v6617 = vsel %vm21, %v6535, %v6537
  %v6618 = vsel %vm21, %v6537, %v6539
  %v6619 = vsel %vm21, %v6539, %v6541
  %v6620 = vsel %vm21, %v6541, %v6543
  %v6621 = vsel %vm21, %v6543, %v6545
  %v6622 = vsel %vm21, %v6545, %v6547
  %v6699 = vsel %vm2612, %v6224, 0
  %v6702 = vsel %vm2612, %v6225, 0
  %v6705 = vsel %vm2612, %v6226, 0
  %v6708 = vsel %vm2612, %v6227, 0
  %v6711 = vsel %vm2612, %v6228, 0
  %v6714 = vsel %vm2612, %v6229, 0
  %v6717 = vsel %vm2612, %v6230, 0
  %v6720 = vsel %vm2612, %v6231, 0
  %v6723 = vsel %vm2612, %v6232, 0
  %v6726 = vsel %vm2612, %v6233, 0
  %v6729 = vsel %vm2612, %v6234, 0
  %v6732 = vsel %vm2612, %v6235, 0
  %6734 = vmatprep.subr.mxu0 %v6549
  %6735 = vmatpush1.msra.mxu0 %v6548
  %6736 = vmatprep.subr.mxu0 %v6574
  %6737 = vmatpush1.msra.mxu0 %v6573
  %6738 = vmatprep.subr.mxu0 %v6599
  %6739 = vmatpush1.msra.mxu0 %v6598
  %6740 = vmatprep.subr.mxu0 0.0
  %6741 = vmatpush1.msra.mxu0 0.0
  %6742 = vmatprep.subr.mxu0 0.0
  %6743 = vmatpush1.msra.mxu0 0.0
  %6744 = vmatprep.subr.mxu0 0.0
  %6745 = vmatpush1.msra.mxu0 0.0
  %6746 = vmatprep.subr.mxu0 0.0
  %6747 = vmatpush1.msra.mxu0 0.0
  %6748 = vmatprep.subr.mxu0 0.0
  %6749 = vmatpush1.msra.mxu0 0.0
  %6750 = vmatprep.subr.mxu0 0.0
  %6751 = vmatpush1.msra.mxu0 0.0
  %6752 = vmatprep.subr.mxu0 0.0
  %6753 = vmatpush1.msra.mxu0 0.0
  %6754 = vmatprep.subr.mxu0 0.0
  %6755 = vmatpush1.msra.mxu0 0.0
  %6756 = vmatprep.subr.mxu0 0.0
  %6757 = vmatpush1.msra.mxu0 0.0
  %6758 = vmatprep.subr.mxu0 0.0
  %6759 = vmatpush1.msra.mxu0 0.0
  %6760 = vmatprep.subr.mxu0 0.0
  %6761 = vmatpush1.msra.mxu0 0.0
  %6762 = vmatprep.subr.mxu0 0.0
  %6763 = vmatpush1.msra.mxu0 0.0
  %6764 = vmatprep.subr.mxu0 0.0
  %6765 = vmatpush1.msra.mxu0 0.0
  %6766 = vmatprep.subr.mxu0 0.0
  %6767 = vmatpush1.msra.mxu0 0.0
  %6768 = vmatprep.subr.mxu0 0.0
  %6769 = vmatpush1.msra.mxu0 0.0
  %6770 = vmatprep.subr.mxu0 0.0
  %6771 = vmatpush1.msra.mxu0 0.0
  %6772 = vmatprep.subr.mxu0 0.0
  %6773 = vmatpush1.msra.mxu0 0.0
  %6774 = vmatprep.subr.mxu0 0.0
  %6775 = vmatpush1.msra.mxu0 0.0
  %6776 = vmatprep.subr.mxu0 0.0
  %6777 = vmatpush1.msra.mxu0 0.0
  %6778 = vmatprep.subr.mxu0 0.0
  %6779 = vmatpush1.msra.mxu0 0.0
  %6780 = vmatprep.subr.mxu0 0.0
  %6781 = vmatpush1.msra.mxu0 0.0
  %6782 = vmatprep.subr.mxu0 0.0
  %6783 = vmatpush1.msra.mxu0 0.0
  %6784 = vmatprep.subr.mxu0 0.0
  %6785 = vmatpush1.msra.mxu0 0.0
  %6786 = vmatprep.subr.mxu0 0.0
  %6787 = vmatpush1.msra.mxu0 0.0
  %6788 = vmatprep.subr.mxu0 0.0
  %6789 = vmatpush1.msra.mxu0 0.0
  %6790 = vmatprep.subr.mxu0 0.0
  %6791 = vmatpush1.msra.mxu0 0.0
  %6792 = vmatprep.subr.mxu0 0.0
  %6793 = vmatpush1.msra.mxu0 0.0
  %6794 = vmatprep.subr.mxu0 0.0
  %6795 = vmatpush1.msra.mxu0 0.0
  %6796 = vmatprep.subr.mxu0 0.0
  %6797 = vmatpush1.msra.mxu0 0.0
  %6798 = vmatprep.mubr.f32.mxu0 0.0
  %6799 = vmatmul.mubr.f32.gmra.mrb[0].mxu0 %v6699
  %v6800 = vpop.f32.mrb[0].mxu0
  %v6801 = vadd.f32 0.0, %v6800
  %v6802 = vpop.f32.mrb[0].mxu0
  %v6803 = vadd.f32 0.0, %v6802
  %6804 = vmatprep.mubr.f32.mxu0 0.0
  %6805 = vmatmul.mubr.f32.gmra.mrb[0].mxu0 %v6702
  %v6806 = vpop.f32.mrb[0].mxu0
  %v6807 = vadd.f32 0.0, %v6806
  %v6808 = vpop.f32.mrb[0].mxu0
  %v6809 = vadd.f32 0.0, %v6808
  %6810 = vmatprep.mubr.f32.mxu0 0.0
  %6811 = vmatmul.mubr.f32.gmra.mrb[0].mxu0 %v6705
  %v6812 = vpop.f32.mrb[0].mxu0
  %v6813 = vadd.f32 0.0, %v6812
  %v6814 = vpop.f32.mrb[0].mxu0
  %v6815 = vadd.f32 0.0, %v6814
  %6816 = vmatprep.mubr.f32.mxu0 0.0
  %6817 = vmatmul.mubr.f32.gmra.mrb[0].mxu0 %v6708
  %v6818 = vpop.f32.mrb[0].mxu0
  %v6819 = vadd.f32 0.0, %v6818
  %v6820 = vpop.f32.mrb[0].mxu0
  %v6821 = vadd.f32 0.0, %v6820
  %6822 = vmatprep.mubr.f32.mxu0 0.0
  %6823 = vmatmul.mubr.f32.gmra.mrb[0].mxu0 %v6711
  %v6824 = vpop.f32.mrb[0].mxu0
  %v6825 = vadd.f32 0.0, %v6824
  %v6826 = vpop.f32.mrb[0].mxu0
  %v6827 = vadd.f32 0.0, %v6826
  %6828 = vmatprep.mubr.f32.mxu0 0.0
  %6829 = vmatmul.mubr.f32.gmra.mrb[0].mxu0 %v6714
  %v6830 = vpop.f32.mrb[0].mxu0
  %v6831 = vadd.f32 0.0, %v6830
  %v6832 = vpop.f32.mrb[0].mxu0
  %v6833 = vadd.f32 0.0, %v6832
  %6834 = vmatprep.mubr.f32.mxu0 0.0
  %6835 = vmatmul.mubr.f32.gmra.mrb[0].mxu0 %v6717
  %v6836 = vpop.f32.mrb[0].mxu0
  %v6837 = vadd.f32 0.0, %v6836
  %v6838 = vpop.f32.mrb[0].mxu0
  %v6839 = vadd.f32 0.0, %v6838
  %6840 = vmatprep.mubr.f32.mxu0 0.0
  %6841 = vmatmul.mubr.f32.gmra.mrb[0].mxu0 %v6720
  %v6842 = vpop.f32.mrb[0].mxu0
  %v6843 = vadd.f32 0.0, %v6842
  %v6844 = vpop.f32.mrb[0].mxu0
  %v6845 = vadd.f32 0.0, %v6844
  %6846 = vmatprep.mubr.f32.mxu0 0.0
  %6847 = vmatmul.mubr.f32.gmra.mrb[0].mxu0 %v6723
  %v6848 = vpop.f32.mrb[0].mxu0
  %v6849 = vadd.f32 0.0, %v6848
  %v6850 = vpop.f32.mrb[0].mxu0
  %v6851 = vadd.f32 0.0, %v6850
  %6852 = vmatprep.mubr.f32.mxu0 0.0
  %6853 = vmatmul.mubr.f32.gmra.mrb[0].mxu0 %v6726
  %v6854 = vpop.f32.mrb[0].mxu0
  %v6855 = vadd.f32 0.0, %v6854
  %v6856 = vpop.f32.mrb[0].mxu0
  %v6857 = vadd.f32 0.0, %v6856
  %6858 = vmatprep.mubr.f32.mxu0 0.0
  %6859 = vmatmul.mubr.f32.gmra.mrb[0].mxu0 %v6729
  %v6860 = vpop.f32.mrb[0].mxu0
  %v6861 = vadd.f32 0.0, %v6860
  %v6862 = vpop.f32.mrb[0].mxu0
  %v6863 = vadd.f32 0.0, %v6862
  %6864 = vmatprep.mubr.f32.mxu0 0.0
  %6865 = vmatmul.mubr.f32.gmra.mrb[0].mxu0 %v6732
  %v6866 = vpop.f32.mrb[0].mxu0
  %v6867 = vadd.f32 0.0, %v6866
  %v6868 = vpop.f32.mrb[0].mxu0
  %v6869 = vadd.f32 0.0, %v6868
  %6870 = vdwg.mxu0
  %6871 = vmatprep.subr.mxu0 %v6551
  %6872 = vmatpush1.msra.mxu0 %v6550
  %6873 = vmatprep.subr.mxu0 %v6576
  %6874 = vmatpush1.msra.mxu0 %v6575
  %6875 = vmatprep.subr.mxu0 %v6601
  %6876 = vmatpush1.msra.mxu0 %v6600
  %6877 = vmatprep.subr.mxu0 0.0
  %6878 = vmatpush1.msra.mxu0 0.0
  %6879 = vmatprep.subr.mxu0 0.0
  %6880 = vmatpush1.msra.mxu0 0.0
  %6881 = vmatprep.subr.mxu0 0.0
  %6882 = vmatpush1.msra.mxu0 0.0
  %6883 = vmatprep.subr.mxu0 0.0
  %6884 = vmatpush1.msra.mxu0 0.0
  %6885 = vmatprep.subr.mxu0 0.0
  %6886 = vmatpush1.msra.mxu0 0.0
  %6887 = vmatprep.subr.mxu0 0.0
  %6888 = vmatpush1.msra.mxu0 0.0
  %6889 = vmatprep.subr.mxu0 0.0
  %6890 = vmatpush1.msra.mxu0 0.0
  %6891 = vmatprep.subr.mxu0 0.0
  %6892 = vmatpush1.msra.mxu0 0.0
  %6893 = vmatprep.subr.mxu0 0.0
  %6894 = vmatpush1.msra.mxu0 0.0
  %6895 = vmatprep.subr.mxu0 0.0
  %6896 = vmatpush1.msra.mxu0 0.0
  %6897 = vmatprep.subr.mxu0 0.0
  %6898 = vmatpush1.msra.mxu0 0.0
  %6899 = vmatprep.subr.mxu0 0.0
  %6900 = vmatpush1.msra.mxu0 0.0
  %6901 = vmatprep.subr.mxu0 0.0
  %6902 = vmatpush1.msra.mxu0 0.0
  %6903 = vmatprep.subr.mxu0 0.0
  %6904 = vmatpush1.msra.mxu0 0.0
  %6905 = vmatprep.subr.mxu0 0.0
  %6906 = vmatpush1.msra.mxu0 0.0
  %6907 = vmatprep.subr.mxu0 0.0
  %6908 = vmatpush1.msra.mxu0 0.0
  %6909 = vmatprep.subr.mxu0 0.0
  %6910 = vmatpush1.msra.mxu0 0.0
  %6911 = vmatprep.subr.mxu0 0.0
  %6912 = vmatpush1.msra.mxu0 0.0
  %6913 = vmatprep.subr.mxu0 0.0
  %6914 = vmatpush1.msra.mxu0 0.0
  %6915 = vmatprep.subr.mxu0 0.0
  %6916 = vmatpush1.msra.mxu0 0.0
  %6917 = vmatprep.subr.mxu0 0.0
  %6918 = vmatpush1.msra.mxu0 0.0
  %6919 = vmatprep.subr.mxu0 0.0
  %6920 = vmatpush1.msra.mxu0 0.0
  %6921 = vmatprep.subr.mxu0 0.0
  %6922 = vmatpush1.msra.mxu0 0.0
  %6923 = vmatprep.subr.mxu0 0.0
  %6924 = vmatpush1.msra.mxu0 0.0
  %6925 = vmatprep.subr.mxu0 0.0
  %6926 = vmatpush1.msra.mxu0 0.0
  %6927 = vmatprep.subr.mxu0 0.0
  %6928 = vmatpush1.msra.mxu0 0.0
  %6929 = vmatprep.subr.mxu0 0.0
  %6930 = vmatpush1.msra.mxu0 0.0
  %6931 = vmatprep.subr.mxu0 0.0
  %6932 = vmatpush1.msra.mxu0 0.0
  %6933 = vmatprep.subr.mxu0 0.0
  %6934 = vmatpush1.msra.mxu0 0.0
  %6935 = vmatprep.mubr.f32.mxu0 0.0
  %6936 = vmatmul.mubr.f32.gmra.mrb[0].mxu0 %v6699
  %v6937 = vpop.f32.mrb[0].mxu0
  %v6938 = vadd.f32 0.0, %v6937
  %v6939 = vpop.f32.mrb[0].mxu0
  %v6940 = vadd.f32 0.0, %v6939
  %6941 = vmatprep.mubr.f32.mxu0 0.0
  %6942 = vmatmul.mubr.f32.gmra.mrb[0].mxu0 %v6702
  %v6943 = vpop.f32.mrb[0].mxu0
  %v6944 = vadd.f32 0.0, %v6943
  %v6945 = vpop.f32.mrb[0].mxu0
  %v6946 = vadd.f32 0.0, %v6945
  %6947 = vmatprep.mubr.f32.mxu0 0.0
  %6948 = vmatmul.mubr.f32.gmra.mrb[0].mxu0 %v6705
  %v6949 = vpop.f32.mrb[0].mxu0
  %v6950 = vadd.f32 0.0, %v6949
  %v6951 = vpop.f32.mrb[0].mxu0
  %v6952 = vadd.f32 0.0, %v6951
  %6953 = vmatprep.mubr.f32.mxu0 0.0
  %6954 = vmatmul.mubr.f32.gmra.mrb[0].mxu0 %v6708
  %v6955 = vpop.f32.mrb[0].mxu0
  %v6956 = vadd.f32 0.0, %v6955
  %v6957 = vpop.f32.mrb[0].mxu0
  %v6958 = vadd.f32 0.0, %v6957
  %6959 = vmatprep.mubr.f32.mxu0 0.0
  %6960 = vmatmul.mubr.f32.gmra.mrb[0].mxu0 %v6711
  %v6961 = vpop.f32.mrb[0].mxu0
  %v6962 = vadd.f32 0.0, %v6961
  %v6963 = vpop.f32.mrb[0].mxu0
  %v6964 = vadd.f32 0.0, %v6963
  %6965 = vmatprep.mubr.f32.mxu0 0.0
  %6966 = vmatmul.mubr.f32.gmra.mrb[0].mxu0 %v6714
  %v6967 = vpop.f32.mrb[0].mxu0
  %v6968 = vadd.f32 0.0, %v6967
  %v6969 = vpop.f32.mrb[0].mxu0
  %v6970 = vadd.f32 0.0, %v6969
  %6971 = vmatprep.mubr.f32.mxu0 0.0
  %6972 = vmatmul.mubr.f32.gmra.mrb[0].mxu0 %v6717
  %v6973 = vpop.f32.mrb[0].mxu0
  %v6974 = vadd.f32 0.0, %v6973
  %v6975 = vpop.f32.mrb[0].mxu0
  %v6976 = vadd.f32 0.0, %v6975
  %6977 = vmatprep.mubr.f32.mxu0 0.0
  %6978 = vmatmul.mubr.f32.gmra.mrb[0].mxu0 %v6720
  %v6979 = vpop.f32.mrb[0].mxu0
  %v6980 = vadd.f32 0.0, %v6979
  %v6981 = vpop.f32.mrb[0].mxu0
  %v6982 = vadd.f32 0.0, %v6981
  %6983 = vmatprep.mubr.f32.mxu0 0.0
  %6984 = vmatmul.mubr.f32.gmra.mrb[0].mxu0 %v6723
  %v6985 = vpop.f32.mrb[0].mxu0
  %v6986 = vadd.f32 0.0, %v6985
  %v6987 = vpop.f32.mrb[0].mxu0
  %v6988 = vadd.f32 0.0, %v6987
  %6989 = vmatprep.mubr.f32.mxu0 0.0
  %6990 = vmatmul.mubr.f32.gmra.mrb[0].mxu0 %v6726
  %v6991 = vpop.f32.mrb[0].mxu0
  %v6992 = vadd.f32 0.0, %v6991
  %v6993 = vpop.f32.mrb[0].mxu0
  %v6994 = vadd.f32 0.0, %v6993
  %6995 = vmatprep.mubr.f32.mxu0 0.0
  %6996 = vmatmul.mubr.f32.gmra.mrb[0].mxu0 %v6729
  %v6997 = vpop.f32.mrb[0].mxu0
  %v6998 = vadd.f32 0.0, %v6997
  %v6999 = vpop.f32.mrb[0].mxu0
  %v7000 = vadd.f32 0.0, %v6999
  %7001 = vmatprep.mubr.f32.mxu0 0.0
  %7002 = vmatmul.mubr.f32.gmra.mrb[0].mxu0 %v6732
  %v7003 = vpop.f32.mrb[0].mxu0
  %v7004 = vadd.f32 0.0, %v7003
  %v7005 = vpop.f32.mrb[0].mxu0
  %v7006 = vadd.f32 0.0, %v7005
  %7007 = vdwg.mxu0
  %7008 = vmatprep.subr.mxu0 %v6553
  %7009 = vmatpush1.msra.mxu0 %v6552
  %7010 = vmatprep.subr.mxu0 %v6578
  %7011 = vmatpush1.msra.mxu0 %v6577
  %7012 = vmatprep.subr.mxu0 %v6603
  %7013 = vmatpush1.msra.mxu0 %v6602
  %7014 = vmatprep.subr.mxu0 0.0
  %7015 = vmatpush1.msra.mxu0 0.0
  %7016 = vmatprep.subr.mxu0 0.0
  %7017 = vmatpush1.msra.mxu0 0.0
  %7018 = vmatprep.subr.mxu0 0.0
  %7019 = vmatpush1.msra.mxu0 0.0
  %7020 = vmatprep.subr.mxu0 0.0
  %7021 = vmatpush1.msra.mxu0 0.0
  %7022 = vmatprep.subr.mxu0 0.0
  %7023 = vmatpush1.msra.mxu0 0.0
  %7024 = vmatprep.subr.mxu0 0.0
  %7025 = vmatpush1.msra.mxu0 0.0
  %7026 = vmatprep.subr.mxu0 0.0
  %7027 = vmatpush1.msra.mxu0 0.0
  %7028 = vmatprep.subr.mxu0 0.0
  %7029 = vmatpush1.msra.mxu0 0.0
  %7030 = vmatprep.subr.mxu0 0.0
  %7031 = vmatpush1.msra.mxu0 0.0
  %7032 = vmatprep.subr.mxu0 0.0
  %7033 = vmatpush1.msra.mxu0 0.0
  %7034 = vmatprep.subr.mxu0 0.0
  %7035 = vmatpush1.msra.mxu0 0.0
  %7036 = vmatprep.subr.mxu0 0.0
  %7037 = vmatpush1.msra.mxu0 0.0
  %7038 = vmatprep.subr.mxu0 0.0
  %7039 = vmatpush1.msra.mxu0 0.0
  %7040 = vmatprep.subr.mxu0 0.0
  %7041 = vmatpush1.msra.mxu0 0.0
  %7042 = vmatprep.subr.mxu0 0.0
  %7043 = vmatpush1.msra.mxu0 0.0
  %7044 = vmatprep.subr.mxu0 0.0
  %7045 = vmatpush1.msra.mxu0 0.0
  %7046 = vmatprep.subr.mxu0 0.0
  %7047 = vmatpush1.msra.mxu0 0.0
  %7048 = vmatprep.subr.mxu0 0.0
  %7049 = vmatpush1.msra.mxu0 0.0
  %7050 = vmatprep.subr.mxu0 0.0
  %7051 = vmatpush1.msra.mxu0 0.0
  %7052 = vmatprep.subr.mxu0 0.0
  %7053 = vmatpush1.msra.mxu0 0.0
  %7054 = vmatprep.subr.mxu0 0.0
  %7055 = vmatpush1.msra.mxu0 0.0
  %7056 = vmatprep.subr.mxu0 0.0
  %7057 = vmatpush1.msra.mxu0 0.0
  %7058 = vmatprep.subr.mxu0 0.0
  %7059 = vmatpush1.msra.mxu0 0.0
  %7060 = vmatprep.subr.mxu0 0.0
  %7061 = vmatpush1.msra.mxu0 0.0
  %7062 = vmatprep.subr.mxu0 0.0
  %7063 = vmatpush1.msra.mxu0 0.0
  %7064 = vmatprep.subr.mxu0 0.0
  %7065 = vmatpush1.msra.mxu0 0.0
  %7066 = vmatprep.subr.mxu0 0.0
  %7067 = vmatpush1.msra.mxu0 0.0
  %7068 = vmatprep.subr.mxu0 0.0
  %7069 = vmatpush1.msra.mxu0 0.0
  %7070 = vmatprep.subr.mxu0 0.0
  %7071 = vmatpush1.msra.mxu0 0.0
  %7072 = vmatprep.mubr.f32.mxu0 0.0
  %7073 = vmatmul.mubr.f32.gmra.mrb[0].mxu0 %v6699
  %v7074 = vpop.f32.mrb[0].mxu0
  %v7075 = vadd.f32 0.0, %v7074
  %v7076 = vpop.f32.mrb[0].mxu0
  %v7077 = vadd.f32 0.0, %v7076
  %7078 = vmatprep.mubr.f32.mxu0 0.0
  %7079 = vmatmul.mubr.f32.gmra.mrb[0].mxu0 %v6702
  %v7080 = vpop.f32.mrb[0].mxu0
  %v7081 = vadd.f32 0.0, %v7080
  %v7082 = vpop.f32.mrb[0].mxu0
  %v7083 = vadd.f32 0.0, %v7082
  %7084 = vmatprep.mubr.f32.mxu0 0.0
  %7085 = vmatmul.mubr.f32.gmra.mrb[0].mxu0 %v6705
  %v7086 = vpop.f32.mrb[0].mxu0
  %v7087 = vadd.f32 0.0, %v7086
  %v7088 = vpop.f32.mrb[0].mxu0
  %v7089 = vadd.f32 0.0, %v7088
  %7090 = vmatprep.mubr.f32.mxu0 0.0
  %7091 = vmatmul.mubr.f32.gmra.mrb[0].mxu0 %v6708
  %v7092 = vpop.f32.mrb[0].mxu0
  %v7093 = vadd.f32 0.0, %v7092
  %v7094 = vpop.f32.mrb[0].mxu0
  %v7095 = vadd.f32 0.0, %v7094
  %7096 = vmatprep.mubr.f32.mxu0 0.0
  %7097 = vmatmul.mubr.f32.gmra.mrb[0].mxu0 %v6711
  %v7098 = vpop.f32.mrb[0].mxu0
  %v7099 = vadd.f32 0.0, %v7098
  %v7100 = vpop.f32.mrb[0].mxu0
  %v7101 = vadd.f32 0.0, %v7100
  %7102 = vmatprep.mubr.f32.mxu0 0.0
  %7103 = vmatmul.mubr.f32.gmra.mrb[0].mxu0 %v6714
  %v7104 = vpop.f32.mrb[0].mxu0
  %v7105 = vadd.f32 0.0, %v7104
  %v7106 = vpop.f32.mrb[0].mxu0
  %v7107 = vadd.f32 0.0, %v7106
  %7108 = vmatprep.mubr.f32.mxu0 0.0
  %7109 = vmatmul.mubr.f32.gmra.mrb[0].mxu0 %v6717
  %v7110 = vpop.f32.mrb[0].mxu0
  %v7111 = vadd.f32 0.0, %v7110
  %v7112 = vpop.f32.mrb[0].mxu0
  %v7113 = vadd.f32 0.0, %v7112
  %7114 = vmatprep.mubr.f32.mxu0 0.0
  %7115 = vmatmul.mubr.f32.gmra.mrb[0].mxu0 %v6720
  %v7116 = vpop.f32.mrb[0].mxu0
  %v7117 = vadd.f32 0.0, %v7116
  %v7118 = vpop.f32.mrb[0].mxu0
  %v7119 = vadd.f32 0.0, %v7118
  %7120 = vmatprep.mubr.f32.mxu0 0.0
  %7121 = vmatmul.mubr.f32.gmra.mrb[0].mxu0 %v6723
  %v7122 = vpop.f32.mrb[0].mxu0
  %v7123 = vadd.f32 0.0, %v7122
  %v7124 = vpop.f32.mrb[0].mxu0
  %v7125 = vadd.f32 0.0, %v7124
  %7126 = vmatprep.mubr.f32.mxu0 0.0
  %7127 = vmatmul.mubr.f32.gmra.mrb[0].mxu0 %v6726
  %v7128 = vpop.f32.mrb[0].mxu0
  %v7129 = vadd.f32 0.0, %v7128
  %v7130 = vpop.f32.mrb[0].mxu0
  %v7131 = vadd.f32 0.0, %v7130
  %7132 = vmatprep.mubr.f32.mxu0 0.0
  %7133 = vmatmul.mubr.f32.gmra.mrb[0].mxu0 %v6729
  %v7134 = vpop.f32.mrb[0].mxu0
  %v7135 = vadd.f32 0.0, %v7134
  %v7136 = vpop.f32.mrb[0].mxu0
  %v7137 = vadd.f32 0.0, %v7136
  %7138 = vmatprep.mubr.f32.mxu0 0.0
  %7139 = vmatmul.mubr.f32.gmra.mrb[0].mxu0 %v6732
  %v7140 = vpop.f32.mrb[0].mxu0
  %v7141 = vadd.f32 0.0, %v7140
  %v7142 = vpop.f32.mrb[0].mxu0
  %v7143 = vadd.f32 0.0, %v7142
  %7144 = vdwg.mxu0
  %7145 = vmatprep.subr.mxu0 %v6555
  %7146 = vmatpush1.msra.mxu0 %v6554
  %7147 = vmatprep.subr.mxu0 %v6580
  %7148 = vmatpush1.msra.mxu0 %v6579
  %7149 = vmatprep.subr.mxu0 %v6605
  %7150 = vmatpush1.msra.mxu0 %v6604
  %7151 = vmatprep.subr.mxu0 0.0
  %7152 = vmatpush1.msra.mxu0 0.0
  %7153 = vmatprep.subr.mxu0 0.0
  %7154 = vmatpush1.msra.mxu0 0.0
  %7155 = vmatprep.subr.mxu0 0.0
  %7156 = vmatpush1.msra.mxu0 0.0
  %7157 = vmatprep.subr.mxu0 0.0
  %7158 = vmatpush1.msra.mxu0 0.0
  %7159 = vmatprep.subr.mxu0 0.0
  %7160 = vmatpush1.msra.mxu0 0.0
  %7161 = vmatprep.subr.mxu0 0.0
  %7162 = vmatpush1.msra.mxu0 0.0
  %7163 = vmatprep.subr.mxu0 0.0
  %7164 = vmatpush1.msra.mxu0 0.0
  %7165 = vmatprep.subr.mxu0 0.0
  %7166 = vmatpush1.msra.mxu0 0.0
  %7167 = vmatprep.subr.mxu0 0.0
  %7168 = vmatpush1.msra.mxu0 0.0
  %7169 = vmatprep.subr.mxu0 0.0
  %7170 = vmatpush1.msra.mxu0 0.0
  %7171 = vmatprep.subr.mxu0 0.0
  %7172 = vmatpush1.msra.mxu0 0.0
  %7173 = vmatprep.subr.mxu0 0.0
  %7174 = vmatpush1.msra.mxu0 0.0
  %7175 = vmatprep.subr.mxu0 0.0
  %7176 = vmatpush1.msra.mxu0 0.0
  %7177 = vmatprep.subr.mxu0 0.0
  %7178 = vmatpush1.msra.mxu0 0.0
  %7179 = vmatprep.subr.mxu0 0.0
  %7180 = vmatpush1.msra.mxu0 0.0
  %7181 = vmatprep.subr.mxu0 0.0
  %7182 = vmatpush1.msra.mxu0 0.0
  %7183 = vmatprep.subr.mxu0 0.0
  %7184 = vmatpush1.msra.mxu0 0.0
  %7185 = vmatprep.subr.mxu0 0.0
  %7186 = vmatpush1.msra.mxu0 0.0
  %7187 = vmatprep.subr.mxu0 0.0
  %7188 = vmatpush1.msra.mxu0 0.0
  %7189 = vmatprep.subr.mxu0 0.0
  %7190 = vmatpush1.msra.mxu0 0.0
  %7191 = vmatprep.subr.mxu0 0.0
  %7192 = vmatpush1.msra.mxu0 0.0
  %7193 = vmatprep.subr.mxu0 0.0
  %7194 = vmatpush1.msra.mxu0 0.0
  %7195 = vmatprep.subr.mxu0 0.0
  %7196 = vmatpush1.msra.mxu0 0.0
  %7197 = vmatprep.subr.mxu0 0.0
  %7198 = vmatpush1.msra.mxu0 0.0
  %7199 = vmatprep.subr.mxu0 0.0
  %7200 = vmatpush1.msra.mxu0 0.0
  %7201 = vmatprep.subr.mxu0 0.0
  %7202 = vmatpush1.msra.mxu0 0.0
  %7203 = vmatprep.subr.mxu0 0.0
  %7204 = vmatpush1.msra.mxu0 0.0
  %7205 = vmatprep.subr.mxu0 0.0
  %7206 = vmatpush1.msra.mxu0 0.0
  %7207 = vmatprep.subr.mxu0 0.0
  %7208 = vmatpush1.msra.mxu0 0.0
  %7209 = vmatprep.mubr.f32.mxu0 0.0
  %7210 = vmatmul.mubr.f32.gmra.mrb[0].mxu0 %v6699
  %v7211 = vpop.f32.mrb[0].mxu0
  %v7212 = vadd.f32 0.0, %v7211
  %v7213 = vpop.f32.mrb[0].mxu0
  %v7214 = vadd.f32 0.0, %v7213
  %7215 = vmatprep.mubr.f32.mxu0 0.0
  %7216 = vmatmul.mubr.f32.gmra.mrb[0].mxu0 %v6702
  %v7217 = vpop.f32.mrb[0].mxu0
  %v7218 = vadd.f32 0.0, %v7217
  %v7219 = vpop.f32.mrb[0].mxu0
  %v7220 = vadd.f32 0.0, %v7219
  %7221 = vmatprep.mubr.f32.mxu0 0.0
  %7222 = vmatmul.mubr.f32.gmra.mrb[0].mxu0 %v6705
  %v7223 = vpop.f32.mrb[0].mxu0
  %v7224 = vadd.f32 0.0, %v7223
  %v7225 = vpop.f32.mrb[0].mxu0
  %v7226 = vadd.f32 0.0, %v7225
  %7227 = vmatprep.mubr.f32.mxu0 0.0
  %7228 = vmatmul.mubr.f32.gmra.mrb[0].mxu0 %v6708
  %v7229 = vpop.f32.mrb[0].mxu0
  %v7230 = vadd.f32 0.0, %v7229
  %v7231 = vpop.f32.mrb[0].mxu0
  %v7232 = vadd.f32 0.0, %v7231
  %7233 = vmatprep.mubr.f32.mxu0 0.0
  %7234 = vmatmul.mubr.f32.gmra.mrb[0].mxu0 %v6711
  %v7235 = vpop.f32.mrb[0].mxu0
  %v7236 = vadd.f32 0.0, %v7235
  %v7237 = vpop.f32.mrb[0].mxu0
  %v7238 = vadd.f32 0.0, %v7237
  %7239 = vmatprep.mubr.f32.mxu0 0.0
  %7240 = vmatmul.mubr.f32.gmra.mrb[0].mxu0 %v6714
  %v7241 = vpop.f32.mrb[0].mxu0
  %v7242 = vadd.f32 0.0, %v7241
  %v7243 = vpop.f32.mrb[0].mxu0
  %v7244 = vadd.f32 0.0, %v7243
  %7245 = vmatprep.mubr.f32.mxu0 0.0
  %7246 = vmatmul.mubr.f32.gmra.mrb[0].mxu0 %v6717
  %v7247 = vpop.f32.mrb[0].mxu0
  %v7248 = vadd.f32 0.0, %v7247
  %v7249 = vpop.f32.mrb[0].mxu0
  %v7250 = vadd.f32 0.0, %v7249
  %7251 = vmatprep.mubr.f32.mxu0 0.0
  %7252 = vmatmul.mubr.f32.gmra.mrb[0].mxu0 %v6720
  %v7253 = vpop.f32.mrb[0].mxu0
  %v7254 = vadd.f32 0.0, %v7253
  %v7255 = vpop.f32.mrb[0].mxu0
  %v7256 = vadd.f32 0.0, %v7255
  %7257 = vmatprep.mubr.f32.mxu0 0.0
  %7258 = vmatmul.mubr.f32.gmra.mrb[0].mxu0 %v6723
  %v7259 = vpop.f32.mrb[0].mxu0
  %v7260 = vadd.f32 0.0, %v7259
  %v7261 = vpop.f32.mrb[0].mxu0
  %v7262 = vadd.f32 0.0, %v7261
  %7263 = vmatprep.mubr.f32.mxu0 0.0
  %7264 = vmatmul.mubr.f32.gmra.mrb[0].mxu0 %v6726
  %v7265 = vpop.f32.mrb[0].mxu0
  %v7266 = vadd.f32 0.0, %v7265
  %v7267 = vpop.f32.mrb[0].mxu0
  %v7268 = vadd.f32 0.0, %v7267
  %7269 = vmatprep.mubr.f32.mxu0 0.0
  %7270 = vmatmul.mubr.f32.gmra.mrb[0].mxu0 %v6729
  %v7271 = vpop.f32.mrb[0].mxu0
  %v7272 = vadd.f32 0.0, %v7271
  %v7273 = vpop.f32.mrb[0].mxu0
  %v7274 = vadd.f32 0.0, %v7273
  %7275 = vmatprep.mubr.f32.mxu0 0.0
  %7276 = vmatmul.mubr.f32.gmra.mrb[0].mxu0 %v6732
  %v7277 = vpop.f32.mrb[0].mxu0
  %v7278 = vadd.f32 0.0, %v7277
  %v7279 = vpop.f32.mrb[0].mxu0
  %v7280 = vadd.f32 0.0, %v7279
  %7281 = vdwg.mxu0
  %7282 = vmatprep.subr.mxu0 %v6557
  %7283 = vmatpush1.msra.mxu0 %v6556
  %7284 = vmatprep.subr.mxu0 %v6582
  %7285 = vmatpush1.msra.mxu0 %v6581
  %7286 = vmatprep.subr.mxu0 %v6607
  %7287 = vmatpush1.msra.mxu0 %v6606
  %7288 = vmatprep.subr.mxu0 0.0
  %7289 = vmatpush1.msra.mxu0 0.0
  %7290 = vmatprep.subr.mxu0 0.0
  %7291 = vmatpush1.msra.mxu0 0.0
  %7292 = vmatprep.subr.mxu0 0.0
  %7293 = vmatpush1.msra.mxu0 0.0
  %7294 = vmatprep.subr.mxu0 0.0
  %7295 = vmatpush1.msra.mxu0 0.0
  %7296 = vmatprep.subr.mxu0 0.0
  %7297 = vmatpush1.msra.mxu0 0.0
  %7298 = vmatprep.subr.mxu0 0.0
  %7299 = vmatpush1.msra.mxu0 0.0
  %7300 = vmatprep.subr.mxu0 0.0
  %7301 = vmatpush1.msra.mxu0 0.0
  %7302 = vmatprep.subr.mxu0 0.0
  %7303 = vmatpush1.msra.mxu0 0.0
  %7304 = vmatprep.subr.mxu0 0.0
  %7305 = vmatpush1.msra.mxu0 0.0
  %7306 = vmatprep.subr.mxu0 0.0
  %7307 = vmatpush1.msra.mxu0 0.0
  %7308 = vmatprep.subr.mxu0 0.0
  %7309 = vmatpush1.msra.mxu0 0.0
  %7310 = vmatprep.subr.mxu0 0.0
  %7311 = vmatpush1.msra.mxu0 0.0
  %7312 = vmatprep.subr.mxu0 0.0
  %7313 = vmatpush1.msra.mxu0 0.0
  %7314 = vmatprep.subr.mxu0 0.0
  %7315 = vmatpush1.msra.mxu0 0.0
  %7316 = vmatprep.subr.mxu0 0.0
  %7317 = vmatpush1.msra.mxu0 0.0
  %7318 = vmatprep.subr.mxu0 0.0
  %7319 = vmatpush1.msra.mxu0 0.0
  %7320 = vmatprep.subr.mxu0 0.0
  %7321 = vmatpush1.msra.mxu0 0.0
  %7322 = vmatprep.subr.mxu0 0.0
  %7323 = vmatpush1.msra.mxu0 0.0
  %7324 = vmatprep.subr.mxu0 0.0
  %7325 = vmatpush1.msra.mxu0 0.0
  %7326 = vmatprep.subr.mxu0 0.0
  %7327 = vmatpush1.msra.mxu0 0.0
  %7328 = vmatprep.subr.mxu0 0.0
  %7329 = vmatpush1.msra.mxu0 0.0
  %7330 = vmatprep.subr.mxu0 0.0
  %7331 = vmatpush1.msra.mxu0 0.0
  %7332 = vmatprep.subr.mxu0 0.0
  %7333 = vmatpush1.msra.mxu0 0.0
  %7334 = vmatprep.subr.mxu0 0.0
  %7335 = vmatpush1.msra.mxu0 0.0
  %7336 = vmatprep.subr.mxu0 0.0
  %7337 = vmatpush1.msra.mxu0 0.0
  %7338 = vmatprep.subr.mxu0 0.0
  %7339 = vmatpush1.msra.mxu0 0.0
  %7340 = vmatprep.subr.mxu0 0.0
  %7341 = vmatpush1.msra.mxu0 0.0
  %7342 = vmatprep.subr.mxu0 0.0
  %7343 = vmatpush1.msra.mxu0 0.0
  %7344 = vmatprep.subr.mxu0 0.0
  %7345 = vmatpush1.msra.mxu0 0.0
  %7346 = vmatprep.mubr.f32.mxu0 0.0
  %7347 = vmatmul.mubr.f32.gmra.mrb[0].mxu0 %v6699
  %v7348 = vpop.f32.mrb[0].mxu0
  %v7349 = vadd.f32 0.0, %v7348
  %v7350 = vpop.f32.mrb[0].mxu0
  %v7351 = vadd.f32 0.0, %v7350
  %7352 = vmatprep.mubr.f32.mxu0 0.0
  %7353 = vmatmul.mubr.f32.gmra.mrb[0].mxu0 %v6702
  %v7354 = vpop.f32.mrb[0].mxu0
  %v7355 = vadd.f32 0.0, %v7354
  %v7356 = vpop.f32.mrb[0].mxu0
  %v7357 = vadd.f32 0.0, %v7356
  %7358 = vmatprep.mubr.f32.mxu0 0.0
  %7359 = vmatmul.mubr.f32.gmra.mrb[0].mxu0 %v6705
  %v7360 = vpop.f32.mrb[0].mxu0
  %v7361 = vadd.f32 0.0, %v7360
  %v7362 = vpop.f32.mrb[0].mxu0
  %v7363 = vadd.f32 0.0, %v7362
  %7364 = vmatprep.mubr.f32.mxu0 0.0
  %7365 = vmatmul.mubr.f32.gmra.mrb[0].mxu0 %v6708
  %v7366 = vpop.f32.mrb[0].mxu0
  %v7367 = vadd.f32 0.0, %v7366
  %v7368 = vpop.f32.mrb[0].mxu0
  %v7369 = vadd.f32 0.0, %v7368
  %7370 = vmatprep.mubr.f32.mxu0 0.0
  %7371 = vmatmul.mubr.f32.gmra.mrb[0].mxu0 %v6711
  %v7372 = vpop.f32.mrb[0].mxu0
  %v7373 = vadd.f32 0.0, %v7372
  %v7374 = vpop.f32.mrb[0].mxu0
  %v7375 = vadd.f32 0.0, %v7374
  %7376 = vmatprep.mubr.f32.mxu0 0.0
  %7377 = vmatmul.mubr.f32.gmra.mrb[0].mxu0 %v6714
  %v7378 = vpop.f32.mrb[0].mxu0
  %v7379 = vadd.f32 0.0, %v7378
  %v7380 = vpop.f32.mrb[0].mxu0
  %v7381 = vadd.f32 0.0, %v7380
  %7382 = vmatprep.mubr.f32.mxu0 0.0
  %7383 = vmatmul.mubr.f32.gmra.mrb[0].mxu0 %v6717
  %v7384 = vpop.f32.mrb[0].mxu0
  %v7385 = vadd.f32 0.0, %v7384
  %v7386 = vpop.f32.mrb[0].mxu0
  %v7387 = vadd.f32 0.0, %v7386
  %7388 = vmatprep.mubr.f32.mxu0 0.0
  %7389 = vmatmul.mubr.f32.gmra.mrb[0].mxu0 %v6720
  %v7390 = vpop.f32.mrb[0].mxu0
  %v7391 = vadd.f32 0.0, %v7390
  %v7392 = vpop.f32.mrb[0].mxu0
  %v7393 = vadd.f32 0.0, %v7392
  %7394 = vmatprep.mubr.f32.mxu0 0.0
  %7395 = vmatmul.mubr.f32.gmra.mrb[0].mxu0 %v6723
  %v7396 = vpop.f32.mrb[0].mxu0
  %v7397 = vadd.f32 0.0, %v7396
  %v7398 = vpop.f32.mrb[0].mxu0
  %v7399 = vadd.f32 0.0, %v7398
  %7400 = vmatprep.mubr.f32.mxu0 0.0
  %7401 = vmatmul.mubr.f32.gmra.mrb[0].mxu0 %v6726
  %v7402 = vpop.f32.mrb[0].mxu0
  %v7403 = vadd.f32 0.0, %v7402
  %v7404 = vpop.f32.mrb[0].mxu0
  %v7405 = vadd.f32 0.0, %v7404
  %7406 = vmatprep.mubr.f32.mxu0 0.0
  %7407 = vmatmul.mubr.f32.gmra.mrb[0].mxu0 %v6729
  %v7408 = vpop.f32.mrb[0].mxu0
  %v7409 = vadd.f32 0.0, %v7408
  %v7410 = vpop.f32.mrb[0].mxu0
  %v7411 = vadd.f32 0.0, %v7410
  %7412 = vmatprep.mubr.f32.mxu0 0.0
  %7413 = vmatmul.mubr.f32.gmra.mrb[0].mxu0 %v6732
  %v7414 = vpop.f32.mrb[0].mxu0
  %v7415 = vadd.f32 0.0, %v7414
  %v7416 = vpop.f32.mrb[0].mxu0
  %v7417 = vadd.f32 0.0, %v7416
  %7418 = vdwg.mxu0
  %7419 = vmatprep.subr.mxu0 %v6559
  %7420 = vmatpush1.msra.mxu0 %v6558
  %7421 = vmatprep.subr.mxu0 %v6584
  %7422 = vmatpush1.msra.mxu0 %v6583
  %7423 = vmatprep.subr.mxu0 %v6609
  %7424 = vmatpush1.msra.mxu0 %v6608
  %7425 = vmatprep.subr.mxu0 0.0
  %7426 = vmatpush1.msra.mxu0 0.0
  %7427 = vmatprep.subr.mxu0 0.0
  %7428 = vmatpush1.msra.mxu0 0.0
  %7429 = vmatprep.subr.mxu0 0.0
  %7430 = vmatpush1.msra.mxu0 0.0
  %7431 = vmatprep.subr.mxu0 0.0
  %7432 = vmatpush1.msra.mxu0 0.0
  %7433 = vmatprep.subr.mxu0 0.0
  %7434 = vmatpush1.msra.mxu0 0.0
  %7435 = vmatprep.subr.mxu0 0.0
  %7436 = vmatpush1.msra.mxu0 0.0
  %7437 = vmatprep.subr.mxu0 0.0
  %7438 = vmatpush1.msra.mxu0 0.0
  %7439 = vmatprep.subr.mxu0 0.0
  %7440 = vmatpush1.msra.mxu0 0.0
  %7441 = vmatprep.subr.mxu0 0.0
  %7442 = vmatpush1.msra.mxu0 0.0
  %7443 = vmatprep.subr.mxu0 0.0
  %7444 = vmatpush1.msra.mxu0 0.0
  %7445 = vmatprep.subr.mxu0 0.0
  %7446 = vmatpush1.msra.mxu0 0.0
  %7447 = vmatprep.subr.mxu0 0.0
  %7448 = vmatpush1.msra.mxu0 0.0
  %7449 = vmatprep.subr.mxu0 0.0
  %7450 = vmatpush1.msra.mxu0 0.0
  %7451 = vmatprep.subr.mxu0 0.0
  %7452 = vmatpush1.msra.mxu0 0.0
  %7453 = vmatprep.subr.mxu0 0.0
  %7454 = vmatpush1.msra.mxu0 0.0
  %7455 = vmatprep.subr.mxu0 0.0
  %7456 = vmatpush1.msra.mxu0 0.0
  %7457 = vmatprep.subr.mxu0 0.0
  %7458 = vmatpush1.msra.mxu0 0.0
  %7459 = vmatprep.subr.mxu0 0.0
  %7460 = vmatpush1.msra.mxu0 0.0
  %7461 = vmatprep.subr.mxu0 0.0
  %7462 = vmatpush1.msra.mxu0 0.0
  %7463 = vmatprep.subr.mxu0 0.0
  %7464 = vmatpush1.msra.mxu0 0.0
  %7465 = vmatprep.subr.mxu0 0.0
  %7466 = vmatpush1.msra.mxu0 0.0
  %7467 = vmatprep.subr.mxu0 0.0
  %7468 = vmatpush1.msra.mxu0 0.0
  %7469 = vmatprep.subr.mxu0 0.0
  %7470 = vmatpush1.msra.mxu0 0.0
  %7471 = vmatprep.subr.mxu0 0.0
  %7472 = vmatpush1.msra.mxu0 0.0
  %7473 = vmatprep.subr.mxu0 0.0
  %7474 = vmatpush1.msra.mxu0 0.0
  %7475 = vmatprep.subr.mxu0 0.0
  %7476 = vmatpush1.msra.mxu0 0.0
  %7477 = vmatprep.subr.mxu0 0.0
  %7478 = vmatpush1.msra.mxu0 0.0
  %7479 = vmatprep.subr.mxu0 0.0
  %7480 = vmatpush1.msra.mxu0 0.0
  %7481 = vmatprep.subr.mxu0 0.0
  %7482 = vmatpush1.msra.mxu0 0.0
  %7483 = vmatprep.mubr.f32.mxu0 0.0
  %7484 = vmatmul.mubr.f32.gmra.mrb[0].mxu0 %v6699
  %v7485 = vpop.f32.mrb[0].mxu0
  %v7486 = vadd.f32 0.0, %v7485
  %v7487 = vpop.f32.mrb[0].mxu0
  %v7488 = vadd.f32 0.0, %v7487
  %7489 = vmatprep.mubr.f32.mxu0 0.0
  %7490 = vmatmul.mubr.f32.gmra.mrb[0].mxu0 %v6702
  %v7491 = vpop.f32.mrb[0].mxu0
  %v7492 = vadd.f32 0.0, %v7491
  %v7493 = vpop.f32.mrb[0].mxu0
  %v7494 = vadd.f32 0.0, %v7493
  %7495 = vmatprep.mubr.f32.mxu0 0.0
  %7496 = vmatmul.mubr.f32.gmra.mrb[0].mxu0 %v6705
  %v7497 = vpop.f32.mrb[0].mxu0
  %v7498 = vadd.f32 0.0, %v7497
  %v7499 = vpop.f32.mrb[0].mxu0
  %v7500 = vadd.f32 0.0, %v7499
  %7501 = vmatprep.mubr.f32.mxu0 0.0
  %7502 = vmatmul.mubr.f32.gmra.mrb[0].mxu0 %v6708
  %v7503 = vpop.f32.mrb[0].mxu0
  %v7504 = vadd.f32 0.0, %v7503
  %v7505 = vpop.f32.mrb[0].mxu0
  %v7506 = vadd.f32 0.0, %v7505
  %7507 = vmatprep.mubr.f32.mxu0 0.0
  %7508 = vmatmul.mubr.f32.gmra.mrb[0].mxu0 %v6711
  %v7509 = vpop.f32.mrb[0].mxu0
  %v7510 = vadd.f32 0.0, %v7509
  %v7511 = vpop.f32.mrb[0].mxu0
  %v7512 = vadd.f32 0.0, %v7511
  %7513 = vmatprep.mubr.f32.mxu0 0.0
  %7514 = vmatmul.mubr.f32.gmra.mrb[0].mxu0 %v6714
  %v7515 = vpop.f32.mrb[0].mxu0
  %v7516 = vadd.f32 0.0, %v7515
  %v7517 = vpop.f32.mrb[0].mxu0
  %v7518 = vadd.f32 0.0, %v7517
  %7519 = vmatprep.mubr.f32.mxu0 0.0
  %7520 = vmatmul.mubr.f32.gmra.mrb[0].mxu0 %v6717
  %v7521 = vpop.f32.mrb[0].mxu0
  %v7522 = vadd.f32 0.0, %v7521
  %v7523 = vpop.f32.mrb[0].mxu0
  %v7524 = vadd.f32 0.0, %v7523
  %7525 = vmatprep.mubr.f32.mxu0 0.0
  %7526 = vmatmul.mubr.f32.gmra.mrb[0].mxu0 %v6720
  %v7527 = vpop.f32.mrb[0].mxu0
  %v7528 = vadd.f32 0.0, %v7527
  %v7529 = vpop.f32.mrb[0].mxu0
  %v7530 = vadd.f32 0.0, %v7529
  %7531 = vmatprep.mubr.f32.mxu0 0.0
  %7532 = vmatmul.mubr.f32.gmra.mrb[0].mxu0 %v6723
  %v7533 = vpop.f32.mrb[0].mxu0
  %v7534 = vadd.f32 0.0, %v7533
  %v7535 = vpop.f32.mrb[0].mxu0
  %v7536 = vadd.f32 0.0, %v7535
  %7537 = vmatprep.mubr.f32.mxu0 0.0
  %7538 = vmatmul.mubr.f32.gmra.mrb[0].mxu0 %v6726
  %v7539 = vpop.f32.mrb[0].mxu0
  %v7540 = vadd.f32 0.0, %v7539
  %v7541 = vpop.f32.mrb[0].mxu0
  %v7542 = vadd.f32 0.0, %v7541
  %7543 = vmatprep.mubr.f32.mxu0 0.0
  %7544 = vmatmul.mubr.f32.gmra.mrb[0].mxu0 %v6729
  %v7545 = vpop.f32.mrb[0].mxu0
  %v7546 = vadd.f32 0.0, %v7545
  %v7547 = vpop.f32.mrb[0].mxu0
  %v7548 = vadd.f32 0.0, %v7547
  %7549 = vmatprep.mubr.f32.mxu0 0.0
  %7550 = vmatmul.mubr.f32.gmra.mrb[0].mxu0 %v6732
  %v7551 = vpop.f32.mrb[0].mxu0
  %v7552 = vadd.f32 0.0, %v7551
  %v7553 = vpop.f32.mrb[0].mxu0
  %v7554 = vadd.f32 0.0, %v7553
  %7555 = vdwg.mxu0
  %7556 = vmatprep.subr.mxu0 %v6561
  %7557 = vmatpush1.msra.mxu0 %v6560
  %7558 = vmatprep.subr.mxu0 %v6586
  %7559 = vmatpush1.msra.mxu0 %v6585
  %7560 = vmatprep.subr.mxu0 %v6611
  %7561 = vmatpush1.msra.mxu0 %v6610
  %7562 = vmatprep.subr.mxu0 0.0
  %7563 = vmatpush1.msra.mxu0 0.0
  %7564 = vmatprep.subr.mxu0 0.0
  %7565 = vmatpush1.msra.mxu0 0.0
  %7566 = vmatprep.subr.mxu0 0.0
  %7567 = vmatpush1.msra.mxu0 0.0
  %7568 = vmatprep.subr.mxu0 0.0
  %7569 = vmatpush1.msra.mxu0 0.0
  %7570 = vmatprep.subr.mxu0 0.0
  %7571 = vmatpush1.msra.mxu0 0.0
  %7572 = vmatprep.subr.mxu0 0.0
  %7573 = vmatpush1.msra.mxu0 0.0
  %7574 = vmatprep.subr.mxu0 0.0
  %7575 = vmatpush1.msra.mxu0 0.0
  %7576 = vmatprep.subr.mxu0 0.0
  %7577 = vmatpush1.msra.mxu0 0.0
  %7578 = vmatprep.subr.mxu0 0.0
  %7579 = vmatpush1.msra.mxu0 0.0
  %7580 = vmatprep.subr.mxu0 0.0
  %7581 = vmatpush1.msra.mxu0 0.0
  %7582 = vmatprep.subr.mxu0 0.0
  %7583 = vmatpush1.msra.mxu0 0.0
  %7584 = vmatprep.subr.mxu0 0.0
  %7585 = vmatpush1.msra.mxu0 0.0
  %7586 = vmatprep.subr.mxu0 0.0
  %7587 = vmatpush1.msra.mxu0 0.0
  %7588 = vmatprep.subr.mxu0 0.0
  %7589 = vmatpush1.msra.mxu0 0.0
  %7590 = vmatprep.subr.mxu0 0.0
  %7591 = vmatpush1.msra.mxu0 0.0
  %7592 = vmatprep.subr.mxu0 0.0
  %7593 = vmatpush1.msra.mxu0 0.0
  %7594 = vmatprep.subr.mxu0 0.0
  %7595 = vmatpush1.msra.mxu0 0.0
  %7596 = vmatprep.subr.mxu0 0.0
  %7597 = vmatpush1.msra.mxu0 0.0
  %7598 = vmatprep.subr.mxu0 0.0
  %7599 = vmatpush1.msra.mxu0 0.0
  %7600 = vmatprep.subr.mxu0 0.0
  %7601 = vmatpush1.msra.mxu0 0.0
  %7602 = vmatprep.subr.mxu0 0.0
  %7603 = vmatpush1.msra.mxu0 0.0
  %7604 = vmatprep.subr.mxu0 0.0
  %7605 = vmatpush1.msra.mxu0 0.0
  %7606 = vmatprep.subr.mxu0 0.0
  %7607 = vmatpush1.msra.mxu0 0.0
  %7608 = vmatprep.subr.mxu0 0.0
  %7609 = vmatpush1.msra.mxu0 0.0
  %7610 = vmatprep.subr.mxu0 0.0
  %7611 = vmatpush1.msra.mxu0 0.0
  %7612 = vmatprep.subr.mxu0 0.0
  %7613 = vmatpush1.msra.mxu0 0.0
  %7614 = vmatprep.subr.mxu0 0.0
  %7615 = vmatpush1.msra.mxu0 0.0
  %7616 = vmatprep.subr.mxu0 0.0
  %7617 = vmatpush1.msra.mxu0 0.0
  %7618 = vmatprep.subr.mxu0 0.0
  %7619 = vmatpush1.msra.mxu0 0.0
  %7620 = vmatprep.mubr.f32.mxu0 0.0
  %7621 = vmatmul.mubr.f32.gmra.mrb[0].mxu0 %v6699
  %v7622 = vpop.f32.mrb[0].mxu0
  %v7623 = vadd.f32 0.0, %v7622
  %v7624 = vpop.f32.mrb[0].mxu0
  %v7625 = vadd.f32 0.0, %v7624
  %7626 = vmatprep.mubr.f32.mxu0 0.0
  %7627 = vmatmul.mubr.f32.gmra.mrb[0].mxu0 %v6702
  %v7628 = vpop.f32.mrb[0].mxu0
  %v7629 = vadd.f32 0.0, %v7628
  %v7630 = vpop.f32.mrb[0].mxu0
  %v7631 = vadd.f32 0.0, %v7630
  %7632 = vmatprep.mubr.f32.mxu0 0.0
  %7633 = vmatmul.mubr.f32.gmra.mrb[0].mxu0 %v6705
  %v7634 = vpop.f32.mrb[0].mxu0
  %v7635 = vadd.f32 0.0, %v7634
  %v7636 = vpop.f32.mrb[0].mxu0
  %v7637 = vadd.f32 0.0, %v7636
  %7638 = vmatprep.mubr.f32.mxu0 0.0
  %7639 = vmatmul.mubr.f32.gmra.mrb[0].mxu0 %v6708
  %v7640 = vpop.f32.mrb[0].mxu0
  %v7641 = vadd.f32 0.0, %v7640
  %v7642 = vpop.f32.mrb[0].mxu0
  %v7643 = vadd.f32 0.0, %v7642
  %7644 = vmatprep.mubr.f32.mxu0 0.0
  %7645 = vmatmul.mubr.f32.gmra.mrb[0].mxu0 %v6711
  %v7646 = vpop.f32.mrb[0].mxu0
  %v7647 = vadd.f32 0.0, %v7646
  %v7648 = vpop.f32.mrb[0].mxu0
  %v7649 = vadd.f32 0.0, %v7648
  %7650 = vmatprep.mubr.f32.mxu0 0.0
  %7651 = vmatmul.mubr.f32.gmra.mrb[0].mxu0 %v6714
  %v7652 = vpop.f32.mrb[0].mxu0
  %v7653 = vadd.f32 0.0, %v7652
  %v7654 = vpop.f32.mrb[0].mxu0
  %v7655 = vadd.f32 0.0, %v7654
  %7656 = vmatprep.mubr.f32.mxu0 0.0
  %7657 = vmatmul.mubr.f32.gmra.mrb[0].mxu0 %v6717
  %v7658 = vpop.f32.mrb[0].mxu0
  %v7659 = vadd.f32 0.0, %v7658
  %v7660 = vpop.f32.mrb[0].mxu0
  %v7661 = vadd.f32 0.0, %v7660
  %7662 = vmatprep.mubr.f32.mxu0 0.0
  %7663 = vmatmul.mubr.f32.gmra.mrb[0].mxu0 %v6720
  %v7664 = vpop.f32.mrb[0].mxu0
  %v7665 = vadd.f32 0.0, %v7664
  %v7666 = vpop.f32.mrb[0].mxu0
  %v7667 = vadd.f32 0.0, %v7666
  %7668 = vmatprep.mubr.f32.mxu0 0.0
  %7669 = vmatmul.mubr.f32.gmra.mrb[0].mxu0 %v6723
  %v7670 = vpop.f32.mrb[0].mxu0
  %v7671 = vadd.f32 0.0, %v7670
  %v7672 = vpop.f32.mrb[0].mxu0
  %v7673 = vadd.f32 0.0, %v7672
  %7674 = vmatprep.mubr.f32.mxu0 0.0
  %7675 = vmatmul.mubr.f32.gmra.mrb[0].mxu0 %v6726
  %v7676 = vpop.f32.mrb[0].mxu0
  %v7677 = vadd.f32 0.0, %v7676
  %v7678 = vpop.f32.mrb[0].mxu0
  %v7679 = vadd.f32 0.0, %v7678
  %7680 = vmatprep.mubr.f32.mxu0 0.0
  %7681 = vmatmul.mubr.f32.gmra.mrb[0].mxu0 %v6729
  %v7682 = vpop.f32.mrb[0].mxu0
  %v7683 = vadd.f32 0.0, %v7682
  %v7684 = vpop.f32.mrb[0].mxu0
  %v7685 = vadd.f32 0.0, %v7684
  %7686 = vmatprep.mubr.f32.mxu0 0.0
  %7687 = vmatmul.mubr.f32.gmra.mrb[0].mxu0 %v6732
  %v7688 = vpop.f32.mrb[0].mxu0
  %v7689 = vadd.f32 0.0, %v7688
  %v7690 = vpop.f32.mrb[0].mxu0
  %v7691 = vadd.f32 0.0, %v7690
  %7692 = vdwg.mxu0
  %7693 = vmatprep.subr.mxu0 %v6563
  %7694 = vmatpush1.msra.mxu0 %v6562
  %7695 = vmatprep.subr.mxu0 %v6588
  %7696 = vmatpush1.msra.mxu0 %v6587
  %7697 = vmatprep.subr.mxu0 %v6613
  %7698 = vmatpush1.msra.mxu0 %v6612
  %7699 = vmatprep.subr.mxu0 0.0
  %7700 = vmatpush1.msra.mxu0 0.0
  %7701 = vmatprep.subr.mxu0 0.0
  %7702 = vmatpush1.msra.mxu0 0.0
  %7703 = vmatprep.subr.mxu0 0.0
  %7704 = vmatpush1.msra.mxu0 0.0
  %7705 = vmatprep.subr.mxu0 0.0
  %7706 = vmatpush1.msra.mxu0 0.0
  %7707 = vmatprep.subr.mxu0 0.0
  %7708 = vmatpush1.msra.mxu0 0.0
  %7709 = vmatprep.subr.mxu0 0.0
  %7710 = vmatpush1.msra.mxu0 0.0
  %7711 = vmatprep.subr.mxu0 0.0
  %7712 = vmatpush1.msra.mxu0 0.0
  %7713 = vmatprep.subr.mxu0 0.0
  %7714 = vmatpush1.msra.mxu0 0.0
  %7715 = vmatprep.subr.mxu0 0.0
  %7716 = vmatpush1.msra.mxu0 0.0
  %7717 = vmatprep.subr.mxu0 0.0
  %7718 = vmatpush1.msra.mxu0 0.0
  %7719 = vmatprep.subr.mxu0 0.0
  %7720 = vmatpush1.msra.mxu0 0.0
  %7721 = vmatprep.subr.mxu0 0.0
  %7722 = vmatpush1.msra.mxu0 0.0
  %7723 = vmatprep.subr.mxu0 0.0
  %7724 = vmatpush1.msra.mxu0 0.0
  %7725 = vmatprep.subr.mxu0 0.0
  %7726 = vmatpush1.msra.mxu0 0.0
  %7727 = vmatprep.subr.mxu0 0.0
  %7728 = vmatpush1.msra.mxu0 0.0
  %7729 = vmatprep.subr.mxu0 0.0
  %7730 = vmatpush1.msra.mxu0 0.0
  %7731 = vmatprep.subr.mxu0 0.0
  %7732 = vmatpush1.msra.mxu0 0.0
  %7733 = vmatprep.subr.mxu0 0.0
  %7734 = vmatpush1.msra.mxu0 0.0
  %7735 = vmatprep.subr.mxu0 0.0
  %7736 = vmatpush1.msra.mxu0 0.0
  %7737 = vmatprep.subr.mxu0 0.0
  %7738 = vmatpush1.msra.mxu0 0.0
  %7739 = vmatprep.subr.mxu0 0.0
  %7740 = vmatpush1.msra.mxu0 0.0
  %7741 = vmatprep.subr.mxu0 0.0
  %7742 = vmatpush1.msra.mxu0 0.0
  %7743 = vmatprep.subr.mxu0 0.0
  %7744 = vmatpush1.msra.mxu0 0.0
  %7745 = vmatprep.subr.mxu0 0.0
  %7746 = vmatpush1.msra.mxu0 0.0
  %7747 = vmatprep.subr.mxu0 0.0
  %7748 = vmatpush1.msra.mxu0 0.0
  %7749 = vmatprep.subr.mxu0 0.0
  %7750 = vmatpush1.msra.mxu0 0.0
  %7751 = vmatprep.subr.mxu0 0.0
  %7752 = vmatpush1.msra.mxu0 0.0
  %7753 = vmatprep.subr.mxu0 0.0
  %7754 = vmatpush1.msra.mxu0 0.0
  %7755 = vmatprep.subr.mxu0 0.0
  %7756 = vmatpush1.msra.mxu0 0.0
  %7757 = vmatprep.mubr.f32.mxu0 0.0
  %7758 = vmatmul.mubr.f32.gmra.mrb[0].mxu0 %v6699
  %v7759 = vpop.f32.mrb[0].mxu0
  %v7760 = vadd.f32 0.0, %v7759
  %v7761 = vpop.f32.mrb[0].mxu0
  %v7762 = vadd.f32 0.0, %v7761
  %7763 = vmatprep.mubr.f32.mxu0 0.0
  %7764 = vmatmul.mubr.f32.gmra.mrb[0].mxu0 %v6702
  %v7765 = vpop.f32.mrb[0].mxu0
  %v7766 = vadd.f32 0.0, %v7765
  %v7767 = vpop.f32.mrb[0].mxu0
  %v7768 = vadd.f32 0.0, %v7767
  %7769 = vmatprep.mubr.f32.mxu0 0.0
  %7770 = vmatmul.mubr.f32.gmra.mrb[0].mxu0 %v6705
  %v7771 = vpop.f32.mrb[0].mxu0
  %v7772 = vadd.f32 0.0, %v7771
  %v7773 = vpop.f32.mrb[0].mxu0
  %v7774 = vadd.f32 0.0, %v7773
  %7775 = vmatprep.mubr.f32.mxu0 0.0
  %7776 = vmatmul.mubr.f32.gmra.mrb[0].mxu0 %v6708
  %v7777 = vpop.f32.mrb[0].mxu0
  %v7778 = vadd.f32 0.0, %v7777
  %v7779 = vpop.f32.mrb[0].mxu0
  %v7780 = vadd.f32 0.0, %v7779
  %7781 = vmatprep.mubr.f32.mxu0 0.0
  %7782 = vmatmul.mubr.f32.gmra.mrb[0].mxu0 %v6711
  %v7783 = vpop.f32.mrb[0].mxu0
  %v7784 = vadd.f32 0.0, %v7783
  %v7785 = vpop.f32.mrb[0].mxu0
  %v7786 = vadd.f32 0.0, %v7785
  %7787 = vmatprep.mubr.f32.mxu0 0.0
  %7788 = vmatmul.mubr.f32.gmra.mrb[0].mxu0 %v6714
  %v7789 = vpop.f32.mrb[0].mxu0
  %v7790 = vadd.f32 0.0, %v7789
  %v7791 = vpop.f32.mrb[0].mxu0
  %v7792 = vadd.f32 0.0, %v7791
  %7793 = vmatprep.mubr.f32.mxu0 0.0
  %7794 = vmatmul.mubr.f32.gmra.mrb[0].mxu0 %v6717
  %v7795 = vpop.f32.mrb[0].mxu0
  %v7796 = vadd.f32 0.0, %v7795
  %v7797 = vpop.f32.mrb[0].mxu0
  %v7798 = vadd.f32 0.0, %v7797
  %7799 = vmatprep.mubr.f32.mxu0 0.0
  %7800 = vmatmul.mubr.f32.gmra.mrb[0].mxu0 %v6720
  %v7801 = vpop.f32.mrb[0].mxu0
  %v7802 = vadd.f32 0.0, %v7801
  %v7803 = vpop.f32.mrb[0].mxu0
  %v7804 = vadd.f32 0.0, %v7803
  %7805 = vmatprep.mubr.f32.mxu0 0.0
  %7806 = vmatmul.mubr.f32.gmra.mrb[0].mxu0 %v6723
  %v7807 = vpop.f32.mrb[0].mxu0
  %v7808 = vadd.f32 0.0, %v7807
  %v7809 = vpop.f32.mrb[0].mxu0
  %v7810 = vadd.f32 0.0, %v7809
  %7811 = vmatprep.mubr.f32.mxu0 0.0
  %7812 = vmatmul.mubr.f32.gmra.mrb[0].mxu0 %v6726
  %v7813 = vpop.f32.mrb[0].mxu0
  %v7814 = vadd.f32 0.0, %v7813
  %v7815 = vpop.f32.mrb[0].mxu0
  %v7816 = vadd.f32 0.0, %v7815
  %7817 = vmatprep.mubr.f32.mxu0 0.0
  %7818 = vmatmul.mubr.f32.gmra.mrb[0].mxu0 %v6729
  %v7819 = vpop.f32.mrb[0].mxu0
  %v7820 = vadd.f32 0.0, %v7819
  %v7821 = vpop.f32.mrb[0].mxu0
  %v7822 = vadd.f32 0.0, %v7821
  %7823 = vmatprep.mubr.f32.mxu0 0.0
  %7824 = vmatmul.mubr.f32.gmra.mrb[0].mxu0 %v6732
  %v7825 = vpop.f32.mrb[0].mxu0
  %v7826 = vadd.f32 0.0, %v7825
  %v7827 = vpop.f32.mrb[0].mxu0
  %v7828 = vadd.f32 0.0, %v7827
  %7829 = vdwg.mxu0
  %7830 = vmatprep.subr.mxu0 %v6565
  %7831 = vmatpush1.msra.mxu0 %v6564
  %7832 = vmatprep.subr.mxu0 %v6590
  %7833 = vmatpush1.msra.mxu0 %v6589
  %7834 = vmatprep.subr.mxu0 %v6615
  %7835 = vmatpush1.msra.mxu0 %v6614
  %7836 = vmatprep.subr.mxu0 0.0
  %7837 = vmatpush1.msra.mxu0 0.0
  %7838 = vmatprep.subr.mxu0 0.0
  %7839 = vmatpush1.msra.mxu0 0.0
  %7840 = vmatprep.subr.mxu0 0.0
  %7841 = vmatpush1.msra.mxu0 0.0
  %7842 = vmatprep.subr.mxu0 0.0
  %7843 = vmatpush1.msra.mxu0 0.0
  %7844 = vmatprep.subr.mxu0 0.0
  %7845 = vmatpush1.msra.mxu0 0.0
  %7846 = vmatprep.subr.mxu0 0.0
  %7847 = vmatpush1.msra.mxu0 0.0
  %7848 = vmatprep.subr.mxu0 0.0
  %7849 = vmatpush1.msra.mxu0 0.0
  %7850 = vmatprep.subr.mxu0 0.0
  %7851 = vmatpush1.msra.mxu0 0.0
  %7852 = vmatprep.subr.mxu0 0.0
  %7853 = vmatpush1.msra.mxu0 0.0
  %7854 = vmatprep.subr.mxu0 0.0
  %7855 = vmatpush1.msra.mxu0 0.0
  %7856 = vmatprep.subr.mxu0 0.0
  %7857 = vmatpush1.msra.mxu0 0.0
  %7858 = vmatprep.subr.mxu0 0.0
  %7859 = vmatpush1.msra.mxu0 0.0
  %7860 = vmatprep.subr.mxu0 0.0
  %7861 = vmatpush1.msra.mxu0 0.0
  %7862 = vmatprep.subr.mxu0 0.0
  %7863 = vmatpush1.msra.mxu0 0.0
  %7864 = vmatprep.subr.mxu0 0.0
  %7865 = vmatpush1.msra.mxu0 0.0
  %7866 = vmatprep.subr.mxu0 0.0
  %7867 = vmatpush1.msra.mxu0 0.0
  %7868 = vmatprep.subr.mxu0 0.0
  %7869 = vmatpush1.msra.mxu0 0.0
  %7870 = vmatprep.subr.mxu0 0.0
  %7871 = vmatpush1.msra.mxu0 0.0
  %7872 = vmatprep.subr.mxu0 0.0
  %7873 = vmatpush1.msra.mxu0 0.0
  %7874 = vmatprep.subr.mxu0 0.0
  %7875 = vmatpush1.msra.mxu0 0.0
  %7876 = vmatprep.subr.mxu0 0.0
  %7877 = vmatpush1.msra.mxu0 0.0
  %7878 = vmatprep.subr.mxu0 0.0
  %7879 = vmatpush1.msra.mxu0 0.0
  %7880 = vmatprep.subr.mxu0 0.0
  %7881 = vmatpush1.msra.mxu0 0.0
  %7882 = vmatprep.subr.mxu0 0.0
  %7883 = vmatpush1.msra.mxu0 0.0
  %7884 = vmatprep.subr.mxu0 0.0
  %7885 = vmatpush1.msra.mxu0 0.0
  %7886 = vmatprep.subr.mxu0 0.0
  %7887 = vmatpush1.msra.mxu0 0.0
  %7888 = vmatprep.subr.mxu0 0.0
  %7889 = vmatpush1.msra.mxu0 0.0
  %7890 = vmatprep.subr.mxu0 0.0
  %7891 = vmatpush1.msra.mxu0 0.0
  %7892 = vmatprep.subr.mxu0 0.0
  %7893 = vmatpush1.msra.mxu0 0.0
  %7894 = vmatprep.mubr.f32.mxu0 0.0
  %7895 = vmatmul.mubr.f32.gmra.mrb[0].mxu0 %v6699
  %v7896 = vpop.f32.mrb[0].mxu0
  %v7897 = vadd.f32 0.0, %v7896
  %v7898 = vpop.f32.mrb[0].mxu0
  %v7899 = vadd.f32 0.0, %v7898
  %7900 = vmatprep.mubr.f32.mxu0 0.0
  %7901 = vmatmul.mubr.f32.gmra.mrb[0].mxu0 %v6702
  %v7902 = vpop.f32.mrb[0].mxu0
  %v7903 = vadd.f32 0.0, %v7902
  %v7904 = vpop.f32.mrb[0].mxu0
  %v7905 = vadd.f32 0.0, %v7904
  %7906 = vmatprep.mubr.f32.mxu0 0.0
  %7907 = vmatmul.mubr.f32.gmra.mrb[0].mxu0 %v6705
  %v7908 = vpop.f32.mrb[0].mxu0
  %v7909 = vadd.f32 0.0, %v7908
  %v7910 = vpop.f32.mrb[0].mxu0
  %v7911 = vadd.f32 0.0, %v7910
  %7912 = vmatprep.mubr.f32.mxu0 0.0
  %7913 = vmatmul.mubr.f32.gmra.mrb[0].mxu0 %v6708
  %v7914 = vpop.f32.mrb[0].mxu0
  %v7915 = vadd.f32 0.0, %v7914
  %v7916 = vpop.f32.mrb[0].mxu0
  %v7917 = vadd.f32 0.0, %v7916
  %7918 = vmatprep.mubr.f32.mxu0 0.0
  %7919 = vmatmul.mubr.f32.gmra.mrb[0].mxu0 %v6711
  %v7920 = vpop.f32.mrb[0].mxu0
  %v7921 = vadd.f32 0.0, %v7920
  %v7922 = vpop.f32.mrb[0].mxu0
  %v7923 = vadd.f32 0.0, %v7922
  %7924 = vmatprep.mubr.f32.mxu0 0.0
  %7925 = vmatmul.mubr.f32.gmra.mrb[0].mxu0 %v6714
  %v7926 = vpop.f32.mrb[0].mxu0
  %v7927 = vadd.f32 0.0, %v7926
  %v7928 = vpop.f32.mrb[0].mxu0
  %v7929 = vadd.f32 0.0, %v7928
  %7930 = vmatprep.mubr.f32.mxu0 0.0
  %7931 = vmatmul.mubr.f32.gmra.mrb[0].mxu0 %v6717
  %v7932 = vpop.f32.mrb[0].mxu0
  %v7933 = vadd.f32 0.0, %v7932
  %v7934 = vpop.f32.mrb[0].mxu0
  %v7935 = vadd.f32 0.0, %v7934
  %7936 = vmatprep.mubr.f32.mxu0 0.0
  %7937 = vmatmul.mubr.f32.gmra.mrb[0].mxu0 %v6720
  %v7938 = vpop.f32.mrb[0].mxu0
  %v7939 = vadd.f32 0.0, %v7938
  %v7940 = vpop.f32.mrb[0].mxu0
  %v7941 = vadd.f32 0.0, %v7940
  %7942 = vmatprep.mubr.f32.mxu0 0.0
  %7943 = vmatmul.mubr.f32.gmra.mrb[0].mxu0 %v6723
  %v7944 = vpop.f32.mrb[0].mxu0
  %v7945 = vadd.f32 0.0, %v7944
  %v7946 = vpop.f32.mrb[0].mxu0
  %v7947 = vadd.f32 0.0, %v7946
  %7948 = vmatprep.mubr.f32.mxu0 0.0
  %7949 = vmatmul.mubr.f32.gmra.mrb[0].mxu0 %v6726
  %v7950 = vpop.f32.mrb[0].mxu0
  %v7951 = vadd.f32 0.0, %v7950
  %v7952 = vpop.f32.mrb[0].mxu0
  %v7953 = vadd.f32 0.0, %v7952
  %7954 = vmatprep.mubr.f32.mxu0 0.0
  %7955 = vmatmul.mubr.f32.gmra.mrb[0].mxu0 %v6729
  %v7956 = vpop.f32.mrb[0].mxu0
  %v7957 = vadd.f32 0.0, %v7956
  %v7958 = vpop.f32.mrb[0].mxu0
  %v7959 = vadd.f32 0.0, %v7958
  %7960 = vmatprep.mubr.f32.mxu0 0.0
  %7961 = vmatmul.mubr.f32.gmra.mrb[0].mxu0 %v6732
  %v7962 = vpop.f32.mrb[0].mxu0
  %v7963 = vadd.f32 0.0, %v7962
  %v7964 = vpop.f32.mrb[0].mxu0
  %v7965 = vadd.f32 0.0, %v7964
  %7966 = vdwg.mxu0
  %7967 = vmatprep.subr.mxu0 %v6567
  %7968 = vmatpush1.msra.mxu0 %v6566
  %7969 = vmatprep.subr.mxu0 %v6592
  %7970 = vmatpush1.msra.mxu0 %v6591
  %7971 = vmatprep.subr.mxu0 %v6617
  %7972 = vmatpush1.msra.mxu0 %v6616
  %7973 = vmatprep.subr.mxu0 0.0
  %7974 = vmatpush1.msra.mxu0 0.0
  %7975 = vmatprep.subr.mxu0 0.0
  %7976 = vmatpush1.msra.mxu0 0.0
  %7977 = vmatprep.subr.mxu0 0.0
  %7978 = vmatpush1.msra.mxu0 0.0
  %7979 = vmatprep.subr.mxu0 0.0
  %7980 = vmatpush1.msra.mxu0 0.0
  %7981 = vmatprep.subr.mxu0 0.0
  %7982 = vmatpush1.msra.mxu0 0.0
  %7983 = vmatprep.subr.mxu0 0.0
  %7984 = vmatpush1.msra.mxu0 0.0
  %7985 = vmatprep.subr.mxu0 0.0
  %7986 = vmatpush1.msra.mxu0 0.0
  %7987 = vmatprep.subr.mxu0 0.0
  %7988 = vmatpush1.msra.mxu0 0.0
  %7989 = vmatprep.subr.mxu0 0.0
  %7990 = vmatpush1.msra.mxu0 0.0
  %7991 = vmatprep.subr.mxu0 0.0
  %7992 = vmatpush1.msra.mxu0 0.0
  %7993 = vmatprep.subr.mxu0 0.0
  %7994 = vmatpush1.msra.mxu0 0.0
  %7995 = vmatprep.subr.mxu0 0.0
  %7996 = vmatpush1.msra.mxu0 0.0
  %7997 = vmatprep.subr.mxu0 0.0
  %7998 = vmatpush1.msra.mxu0 0.0
  %7999 = vmatprep.subr.mxu0 0.0
  %8000 = vmatpush1.msra.mxu0 0.0
  %8001 = vmatprep.subr.mxu0 0.0
  %8002 = vmatpush1.msra.mxu0 0.0
  %8003 = vmatprep.subr.mxu0 0.0
  %8004 = vmatpush1.msra.mxu0 0.0
  %8005 = vmatprep.subr.mxu0 0.0
  %8006 = vmatpush1.msra.mxu0 0.0
  %8007 = vmatprep.subr.mxu0 0.0
  %8008 = vmatpush1.msra.mxu0 0.0
  %8009 = vmatprep.subr.mxu0 0.0
  %8010 = vmatpush1.msra.mxu0 0.0
  %8011 = vmatprep.subr.mxu0 0.0
  %8012 = vmatpush1.msra.mxu0 0.0
  %8013 = vmatprep.subr.mxu0 0.0
  %8014 = vmatpush1.msra.mxu0 0.0
  %8015 = vmatprep.subr.mxu0 0.0
  %8016 = vmatpush1.msra.mxu0 0.0
  %8017 = vmatprep.subr.mxu0 0.0
  %8018 = vmatpush1.msra.mxu0 0.0
  %8019 = vmatprep.subr.mxu0 0.0
  %8020 = vmatpush1.msra.mxu0 0.0
  %8021 = vmatprep.subr.mxu0 0.0
  %8022 = vmatpush1.msra.mxu0 0.0
  %8023 = vmatprep.subr.mxu0 0.0
  %8024 = vmatpush1.msra.mxu0 0.0
  %8025 = vmatprep.subr.mxu0 0.0
  %8026 = vmatpush1.msra.mxu0 0.0
  %8027 = vmatprep.subr.mxu0 0.0
  %8028 = vmatpush1.msra.mxu0 0.0
  %8029 = vmatprep.subr.mxu0 0.0
  %8030 = vmatpush1.msra.mxu0 0.0
  %8031 = vmatprep.mubr.f32.mxu0 0.0
  %8032 = vmatmul.mubr.f32.gmra.mrb[0].mxu0 %v6699
  %v8033 = vpop.f32.mrb[0].mxu0
  %v8034 = vadd.f32 0.0, %v8033
  %v8035 = vpop.f32.mrb[0].mxu0
  %v8036 = vadd.f32 0.0, %v8035
  %8037 = vmatprep.mubr.f32.mxu0 0.0
  %8038 = vmatmul.mubr.f32.gmra.mrb[0].mxu0 %v6702
  %v8039 = vpop.f32.mrb[0].mxu0
  %v8040 = vadd.f32 0.0, %v8039
  %v8041 = vpop.f32.mrb[0].mxu0
  %v8042 = vadd.f32 0.0, %v8041
  %8043 = vmatprep.mubr.f32.mxu0 0.0
  %8044 = vmatmul.mubr.f32.gmra.mrb[0].mxu0 %v6705
  %v8045 = vpop.f32.mrb[0].mxu0
  %v8046 = vadd.f32 0.0, %v8045
  %v8047 = vpop.f32.mrb[0].mxu0
  %v8048 = vadd.f32 0.0, %v8047
  %8049 = vmatprep.mubr.f32.mxu0 0.0
  %8050 = vmatmul.mubr.f32.gmra.mrb[0].mxu0 %v6708
  %v8051 = vpop.f32.mrb[0].mxu0
  %v8052 = vadd.f32 0.0, %v8051
  %v8053 = vpop.f32.mrb[0].mxu0
  %v8054 = vadd.f32 0.0, %v8053
  %8055 = vmatprep.mubr.f32.mxu0 0.0
  %8056 = vmatmul.mubr.f32.gmra.mrb[0].mxu0 %v6711
  %v8057 = vpop.f32.mrb[0].mxu0
  %v8058 = vadd.f32 0.0, %v8057
  %v8059 = vpop.f32.mrb[0].mxu0
  %v8060 = vadd.f32 0.0, %v8059
  %8061 = vmatprep.mubr.f32.mxu0 0.0
  %8062 = vmatmul.mubr.f32.gmra.mrb[0].mxu0 %v6714
  %v8063 = vpop.f32.mrb[0].mxu0
  %v8064 = vadd.f32 0.0, %v8063
  %v8065 = vpop.f32.mrb[0].mxu0
  %v8066 = vadd.f32 0.0, %v8065
  %8067 = vmatprep.mubr.f32.mxu0 0.0
  %8068 = vmatmul.mubr.f32.gmra.mrb[0].mxu0 %v6717
  %v8069 = vpop.f32.mrb[0].mxu0
  %v8070 = vadd.f32 0.0, %v8069
  %v8071 = vpop.f32.mrb[0].mxu0
  %v8072 = vadd.f32 0.0, %v8071
  %8073 = vmatprep.mubr.f32.mxu0 0.0
  %8074 = vmatmul.mubr.f32.gmra.mrb[0].mxu0 %v6720
  %v8075 = vpop.f32.mrb[0].mxu0
  %v8076 = vadd.f32 0.0, %v8075
  %v8077 = vpop.f32.mrb[0].mxu0
  %v8078 = vadd.f32 0.0, %v8077
  %8079 = vmatprep.mubr.f32.mxu0 0.0
  %8080 = vmatmul.mubr.f32.gmra.mrb[0].mxu0 %v6723
  %v8081 = vpop.f32.mrb[0].mxu0
  %v8082 = vadd.f32 0.0, %v8081
  %v8083 = vpop.f32.mrb[0].mxu0
  %v8084 = vadd.f32 0.0, %v8083
  %8085 = vmatprep.mubr.f32.mxu0 0.0
  %8086 = vmatmul.mubr.f32.gmra.mrb[0].mxu0 %v6726
  %v8087 = vpop.f32.mrb[0].mxu0
  %v8088 = vadd.f32 0.0, %v8087
  %v8089 = vpop.f32.mrb[0].mxu0
  %v8090 = vadd.f32 0.0, %v8089
  %8091 = vmatprep.mubr.f32.mxu0 0.0
  %8092 = vmatmul.mubr.f32.gmra.mrb[0].mxu0 %v6729
  %v8093 = vpop.f32.mrb[0].mxu0
  %v8094 = vadd.f32 0.0, %v8093
  %v8095 = vpop.f32.mrb[0].mxu0
  %v8096 = vadd.f32 0.0, %v8095
  %8097 = vmatprep.mubr.f32.mxu0 0.0
  %8098 = vmatmul.mubr.f32.gmra.mrb[0].mxu0 %v6732
  %v8099 = vpop.f32.mrb[0].mxu0
  %v8100 = vadd.f32 0.0, %v8099
  %v8101 = vpop.f32.mrb[0].mxu0
  %v8102 = vadd.f32 0.0, %v8101
  %8103 = vdwg.mxu0
  %8104 = vmatprep.subr.mxu0 %v6569
  %8105 = vmatpush1.msra.mxu0 %v6568
  %8106 = vmatprep.subr.mxu0 %v6594
  %8107 = vmatpush1.msra.mxu0 %v6593
  %8108 = vmatprep.subr.mxu0 %v6619
  %8109 = vmatpush1.msra.mxu0 %v6618
  %8110 = vmatprep.subr.mxu0 0.0
  %8111 = vmatpush1.msra.mxu0 0.0
  %8112 = vmatprep.subr.mxu0 0.0
  %8113 = vmatpush1.msra.mxu0 0.0
  %8114 = vmatprep.subr.mxu0 0.0
  %8115 = vmatpush1.msra.mxu0 0.0
  %8116 = vmatprep.subr.mxu0 0.0
  %8117 = vmatpush1.msra.mxu0 0.0
  %8118 = vmatprep.subr.mxu0 0.0
  %8119 = vmatpush1.msra.mxu0 0.0
  %8120 = vmatprep.subr.mxu0 0.0
  %8121 = vmatpush1.msra.mxu0 0.0
  %8122 = vmatprep.subr.mxu0 0.0
  %8123 = vmatpush1.msra.mxu0 0.0
  %8124 = vmatprep.subr.mxu0 0.0
  %8125 = vmatpush1.msra.mxu0 0.0
  %8126 = vmatprep.subr.mxu0 0.0
  %8127 = vmatpush1.msra.mxu0 0.0
  %8128 = vmatprep.subr.mxu0 0.0
  %8129 = vmatpush1.msra.mxu0 0.0
  %8130 = vmatprep.subr.mxu0 0.0
  %8131 = vmatpush1.msra.mxu0 0.0
  %8132 = vmatprep.subr.mxu0 0.0
  %8133 = vmatpush1.msra.mxu0 0.0
  %8134 = vmatprep.subr.mxu0 0.0
  %8135 = vmatpush1.msra.mxu0 0.0
  %8136 = vmatprep.subr.mxu0 0.0
  %8137 = vmatpush1.msra.mxu0 0.0
  %8138 = vmatprep.subr.mxu0 0.0
  %8139 = vmatpush1.msra.mxu0 0.0
  %8140 = vmatprep.subr.mxu0 0.0
  %8141 = vmatpush1.msra.mxu0 0.0
  %8142 = vmatprep.subr.mxu0 0.0
  %8143 = vmatpush1.msra.mxu0 0.0
  %8144 = vmatprep.subr.mxu0 0.0
  %8145 = vmatpush1.msra.mxu0 0.0
  %8146 = vmatprep.subr.mxu0 0.0
  %8147 = vmatpush1.msra.mxu0 0.0
  %8148 = vmatprep.subr.mxu0 0.0
  %8149 = vmatpush1.msra.mxu0 0.0
  %8150 = vmatprep.subr.mxu0 0.0
  %8151 = vmatpush1.msra.mxu0 0.0
  %8152 = vmatprep.subr.mxu0 0.0
  %8153 = vmatpush1.msra.mxu0 0.0
  %8154 = vmatprep.subr.mxu0 0.0
  %8155 = vmatpush1.msra.mxu0 0.0
  %8156 = vmatprep.subr.mxu0 0.0
  %8157 = vmatpush1.msra.mxu0 0.0
  %8158 = vmatprep.subr.mxu0 0.0
  %8159 = vmatpush1.msra.mxu0 0.0
  %8160 = vmatprep.subr.mxu0 0.0
  %8161 = vmatpush1.msra.mxu0 0.0
  %8162 = vmatprep.subr.mxu0 0.0
  %8163 = vmatpush1.msra.mxu0 0.0
  %8164 = vmatprep.subr.mxu0 0.0
  %8165 = vmatpush1.msra.mxu0 0.0
  %8166 = vmatprep.subr.mxu0 0.0
  %8167 = vmatpush1.msra.mxu0 0.0
  %8168 = vmatprep.mubr.f32.mxu0 0.0
  %8169 = vmatmul.mubr.f32.gmra.mrb[0].mxu0 %v6699
  %v8170 = vpop.f32.mrb[0].mxu0
  %v8171 = vadd.f32 0.0, %v8170
  %v8172 = vpop.f32.mrb[0].mxu0
  %v8173 = vadd.f32 0.0, %v8172
  %8174 = vmatprep.mubr.f32.mxu0 0.0
  %8175 = vmatmul.mubr.f32.gmra.mrb[0].mxu0 %v6702
  %v8176 = vpop.f32.mrb[0].mxu0
  %v8177 = vadd.f32 0.0, %v8176
  %v8178 = vpop.f32.mrb[0].mxu0
  %v8179 = vadd.f32 0.0, %v8178
  %8180 = vmatprep.mubr.f32.mxu0 0.0
  %8181 = vmatmul.mubr.f32.gmra.mrb[0].mxu0 %v6705
  %v8182 = vpop.f32.mrb[0].mxu0
  %v8183 = vadd.f32 0.0, %v8182
  %v8184 = vpop.f32.mrb[0].mxu0
  %v8185 = vadd.f32 0.0, %v8184
  %8186 = vmatprep.mubr.f32.mxu0 0.0
  %8187 = vmatmul.mubr.f32.gmra.mrb[0].mxu0 %v6708
  %v8188 = vpop.f32.mrb[0].mxu0
  %v8189 = vadd.f32 0.0, %v8188
  %v8190 = vpop.f32.mrb[0].mxu0
  %v8191 = vadd.f32 0.0, %v8190
  %8192 = vmatprep.mubr.f32.mxu0 0.0
  %8193 = vmatmul.mubr.f32.gmra.mrb[0].mxu0 %v6711
  %v8194 = vpop.f32.mrb[0].mxu0
  %v8195 = vadd.f32 0.0, %v8194
  %v8196 = vpop.f32.mrb[0].mxu0
  %v8197 = vadd.f32 0.0, %v8196
  %8198 = vmatprep.mubr.f32.mxu0 0.0
  %8199 = vmatmul.mubr.f32.gmra.mrb[0].mxu0 %v6714
  %v8200 = vpop.f32.mrb[0].mxu0
  %v8201 = vadd.f32 0.0, %v8200
  %v8202 = vpop.f32.mrb[0].mxu0
  %v8203 = vadd.f32 0.0, %v8202
  %8204 = vmatprep.mubr.f32.mxu0 0.0
  %8205 = vmatmul.mubr.f32.gmra.mrb[0].mxu0 %v6717
  %v8206 = vpop.f32.mrb[0].mxu0
  %v8207 = vadd.f32 0.0, %v8206
  %v8208 = vpop.f32.mrb[0].mxu0
  %v8209 = vadd.f32 0.0, %v8208
  %8210 = vmatprep.mubr.f32.mxu0 0.0
  %8211 = vmatmul.mubr.f32.gmra.mrb[0].mxu0 %v6720
  %v8212 = vpop.f32.mrb[0].mxu0
  %v8213 = vadd.f32 0.0, %v8212
  %v8214 = vpop.f32.mrb[0].mxu0
  %v8215 = vadd.f32 0.0, %v8214
  %8216 = vmatprep.mubr.f32.mxu0 0.0
  %8217 = vmatmul.mubr.f32.gmra.mrb[0].mxu0 %v6723
  %v8218 = vpop.f32.mrb[0].mxu0
  %v8219 = vadd.f32 0.0, %v8218
  %v8220 = vpop.f32.mrb[0].mxu0
  %v8221 = vadd.f32 0.0, %v8220
  %8222 = vmatprep.mubr.f32.mxu0 0.0
  %8223 = vmatmul.mubr.f32.gmra.mrb[0].mxu0 %v6726
  %v8224 = vpop.f32.mrb[0].mxu0
  %v8225 = vadd.f32 0.0, %v8224
  %v8226 = vpop.f32.mrb[0].mxu0
  %v8227 = vadd.f32 0.0, %v8226
  %8228 = vmatprep.mubr.f32.mxu0 0.0
  %8229 = vmatmul.mubr.f32.gmra.mrb[0].mxu0 %v6729
  %v8230 = vpop.f32.mrb[0].mxu0
  %v8231 = vadd.f32 0.0, %v8230
  %v8232 = vpop.f32.mrb[0].mxu0
  %v8233 = vadd.f32 0.0, %v8232
  %8234 = vmatprep.mubr.f32.mxu0 0.0
  %8235 = vmatmul.mubr.f32.gmra.mrb[0].mxu0 %v6732
  %v8236 = vpop.f32.mrb[0].mxu0
  %v8237 = vadd.f32 0.0, %v8236
  %v8238 = vpop.f32.mrb[0].mxu0
  %v8239 = vadd.f32 0.0, %v8238
  %8240 = vdwg.mxu0
  %8241 = vmatprep.subr.mxu0 %v6571
  %8242 = vmatpush1.msra.mxu0 %v6570
  %8243 = vmatprep.subr.mxu0 %v6596
  %8244 = vmatpush1.msra.mxu0 %v6595
  %8245 = vmatprep.subr.mxu0 %v6621
  %8246 = vmatpush1.msra.mxu0 %v6620
  %8247 = vmatprep.subr.mxu0 0.0
  %8248 = vmatpush1.msra.mxu0 0.0
  %8249 = vmatprep.subr.mxu0 0.0
  %8250 = vmatpush1.msra.mxu0 0.0
  %8251 = vmatprep.subr.mxu0 0.0
  %8252 = vmatpush1.msra.mxu0 0.0
  %8253 = vmatprep.subr.mxu0 0.0
  %8254 = vmatpush1.msra.mxu0 0.0
  %8255 = vmatprep.subr.mxu0 0.0
  %8256 = vmatpush1.msra.mxu0 0.0
  %8257 = vmatprep.subr.mxu0 0.0
  %8258 = vmatpush1.msra.mxu0 0.0
  %8259 = vmatprep.subr.mxu0 0.0
  %8260 = vmatpush1.msra.mxu0 0.0
  %8261 = vmatprep.subr.mxu0 0.0
  %8262 = vmatpush1.msra.mxu0 0.0
  %8263 = vmatprep.subr.mxu0 0.0
  %8264 = vmatpush1.msra.mxu0 0.0
  %8265 = vmatprep.subr.mxu0 0.0
  %8266 = vmatpush1.msra.mxu0 0.0
  %8267 = vmatprep.subr.mxu0 0.0
  %8268 = vmatpush1.msra.mxu0 0.0
  %8269 = vmatprep.subr.mxu0 0.0
  %8270 = vmatpush1.msra.mxu0 0.0
  %8271 = vmatprep.subr.mxu0 0.0
  %8272 = vmatpush1.msra.mxu0 0.0
  %8273 = vmatprep.subr.mxu0 0.0
  %8274 = vmatpush1.msra.mxu0 0.0
  %8275 = vmatprep.subr.mxu0 0.0
  %8276 = vmatpush1.msra.mxu0 0.0
  %8277 = vmatprep.subr.mxu0 0.0
  %8278 = vmatpush1.msra.mxu0 0.0
  %8279 = vmatprep.subr.mxu0 0.0
  %8280 = vmatpush1.msra.mxu0 0.0
  %8281 = vmatprep.subr.mxu0 0.0
  %8282 = vmatpush1.msra.mxu0 0.0
  %8283 = vmatprep.subr.mxu0 0.0
  %8284 = vmatpush1.msra.mxu0 0.0
  %8285 = vmatprep.subr.mxu0 0.0
  %8286 = vmatpush1.msra.mxu0 0.0
  %8287 = vmatprep.subr.mxu0 0.0
  %8288 = vmatpush1.msra.mxu0 0.0
  %8289 = vmatprep.subr.mxu0 0.0
  %8290 = vmatpush1.msra.mxu0 0.0
  %8291 = vmatprep.subr.mxu0 0.0
  %8292 = vmatpush1.msra.mxu0 0.0
  %8293 = vmatprep.subr.mxu0 0.0
  %8294 = vmatpush1.msra.mxu0 0.0
  %8295 = vmatprep.subr.mxu0 0.0
  %8296 = vmatpush1.msra.mxu0 0.0
  %8297 = vmatprep.subr.mxu0 0.0
  %8298 = vmatpush1.msra.mxu0 0.0
  %8299 = vmatprep.subr.mxu0 0.0
  %8300 = vmatpush1.msra.mxu0 0.0
  %8301 = vmatprep.subr.mxu0 0.0
  %8302 = vmatpush1.msra.mxu0 0.0
  %8303 = vmatprep.subr.mxu0 0.0
  %8304 = vmatpush1.msra.mxu0 0.0
  %8305 = vmatprep.mubr.f32.mxu0 0.0
  %8306 = vmatmul.mubr.f32.gmra.mrb[0].mxu0 %v6699
  %v8307 = vpop.f32.mrb[0].mxu0
  %v8308 = vadd.f32 0.0, %v8307
  %v8309 = vpop.f32.mrb[0].mxu0
  %v8310 = vadd.f32 0.0, %v8309
  %8311 = vmatprep.mubr.f32.mxu0 0.0
  %8312 = vmatmul.mubr.f32.gmra.mrb[0].mxu0 %v6702
  %v8313 = vpop.f32.mrb[0].mxu0
  %v8314 = vadd.f32 0.0, %v8313
  %v8315 = vpop.f32.mrb[0].mxu0
  %v8316 = vadd.f32 0.0, %v8315
  %8317 = vmatprep.mubr.f32.mxu0 0.0
  %8318 = vmatmul.mubr.f32.gmra.mrb[0].mxu0 %v6705
  %v8319 = vpop.f32.mrb[0].mxu0
  %v8320 = vadd.f32 0.0, %v8319
  %v8321 = vpop.f32.mrb[0].mxu0
  %v8322 = vadd.f32 0.0, %v8321
  %8323 = vmatprep.mubr.f32.mxu0 0.0
  %8324 = vmatmul.mubr.f32.gmra.mrb[0].mxu0 %v6708
  %v8325 = vpop.f32.mrb[0].mxu0
  %v8326 = vadd.f32 0.0, %v8325
  %v8327 = vpop.f32.mrb[0].mxu0
  %v8328 = vadd.f32 0.0, %v8327
  %8329 = vmatprep.mubr.f32.mxu0 0.0
  %8330 = vmatmul.mubr.f32.gmra.mrb[0].mxu0 %v6711
  %v8331 = vpop.f32.mrb[0].mxu0
  %v8332 = vadd.f32 0.0, %v8331
  %v8333 = vpop.f32.mrb[0].mxu0
  %v8334 = vadd.f32 0.0, %v8333
  %8335 = vmatprep.mubr.f32.mxu0 0.0
  %8336 = vmatmul.mubr.f32.gmra.mrb[0].mxu0 %v6714
  %v8337 = vpop.f32.mrb[0].mxu0
  %v8338 = vadd.f32 0.0, %v8337
  %v8339 = vpop.f32.mrb[0].mxu0
  %v8340 = vadd.f32 0.0, %v8339
  %8341 = vmatprep.mubr.f32.mxu0 0.0
  %8342 = vmatmul.mubr.f32.gmra.mrb[0].mxu0 %v6717
  %v8343 = vpop.f32.mrb[0].mxu0
  %v8344 = vadd.f32 0.0, %v8343
  %v8345 = vpop.f32.mrb[0].mxu0
  %v8346 = vadd.f32 0.0, %v8345
  %8347 = vmatprep.mubr.f32.mxu0 0.0
  %8348 = vmatmul.mubr.f32.gmra.mrb[0].mxu0 %v6720
  %v8349 = vpop.f32.mrb[0].mxu0
  %v8350 = vadd.f32 0.0, %v8349
  %v8351 = vpop.f32.mrb[0].mxu0
  %v8352 = vadd.f32 0.0, %v8351
  %8353 = vmatprep.mubr.f32.mxu0 0.0
  %8354 = vmatmul.mubr.f32.gmra.mrb[0].mxu0 %v6723
  %v8355 = vpop.f32.mrb[0].mxu0
  %v8356 = vadd.f32 0.0, %v8355
  %v8357 = vpop.f32.mrb[0].mxu0
  %v8358 = vadd.f32 0.0, %v8357
  %8359 = vmatprep.mubr.f32.mxu0 0.0
  %8360 = vmatmul.mubr.f32.gmra.mrb[0].mxu0 %v6726
  %v8361 = vpop.f32.mrb[0].mxu0
  %v8362 = vadd.f32 0.0, %v8361
  %v8363 = vpop.f32.mrb[0].mxu0
  %v8364 = vadd.f32 0.0, %v8363
  %8365 = vmatprep.mubr.f32.mxu0 0.0
  %8366 = vmatmul.mubr.f32.gmra.mrb[0].mxu0 %v6729
  %v8367 = vpop.f32.mrb[0].mxu0
  %v8368 = vadd.f32 0.0, %v8367
  %v8369 = vpop.f32.mrb[0].mxu0
  %v8370 = vadd.f32 0.0, %v8369
  %8371 = vmatprep.mubr.f32.mxu0 0.0
  %8372 = vmatmul.mubr.f32.gmra.mrb[0].mxu0 %v6732
  %v8373 = vpop.f32.mrb[0].mxu0
  %v8374 = vadd.f32 0.0, %v8373
  %v8375 = vpop.f32.mrb[0].mxu0
  %v8376 = vadd.f32 0.0, %v8375
  %8377 = vdwg.mxu0
  %8378 = vmatprep.subr.mxu0 0.0
  %8379 = vmatpush1.msra.mxu0 %v6572
  %8380 = vmatprep.subr.mxu0 0.0
  %8381 = vmatpush1.msra.mxu0 %v6597
  %8382 = vmatprep.subr.mxu0 0.0
  %8383 = vmatpush1.msra.mxu0 %v6622
  %8384 = vmatprep.subr.mxu0 0.0
  %8385 = vmatpush1.msra.mxu0 0.0
  %8386 = vmatprep.subr.mxu0 0.0
  %8387 = vmatpush1.msra.mxu0 0.0
  %8388 = vmatprep.subr.mxu0 0.0
  %8389 = vmatpush1.msra.mxu0 0.0
  %8390 = vmatprep.subr.mxu0 0.0
  %8391 = vmatpush1.msra.mxu0 0.0
  %8392 = vmatprep.subr.mxu0 0.0
  %8393 = vmatpush1.msra.mxu0 0.0
  %8394 = vmatprep.subr.mxu0 0.0
  %8395 = vmatpush1.msra.mxu0 0.0
  %8396 = vmatprep.subr.mxu0 0.0
  %8397 = vmatpush1.msra.mxu0 0.0
  %8398 = vmatprep.subr.mxu0 0.0
  %8399 = vmatpush1.msra.mxu0 0.0
  %8400 = vmatprep.subr.mxu0 0.0
  %8401 = vmatpush1.msra.mxu0 0.0
  %8402 = vmatprep.subr.mxu0 0.0
  %8403 = vmatpush1.msra.mxu0 0.0
  %8404 = vmatprep.subr.mxu0 0.0
  %8405 = vmatpush1.msra.mxu0 0.0
  %8406 = vmatprep.subr.mxu0 0.0
  %8407 = vmatpush1.msra.mxu0 0.0
  %8408 = vmatprep.subr.mxu0 0.0
  %8409 = vmatpush1.msra.mxu0 0.0
  %8410 = vmatprep.subr.mxu0 0.0
  %8411 = vmatpush1.msra.mxu0 0.0
  %8412 = vmatprep.subr.mxu0 0.0
  %8413 = vmatpush1.msra.mxu0 0.0
  %8414 = vmatprep.subr.mxu0 0.0
  %8415 = vmatpush1.msra.mxu0 0.0
  %8416 = vmatprep.subr.mxu0 0.0
  %8417 = vmatpush1.msra.mxu0 0.0
  %8418 = vmatprep.subr.mxu0 0.0
  %8419 = vmatpush1.msra.mxu0 0.0
  %8420 = vmatprep.subr.mxu0 0.0
  %8421 = vmatpush1.msra.mxu0 0.0
  %8422 = vmatprep.subr.mxu0 0.0
  %8423 = vmatpush1.msra.mxu0 0.0
  %8424 = vmatprep.subr.mxu0 0.0
  %8425 = vmatpush1.msra.mxu0 0.0
  %8426 = vmatprep.subr.mxu0 0.0
  %8427 = vmatpush1.msra.mxu0 0.0
  %8428 = vmatprep.subr.mxu0 0.0
  %8429 = vmatpush1.msra.mxu0 0.0
  %8430 = vmatprep.subr.mxu0 0.0
  %8431 = vmatpush1.msra.mxu0 0.0
  %8432 = vmatprep.subr.mxu0 0.0
  %8433 = vmatpush1.msra.mxu0 0.0
  %8434 = vmatprep.subr.mxu0 0.0
  %8435 = vmatpush1.msra.mxu0 0.0
  %8436 = vmatprep.subr.mxu0 0.0
  %8437 = vmatpush1.msra.mxu0 0.0
  %8438 = vmatprep.subr.mxu0 0.0
  %8439 = vmatpush1.msra.mxu0 0.0
  %8440 = vmatprep.subr.mxu0 0.0
  %8441 = vmatpush1.msra.mxu0 0.0
  %8442 = vmatprep.mubr.f32.mxu0 0.0
  %8443 = vmatmul.mubr.f32.gmra.mrb[0].mxu0 %v6699
  %v8444 = vpop.f32.mrb[0].mxu0
  %v8445 = vadd.f32 0.0, %v8444
  %v8446 = vpop.f32.mrb[0].mxu0
  %8447 = vmatprep.mubr.f32.mxu0 0.0
  %8448 = vmatmul.mubr.f32.gmra.mrb[0].mxu0 %v6702
  %v8449 = vpop.f32.mrb[0].mxu0
  %v8450 = vadd.f32 0.0, %v8449
  %v8451 = vpop.f32.mrb[0].mxu0
  %8452 = vmatprep.mubr.f32.mxu0 0.0
  %8453 = vmatmul.mubr.f32.gmra.mrb[0].mxu0 %v6705
  %v8454 = vpop.f32.mrb[0].mxu0
  %v8455 = vadd.f32 0.0, %v8454
  %v8456 = vpop.f32.mrb[0].mxu0
  %8457 = vmatprep.mubr.f32.mxu0 0.0
  %8458 = vmatmul.mubr.f32.gmra.mrb[0].mxu0 %v6708
  %v8459 = vpop.f32.mrb[0].mxu0
  %v8460 = vadd.f32 0.0, %v8459
  %v8461 = vpop.f32.mrb[0].mxu0
  %8462 = vmatprep.mubr.f32.mxu0 0.0
  %8463 = vmatmul.mubr.f32.gmra.mrb[0].mxu0 %v6711
  %v8464 = vpop.f32.mrb[0].mxu0
  %v8465 = vadd.f32 0.0, %v8464
  %v8466 = vpop.f32.mrb[0].mxu0
  %8467 = vmatprep.mubr.f32.mxu0 0.0
  %8468 = vmatmul.mubr.f32.gmra.mrb[0].mxu0 %v6714
  %v8469 = vpop.f32.mrb[0].mxu0
  %v8470 = vadd.f32 0.0, %v8469
  %v8471 = vpop.f32.mrb[0].mxu0
  %8472 = vmatprep.mubr.f32.mxu0 0.0
  %8473 = vmatmul.mubr.f32.gmra.mrb[0].mxu0 %v6717
  %v8474 = vpop.f32.mrb[0].mxu0
  %v8475 = vadd.f32 0.0, %v8474
  %v8476 = vpop.f32.mrb[0].mxu0
  %8477 = vmatprep.mubr.f32.mxu0 0.0
  %8478 = vmatmul.mubr.f32.gmra.mrb[0].mxu0 %v6720
  %v8479 = vpop.f32.mrb[0].mxu0
  %v8480 = vadd.f32 0.0, %v8479
  %v8481 = vpop.f32.mrb[0].mxu0
  %8482 = vmatprep.mubr.f32.mxu0 0.0
  %8483 = vmatmul.mubr.f32.gmra.mrb[0].mxu0 %v6723
  %v8484 = vpop.f32.mrb[0].mxu0
  %v8485 = vadd.f32 0.0, %v8484
  %v8486 = vpop.f32.mrb[0].mxu0
  %8487 = vmatprep.mubr.f32.mxu0 0.0
  %8488 = vmatmul.mubr.f32.gmra.mrb[0].mxu0 %v6726
  %v8489 = vpop.f32.mrb[0].mxu0
  %v8490 = vadd.f32 0.0, %v8489
  %v8491 = vpop.f32.mrb[0].mxu0
  %8492 = vmatprep.mubr.f32.mxu0 0.0
  %8493 = vmatmul.mubr.f32.gmra.mrb[0].mxu0 %v6729
  %v8494 = vpop.f32.mrb[0].mxu0
  %v8495 = vadd.f32 0.0, %v8494
  %v8496 = vpop.f32.mrb[0].mxu0
  %8497 = vmatprep.mubr.f32.mxu0 0.0
  %8498 = vmatmul.mubr.f32.gmra.mrb[0].mxu0 %v6732
  %v8499 = vpop.f32.mrb[0].mxu0
  %v8500 = vadd.f32 0.0, %v8499
  %v8501 = vpop.f32.mrb[0].mxu0
  %8502 = vdwg.mxu0
  %v8503 = vadd.f32 %v4521, %v6801
  %v8504 = vadd.f32 %v4523, %v6803
  %v8505 = vadd.f32 %v4658, %v6938
  %v8506 = vadd.f32 %v4660, %v6940
  %v8507 = vadd.f32 %v4795, %v7075
  %v8508 = vadd.f32 %v4797, %v7077
  %v8509 = vadd.f32 %v4932, %v7212
  %v8510 = vadd.f32 %v4934, %v7214
  %v8511 = vadd.f32 %v5069, %v7349
  %v8512 = vadd.f32 %v5071, %v7351
  %v8513 = vadd.f32 %v5206, %v7486
  %v8514 = vadd.f32 %v5208, %v7488
  %v8515 = vadd.f32 %v5343, %v7623
  %v8516 = vadd.f32 %v5345, %v7625
  %v8517 = vadd.f32 %v5480, %v7760
  %v8518 = vadd.f32 %v5482, %v7762
  %v8519 = vadd.f32 %v5617, %v7897
  %v8520 = vadd.f32 %v5619, %v7899
  %v8521 = vadd.f32 %v5754, %v8034
  %v8522 = vadd.f32 %v5756, %v8036
  %v8523 = vadd.f32 %v5891, %v8171
  %v8524 = vadd.f32 %v5893, %v8173
  %v8525 = vadd.f32 %v6028, %v8308
  %v8526 = vadd.f32 %v6030, %v8310
  %v8527 = vadd.f32 %v6165, %v8445
  %v8528 = vadd.f32 %v4527, %v6807
  %v8529 = vadd.f32 %v4529, %v6809
  %v8530 = vadd.f32 %v4664, %v6944
  %v8531 = vadd.f32 %v4666, %v6946
  %v8532 = vadd.f32 %v4801, %v7081
  %v8533 = vadd.f32 %v4803, %v7083
  %v8534 = vadd.f32 %v4938, %v7218
  %v8535 = vadd.f32 %v4940, %v7220
  %v8536 = vadd.f32 %v5075, %v7355
  %v8537 = vadd.f32 %v5077, %v7357
  %v8538 = vadd.f32 %v5212, %v7492
  %v8539 = vadd.f32 %v5214, %v7494
  %v8540 = vadd.f32 %v5349, %v7629
  %v8541 = vadd.f32 %v5351, %v7631
  %v8542 = vadd.f32 %v5486, %v7766
  %v8543 = vadd.f32 %v5488, %v7768
  %v8544 = vadd.f32 %v5623, %v7903
  %v8545 = vadd.f32 %v5625, %v7905
  %v8546 = vadd.f32 %v5760, %v8040
  %v8547 = vadd.f32 %v5762, %v8042
  %v8548 = vadd.f32 %v5897, %v8177
  %v8549 = vadd.f32 %v5899, %v8179
  %v8550 = vadd.f32 %v6034, %v8314
  %v8551 = vadd.f32 %v6036, %v8316
  %v8552 = vadd.f32 %v6170, %v8450
  %v8553 = vadd.f32 %v4533, %v6813
  %v8554 = vadd.f32 %v4535, %v6815
  %v8555 = vadd.f32 %v4670, %v6950
  %v8556 = vadd.f32 %v4672, %v6952
  %v8557 = vadd.f32 %v4807, %v7087
  %v8558 = vadd.f32 %v4809, %v7089
  %v8559 = vadd.f32 %v4944, %v7224
  %v8560 = vadd.f32 %v4946, %v7226
  %v8561 = vadd.f32 %v5081, %v7361
  %v8562 = vadd.f32 %v5083, %v7363
  %v8563 = vadd.f32 %v5218, %v7498
  %v8564 = vadd.f32 %v5220, %v7500
  %v8565 = vadd.f32 %v5355, %v7635
  %v8566 = vadd.f32 %v5357, %v7637
  %v8567 = vadd.f32 %v5492, %v7772
  %v8568 = vadd.f32 %v5494, %v7774
  %v8569 = vadd.f32 %v5629, %v7909
  %v8570 = vadd.f32 %v5631, %v7911
  %v8571 = vadd.f32 %v5766, %v8046
  %v8572 = vadd.f32 %v5768, %v8048
  %v8573 = vadd.f32 %v5903, %v8183
  %v8574 = vadd.f32 %v5905, %v8185
  %v8575 = vadd.f32 %v6040, %v8320
  %v8576 = vadd.f32 %v6042, %v8322
  %v8577 = vadd.f32 %v6175, %v8455
  %v8578 = vadd.f32 %v4539, %v6819
  %v8579 = vadd.f32 %v4541, %v6821
  %v8580 = vadd.f32 %v4676, %v6956
  %v8581 = vadd.f32 %v4678, %v6958
  %v8582 = vadd.f32 %v4813, %v7093
  %v8583 = vadd.f32 %v4815, %v7095
  %v8584 = vadd.f32 %v4950, %v7230
  %v8585 = vadd.f32 %v4952, %v7232
  %v8586 = vadd.f32 %v5087, %v7367
  %v8587 = vadd.f32 %v5089, %v7369
  %v8588 = vadd.f32 %v5224, %v7504
  %v8589 = vadd.f32 %v5226, %v7506
  %v8590 = vadd.f32 %v5361, %v7641
  %v8591 = vadd.f32 %v5363, %v7643
  %v8592 = vadd.f32 %v5498, %v7778
  %v8593 = vadd.f32 %v5500, %v7780
  %v8594 = vadd.f32 %v5635, %v7915
  %v8595 = vadd.f32 %v5637, %v7917
  %v8596 = vadd.f32 %v5772, %v8052
  %v8597 = vadd.f32 %v5774, %v8054
  %v8598 = vadd.f32 %v5909, %v8189
  %v8599 = vadd.f32 %v5911, %v8191
  %v8600 = vadd.f32 %v6046, %v8326
  %v8601 = vadd.f32 %v6048, %v8328
  %v8602 = vadd.f32 %v6180, %v8460
  %v8603 = vadd.f32 %v4545, %v6825
  %v8604 = vadd.f32 %v4547, %v6827
  %v8605 = vadd.f32 %v4682, %v6962
  %v8606 = vadd.f32 %v4684, %v6964
  %v8607 = vadd.f32 %v4819, %v7099
  %v8608 = vadd.f32 %v4821, %v7101
  %v8609 = vadd.f32 %v4956, %v7236
  %v8610 = vadd.f32 %v4958, %v7238
  %v8611 = vadd.f32 %v5093, %v7373
  %v8612 = vadd.f32 %v5095, %v7375
  %v8613 = vadd.f32 %v5230, %v7510
  %v8614 = vadd.f32 %v5232, %v7512
  %v8615 = vadd.f32 %v5367, %v7647
  %v8616 = vadd.f32 %v5369, %v7649
  %v8617 = vadd.f32 %v5504, %v7784
  %v8618 = vadd.f32 %v5506, %v7786
  %v8619 = vadd.f32 %v5641, %v7921
  %v8620 = vadd.f32 %v5643, %v7923
  %v8621 = vadd.f32 %v5778, %v8058
  %v8622 = vadd.f32 %v5780, %v8060
  %v8623 = vadd.f32 %v5915, %v8195
  %v8624 = vadd.f32 %v5917, %v8197
  %v8625 = vadd.f32 %v6052, %v8332
  %v8626 = vadd.f32 %v6054, %v8334
  %v8627 = vadd.f32 %v6185, %v8465
  %v8628 = vadd.f32 %v4551, %v6831
  %v8629 = vadd.f32 %v4553, %v6833
  %v8630 = vadd.f32 %v4688, %v6968
  %v8631 = vadd.f32 %v4690, %v6970
  %v8632 = vadd.f32 %v4825, %v7105
  %v8633 = vadd.f32 %v4827, %v7107
  %v8634 = vadd.f32 %v4962, %v7242
  %v8635 = vadd.f32 %v4964, %v7244
  %v8636 = vadd.f32 %v5099, %v7379
  %v8637 = vadd.f32 %v5101, %v7381
  %v8638 = vadd.f32 %v5236, %v7516
  %v8639 = vadd.f32 %v5238, %v7518
  %v8640 = vadd.f32 %v5373, %v7653
  %v8641 = vadd.f32 %v5375, %v7655
  %v8642 = vadd.f32 %v5510, %v7790
  %v8643 = vadd.f32 %v5512, %v7792
  %v8644 = vadd.f32 %v5647, %v7927
  %v8645 = vadd.f32 %v5649, %v7929
  %v8646 = vadd.f32 %v5784, %v8064
  %v8647 = vadd.f32 %v5786, %v8066
  %v8648 = vadd.f32 %v5921, %v8201
  %v8649 = vadd.f32 %v5923, %v8203
  %v8650 = vadd.f32 %v6058, %v8338
  %v8651 = vadd.f32 %v6060, %v8340
  %v8652 = vadd.f32 %v6190, %v8470
  %v8653 = vadd.f32 %v4557, %v6837
  %v8654 = vadd.f32 %v4559, %v6839
  %v8655 = vadd.f32 %v4694, %v6974
  %v8656 = vadd.f32 %v4696, %v6976
  %v8657 = vadd.f32 %v4831, %v7111
  %v8658 = vadd.f32 %v4833, %v7113
  %v8659 = vadd.f32 %v4968, %v7248
  %v8660 = vadd.f32 %v4970, %v7250
  %v8661 = vadd.f32 %v5105, %v7385
  %v8662 = vadd.f32 %v5107, %v7387
  %v8663 = vadd.f32 %v5242, %v7522
  %v8664 = vadd.f32 %v5244, %v7524
  %v8665 = vadd.f32 %v5379, %v7659
  %v8666 = vadd.f32 %v5381, %v7661
  %v8667 = vadd.f32 %v5516, %v7796
  %v8668 = vadd.f32 %v5518, %v7798
  %v8669 = vadd.f32 %v5653, %v7933
  %v8670 = vadd.f32 %v5655, %v7935
  %v8671 = vadd.f32 %v5790, %v8070
  %v8672 = vadd.f32 %v5792, %v8072
  %v8673 = vadd.f32 %v5927, %v8207
  %v8674 = vadd.f32 %v5929, %v8209
  %v8675 = vadd.f32 %v6064, %v8344
  %v8676 = vadd.f32 %v6066, %v8346
  %v8677 = vadd.f32 %v6195, %v8475
  %v8678 = vadd.f32 %v4563, %v6843
  %v8679 = vadd.f32 %v4565, %v6845
  %v8680 = vadd.f32 %v4700, %v6980
  %v8681 = vadd.f32 %v4702, %v6982
  %v8682 = vadd.f32 %v4837, %v7117
  %v8683 = vadd.f32 %v4839, %v7119
  %v8684 = vadd.f32 %v4974, %v7254
  %v8685 = vadd.f32 %v4976, %v7256
  %v8686 = vadd.f32 %v5111, %v7391
  %v8687 = vadd.f32 %v5113, %v7393
  %v8688 = vadd.f32 %v5248, %v7528
  %v8689 = vadd.f32 %v5250, %v7530
  %v8690 = vadd.f32 %v5385, %v7665
  %v8691 = vadd.f32 %v5387, %v7667
  %v8692 = vadd.f32 %v5522, %v7802
  %v8693 = vadd.f32 %v5524, %v7804
  %v8694 = vadd.f32 %v5659, %v7939
  %v8695 = vadd.f32 %v5661, %v7941
  %v8696 = vadd.f32 %v5796, %v8076
  %v8697 = vadd.f32 %v5798, %v8078
  %v8698 = vadd.f32 %v5933, %v8213
  %v8699 = vadd.f32 %v5935, %v8215
  %v8700 = vadd.f32 %v6070, %v8350
  %v8701 = vadd.f32 %v6072, %v8352
  %v8702 = vadd.f32 %v6200, %v8480
  %v8703 = vadd.f32 %v4569, %v6849
  %v8704 = vadd.f32 %v4571, %v6851
  %v8705 = vadd.f32 %v4706, %v6986
  %v8706 = vadd.f32 %v4708, %v6988
  %v8707 = vadd.f32 %v4843, %v7123
  %v8708 = vadd.f32 %v4845, %v7125
  %v8709 = vadd.f32 %v4980, %v7260
  %v8710 = vadd.f32 %v4982, %v7262
  %v8711 = vadd.f32 %v5117, %v7397
  %v8712 = vadd.f32 %v5119, %v7399
  %v8713 = vadd.f32 %v5254, %v7534
  %v8714 = vadd.f32 %v5256, %v7536
  %v8715 = vadd.f32 %v5391, %v7671
  %v8716 = vadd.f32 %v5393, %v7673
  %v8717 = vadd.f32 %v5528, %v7808
  %v8718 = vadd.f32 %v5530, %v7810
  %v8719 = vadd.f32 %v5665, %v7945
  %v8720 = vadd.f32 %v5667, %v7947
  %v8721 = vadd.f32 %v5802, %v8082
  %v8722 = vadd.f32 %v5804, %v8084
  %v8723 = vadd.f32 %v5939, %v8219
  %v8724 = vadd.f32 %v5941, %v8221
  %v8725 = vadd.f32 %v6076, %v8356
  %v8726 = vadd.f32 %v6078, %v8358
  %v8727 = vadd.f32 %v6205, %v8485
  %v8728 = vadd.f32 %v4575, %v6855
  %v8729 = vadd.f32 %v4577, %v6857
  %v8730 = vadd.f32 %v4712, %v6992
  %v8731 = vadd.f32 %v4714, %v6994
  %v8732 = vadd.f32 %v4849, %v7129
  %v8733 = vadd.f32 %v4851, %v7131
  %v8734 = vadd.f32 %v4986, %v7266
  %v8735 = vadd.f32 %v4988, %v7268
  %v8736 = vadd.f32 %v5123, %v7403
  %v8737 = vadd.f32 %v5125, %v7405
  %v8738 = vadd.f32 %v5260, %v7540
  %v8739 = vadd.f32 %v5262, %v7542
  %v8740 = vadd.f32 %v5397, %v7677
  %v8741 = vadd.f32 %v5399, %v7679
  %v8742 = vadd.f32 %v5534, %v7814
  %v8743 = vadd.f32 %v5536, %v7816
  %v8744 = vadd.f32 %v5671, %v7951
  %v8745 = vadd.f32 %v5673, %v7953
  %v8746 = vadd.f32 %v5808, %v8088
  %v8747 = vadd.f32 %v5810, %v8090
  %v8748 = vadd.f32 %v5945, %v8225
  %v8749 = vadd.f32 %v5947, %v8227
  %v8750 = vadd.f32 %v6082, %v8362
  %v8751 = vadd.f32 %v6084, %v8364
  %v8752 = vadd.f32 %v6210, %v8490
  %v8753 = vadd.f32 %v4581, %v6861
  %v8754 = vadd.f32 %v4583, %v6863
  %v8755 = vadd.f32 %v4718, %v6998
  %v8756 = vadd.f32 %v4720, %v7000
  %v8757 = vadd.f32 %v4855, %v7135
  %v8758 = vadd.f32 %v4857, %v7137
  %v8759 = vadd.f32 %v4992, %v7272
  %v8760 = vadd.f32 %v4994, %v7274
  %v8761 = vadd.f32 %v5129, %v7409
  %v8762 = vadd.f32 %v5131, %v7411
  %v8763 = vadd.f32 %v5266, %v7546
  %v8764 = vadd.f32 %v5268, %v7548
  %v8765 = vadd.f32 %v5403, %v7683
  %v8766 = vadd.f32 %v5405, %v7685
  %v8767 = vadd.f32 %v5540, %v7820
  %v8768 = vadd.f32 %v5542, %v7822
  %v8769 = vadd.f32 %v5677, %v7957
  %v8770 = vadd.f32 %v5679, %v7959
  %v8771 = vadd.f32 %v5814, %v8094
  %v8772 = vadd.f32 %v5816, %v8096
  %v8773 = vadd.f32 %v5951, %v8231
  %v8774 = vadd.f32 %v5953, %v8233
  %v8775 = vadd.f32 %v6088, %v8368
  %v8776 = vadd.f32 %v6090, %v8370
  %v8777 = vadd.f32 %v6215, %v8495
  %v8778 = vadd.f32 %v4587, %v6867
  %v8779 = vadd.f32 %v4589, %v6869
  %v8780 = vadd.f32 %v4724, %v7004
  %v8781 = vadd.f32 %v4726, %v7006
  %v8782 = vadd.f32 %v4861, %v7141
  %v8783 = vadd.f32 %v4863, %v7143
  %v8784 = vadd.f32 %v4998, %v7278
  %v8785 = vadd.f32 %v5000, %v7280
  %v8786 = vadd.f32 %v5135, %v7415
  %v8787 = vadd.f32 %v5137, %v7417
  %v8788 = vadd.f32 %v5272, %v7552
  %v8789 = vadd.f32 %v5274, %v7554
  %v8790 = vadd.f32 %v5409, %v7689
  %v8791 = vadd.f32 %v5411, %v7691
  %v8792 = vadd.f32 %v5546, %v7826
  %v8793 = vadd.f32 %v5548, %v7828
  %v8794 = vadd.f32 %v5683, %v7963
  %v8795 = vadd.f32 %v5685, %v7965
  %v8796 = vadd.f32 %v5820, %v8100
  %v8797 = vadd.f32 %v5822, %v8102
  %v8798 = vadd.f32 %v5957, %v8237
  %v8799 = vadd.f32 %v5959, %v8239
  %v8800 = vadd.f32 %v6094, %v8374
  %v8801 = vadd.f32 %v6096, %v8376
  %v8802 = vadd.f32 %v6220, %v8500
  %8803 = vst [vmem:[%s2] sm:$0xff] %v8503
  %8804 = vst [vmem:[%s2 + $0x8] sm:$0xff] %v8504
  %8805 = vst [vmem:[%s2 + $0x10] sm:$0xff] %v8505
  %8806 = vst [vmem:[%s2 + $0x18] sm:$0xff] %v8506
  %8807 = vst [vmem:[%s2 + $0x20] sm:$0xff] %v8507
  %8808 = vst [vmem:[%s2 + $0x28] sm:$0xff] %v8508
  %8809 = vst [vmem:[%s2 + $0x30] sm:$0xff] %v8509
  %8810 = vst [vmem:[%s2 + $0x38] sm:$0xff] %v8510
  %8811 = vst [vmem:[%s2 + $0x40] sm:$0xff] %v8511
  %8812 = vst [vmem:[%s2 + $0x48] sm:$0xff] %v8512
  %8813 = vst [vmem:[%s2 + $0x50] sm:$0xff] %v8513
  %8814 = vst [vmem:[%s2 + $0x58] sm:$0xff] %v8514
  %8815 = vst [vmem:[%s2 + $0x60] sm:$0xff] %v8515
  %8816 = vst [vmem:[%s2 + $0x68] sm:$0xff] %v8516
  %8817 = vst [vmem:[%s2 + $0x70] sm:$0xff] %v8517
  %8818 = vst [vmem:[%s2 + $0x78] sm:$0xff] %v8518
  %8819 = vst [vmem:[%s2 + $0x80] sm:$0xff] %v8519
  %8820 = vst [vmem:[%s2 + $0x88] sm:$0xff] %v8520
  %8821 = vst [vmem:[%s2 + $0x90] sm:$0xff] %v8521
  %8822 = vst [vmem:[%s2 + $0x98] sm:$0xff] %v8522
  %8823 = vst [vmem:[%s2 + $0xa0] sm:$0xff] %v8523
  %8824 = vst [vmem:[%s2 + $0xa8] sm:$0xff] %v8524
  %8825 = vst [vmem:[%s2 + $0xb0] sm:$0xff] %v8525
  %8826 = vst [vmem:[%s2 + $0xb8] sm:$0xff] %v8526
  %vm8827 = vcmask 523264
  %8828 = vst.msk [vmem:[%s2 + $0xc0] sm:$0xff] %vm8827, %v8527
  %8829 = vst [vmem:[%s2 + $0xc8] sm:$0xff] %v8528
  %8830 = vst [vmem:[%s2 + $0xd0] sm:$0xff] %v8529
  %8831 = vst [vmem:[%s2 + $0xd8] sm:$0xff] %v8530
  %8832 = vst [vmem:[%s2 + $0xe0] sm:$0xff] %v8531
  %8833 = vst [vmem:[%s2 + $0xe8] sm:$0xff] %v8532
  %8834 = vst [vmem:[%s2 + $0xf0] sm:$0xff] %v8533
  %8835 = vst [vmem:[%s2 + $0xf8] sm:$0xff] %v8534
  %8836 = vst [vmem:[%s2 + $0x100] sm:$0xff] %v8535
  %8837 = vst [vmem:[%s2 + $0x108] sm:$0xff] %v8536
  %8838 = vst [vmem:[%s2 + $0x110] sm:$0xff] %v8537
  %8839 = vst [vmem:[%s2 + $0x118] sm:$0xff] %v8538
  %8840 = vst [vmem:[%s2 + $0x120] sm:$0xff] %v8539
  %8841 = vst [vmem:[%s2 + $0x128] sm:$0xff] %v8540
  %8842 = vst [vmem:[%s2 + $0x130] sm:$0xff] %v8541
  %8843 = vst [vmem:[%s2 + $0x138] sm:$0xff] %v8542
  %8844 = vst [vmem:[%s2 + $0x140] sm:$0xff] %v8543
  %8845 = vst [vmem:[%s2 + $0x148] sm:$0xff] %v8544
  %8846 = vst [vmem:[%s2 + $0x150] sm:$0xff] %v8545
  %8847 = vst [vmem:[%s2 + $0x158] sm:$0xff] %v8546
  %8848 = vst [vmem:[%s2 + $0x160] sm:$0xff] %v8547
  %8849 = vst [vmem:[%s2 + $0x168] sm:$0xff] %v8548
  %8850 = vst [vmem:[%s2 + $0x170] sm:$0xff] %v8549
  %8851 = vst [vmem:[%s2 + $0x178] sm:$0xff] %v8550
  %8852 = vst [vmem:[%s2 + $0x180] sm:$0xff] %v8551
  %8853 = vst.msk [vmem:[%s2 + $0x188] sm:$0xff] %vm8827, %v8552
  %8854 = vst [vmem:[%s2 + $0x190] sm:$0xff] %v8553
  %8855 = vst [vmem:[%s2 + $0x198] sm:$0xff] %v8554
  %8856 = vst [vmem:[%s2 + $0x1a0] sm:$0xff] %v8555
  %8857 = vst [vmem:[%s2 + $0x1a8] sm:$0xff] %v8556
  %8858 = vst [vmem:[%s2 + $0x1b0] sm:$0xff] %v8557
  %8859 = vst [vmem:[%s2 + $0x1b8] sm:$0xff] %v8558
  %8860 = vst [vmem:[%s2 + $0x1c0] sm:$0xff] %v8559
  %8861 = vst [vmem:[%s2 + $0x1c8] sm:$0xff] %v8560
  %8862 = vst [vmem:[%s2 + $0x1d0] sm:$0xff] %v8561
  %8863 = vst [vmem:[%s2 + $0x1d8] sm:$0xff] %v8562
  %8864 = vst [vmem:[%s2 + $0x1e0] sm:$0xff] %v8563
  %8865 = vst [vmem:[%s2 + $0x1e8] sm:$0xff] %v8564
  %8866 = vst [vmem:[%s2 + $0x1f0] sm:$0xff] %v8565
  %8867 = vst [vmem:[%s2 + $0x1f8] sm:$0xff] %v8566
  %8868 = vst [vmem:[%s2 + $0x200] sm:$0xff] %v8567
  %8869 = vst [vmem:[%s2 + $0x208] sm:$0xff] %v8568
  %8870 = vst [vmem:[%s2 + $0x210] sm:$0xff] %v8569
  %8871 = vst [vmem:[%s2 + $0x218] sm:$0xff] %v8570
  %8872 = vst [vmem:[%s2 + $0x220] sm:$0xff] %v8571
  %8873 = vst [vmem:[%s2 + $0x228] sm:$0xff] %v8572
  %8874 = vst [vmem:[%s2 + $0x230] sm:$0xff] %v8573
  %8875 = vst [vmem:[%s2 + $0x238] sm:$0xff] %v8574
  %8876 = vst [vmem:[%s2 + $0x240] sm:$0xff] %v8575
  %8877 = vst [vmem:[%s2 + $0x248] sm:$0xff] %v8576
  %8878 = vst.msk [vmem:[%s2 + $0x250] sm:$0xff] %vm8827, %v8577
  %8879 = vst [vmem:[%s2 + $0x258] sm:$0xff] %v8578
  %8880 = vst [vmem:[%s2 + $0x260] sm:$0xff] %v8579
  %8881 = vst [vmem:[%s2 + $0x268] sm:$0xff] %v8580
  %8882 = vst [vmem:[%s2 + $0x270] sm:$0xff] %v8581
  %8883 = vst [vmem:[%s2 + $0x278] sm:$0xff] %v8582
  %8884 = vst [vmem:[%s2 + $0x280] sm:$0xff] %v8583
  %8885 = vst [vmem:[%s2 + $0x288] sm:$0xff] %v8584
  %8886 = vst [vmem:[%s2 + $0x290] sm:$0xff] %v8585
  %8887 = vst [vmem:[%s2 + $0x298] sm:$0xff] %v8586
  %8888 = vst [vmem:[%s2 + $0x2a0] sm:$0xff] %v8587
  %8889 = vst [vmem:[%s2 + $0x2a8] sm:$0xff] %v8588
  %8890 = vst [vmem:[%s2 + $0x2b0] sm:$0xff] %v8589
  %8891 = vst [vmem:[%s2 + $0x2b8] sm:$0xff] %v8590
  %8892 = vst [vmem:[%s2 + $0x2c0] sm:$0xff] %v8591
  %8893 = vst [vmem:[%s2 + $0x2c8] sm:$0xff] %v8592
  %8894 = vst [vmem:[%s2 + $0x2d0] sm:$0xff] %v8593
  %8895 = vst [vmem:[%s2 + $0x2d8] sm:$0xff] %v8594
  %8896 = vst [vmem:[%s2 + $0x2e0] sm:$0xff] %v8595
  %8897 = vst [vmem:[%s2 + $0x2e8] sm:$0xff] %v8596
  %8898 = vst [vmem:[%s2 + $0x2f0] sm:$0xff] %v8597
  %8899 = vst [vmem:[%s2 + $0x2f8] sm:$0xff] %v8598
  %8900 = vst [vmem:[%s2 + $0x300] sm:$0xff] %v8599
  %8901 = vst [vmem:[%s2 + $0x308] sm:$0xff] %v8600
  %8902 = vst [vmem:[%s2 + $0x310] sm:$0xff] %v8601
  %8903 = vst.msk [vmem:[%s2 + $0x318] sm:$0xff] %vm8827, %v8602
  %8904 = vst [vmem:[%s2 + $0x320] sm:$0xff] %v8603
  %8905 = vst [vmem:[%s2 + $0x328] sm:$0xff] %v8604
  %8906 = vst [vmem:[%s2 + $0x330] sm:$0xff] %v8605
  %8907 = vst [vmem:[%s2 + $0x338] sm:$0xff] %v8606
  %8908 = vst [vmem:[%s2 + $0x340] sm:$0xff] %v8607
  %8909 = vst [vmem:[%s2 + $0x348] sm:$0xff] %v8608
  %8910 = vst [vmem:[%s2 + $0x350] sm:$0xff] %v8609
  %8911 = vst [vmem:[%s2 + $0x358] sm:$0xff] %v8610
  %8912 = vst [vmem:[%s2 + $0x360] sm:$0xff] %v8611
  %8913 = vst [vmem:[%s2 + $0x368] sm:$0xff] %v8612
  %8914 = vst [vmem:[%s2 + $0x370] sm:$0xff] %v8613
  %8915 = vst [vmem:[%s2 + $0x378] sm:$0xff] %v8614
  %8916 = vst [vmem:[%s2 + $0x380] sm:$0xff] %v8615
  %8917 = vst [vmem:[%s2 + $0x388] sm:$0xff] %v8616
  %8918 = vst [vmem:[%s2 + $0x390] sm:$0xff] %v8617
  %8919 = vst [vmem:[%s2 + $0x398] sm:$0xff] %v8618
  %8920 = vst [vmem:[%s2 + $0x3a0] sm:$0xff] %v8619
  %8921 = vst [vmem:[%s2 + $0x3a8] sm:$0xff] %v8620
  %8922 = vst [vmem:[%s2 + $0x3b0] sm:$0xff] %v8621
  %8923 = vst [vmem:[%s2 + $0x3b8] sm:$0xff] %v8622
  %8924 = vst [vmem:[%s2 + $0x3c0] sm:$0xff] %v8623
  %8925 = vst [vmem:[%s2 + $0x3c8] sm:$0xff] %v8624
  %8926 = vst [vmem:[%s2 + $0x3d0] sm:$0xff] %v8625
  %8927 = vst [vmem:[%s2 + $0x3d8] sm:$0xff] %v8626
  %8928 = vst.msk [vmem:[%s2 + $0x3e0] sm:$0xff] %vm8827, %v8627
  %8929 = vst [vmem:[%s2 + $0x3e8] sm:$0xff] %v8628
  %8930 = vst [vmem:[%s2 + $0x3f0] sm:$0xff] %v8629
  %8931 = vst [vmem:[%s2 + $0x3f8] sm:$0xff] %v8630
  %8932 = vst [vmem:[%s2 + $0x400] sm:$0xff] %v8631
  %8933 = vst [vmem:[%s2 + $0x408] sm:$0xff] %v8632
  %8934 = vst [vmem:[%s2 + $0x410] sm:$0xff] %v8633
  %8935 = vst [vmem:[%s2 + $0x418] sm:$0xff] %v8634
  %8936 = vst [vmem:[%s2 + $0x420] sm:$0xff] %v8635
  %8937 = vst [vmem:[%s2 + $0x428] sm:$0xff] %v8636
  %8938 = vst [vmem:[%s2 + $0x430] sm:$0xff] %v8637
  %8939 = vst [vmem:[%s2 + $0x438] sm:$0xff] %v8638
  %8940 = vst [vmem:[%s2 + $0x440] sm:$0xff] %v8639
  %8941 = vst [vmem:[%s2 + $0x448] sm:$0xff] %v8640
  %8942 = vst [vmem:[%s2 + $0x450] sm:$0xff] %v8641
  %8943 = vst [vmem:[%s2 + $0x458] sm:$0xff] %v8642
  %8944 = vst [vmem:[%s2 + $0x460] sm:$0xff] %v8643
  %8945 = vst [vmem:[%s2 + $0x468] sm:$0xff] %v8644
  %8946 = vst [vmem:[%s2 + $0x470] sm:$0xff] %v8645
  %8947 = vst [vmem:[%s2 + $0x478] sm:$0xff] %v8646
  %8948 = vst [vmem:[%s2 + $0x480] sm:$0xff] %v8647
  %8949 = vst [vmem:[%s2 + $0x488] sm:$0xff] %v8648
  %8950 = vst [vmem:[%s2 + $0x490] sm:$0xff] %v8649
  %8951 = vst [vmem:[%s2 + $0x498] sm:$0xff] %v8650
  %8952 = vst [vmem:[%s2 + $0x4a0] sm:$0xff] %v8651
  %8953 = vst.msk [vmem:[%s2 + $0x4a8] sm:$0xff] %vm8827, %v8652
  %8954 = vst [vmem:[%s2 + $0x4b0] sm:$0xff] %v8653
  %8955 = vst [vmem:[%s2 + $0x4b8] sm:$0xff] %v8654
  %8956 = vst [vmem:[%s2 + $0x4c0] sm:$0xff] %v8655
  %8957 = vst [vmem:[%s2 + $0x4c8] sm:$0xff] %v8656
  %8958 = vst [vmem:[%s2 + $0x4d0] sm:$0xff] %v8657
  %8959 = vst [vmem:[%s2 + $0x4d8] sm:$0xff] %v8658
  %8960 = vst [vmem:[%s2 + $0x4e0] sm:$0xff] %v8659
  %8961 = vst [vmem:[%s2 + $0x4e8] sm:$0xff] %v8660
  %8962 = vst [vmem:[%s2 + $0x4f0] sm:$0xff] %v8661
  %8963 = vst [vmem:[%s2 + $0x4f8] sm:$0xff] %v8662
  %8964 = vst [vmem:[%s2 + $0x500] sm:$0xff] %v8663
  %8965 = vst [vmem:[%s2 + $0x508] sm:$0xff] %v8664
  %8966 = vst [vmem:[%s2 + $0x510] sm:$0xff] %v8665
  %8967 = vst [vmem:[%s2 + $0x518] sm:$0xff] %v8666
  %8968 = vst [vmem:[%s2 + $0x520] sm:$0xff] %v8667
  %8969 = vst [vmem:[%s2 + $0x528] sm:$0xff] %v8668
  %8970 = vst [vmem:[%s2 + $0x530] sm:$0xff] %v8669
  %8971 = vst [vmem:[%s2 + $0x538] sm:$0xff] %v8670
  %8972 = vst [vmem:[%s2 + $0x540] sm:$0xff] %v8671
  %8973 = vst [vmem:[%s2 + $0x548] sm:$0xff] %v8672
  %8974 = vst [vmem:[%s2 + $0x550] sm:$0xff] %v8673
  %8975 = vst [vmem:[%s2 + $0x558] sm:$0xff] %v8674
  %8976 = vst [vmem:[%s2 + $0x560] sm:$0xff] %v8675
  %8977 = vst [vmem:[%s2 + $0x568] sm:$0xff] %v8676
  %8978 = vst.msk [vmem:[%s2 + $0x570] sm:$0xff] %vm8827, %v8677
  %8979 = vst [vmem:[%s2 + $0x578] sm:$0xff] %v8678
  %8980 = vst [vmem:[%s2 + $0x580] sm:$0xff] %v8679
  %8981 = vst [vmem:[%s2 + $0x588] sm:$0xff] %v8680
  %8982 = vst [vmem:[%s2 + $0x590] sm:$0xff] %v8681
  %8983 = vst [vmem:[%s2 + $0x598] sm:$0xff] %v8682
  %8984 = vst [vmem:[%s2 + $0x5a0] sm:$0xff] %v8683
  %8985 = vst [vmem:[%s2 + $0x5a8] sm:$0xff] %v8684
  %8986 = vst [vmem:[%s2 + $0x5b0] sm:$0xff] %v8685
  %8987 = vst [vmem:[%s2 + $0x5b8] sm:$0xff] %v8686
  %8988 = vst [vmem:[%s2 + $0x5c0] sm:$0xff] %v8687
  %8989 = vst [vmem:[%s2 + $0x5c8] sm:$0xff] %v8688
  %8990 = vst [vmem:[%s2 + $0x5d0] sm:$0xff] %v8689
  %8991 = vst [vmem:[%s2 + $0x5d8] sm:$0xff] %v8690
  %8992 = vst [vmem:[%s2 + $0x5e0] sm:$0xff] %v8691
  %8993 = vst [vmem:[%s2 + $0x5e8] sm:$0xff] %v8692
  %8994 = vst [vmem:[%s2 + $0x5f0] sm:$0xff] %v8693
  %8995 = vst [vmem:[%s2 + $0x5f8] sm:$0xff] %v8694
  %8996 = vst [vmem:[%s2 + $0x600] sm:$0xff] %v8695
  %8997 = vst [vmem:[%s2 + $0x608] sm:$0xff] %v8696
  %8998 = vst [vmem:[%s2 + $0x610] sm:$0xff] %v8697
  %8999 = vst [vmem:[%s2 + $0x618] sm:$0xff] %v8698
  %9000 = vst [vmem:[%s2 + $0x620] sm:$0xff] %v8699
  %9001 = vst [vmem:[%s2 + $0x628] sm:$0xff] %v8700
  %9002 = vst [vmem:[%s2 + $0x630] sm:$0xff] %v8701
  %9003 = vst.msk [vmem:[%s2 + $0x638] sm:$0xff] %vm8827, %v8702
  %9004 = vst [vmem:[%s2 + $0x640] sm:$0xff] %v8703
  %9005 = vst [vmem:[%s2 + $0x648] sm:$0xff] %v8704
  %9006 = vst [vmem:[%s2 + $0x650] sm:$0xff] %v8705
  %9007 = vst [vmem:[%s2 + $0x658] sm:$0xff] %v8706
  %9008 = vst [vmem:[%s2 + $0x660] sm:$0xff] %v8707
  %9009 = vst [vmem:[%s2 + $0x668] sm:$0xff] %v8708
  %9010 = vst [vmem:[%s2 + $0x670] sm:$0xff] %v8709
  %9011 = vst [vmem:[%s2 + $0x678] sm:$0xff] %v8710
  %9012 = vst [vmem:[%s2 + $0x680] sm:$0xff] %v8711
  %9013 = vst [vmem:[%s2 + $0x688] sm:$0xff] %v8712
  %9014 = vst [vmem:[%s2 + $0x690] sm:$0xff] %v8713
  %9015 = vst [vmem:[%s2 + $0x698] sm:$0xff] %v8714
  %9016 = vst [vmem:[%s2 + $0x6a0] sm:$0xff] %v8715
  %9017 = vst [vmem:[%s2 + $0x6a8] sm:$0xff] %v8716
  %9018 = vst [vmem:[%s2 + $0x6b0] sm:$0xff] %v8717
  %9019 = vst [vmem:[%s2 + $0x6b8] sm:$0xff] %v8718
  %9020 = vst [vmem:[%s2 + $0x6c0] sm:$0xff] %v8719
  %9021 = vst [vmem:[%s2 + $0x6c8] sm:$0xff] %v8720
  %9022 = vst [vmem:[%s2 + $0x6d0] sm:$0xff] %v8721
  %9023 = vst [vmem:[%s2 + $0x6d8] sm:$0xff] %v8722
  %9024 = vst [vmem:[%s2 + $0x6e0] sm:$0xff] %v8723
  %9025 = vst [vmem:[%s2 + $0x6e8] sm:$0xff] %v8724
  %9026 = vst [vmem:[%s2 + $0x6f0] sm:$0xff] %v8725
  %9027 = vst [vmem:[%s2 + $0x6f8] sm:$0xff] %v8726
  %9028 = vst.msk [vmem:[%s2 + $0x700] sm:$0xff] %vm8827, %v8727
  %9029 = vst [vmem:[%s2 + $0x708] sm:$0xff] %v8728
  %9030 = vst [vmem:[%s2 + $0x710] sm:$0xff] %v8729
  %9031 = vst [vmem:[%s2 + $0x718] sm:$0xff] %v8730
  %9032 = vst [vmem:[%s2 + $0x720] sm:$0xff] %v8731
  %9033 = vst [vmem:[%s2 + $0x728] sm:$0xff] %v8732
  %9034 = vst [vmem:[%s2 + $0x730] sm:$0xff] %v8733
  %9035 = vst [vmem:[%s2 + $0x738] sm:$0xff] %v8734
  %9036 = vst [vmem:[%s2 + $0x740] sm:$0xff] %v8735
  %9037 = vst [vmem:[%s2 + $0x748] sm:$0xff] %v8736
  %9038 = vst [vmem:[%s2 + $0x750] sm:$0xff] %v8737
  %9039 = vst [vmem:[%s2 + $0x758] sm:$0xff] %v8738
  %9040 = vst [vmem:[%s2 + $0x760] sm:$0xff] %v8739
  %9041 = vst [vmem:[%s2 + $0x768] sm:$0xff] %v8740
  %9042 = vst [vmem:[%s2 + $0x770] sm:$0xff] %v8741
  %9043 = vst [vmem:[%s2 + $0x778] sm:$0xff] %v8742
  %9044 = vst [vmem:[%s2 + $0x780] sm:$0xff] %v8743
  %9045 = vst [vmem:[%s2 + $0x788] sm:$0xff] %v8744
  %9046 = vst [vmem:[%s2 + $0x790] sm:$0xff] %v8745
  %9047 = vst [vmem:[%s2 + $0x798] sm:$0xff] %v8746
  %9048 = vst [vmem:[%s2 + $0x7a0] sm:$0xff] %v8747
  %9049 = vst [vmem:[%s2 + $0x7a8] sm:$0xff] %v8748
  %9050 = vst [vmem:[%s2 + $0x7b0] sm:$0xff] %v8749
  %9051 = vst [vmem:[%s2 + $0x7b8] sm:$0xff] %v8750
  %9052 = vst [vmem:[%s2 + $0x7c0] sm:$0xff] %v8751
  %9053 = vst.msk [vmem:[%s2 + $0x7c8] sm:$0xff] %vm8827, %v8752
  %9054 = vst [vmem:[%s2 + $0x7d0] sm:$0xff] %v8753
  %9055 = vst [vmem:[%s2 + $0x7d8] sm:$0xff] %v8754
  %9056 = vst [vmem:[%s2 + $0x7e0] sm:$0xff] %v8755
  %9057 = vst [vmem:[%s2 + $0x7e8] sm:$0xff] %v8756
  %9058 = vst [vmem:[%s2 + $0x7f0] sm:$0xff] %v8757
  %9059 = vst [vmem:[%s2 + $0x7f8] sm:$0xff] %v8758
  %9060 = vst [vmem:[%s2 + $0x800] sm:$0xff] %v8759
  %9061 = vst [vmem:[%s2 + $0x808] sm:$0xff] %v8760
  %9062 = vst [vmem:[%s2 + $0x810] sm:$0xff] %v8761
  %9063 = vst [vmem:[%s2 + $0x818] sm:$0xff] %v8762
  %9064 = vst [vmem:[%s2 + $0x820] sm:$0xff] %v8763
  %9065 = vst [vmem:[%s2 + $0x828] sm:$0xff] %v8764
  %9066 = vst [vmem:[%s2 + $0x830] sm:$0xff] %v8765
  %9067 = vst [vmem:[%s2 + $0x838] sm:$0xff] %v8766
  %9068 = vst [vmem:[%s2 + $0x840] sm:$0xff] %v8767
  %9069 = vst [vmem:[%s2 + $0x848] sm:$0xff] %v8768
  %9070 = vst [vmem:[%s2 + $0x850] sm:$0xff] %v8769
  %9071 = vst [vmem:[%s2 + $0x858] sm:$0xff] %v8770
  %9072 = vst [vmem:[%s2 + $0x860] sm:$0xff] %v8771
  %9073 = vst [vmem:[%s2 + $0x868] sm:$0xff] %v8772
  %9074 = vst [vmem:[%s2 + $0x870] sm:$0xff] %v8773
  %9075 = vst [vmem:[%s2 + $0x878] sm:$0xff] %v8774
  %9076 = vst [vmem:[%s2 + $0x880] sm:$0xff] %v8775
  %9077 = vst [vmem:[%s2 + $0x888] sm:$0xff] %v8776
  %9078 = vst.msk [vmem:[%s2 + $0x890] sm:$0xff] %vm8827, %v8777
  %9079 = vst [vmem:[%s2 + $0x898] sm:$0xff] %v8778
  %9080 = vst [vmem:[%s2 + $0x8a0] sm:$0xff] %v8779
  %9081 = vst [vmem:[%s2 + $0x8a8] sm:$0xff] %v8780
  %9082 = vst [vmem:[%s2 + $0x8b0] sm:$0xff] %v8781
  %9083 = vst [vmem:[%s2 + $0x8b8] sm:$0xff] %v8782
  %9084 = vst [vmem:[%s2 + $0x8c0] sm:$0xff] %v8783
  %9085 = vst [vmem:[%s2 + $0x8c8] sm:$0xff] %v8784
  %9086 = vst [vmem:[%s2 + $0x8d0] sm:$0xff] %v8785
  %9087 = vst [vmem:[%s2 + $0x8d8] sm:$0xff] %v8786
  %9088 = vst [vmem:[%s2 + $0x8e0] sm:$0xff] %v8787
  %9089 = vst [vmem:[%s2 + $0x8e8] sm:$0xff] %v8788
  %9090 = vst [vmem:[%s2 + $0x8f0] sm:$0xff] %v8789
  %9091 = vst [vmem:[%s2 + $0x8f8] sm:$0xff] %v8790
  %9092 = vst [vmem:[%s2 + $0x900] sm:$0xff] %v8791
  %9093 = vst [vmem:[%s2 + $0x908] sm:$0xff] %v8792
  %9094 = vst [vmem:[%s2 + $0x910] sm:$0xff] %v8793
  %9095 = vst [vmem:[%s2 + $0x918] sm:$0xff] %v8794
  %9096 = vst [vmem:[%s2 + $0x920] sm:$0xff] %v8795
  %9097 = vst [vmem:[%s2 + $0x928] sm:$0xff] %v8796
  %9098 = vst [vmem:[%s2 + $0x930] sm:$0xff] %v8797
  %9099 = vst [vmem:[%s2 + $0x938] sm:$0xff] %v8798
  %9100 = vst [vmem:[%s2 + $0x940] sm:$0xff] %v8799
  %9101 = vst [vmem:[%s2 + $0x948] sm:$0xff] %v8800
  %9102 = vst [vmem:[%s2 + $0x950] sm:$0xff] %v8801
  %9103 = vst.msk [vmem:[%s2 + $0x958] sm:$0xff] %vm8827, %v8802
  // Predicated region
  $region10: #{kernel_generated_1_forward.1} parent=0 // pred_check
    _
  $region11: #{kernel_generated_1_forward.1} parent=0 // pred_check_branch
    %9105 = sbr.rel (0) target = $region13
  $region12: #{kernel_generated_1_forward.1} parent=0 // pred_region
    _
  $region13: #{kernel_generated_1_forward.1} parent=0 // pred_fallthru
    _
  // Predicated region
  $region14: #{kernel_generated_1_forward.1} parent=0 // pred_check
    _
  $region15: #{kernel_generated_1_forward.1} parent=0 // pred_check_branch
    %9107 = sbr.rel (0) target = $region17
  $region16: #{kernel_generated_1_forward.1} parent=0 // pred_region
    _
  $region17: #{kernel_generated_1_forward.1} parent=0 // pred_fallthru
    _

</llo_original>
